<compile_context>
chip_gen: v7x
topology: tpu7x:2x2x1
jax: 0.10.0
libtpu: 0.0.40
codegen_flags: <defaults>
</compile_context>

<pallas_src>
import functools

import jax
import jax.numpy as jnp
from jax.experimental import pallas as pl
from jax.experimental.pallas import tpu as pltpu

NUM_LAYERS = 6
BN_EPS = 1e-5


def _identity_stack_kernel(x_ref, w_ref, b_ref, g_ref, be_ref, o_ref,
                           *, num_layers, C, N, H, W, eps):
    """Fused 6-layer ZeroConvBatchNorm stack + residual in one kernel invocation.

    x_ref  : (N, C, H*W)        activations, NCHW with spatial flattened on the lane axis (VMEM f32)
    w_ref  : (L*9*Cin, Cout, 1) conv-weight columns w[l, :, ci, kh, kw] on the sublane axis (VMEM)
    b_ref  : (L, C, 1)          conv biases (VMEM)
    g_ref  : (L, C, 1)          BN gamma    (VMEM)
    be_ref : (L, C, 1)          BN beta     (VMEM)
    o_ref  : (N, C, H*W)        output (VMEM)
    """
    HW = H * W
    inv_cnt = 1.0 / float(N * HW)

    # ---- 4 base border masks, batch/channel-invariant (1,1,HW); corners AND'ed on the fly ----
    lane = jax.lax.broadcasted_iota(jnp.int32, (1, 1, HW), 2)
    if (W & (W - 1)) == 0:
        col = lane & (W - 1)              # w coordinate (power-of-two fast path, no vector div)
    else:
        col = lane % W
    row_lo_ok = lane >= W                 # h-1 >= 0
    row_hi_ok = lane < (H - 1) * W        # h+1 <  H
    col_lo_ok = col >= 1                  # w-1 >= 0
    col_hi_ok = col <= W - 2              # w+1 <  W

    def tap_mask(dh, dw):                 # None => tap never leaves the image (center column/row)
        m = None
        if dh == -1:
            m = row_lo_ok
        elif dh == 1:
            m = row_hi_ok
        if dw == -1:
            m = col_lo_ok if m is None else m & col_lo_ok
        elif dw == 1:
            m = col_hi_ok if m is None else m & col_hi_ok
        return m

    # Residual stays resident in vregs for the whole kernel (single load, no second HBM trip).
    x0 = x_ref[...]                       # (N, C, HW), already float32
    cur = x0

    # Straight-line unroll over layers; switch to lax.fori_loop only if a bundle dump shows
    # real vld/vst spill traffic (per review).
    for l in range(num_layers):
        # ---- Conv2d(C, C, 3, stride=1, padding=1) ----
        # One roll + one masked select per tap, shared across ALL channels & batches, then a
        # broadcast FMA per (tap, ci) that writes every output channel at once.
        acc = None
        for kh in range(3):
            dh = kh - 1
            for kw in range(3):
                dw = kw - 1
                off = dh * W + dw
                if off == 0:
                    sh = cur
                else:
                    # shifted[..., p] = cur[..., p + off] (np.roll convention), rolled ONLY along
                    # the flattened lane (H*W) axis; border wrap is zeroed by the mask.
                    sh = pltpu.roll(cur, shift=(-off) % HW, axis=2)
                    sh = jnp.where(tap_mask(dh, dw), sh, 0.0)
                for ci in range(C):
                    w_col = w_ref[((l * 3 + kh) * 3 + kw) * C + ci]     # (Cout, 1) = w[l,:,ci,kh,kw]
                    contrib = sh[:, ci:ci + 1, :] * w_col               # (N,1,HW)*(Cout,1)->(N,C,HW)
                    acc = contrib if acc is None else acc + contrib

        y = acc + b_ref[l]                                              # (N, C, HW) conv output

        # ---- BatchNorm2d (training mode): biased batch stats over (N, H, W), all C fused ----
        yy = jnp.concatenate([y, y * y], axis=1)                        # (N, 2C, HW)
        s = jnp.sum(jnp.sum(yy, axis=2, keepdims=True), axis=0, keepdims=True)   # (1, 2C, 1)
        s1 = s[:, :C, :]                                                # sum(y)    per channel
        s2 = s[:, C:, :]                                                # sum(y*y)  per channel
        mean = s1 * inv_cnt
        var = jnp.maximum(s2 * inv_cnt - mean * mean, 0.0)              # clamp one-pass cancellation
        scale = g_ref[l] * jax.lax.rsqrt(var + eps)                     # (1, C, 1); rsqrt -> EUP
        shift = be_ref[l] - mean * scale
        cur = y * scale + shift                                         # folded BN: 1 FMA / element

    # forward: identity_module(x) + x  — single stacked store.
    o_ref[...] = cur + x0


def identity_mapping_forward(x_nchw, conv_w, conv_b, bn_gamma, bn_beta):
    """x_nchw: (N,C,H,W); conv_w: (L,Cout,Cin,3,3); conv_b/bn_gamma/bn_beta: (L,C)."""
    N, C, H, W = x_nchw.shape
    L = conv_w.shape[0]
    HW = H * W

    # Activations: PURE reshape of NCHW (row-major bitcast) — no transpose, no extra HBM pass.
    x3 = x_nchw.astype(jnp.float32).reshape(N, C, HW)

    # Parameter prep (a few KiB total, negligible; in real use this is folded into weight init):
    # per-(l,kh,kw,ci) weight column over the Cout sublane axis, so one FMA hits all Cout.
    w_cols = jnp.transpose(conv_w.astype(jnp.float32), (0, 3, 4, 2, 1)).reshape(L * 9 * C, C, 1)
    b_col = conv_b.astype(jnp.float32).reshape(L, C, 1)
    g_col = bn_gamma.astype(jnp.float32).reshape(L, C, 1)
    be_col = bn_beta.astype(jnp.float32).reshape(L, C, 1)

    kernel = functools.partial(_identity_stack_kernel, num_layers=L, C=C, N=N, H=H, W=W,
                               eps=BN_EPS)

    flops = 2 * 9 * C * C * N * HW * L + 12 * C * N * HW * L            # conv FMAs + BN/residual
    bytes_accessed = 2 * N * C * HW * 4 + 4 * (w_cols.size + b_col.size + g_col.size + be_col.size)

    out = pl.pallas_call(
        kernel,
        out_shape=jax.ShapeDtypeStruct((N, C, HW), jnp.float32),
        in_specs=[
            pl.BlockSpec(memory_space=pltpu.MemorySpace.VMEM),   # activations (whole array)
            pl.BlockSpec(memory_space=pltpu.MemorySpace.VMEM),   # conv weight columns
            pl.BlockSpec(memory_space=pltpu.MemorySpace.VMEM),   # conv biases
            pl.BlockSpec(memory_space=pltpu.MemorySpace.VMEM),   # BN gamma
            pl.BlockSpec(memory_space=pltpu.MemorySpace.VMEM),   # BN beta
        ],
        out_specs=pl.BlockSpec(memory_space=pltpu.MemorySpace.VMEM),
        cost_estimate=pl.CostEstimate(flops=int(flops), transcendentals=int(L * C),
                                      bytes_accessed=int(bytes_accessed)),
        # Single grid-less invocation: at (2,3,16,16) the whole problem is a few KiB of VMEM.
        # TODO(synk): for large N/H/W, add a grid over N (or 8-row H strips with a 1-row halo),
        # mark it "parallel" (2 TCs on v7x), derive block size from
        # pltpu.get_tpu_info().vmem_capacity_bytes (64 MiB v7x vs 128 MiB v5e/v6e) and set
        # pltpu.CompilerParams(vmem_limit_bytes=...) with double-buffering headroom.
    )(x3, w_cols, b_col, g_col, be_col)

    return out.reshape(N, C, H, W)                                      # pure reshape back to NCHW


def _reference_forward(x, conv_w, conv_b, bn_gamma, bn_beta, eps=BN_EPS):
    """Pure-JAX (XLA) reference of the PyTorch module forward (train-mode BN)."""
    out = x.astype(jnp.float32)
    L = conv_w.shape[0]
    for l in range(L):
        y = jax.lax.conv_general_dilated(
            out, conv_w[l].astype(jnp.float32), window_strides=(1, 1), padding="SAME",
            dimension_numbers=("NCHW", "OIHW", "NCHW"),
            precision=jax.lax.Precision.HIGHEST)
        y = y + conv_b[l][None, :, None, None]
        mean = jnp.mean(y, axis=(0, 2, 3), keepdims=True)
        var = jnp.mean(jnp.square(y - mean), axis=(0, 2, 3), keepdims=True)
        y = (y - mean) * jax.lax.rsqrt(var + eps)
        out = y * bn_gamma[l][None, :, None, None] + bn_beta[l][None, :, None, None]
    return out + x


if __name__ == "__main__":
    key = jax.random.PRNGKey(0)
    k_x, k_b, k_w = jax.random.split(key, 3)

    # hidden_channels = 3 in the reference module; small deterministic shapes.
    N, C, H, W = 2, 3, 16, 16
    L = NUM_LAYERS

    x = jax.random.normal(k_x, (N, C, H, W), dtype=jnp.float32)

    # Module-spec parameters: conv weights filled with 0 (ZeroConvBatchNorm.__init__), biases
    # use torch's default uniform(-1/sqrt(fan_in), 1/sqrt(fan_in)) with fan_in = C*3*3, and
    # BatchNorm affine is (gamma=1, beta=0).
    conv_w = jnp.zeros((L, C, C, 3, 3), jnp.float32)        # (L, Cout, Cin, KH, KW)
    bound = 1.0 / float((C * 3 * 3) ** 0.5)
    conv_b = jax.random.uniform(k_b, (L, C), jnp.float32, -bound, bound)
    bn_gamma = jnp.ones((L, C), jnp.float32)
    bn_beta = jnp.zeros((L, C), jnp.float32)

    out = jax.block_until_ready(identity_mapping_forward(x, conv_w, conv_b, bn_gamma, bn_beta))
    assert out.shape == x.shape
    # Zero conv weights + train-mode BN collapse every layer's output to ~0, so the module is
    # (numerically) an identity mapping: out ≈ x.
    assert bool(jnp.allclose(out, x, atol=1e-2)), "identity-mapping check failed"

    # Also exercise the general conv/BN path (non-zero weights) against a pure-JAX reference.
    conv_w_rand = 0.1 * jax.random.normal(k_w, (L, C, C, 3, 3), dtype=jnp.float32)
    out_rand = jax.block_until_ready(
        identity_mapping_forward(x, conv_w_rand, conv_b, bn_gamma, bn_beta))
    ref_rand = _reference_forward(x, conv_w_rand, conv_b, bn_gamma, bn_beta)
    assert bool(jnp.allclose(out_rand, ref_rand, atol=2e-3, rtol=2e-3)), \
        "conv/BN path mismatch vs JAX reference"

    print("KERNEL_OK")
</pallas_src>

<mosaic_0001>
module attributes {stable_mosaic.version = 11 : i64} {
  func.func @_identity_stack_kernel(%arg0: memref<2x3x256xf32, #tpu.memory_space<vmem>>, %arg1: memref<162x3x1xf32, #tpu.memory_space<vmem>>, %arg2: memref<6x3x1xf32, #tpu.memory_space<vmem>>, %arg3: memref<6x3x1xf32, #tpu.memory_space<vmem>>, %arg4: memref<6x3x1xf32, #tpu.memory_space<vmem>>, %arg5: memref<2x3x256xf32, #tpu.memory_space<vmem>>) attributes {dimension_semantics = [], scalar_prefetch = 0 : i64, scratch_operands = 0 : i64, tpu.core_type = #tpu.core_type<tc>} {
    %0 = tpu.iota {dimensions = array<i32: 2>} : vector<1x1x256xi32>
    %c15_i32 = arith.constant 15 : i32
    %1 = vector.broadcast %c15_i32 : i32 to vector<1x1x256xi32>
    %2 = arith.andi %0, %1 : vector<1x1x256xi32>
    %c16_i32 = arith.constant 16 : i32
    %3 = vector.broadcast %c16_i32 : i32 to vector<1x1x256xi32>
    %4 = arith.cmpi sge, %0, %3 : vector<1x1x256xi32>
    %c240_i32 = arith.constant 240 : i32
    %5 = vector.broadcast %c240_i32 : i32 to vector<1x1x256xi32>
    %6 = arith.cmpi slt, %0, %5 : vector<1x1x256xi32>
    %c1_i32 = arith.constant 1 : i32
    %7 = vector.broadcast %c1_i32 : i32 to vector<1x1x256xi32>
    %8 = arith.cmpi sge, %2, %7 : vector<1x1x256xi32>
    %c14_i32 = arith.constant 14 : i32
    %9 = vector.broadcast %c14_i32 : i32 to vector<1x1x256xi32>
    %10 = arith.cmpi sle, %2, %9 : vector<1x1x256xi32>
    %c0 = arith.constant 0 : index
    %c0_0 = arith.constant 0 : index
    %c0_1 = arith.constant 0 : index
    %11 = vector.load %arg0[%c0, %c0_0, %c0_1] : memref<2x3x256xf32, #tpu.memory_space<vmem>>, vector<2x3x256xf32>
    %c17_i32 = arith.constant 17 : i32
    %12 = tpu.dynamic_rotate %11 by %c17_i32 dim 2 : vector<2x3x256xf32>, i32 -> vector<2x3x256xf32>
    %13 = arith.andi %4, %8 : vector<1x1x256xi1>
    %cst = arith.constant 0.000000e+00 : f32
    %14 = vector.shape_cast %13 : vector<1x1x256xi1> to vector<1x1x256xi1>
    %15 = vector.broadcast %14 : vector<1x1x256xi1> to vector<2x3x256xi1>
    %16 = vector.broadcast %cst : f32 to vector<2x3x256xf32>
    %17 = arith.select %15, %12, %16 : vector<2x3x256xi1>, vector<2x3x256xf32>
    %c0_2 = arith.constant 0 : index
    %c0_3 = arith.constant 0 : index
    %c0_4 = arith.constant 0 : index
    %18 = vector.load %arg1[%c0_2, %c0_3, %c0_4] : memref<162x3x1xf32, #tpu.memory_space<vmem>>, vector<1x3x1xf32>
    %19 = vector.shape_cast %18 : vector<1x3x1xf32> to vector<3x1xf32>
    %20 = vector.extract_strided_slice %17 {offsets = [0, 0, 0], sizes = [2, 1, 256], strides = [1, 1, 1]} : vector<2x3x256xf32> to vector<2x1x256xf32>
    %21 = vector.shape_cast %19 : vector<3x1xf32> to vector<1x3x1xf32>
    %22 = vector.broadcast %20 : vector<2x1x256xf32> to vector<2x3x256xf32>
    %23 = vector.broadcast %21 : vector<1x3x1xf32> to vector<2x3x256xf32>
    %24 = arith.mulf %22, %23 : vector<2x3x256xf32>
    %c1 = arith.constant 1 : index
    %c0_5 = arith.constant 0 : index
    %c0_6 = arith.constant 0 : index
    %25 = vector.load %arg1[%c1, %c0_5, %c0_6] : memref<162x3x1xf32, #tpu.memory_space<vmem>>, vector<1x3x1xf32>
    %26 = vector.shape_cast %25 : vector<1x3x1xf32> to vector<3x1xf32>
    %27 = vector.extract_strided_slice %17 {offsets = [0, 1, 0], sizes = [2, 1, 256], strides = [1, 1, 1]} : vector<2x3x256xf32> to vector<2x1x256xf32>
    %28 = vector.shape_cast %26 : vector<3x1xf32> to vector<1x3x1xf32>
    %29 = vector.broadcast %27 : vector<2x1x256xf32> to vector<2x3x256xf32>
    %30 = vector.broadcast %28 : vector<1x3x1xf32> to vector<2x3x256xf32>
    %31 = arith.mulf %29, %30 : vector<2x3x256xf32>
    %32 = arith.addf %24, %31 : vector<2x3x256xf32>
    %c2 = arith.constant 2 : index
    %c0_7 = arith.constant 0 : index
    %c0_8 = arith.constant 0 : index
    %33 = vector.load %arg1[%c2, %c0_7, %c0_8] : memref<162x3x1xf32, #tpu.memory_space<vmem>>, vector<1x3x1xf32>
    %34 = vector.shape_cast %33 : vector<1x3x1xf32> to vector<3x1xf32>
    %35 = vector.extract_strided_slice %17 {offsets = [0, 2, 0], sizes = [2, 1, 256], strides = [1, 1, 1]} : vector<2x3x256xf32> to vector<2x1x256xf32>
    %36 = vector.shape_cast %34 : vector<3x1xf32> to vector<1x3x1xf32>
    %37 = vector.broadcast %35 : vector<2x1x256xf32> to vector<2x3x256xf32>
    %38 = vector.broadcast %36 : vector<1x3x1xf32> to vector<2x3x256xf32>
    %39 = arith.mulf %37, %38 : vector<2x3x256xf32>
    %40 = arith.addf %32, %39 : vector<2x3x256xf32>
    %c16_i32_9 = arith.constant 16 : i32
    %41 = tpu.dynamic_rotate %11 by %c16_i32_9 dim 2 : vector<2x3x256xf32>, i32 -> vector<2x3x256xf32>
    %cst_10 = arith.constant 0.000000e+00 : f32
    %42 = vector.shape_cast %4 : vector<1x1x256xi1> to vector<1x1x256xi1>
    %43 = vector.broadcast %42 : vector<1x1x256xi1> to vector<2x3x256xi1>
    %44 = vector.broadcast %cst_10 : f32 to vector<2x3x256xf32>
    %45 = arith.select %43, %41, %44 : vector<2x3x256xi1>, vector<2x3x256xf32>
    %c3 = arith.constant 3 : index
    %c0_11 = arith.constant 0 : index
    %c0_12 = arith.constant 0 : index
    %46 = vector.load %arg1[%c3, %c0_11, %c0_12] : memref<162x3x1xf32, #tpu.memory_space<vmem>>, vector<1x3x1xf32>
    %47 = vector.shape_cast %46 : vector<1x3x1xf32> to vector<3x1xf32>
    %48 = vector.extract_strided_slice %45 {offsets = [0, 0, 0], sizes = [2, 1, 256], strides = [1, 1, 1]} : vector<2x3x256xf32> to vector<2x1x256xf32>
    %49 = vector.shape_cast %47 : vector<3x1xf32> to vector<1x3x1xf32>
    %50 = vector.broadcast %48 : vector<2x1x256xf32> to vector<2x3x256xf32>
    %51 = vector.broadcast %49 : vector<1x3x1xf32> to vector<2x3x256xf32>
    %52 = arith.mulf %50, %51 : vector<2x3x256xf32>
    %53 = arith.addf %40, %52 : vector<2x3x256xf32>
    %c4 = arith.constant 4 : index
    %c0_13 = arith.constant 0 : index
    %c0_14 = arith.constant 0 : index
    %54 = vector.load %arg1[%c4, %c0_13, %c0_14] : memref<162x3x1xf32, #tpu.memory_space<vmem>>, vector<1x3x1xf32>
    %55 = vector.shape_cast %54 : vector<1x3x1xf32> to vector<3x1xf32>
    %56 = vector.extract_strided_slice %45 {offsets = [0, 1, 0], sizes = [2, 1, 256], strides = [1, 1, 1]} : vector<2x3x256xf32> to vector<2x1x256xf32>
    %57 = vector.shape_cast %55 : vector<3x1xf32> to vector<1x3x1xf32>
    %58 = vector.broadcast %56 : vector<2x1x256xf32> to vector<2x3x256xf32>
    %59 = vector.broadcast %57 : vector<1x3x1xf32> to vector<2x3x256xf32>
    %60 = arith.mulf %58, %59 : vector<2x3x256xf32>
    %61 = arith.addf %53, %60 : vector<2x3x256xf32>
    %c5 = arith.constant 5 : index
    %c0_15 = arith.constant 0 : index
    %c0_16 = arith.constant 0 : index
    %62 = vector.load %arg1[%c5, %c0_15, %c0_16] : memref<162x3x1xf32, #tpu.memory_space<vmem>>, vector<1x3x1xf32>
    %63 = vector.shape_cast %62 : vector<1x3x1xf32> to vector<3x1xf32>
    %64 = vector.extract_strided_slice %45 {offsets = [0, 2, 0], sizes = [2, 1, 256], strides = [1, 1, 1]} : vector<2x3x256xf32> to vector<2x1x256xf32>
    %65 = vector.shape_cast %63 : vector<3x1xf32> to vector<1x3x1xf32>
    %66 = vector.broadcast %64 : vector<2x1x256xf32> to vector<2x3x256xf32>
    %67 = vector.broadcast %65 : vector<1x3x1xf32> to vector<2x3x256xf32>
    %68 = arith.mulf %66, %67 : vector<2x3x256xf32>
    %69 = arith.addf %61, %68 : vector<2x3x256xf32>
    %c15_i32_17 = arith.constant 15 : i32
    %70 = tpu.dynamic_rotate %11 by %c15_i32_17 dim 2 : vector<2x3x256xf32>, i32 -> vector<2x3x256xf32>
    %71 = arith.andi %4, %10 : vector<1x1x256xi1>
    %cst_18 = arith.constant 0.000000e+00 : f32
    %72 = vector.shape_cast %71 : vector<1x1x256xi1> to vector<1x1x256xi1>
    %73 = vector.broadcast %72 : vector<1x1x256xi1> to vector<2x3x256xi1>
    %74 = vector.broadcast %cst_18 : f32 to vector<2x3x256xf32>
    %75 = arith.select %73, %70, %74 : vector<2x3x256xi1>, vector<2x3x256xf32>
    %c6 = arith.constant 6 : index
    %c0_19 = arith.constant 0 : index
    %c0_20 = arith.constant 0 : index
    %76 = vector.load %arg1[%c6, %c0_19, %c0_20] : memref<162x3x1xf32, #tpu.memory_space<vmem>>, vector<1x3x1xf32>
    %77 = vector.shape_cast %76 : vector<1x3x1xf32> to vector<3x1xf32>
    %78 = vector.extract_strided_slice %75 {offsets = [0, 0, 0], sizes = [2, 1, 256], strides = [1, 1, 1]} : vector<2x3x256xf32> to vector<2x1x256xf32>
    %79 = vector.shape_cast %77 : vector<3x1xf32> to vector<1x3x1xf32>
    %80 = vector.broadcast %78 : vector<2x1x256xf32> to vector<2x3x256xf32>
    %81 = vector.broadcast %79 : vector<1x3x1xf32> to vector<2x3x256xf32>
    %82 = arith.mulf %80, %81 : vector<2x3x256xf32>
    %83 = arith.addf %69, %82 : vector<2x3x256xf32>
    %c7 = arith.constant 7 : index
    %c0_21 = arith.constant 0 : index
    %c0_22 = arith.constant 0 : index
    %84 = vector.load %arg1[%c7, %c0_21, %c0_22] : memref<162x3x1xf32, #tpu.memory_space<vmem>>, vector<1x3x1xf32>
    %85 = vector.shape_cast %84 : vector<1x3x1xf32> to vector<3x1xf32>
    %86 = vector.extract_strided_slice %75 {offsets = [0, 1, 0], sizes = [2, 1, 256], strides = [1, 1, 1]} : vector<2x3x256xf32> to vector<2x1x256xf32>
    %87 = vector.shape_cast %85 : vector<3x1xf32> to vector<1x3x1xf32>
    %88 = vector.broadcast %86 : vector<2x1x256xf32> to vector<2x3x256xf32>
    %89 = vector.broadcast %87 : vector<1x3x1xf32> to vector<2x3x256xf32>
    %90 = arith.mulf %88, %89 : vector<2x3x256xf32>
    %91 = arith.addf %83, %90 : vector<2x3x256xf32>
    %c8 = arith.constant 8 : index
    %c0_23 = arith.constant 0 : index
    %c0_24 = arith.constant 0 : index
    %92 = vector.load %arg1[%c8, %c0_23, %c0_24] : memref<162x3x1xf32, #tpu.memory_space<vmem>>, vector<1x3x1xf32>
    %93 = vector.shape_cast %92 : vector<1x3x1xf32> to vector<3x1xf32>
    %94 = vector.extract_strided_slice %75 {offsets = [0, 2, 0], sizes = [2, 1, 256], strides = [1, 1, 1]} : vector<2x3x256xf32> to vector<2x1x256xf32>
    %95 = vector.shape_cast %93 : vector<3x1xf32> to vector<1x3x1xf32>
    %96 = vector.broadcast %94 : vector<2x1x256xf32> to vector<2x3x256xf32>
    %97 = vector.broadcast %95 : vector<1x3x1xf32> to vector<2x3x256xf32>
    %98 = arith.mulf %96, %97 : vector<2x3x256xf32>
    %99 = arith.addf %91, %98 : vector<2x3x256xf32>
    %c1_i32_25 = arith.constant 1 : i32
    %100 = tpu.dynamic_rotate %11 by %c1_i32_25 dim 2 : vector<2x3x256xf32>, i32 -> vector<2x3x256xf32>
    %cst_26 = arith.constant 0.000000e+00 : f32
    %101 = vector.shape_cast %8 : vector<1x1x256xi1> to vector<1x1x256xi1>
    %102 = vector.broadcast %101 : vector<1x1x256xi1> to vector<2x3x256xi1>
    %103 = vector.broadcast %cst_26 : f32 to vector<2x3x256xf32>
    %104 = arith.select %102, %100, %103 : vector<2x3x256xi1>, vector<2x3x256xf32>
    %c9 = arith.constant 9 : index
    %c0_27 = arith.constant 0 : index
    %c0_28 = arith.constant 0 : index
    %105 = vector.load %arg1[%c9, %c0_27, %c0_28] : memref<162x3x1xf32, #tpu.memory_space<vmem>>, vector<1x3x1xf32>
    %106 = vector.shape_cast %105 : vector<1x3x1xf32> to vector<3x1xf32>
    %107 = vector.extract_strided_slice %104 {offsets = [0, 0, 0], sizes = [2, 1, 256], strides = [1, 1, 1]} : vector<2x3x256xf32> to vector<2x1x256xf32>
    %108 = vector.shape_cast %106 : vector<3x1xf32> to vector<1x3x1xf32>
    %109 = vector.broadcast %107 : vector<2x1x256xf32> to vector<2x3x256xf32>
    %110 = vector.broadcast %108 : vector<1x3x1xf32> to vector<2x3x256xf32>
    %111 = arith.mulf %109, %110 : vector<2x3x256xf32>
    %112 = arith.addf %99, %111 : vector<2x3x256xf32>
    %c10 = arith.constant 10 : index
    %c0_29 = arith.constant 0 : index
    %c0_30 = arith.constant 0 : index
    %113 = vector.load %arg1[%c10, %c0_29, %c0_30] : memref<162x3x1xf32, #tpu.memory_space<vmem>>, vector<1x3x1xf32>
    %114 = vector.shape_cast %113 : vector<1x3x1xf32> to vector<3x1xf32>
    %115 = vector.extract_strided_slice %104 {offsets = [0, 1, 0], sizes = [2, 1, 256], strides = [1, 1, 1]} : vector<2x3x256xf32> to vector<2x1x256xf32>
    %116 = vector.shape_cast %114 : vector<3x1xf32> to vector<1x3x1xf32>
    %117 = vector.broadcast %115 : vector<2x1x256xf32> to vector<2x3x256xf32>
    %118 = vector.broadcast %116 : vector<1x3x1xf32> to vector<2x3x256xf32>
    %119 = arith.mulf %117, %118 : vector<2x3x256xf32>
    %120 = arith.addf %112, %119 : vector<2x3x256xf32>
    %c11 = arith.constant 11 : index
    %c0_31 = arith.constant 0 : index
    %c0_32 = arith.constant 0 : index
    %121 = vector.load %arg1[%c11, %c0_31, %c0_32] : memref<162x3x1xf32, #tpu.memory_space<vmem>>, vector<1x3x1xf32>
    %122 = vector.shape_cast %121 : vector<1x3x1xf32> to vector<3x1xf32>
    %123 = vector.extract_strided_slice %104 {offsets = [0, 2, 0], sizes = [2, 1, 256], strides = [1, 1, 1]} : vector<2x3x256xf32> to vector<2x1x256xf32>
    %124 = vector.shape_cast %122 : vector<3x1xf32> to vector<1x3x1xf32>
    %125 = vector.broadcast %123 : vector<2x1x256xf32> to vector<2x3x256xf32>
    %126 = vector.broadcast %124 : vector<1x3x1xf32> to vector<2x3x256xf32>
    %127 = arith.mulf %125, %126 : vector<2x3x256xf32>
    %128 = arith.addf %120, %127 : vector<2x3x256xf32>
    %c12 = arith.constant 12 : index
    %c0_33 = arith.constant 0 : index
    %c0_34 = arith.constant 0 : index
    %129 = vector.load %arg1[%c12, %c0_33, %c0_34] : memref<162x3x1xf32, #tpu.memory_space<vmem>>, vector<1x3x1xf32>
    %130 = vector.shape_cast %129 : vector<1x3x1xf32> to vector<3x1xf32>
    %131 = vector.extract_strided_slice %11 {offsets = [0, 0, 0], sizes = [2, 1, 256], strides = [1, 1, 1]} : vector<2x3x256xf32> to vector<2x1x256xf32>
    %132 = vector.shape_cast %130 : vector<3x1xf32> to vector<1x3x1xf32>
    %133 = vector.broadcast %131 : vector<2x1x256xf32> to vector<2x3x256xf32>
    %134 = vector.broadcast %132 : vector<1x3x1xf32> to vector<2x3x256xf32>
    %135 = arith.mulf %133, %134 : vector<2x3x256xf32>
    %136 = arith.addf %128, %135 : vector<2x3x256xf32>
    %c13 = arith.constant 13 : index
    %c0_35 = arith.constant 0 : index
    %c0_36 = arith.constant 0 : index
    %137 = vector.load %arg1[%c13, %c0_35, %c0_36] : memref<162x3x1xf32, #tpu.memory_space<vmem>>, vector<1x3x1xf32>
    %138 = vector.shape_cast %137 : vector<1x3x1xf32> to vector<3x1xf32>
    %139 = vector.extract_strided_slice %11 {offsets = [0, 1, 0], sizes = [2, 1, 256], strides = [1, 1, 1]} : vector<2x3x256xf32> to vector<2x1x256xf32>
    %140 = vector.shape_cast %138 : vector<3x1xf32> to vector<1x3x1xf32>
    %141 = vector.broadcast %139 : vector<2x1x256xf32> to vector<2x3x256xf32>
    %142 = vector.broadcast %140 : vector<1x3x1xf32> to vector<2x3x256xf32>
    %143 = arith.mulf %141, %142 : vector<2x3x256xf32>
    %144 = arith.addf %136, %143 : vector<2x3x256xf32>
    %c14 = arith.constant 14 : index
    %c0_37 = arith.constant 0 : index
    %c0_38 = arith.constant 0 : index
    %145 = vector.load %arg1[%c14, %c0_37, %c0_38] : memref<162x3x1xf32, #tpu.memory_space<vmem>>, vector<1x3x1xf32>
    %146 = vector.shape_cast %145 : vector<1x3x1xf32> to vector<3x1xf32>
    %147 = vector.extract_strided_slice %11 {offsets = [0, 2, 0], sizes = [2, 1, 256], strides = [1, 1, 1]} : vector<2x3x256xf32> to vector<2x1x256xf32>
    %148 = vector.shape_cast %146 : vector<3x1xf32> to vector<1x3x1xf32>
    %149 = vector.broadcast %147 : vector<2x1x256xf32> to vector<2x3x256xf32>
    %150 = vector.broadcast %148 : vector<1x3x1xf32> to vector<2x3x256xf32>
    %151 = arith.mulf %149, %150 : vector<2x3x256xf32>
    %152 = arith.addf %144, %151 : vector<2x3x256xf32>
    %c255_i32 = arith.constant 255 : i32
    %153 = tpu.dynamic_rotate %11 by %c255_i32 dim 2 : vector<2x3x256xf32>, i32 -> vector<2x3x256xf32>
    %cst_39 = arith.constant 0.000000e+00 : f32
    %154 = vector.shape_cast %10 : vector<1x1x256xi1> to vector<1x1x256xi1>
    %155 = vector.broadcast %154 : vector<1x1x256xi1> to vector<2x3x256xi1>
    %156 = vector.broadcast %cst_39 : f32 to vector<2x3x256xf32>
    %157 = arith.select %155, %153, %156 : vector<2x3x256xi1>, vector<2x3x256xf32>
    %c15 = arith.constant 15 : index
    %c0_40 = arith.constant 0 : index
    %c0_41 = arith.constant 0 : index
    %158 = vector.load %arg1[%c15, %c0_40, %c0_41] : memref<162x3x1xf32, #tpu.memory_space<vmem>>, vector<1x3x1xf32>
    %159 = vector.shape_cast %158 : vector<1x3x1xf32> to vector<3x1xf32>
    %160 = vector.extract_strided_slice %157 {offsets = [0, 0, 0], sizes = [2, 1, 256], strides = [1, 1, 1]} : vector<2x3x256xf32> to vector<2x1x256xf32>
    %161 = vector.shape_cast %159 : vector<3x1xf32> to vector<1x3x1xf32>
    %162 = vector.broadcast %160 : vector<2x1x256xf32> to vector<2x3x256xf32>
    %163 = vector.broadcast %161 : vector<1x3x1xf32> to vector<2x3x256xf32>
    %164 = arith.mulf %162, %163 : vector<2x3x256xf32>
    %165 = arith.addf %152, %164 : vector<2x3x256xf32>
    %c16 = arith.constant 16 : index
    %c0_42 = arith.constant 0 : index
    %c0_43 = arith.constant 0 : index
    %166 = vector.load %arg1[%c16, %c0_42, %c0_43] : memref<162x3x1xf32, #tpu.memory_space<vmem>>, vector<1x3x1xf32>
    %167 = vector.shape_cast %166 : vector<1x3x1xf32> to vector<3x1xf32>
    %168 = vector.extract_strided_slice %157 {offsets = [0, 1, 0], sizes = [2, 1, 256], strides = [1, 1, 1]} : vector<2x3x256xf32> to vector<2x1x256xf32>
    %169 = vector.shape_cast %167 : vector<3x1xf32> to vector<1x3x1xf32>
    %170 = vector.broadcast %168 : vector<2x1x256xf32> to vector<2x3x256xf32>
    %171 = vector.broadcast %169 : vector<1x3x1xf32> to vector<2x3x256xf32>
    %172 = arith.mulf %170, %171 : vector<2x3x256xf32>
    %173 = arith.addf %165, %172 : vector<2x3x256xf32>
    %c17 = arith.constant 17 : index
    %c0_44 = arith.constant 0 : index
    %c0_45 = arith.constant 0 : index
    %174 = vector.load %arg1[%c17, %c0_44, %c0_45] : memref<162x3x1xf32, #tpu.memory_space<vmem>>, vector<1x3x1xf32>
    %175 = vector.shape_cast %174 : vector<1x3x1xf32> to vector<3x1xf32>
    %176 = vector.extract_strided_slice %157 {offsets = [0, 2, 0], sizes = [2, 1, 256], strides = [1, 1, 1]} : vector<2x3x256xf32> to vector<2x1x256xf32>
    %177 = vector.shape_cast %175 : vector<3x1xf32> to vector<1x3x1xf32>
    %178 = vector.broadcast %176 : vector<2x1x256xf32> to vector<2x3x256xf32>
    %179 = vector.broadcast %177 : vector<1x3x1xf32> to vector<2x3x256xf32>
    %180 = arith.mulf %178, %179 : vector<2x3x256xf32>
    %181 = arith.addf %173, %180 : vector<2x3x256xf32>
    %c241_i32 = arith.constant 241 : i32
    %182 = tpu.dynamic_rotate %11 by %c241_i32 dim 2 : vector<2x3x256xf32>, i32 -> vector<2x3x256xf32>
    %183 = arith.andi %6, %8 : vector<1x1x256xi1>
    %cst_46 = arith.constant 0.000000e+00 : f32
    %184 = vector.shape_cast %183 : vector<1x1x256xi1> to vector<1x1x256xi1>
    %185 = vector.broadcast %184 : vector<1x1x256xi1> to vector<2x3x256xi1>
    %186 = vector.broadcast %cst_46 : f32 to vector<2x3x256xf32>
    %187 = arith.select %185, %182, %186 : vector<2x3x256xi1>, vector<2x3x256xf32>
    %c18 = arith.constant 18 : index
    %c0_47 = arith.constant 0 : index
    %c0_48 = arith.constant 0 : index
    %188 = vector.load %arg1[%c18, %c0_47, %c0_48] : memref<162x3x1xf32, #tpu.memory_space<vmem>>, vector<1x3x1xf32>
    %189 = vector.shape_cast %188 : vector<1x3x1xf32> to vector<3x1xf32>
    %190 = vector.extract_strided_slice %187 {offsets = [0, 0, 0], sizes = [2, 1, 256], strides = [1, 1, 1]} : vector<2x3x256xf32> to vector<2x1x256xf32>
    %191 = vector.shape_cast %189 : vector<3x1xf32> to vector<1x3x1xf32>
    %192 = vector.broadcast %190 : vector<2x1x256xf32> to vector<2x3x256xf32>
    %193 = vector.broadcast %191 : vector<1x3x1xf32> to vector<2x3x256xf32>
    %194 = arith.mulf %192, %193 : vector<2x3x256xf32>
    %195 = arith.addf %181, %194 : vector<2x3x256xf32>
    %c19 = arith.constant 19 : index
    %c0_49 = arith.constant 0 : index
    %c0_50 = arith.constant 0 : index
    %196 = vector.load %arg1[%c19, %c0_49, %c0_50] : memref<162x3x1xf32, #tpu.memory_space<vmem>>, vector<1x3x1xf32>
    %197 = vector.shape_cast %196 : vector<1x3x1xf32> to vector<3x1xf32>
    %198 = vector.extract_strided_slice %187 {offsets = [0, 1, 0], sizes = [2, 1, 256], strides = [1, 1, 1]} : vector<2x3x256xf32> to vector<2x1x256xf32>
    %199 = vector.shape_cast %197 : vector<3x1xf32> to vector<1x3x1xf32>
    %200 = vector.broadcast %198 : vector<2x1x256xf32> to vector<2x3x256xf32>
    %201 = vector.broadcast %199 : vector<1x3x1xf32> to vector<2x3x256xf32>
    %202 = arith.mulf %200, %201 : vector<2x3x256xf32>
    %203 = arith.addf %195, %202 : vector<2x3x256xf32>
    %c20 = arith.constant 20 : index
    %c0_51 = arith.constant 0 : index
    %c0_52 = arith.constant 0 : index
    %204 = vector.load %arg1[%c20, %c0_51, %c0_52] : memref<162x3x1xf32, #tpu.memory_space<vmem>>, vector<1x3x1xf32>
    %205 = vector.shape_cast %204 : vector<1x3x1xf32> to vector<3x1xf32>
    %206 = vector.extract_strided_slice %187 {offsets = [0, 2, 0], sizes = [2, 1, 256], strides = [1, 1, 1]} : vector<2x3x256xf32> to vector<2x1x256xf32>
    %207 = vector.shape_cast %205 : vector<3x1xf32> to vector<1x3x1xf32>
    %208 = vector.broadcast %206 : vector<2x1x256xf32> to vector<2x3x256xf32>
    %209 = vector.broadcast %207 : vector<1x3x1xf32> to vector<2x3x256xf32>
    %210 = arith.mulf %208, %209 : vector<2x3x256xf32>
    %211 = arith.addf %203, %210 : vector<2x3x256xf32>
    %c240_i32_53 = arith.constant 240 : i32
    %212 = tpu.dynamic_rotate %11 by %c240_i32_53 dim 2 : vector<2x3x256xf32>, i32 -> vector<2x3x256xf32>
    %cst_54 = arith.constant 0.000000e+00 : f32
    %213 = vector.shape_cast %6 : vector<1x1x256xi1> to vector<1x1x256xi1>
    %214 = vector.broadcast %213 : vector<1x1x256xi1> to vector<2x3x256xi1>
    %215 = vector.broadcast %cst_54 : f32 to vector<2x3x256xf32>
    %216 = arith.select %214, %212, %215 : vector<2x3x256xi1>, vector<2x3x256xf32>
    %c21 = arith.constant 21 : index
    %c0_55 = arith.constant 0 : index
    %c0_56 = arith.constant 0 : index
    %217 = vector.load %arg1[%c21, %c0_55, %c0_56] : memref<162x3x1xf32, #tpu.memory_space<vmem>>, vector<1x3x1xf32>
    %218 = vector.shape_cast %217 : vector<1x3x1xf32> to vector<3x1xf32>
    %219 = vector.extract_strided_slice %216 {offsets = [0, 0, 0], sizes = [2, 1, 256], strides = [1, 1, 1]} : vector<2x3x256xf32> to vector<2x1x256xf32>
    %220 = vector.shape_cast %218 : vector<3x1xf32> to vector<1x3x1xf32>
    %221 = vector.broadcast %219 : vector<2x1x256xf32> to vector<2x3x256xf32>
    %222 = vector.broadcast %220 : vector<1x3x1xf32> to vector<2x3x256xf32>
    %223 = arith.mulf %221, %222 : vector<2x3x256xf32>
    %224 = arith.addf %211, %223 : vector<2x3x256xf32>
    %c22 = arith.constant 22 : index
    %c0_57 = arith.constant 0 : index
    %c0_58 = arith.constant 0 : index
    %225 = vector.load %arg1[%c22, %c0_57, %c0_58] : memref<162x3x1xf32, #tpu.memory_space<vmem>>, vector<1x3x1xf32>
    %226 = vector.shape_cast %225 : vector<1x3x1xf32> to vector<3x1xf32>
    %227 = vector.extract_strided_slice %216 {offsets = [0, 1, 0], sizes = [2, 1, 256], strides = [1, 1, 1]} : vector<2x3x256xf32> to vector<2x1x256xf32>
    %228 = vector.shape_cast %226 : vector<3x1xf32> to vector<1x3x1xf32>
    %229 = vector.broadcast %227 : vector<2x1x256xf32> to vector<2x3x256xf32>
    %230 = vector.broadcast %228 : vector<1x3x1xf32> to vector<2x3x256xf32>
    %231 = arith.mulf %229, %230 : vector<2x3x256xf32>
    %232 = arith.addf %224, %231 : vector<2x3x256xf32>
    %c23 = arith.constant 23 : index
    %c0_59 = arith.constant 0 : index
    %c0_60 = arith.constant 0 : index
    %233 = vector.load %arg1[%c23, %c0_59, %c0_60] : memref<162x3x1xf32, #tpu.memory_space<vmem>>, vector<1x3x1xf32>
    %234 = vector.shape_cast %233 : vector<1x3x1xf32> to vector<3x1xf32>
    %235 = vector.extract_strided_slice %216 {offsets = [0, 2, 0], sizes = [2, 1, 256], strides = [1, 1, 1]} : vector<2x3x256xf32> to vector<2x1x256xf32>
    %236 = vector.shape_cast %234 : vector<3x1xf32> to vector<1x3x1xf32>
    %237 = vector.broadcast %235 : vector<2x1x256xf32> to vector<2x3x256xf32>
    %238 = vector.broadcast %236 : vector<1x3x1xf32> to vector<2x3x256xf32>
    %239 = arith.mulf %237, %238 : vector<2x3x256xf32>
    %240 = arith.addf %232, %239 : vector<2x3x256xf32>
    %c239_i32 = arith.constant 239 : i32
    %241 = tpu.dynamic_rotate %11 by %c239_i32 dim 2 : vector<2x3x256xf32>, i32 -> vector<2x3x256xf32>
    %242 = arith.andi %6, %10 : vector<1x1x256xi1>
    %cst_61 = arith.constant 0.000000e+00 : f32
    %243 = vector.shape_cast %242 : vector<1x1x256xi1> to vector<1x1x256xi1>
    %244 = vector.broadcast %243 : vector<1x1x256xi1> to vector<2x3x256xi1>
    %245 = vector.broadcast %cst_61 : f32 to vector<2x3x256xf32>
    %246 = arith.select %244, %241, %245 : vector<2x3x256xi1>, vector<2x3x256xf32>
    %c24 = arith.constant 24 : index
    %c0_62 = arith.constant 0 : index
    %c0_63 = arith.constant 0 : index
    %247 = vector.load %arg1[%c24, %c0_62, %c0_63] : memref<162x3x1xf32, #tpu.memory_space<vmem>>, vector<1x3x1xf32>
    %248 = vector.shape_cast %247 : vector<1x3x1xf32> to vector<3x1xf32>
    %249 = vector.extract_strided_slice %246 {offsets = [0, 0, 0], sizes = [2, 1, 256], strides = [1, 1, 1]} : vector<2x3x256xf32> to vector<2x1x256xf32>
    %250 = vector.shape_cast %248 : vector<3x1xf32> to vector<1x3x1xf32>
    %251 = vector.broadcast %249 : vector<2x1x256xf32> to vector<2x3x256xf32>
    %252 = vector.broadcast %250 : vector<1x3x1xf32> to vector<2x3x256xf32>
    %253 = arith.mulf %251, %252 : vector<2x3x256xf32>
    %254 = arith.addf %240, %253 : vector<2x3x256xf32>
    %c25 = arith.constant 25 : index
    %c0_64 = arith.constant 0 : index
    %c0_65 = arith.constant 0 : index
    %255 = vector.load %arg1[%c25, %c0_64, %c0_65] : memref<162x3x1xf32, #tpu.memory_space<vmem>>, vector<1x3x1xf32>
    %256 = vector.shape_cast %255 : vector<1x3x1xf32> to vector<3x1xf32>
    %257 = vector.extract_strided_slice %246 {offsets = [0, 1, 0], sizes = [2, 1, 256], strides = [1, 1, 1]} : vector<2x3x256xf32> to vector<2x1x256xf32>
    %258 = vector.shape_cast %256 : vector<3x1xf32> to vector<1x3x1xf32>
    %259 = vector.broadcast %257 : vector<2x1x256xf32> to vector<2x3x256xf32>
    %260 = vector.broadcast %258 : vector<1x3x1xf32> to vector<2x3x256xf32>
    %261 = arith.mulf %259, %260 : vector<2x3x256xf32>
    %262 = arith.addf %254, %261 : vector<2x3x256xf32>
    %c26 = arith.constant 26 : index
    %c0_66 = arith.constant 0 : index
    %c0_67 = arith.constant 0 : index
    %263 = vector.load %arg1[%c26, %c0_66, %c0_67] : memref<162x3x1xf32, #tpu.memory_space<vmem>>, vector<1x3x1xf32>
    %264 = vector.shape_cast %263 : vector<1x3x1xf32> to vector<3x1xf32>
    %265 = vector.extract_strided_slice %246 {offsets = [0, 2, 0], sizes = [2, 1, 256], strides = [1, 1, 1]} : vector<2x3x256xf32> to vector<2x1x256xf32>
    %266 = vector.shape_cast %264 : vector<3x1xf32> to vector<1x3x1xf32>
    %267 = vector.broadcast %265 : vector<2x1x256xf32> to vector<2x3x256xf32>
    %268 = vector.broadcast %266 : vector<1x3x1xf32> to vector<2x3x256xf32>
    %269 = arith.mulf %267, %268 : vector<2x3x256xf32>
    %270 = arith.addf %262, %269 : vector<2x3x256xf32>
    %c0_68 = arith.constant 0 : index
    %c0_69 = arith.constant 0 : index
    %c0_70 = arith.constant 0 : index
    %271 = vector.load %arg2[%c0_68, %c0_69, %c0_70] : memref<6x3x1xf32, #tpu.memory_space<vmem>>, vector<1x3x1xf32>
    %272 = vector.shape_cast %271 : vector<1x3x1xf32> to vector<3x1xf32>
    %273 = vector.shape_cast %272 : vector<3x1xf32> to vector<1x3x1xf32>
    %274 = vector.broadcast %273 : vector<1x3x1xf32> to vector<2x3x256xf32>
    %275 = arith.addf %270, %274 : vector<2x3x256xf32>
    %276 = arith.mulf %275, %275 : vector<2x3x256xf32>
    %277 = tpu.concatenate %275, %276 in 1 : vector<2x3x256xf32>, vector<2x3x256xf32> -> vector<2x6x256xf32>
    %cst_71 = arith.constant dense<0.000000e+00> : vector<2x6xf32>
    %278 = vector.multi_reduction <add>, %277, %cst_71 [2] : vector<2x6x256xf32> to vector<2x6xf32>
    %279 = vector.shape_cast %278 : vector<2x6xf32> to vector<2x6x1xf32>
    %cst_72 = arith.constant dense<0.000000e+00> : vector<6x1xf32>
    %280 = vector.multi_reduction <add>, %279, %cst_72 [0] : vector<2x6x1xf32> to vector<6x1xf32>
    %281 = vector.shape_cast %280 : vector<6x1xf32> to vector<1x6x1xf32>
    %282 = vector.extract_strided_slice %281 {offsets = [0, 0, 0], sizes = [1, 3, 1], strides = [1, 1, 1]} : vector<1x6x1xf32> to vector<1x3x1xf32>
    %283 = vector.extract_strided_slice %281 {offsets = [0, 3, 0], sizes = [1, 3, 1], strides = [1, 1, 1]} : vector<1x6x1xf32> to vector<1x3x1xf32>
    %cst_73 = arith.constant 0.001953125 : f32
    %284 = vector.broadcast %cst_73 : f32 to vector<1x3x1xf32>
    %285 = arith.mulf %282, %284 : vector<1x3x1xf32>
    %cst_74 = arith.constant 0.001953125 : f32
    %286 = vector.broadcast %cst_74 : f32 to vector<1x3x1xf32>
    %287 = arith.mulf %283, %286 : vector<1x3x1xf32>
    %288 = arith.mulf %285, %285 : vector<1x3x1xf32>
    %289 = arith.subf %287, %288 : vector<1x3x1xf32>
    %cst_75 = arith.constant 0.000000e+00 : f32
    %290 = vector.broadcast %cst_75 : f32 to vector<1x3x1xf32>
    %291 = arith.maximumf %289, %290 : vector<1x3x1xf32>
    %c0_76 = arith.constant 0 : index
    %c0_77 = arith.constant 0 : index
    %c0_78 = arith.constant 0 : index
    %292 = vector.load %arg3[%c0_76, %c0_77, %c0_78] : memref<6x3x1xf32, #tpu.memory_space<vmem>>, vector<1x3x1xf32>
    %293 = vector.shape_cast %292 : vector<1x3x1xf32> to vector<3x1xf32>
    %cst_79 = arith.constant 9.99999974E-6 : f32
    %294 = vector.broadcast %cst_79 : f32 to vector<1x3x1xf32>
    %295 = arith.addf %291, %294 : vector<1x3x1xf32>
    %296 = math.rsqrt %295 : vector<1x3x1xf32>
    %297 = vector.shape_cast %293 : vector<3x1xf32> to vector<1x3x1xf32>
    %298 = arith.mulf %297, %296 : vector<1x3x1xf32>
    %c0_80 = arith.constant 0 : index
    %c0_81 = arith.constant 0 : index
    %c0_82 = arith.constant 0 : index
    %299 = vector.load %arg4[%c0_80, %c0_81, %c0_82] : memref<6x3x1xf32, #tpu.memory_space<vmem>>, vector<1x3x1xf32>
    %300 = vector.shape_cast %299 : vector<1x3x1xf32> to vector<3x1xf32>
    %301 = arith.mulf %285, %298 : vector<1x3x1xf32>
    %302 = vector.shape_cast %300 : vector<3x1xf32> to vector<1x3x1xf32>
    %303 = arith.subf %302, %301 : vector<1x3x1xf32>
    %304 = vector.broadcast %298 : vector<1x3x1xf32> to vector<2x3x256xf32>
    %305 = arith.mulf %275, %304 : vector<2x3x256xf32>
    %306 = vector.broadcast %303 : vector<1x3x1xf32> to vector<2x3x256xf32>
    %307 = arith.addf %305, %306 : vector<2x3x256xf32>
    %c17_i32_83 = arith.constant 17 : i32
    %308 = tpu.dynamic_rotate %307 by %c17_i32_83 dim 2 : vector<2x3x256xf32>, i32 -> vector<2x3x256xf32>
    %309 = arith.andi %4, %8 : vector<1x1x256xi1>
    %cst_84 = arith.constant 0.000000e+00 : f32
    %310 = vector.shape_cast %309 : vector<1x1x256xi1> to vector<1x1x256xi1>
    %311 = vector.broadcast %310 : vector<1x1x256xi1> to vector<2x3x256xi1>
    %312 = vector.broadcast %cst_84 : f32 to vector<2x3x256xf32>
    %313 = arith.select %311, %308, %312 : vector<2x3x256xi1>, vector<2x3x256xf32>
    %c27 = arith.constant 27 : index
    %c0_85 = arith.constant 0 : index
    %c0_86 = arith.constant 0 : index
    %314 = vector.load %arg1[%c27, %c0_85, %c0_86] : memref<162x3x1xf32, #tpu.memory_space<vmem>>, vector<1x3x1xf32>
    %315 = vector.shape_cast %314 : vector<1x3x1xf32> to vector<3x1xf32>
    %316 = vector.extract_strided_slice %313 {offsets = [0, 0, 0], sizes = [2, 1, 256], strides = [1, 1, 1]} : vector<2x3x256xf32> to vector<2x1x256xf32>
    %317 = vector.shape_cast %315 : vector<3x1xf32> to vector<1x3x1xf32>
    %318 = vector.broadcast %316 : vector<2x1x256xf32> to vector<2x3x256xf32>
    %319 = vector.broadcast %317 : vector<1x3x1xf32> to vector<2x3x256xf32>
    %320 = arith.mulf %318, %319 : vector<2x3x256xf32>
    %c28 = arith.constant 28 : index
    %c0_87 = arith.constant 0 : index
    %c0_88 = arith.constant 0 : index
    %321 = vector.load %arg1[%c28, %c0_87, %c0_88] : memref<162x3x1xf32, #tpu.memory_space<vmem>>, vector<1x3x1xf32>
    %322 = vector.shape_cast %321 : vector<1x3x1xf32> to vector<3x1xf32>
    %323 = vector.extract_strided_slice %313 {offsets = [0, 1, 0], sizes = [2, 1, 256], strides = [1, 1, 1]} : vector<2x3x256xf32> to vector<2x1x256xf32>
    %324 = vector.shape_cast %322 : vector<3x1xf32> to vector<1x3x1xf32>
    %325 = vector.broadcast %323 : vector<2x1x256xf32> to vector<2x3x256xf32>
    %326 = vector.broadcast %324 : vector<1x3x1xf32> to vector<2x3x256xf32>
    %327 = arith.mulf %325, %326 : vector<2x3x256xf32>
    %328 = arith.addf %320, %327 : vector<2x3x256xf32>
    %c29 = arith.constant 29 : index
    %c0_89 = arith.constant 0 : index
    %c0_90 = arith.constant 0 : index
    %329 = vector.load %arg1[%c29, %c0_89, %c0_90] : memref<162x3x1xf32, #tpu.memory_space<vmem>>, vector<1x3x1xf32>
    %330 = vector.shape_cast %329 : vector<1x3x1xf32> to vector<3x1xf32>
    %331 = vector.extract_strided_slice %313 {offsets = [0, 2, 0], sizes = [2, 1, 256], strides = [1, 1, 1]} : vector<2x3x256xf32> to vector<2x1x256xf32>
    %332 = vector.shape_cast %330 : vector<3x1xf32> to vector<1x3x1xf32>
    %333 = vector.broadcast %331 : vector<2x1x256xf32> to vector<2x3x256xf32>
    %334 = vector.broadcast %332 : vector<1x3x1xf32> to vector<2x3x256xf32>
    %335 = arith.mulf %333, %334 : vector<2x3x256xf32>
    %336 = arith.addf %328, %335 : vector<2x3x256xf32>
    %c16_i32_91 = arith.constant 16 : i32
    %337 = tpu.dynamic_rotate %307 by %c16_i32_91 dim 2 : vector<2x3x256xf32>, i32 -> vector<2x3x256xf32>
    %cst_92 = arith.constant 0.000000e+00 : f32
    %338 = vector.shape_cast %4 : vector<1x1x256xi1> to vector<1x1x256xi1>
    %339 = vector.broadcast %338 : vector<1x1x256xi1> to vector<2x3x256xi1>
    %340 = vector.broadcast %cst_92 : f32 to vector<2x3x256xf32>
    %341 = arith.select %339, %337, %340 : vector<2x3x256xi1>, vector<2x3x256xf32>
    %c30 = arith.constant 30 : index
    %c0_93 = arith.constant 0 : index
    %c0_94 = arith.constant 0 : index
    %342 = vector.load %arg1[%c30, %c0_93, %c0_94] : memref<162x3x1xf32, #tpu.memory_space<vmem>>, vector<1x3x1xf32>
    %343 = vector.shape_cast %342 : vector<1x3x1xf32> to vector<3x1xf32>
    %344 = vector.extract_strided_slice %341 {offsets = [0, 0, 0], sizes = [2, 1, 256], strides = [1, 1, 1]} : vector<2x3x256xf32> to vector<2x1x256xf32>
    %345 = vector.shape_cast %343 : vector<3x1xf32> to vector<1x3x1xf32>
    %346 = vector.broadcast %344 : vector<2x1x256xf32> to vector<2x3x256xf32>
    %347 = vector.broadcast %345 : vector<1x3x1xf32> to vector<2x3x256xf32>
    %348 = arith.mulf %346, %347 : vector<2x3x256xf32>
    %349 = arith.addf %336, %348 : vector<2x3x256xf32>
    %c31 = arith.constant 31 : index
    %c0_95 = arith.constant 0 : index
    %c0_96 = arith.constant 0 : index
    %350 = vector.load %arg1[%c31, %c0_95, %c0_96] : memref<162x3x1xf32, #tpu.memory_space<vmem>>, vector<1x3x1xf32>
    %351 = vector.shape_cast %350 : vector<1x3x1xf32> to vector<3x1xf32>
    %352 = vector.extract_strided_slice %341 {offsets = [0, 1, 0], sizes = [2, 1, 256], strides = [1, 1, 1]} : vector<2x3x256xf32> to vector<2x1x256xf32>
    %353 = vector.shape_cast %351 : vector<3x1xf32> to vector<1x3x1xf32>
    %354 = vector.broadcast %352 : vector<2x1x256xf32> to vector<2x3x256xf32>
    %355 = vector.broadcast %353 : vector<1x3x1xf32> to vector<2x3x256xf32>
    %356 = arith.mulf %354, %355 : vector<2x3x256xf32>
    %357 = arith.addf %349, %356 : vector<2x3x256xf32>
    %c32 = arith.constant 32 : index
    %c0_97 = arith.constant 0 : index
    %c0_98 = arith.constant 0 : index
    %358 = vector.load %arg1[%c32, %c0_97, %c0_98] : memref<162x3x1xf32, #tpu.memory_space<vmem>>, vector<1x3x1xf32>
    %359 = vector.shape_cast %358 : vector<1x3x1xf32> to vector<3x1xf32>
    %360 = vector.extract_strided_slice %341 {offsets = [0, 2, 0], sizes = [2, 1, 256], strides = [1, 1, 1]} : vector<2x3x256xf32> to vector<2x1x256xf32>
    %361 = vector.shape_cast %359 : vector<3x1xf32> to vector<1x3x1xf32>
    %362 = vector.broadcast %360 : vector<2x1x256xf32> to vector<2x3x256xf32>
    %363 = vector.broadcast %361 : vector<1x3x1xf32> to vector<2x3x256xf32>
    %364 = arith.mulf %362, %363 : vector<2x3x256xf32>
    %365 = arith.addf %357, %364 : vector<2x3x256xf32>
    %c15_i32_99 = arith.constant 15 : i32
    %366 = tpu.dynamic_rotate %307 by %c15_i32_99 dim 2 : vector<2x3x256xf32>, i32 -> vector<2x3x256xf32>
    %367 = arith.andi %4, %10 : vector<1x1x256xi1>
    %cst_100 = arith.constant 0.000000e+00 : f32
    %368 = vector.shape_cast %367 : vector<1x1x256xi1> to vector<1x1x256xi1>
    %369 = vector.broadcast %368 : vector<1x1x256xi1> to vector<2x3x256xi1>
    %370 = vector.broadcast %cst_100 : f32 to vector<2x3x256xf32>
    %371 = arith.select %369, %366, %370 : vector<2x3x256xi1>, vector<2x3x256xf32>
    %c33 = arith.constant 33 : index
    %c0_101 = arith.constant 0 : index
    %c0_102 = arith.constant 0 : index
    %372 = vector.load %arg1[%c33, %c0_101, %c0_102] : memref<162x3x1xf32, #tpu.memory_space<vmem>>, vector<1x3x1xf32>
    %373 = vector.shape_cast %372 : vector<1x3x1xf32> to vector<3x1xf32>
    %374 = vector.extract_strided_slice %371 {offsets = [0, 0, 0], sizes = [2, 1, 256], strides = [1, 1, 1]} : vector<2x3x256xf32> to vector<2x1x256xf32>
    %375 = vector.shape_cast %373 : vector<3x1xf32> to vector<1x3x1xf32>
    %376 = vector.broadcast %374 : vector<2x1x256xf32> to vector<2x3x256xf32>
    %377 = vector.broadcast %375 : vector<1x3x1xf32> to vector<2x3x256xf32>
    %378 = arith.mulf %376, %377 : vector<2x3x256xf32>
    %379 = arith.addf %365, %378 : vector<2x3x256xf32>
    %c34 = arith.constant 34 : index
    %c0_103 = arith.constant 0 : index
    %c0_104 = arith.constant 0 : index
    %380 = vector.load %arg1[%c34, %c0_103, %c0_104] : memref<162x3x1xf32, #tpu.memory_space<vmem>>, vector<1x3x1xf32>
    %381 = vector.shape_cast %380 : vector<1x3x1xf32> to vector<3x1xf32>
    %382 = vector.extract_strided_slice %371 {offsets = [0, 1, 0], sizes = [2, 1, 256], strides = [1, 1, 1]} : vector<2x3x256xf32> to vector<2x1x256xf32>
    %383 = vector.shape_cast %381 : vector<3x1xf32> to vector<1x3x1xf32>
    %384 = vector.broadcast %382 : vector<2x1x256xf32> to vector<2x3x256xf32>
    %385 = vector.broadcast %383 : vector<1x3x1xf32> to vector<2x3x256xf32>
    %386 = arith.mulf %384, %385 : vector<2x3x256xf32>
    %387 = arith.addf %379, %386 : vector<2x3x256xf32>
    %c35 = arith.constant 35 : index
    %c0_105 = arith.constant 0 : index
    %c0_106 = arith.constant 0 : index
    %388 = vector.load %arg1[%c35, %c0_105, %c0_106] : memref<162x3x1xf32, #tpu.memory_space<vmem>>, vector<1x3x1xf32>
    %389 = vector.shape_cast %388 : vector<1x3x1xf32> to vector<3x1xf32>
    %390 = vector.extract_strided_slice %371 {offsets = [0, 2, 0], sizes = [2, 1, 256], strides = [1, 1, 1]} : vector<2x3x256xf32> to vector<2x1x256xf32>
    %391 = vector.shape_cast %389 : vector<3x1xf32> to vector<1x3x1xf32>
    %392 = vector.broadcast %390 : vector<2x1x256xf32> to vector<2x3x256xf32>
    %393 = vector.broadcast %391 : vector<1x3x1xf32> to vector<2x3x256xf32>
    %394 = arith.mulf %392, %393 : vector<2x3x256xf32>
    %395 = arith.addf %387, %394 : vector<2x3x256xf32>
    %c1_i32_107 = arith.constant 1 : i32
    %396 = tpu.dynamic_rotate %307 by %c1_i32_107 dim 2 : vector<2x3x256xf32>, i32 -> vector<2x3x256xf32>
    %cst_108 = arith.constant 0.000000e+00 : f32
    %397 = vector.shape_cast %8 : vector<1x1x256xi1> to vector<1x1x256xi1>
    %398 = vector.broadcast %397 : vector<1x1x256xi1> to vector<2x3x256xi1>
    %399 = vector.broadcast %cst_108 : f32 to vector<2x3x256xf32>
    %400 = arith.select %398, %396, %399 : vector<2x3x256xi1>, vector<2x3x256xf32>
    %c36 = arith.constant 36 : index
    %c0_109 = arith.constant 0 : index
    %c0_110 = arith.constant 0 : index
    %401 = vector.load %arg1[%c36, %c0_109, %c0_110] : memref<162x3x1xf32, #tpu.memory_space<vmem>>, vector<1x3x1xf32>
    %402 = vector.shape_cast %401 : vector<1x3x1xf32> to vector<3x1xf32>
    %403 = vector.extract_strided_slice %400 {offsets = [0, 0, 0], sizes = [2, 1, 256], strides = [1, 1, 1]} : vector<2x3x256xf32> to vector<2x1x256xf32>
    %404 = vector.shape_cast %402 : vector<3x1xf32> to vector<1x3x1xf32>
    %405 = vector.broadcast %403 : vector<2x1x256xf32> to vector<2x3x256xf32>
    %406 = vector.broadcast %404 : vector<1x3x1xf32> to vector<2x3x256xf32>
    %407 = arith.mulf %405, %406 : vector<2x3x256xf32>
    %408 = arith.addf %395, %407 : vector<2x3x256xf32>
    %c37 = arith.constant 37 : index
    %c0_111 = arith.constant 0 : index
    %c0_112 = arith.constant 0 : index
    %409 = vector.load %arg1[%c37, %c0_111, %c0_112] : memref<162x3x1xf32, #tpu.memory_space<vmem>>, vector<1x3x1xf32>
    %410 = vector.shape_cast %409 : vector<1x3x1xf32> to vector<3x1xf32>
    %411 = vector.extract_strided_slice %400 {offsets = [0, 1, 0], sizes = [2, 1, 256], strides = [1, 1, 1]} : vector<2x3x256xf32> to vector<2x1x256xf32>
    %412 = vector.shape_cast %410 : vector<3x1xf32> to vector<1x3x1xf32>
    %413 = vector.broadcast %411 : vector<2x1x256xf32> to vector<2x3x256xf32>
    %414 = vector.broadcast %412 : vector<1x3x1xf32> to vector<2x3x256xf32>
    %415 = arith.mulf %413, %414 : vector<2x3x256xf32>
    %416 = arith.addf %408, %415 : vector<2x3x256xf32>
    %c38 = arith.constant 38 : index
    %c0_113 = arith.constant 0 : index
    %c0_114 = arith.constant 0 : index
    %417 = vector.load %arg1[%c38, %c0_113, %c0_114] : memref<162x3x1xf32, #tpu.memory_space<vmem>>, vector<1x3x1xf32>
    %418 = vector.shape_cast %417 : vector<1x3x1xf32> to vector<3x1xf32>
    %419 = vector.extract_strided_slice %400 {offsets = [0, 2, 0], sizes = [2, 1, 256], strides = [1, 1, 1]} : vector<2x3x256xf32> to vector<2x1x256xf32>
    %420 = vector.shape_cast %418 : vector<3x1xf32> to vector<1x3x1xf32>
    %421 = vector.broadcast %419 : vector<2x1x256xf32> to vector<2x3x256xf32>
    %422 = vector.broadcast %420 : vector<1x3x1xf32> to vector<2x3x256xf32>
    %423 = arith.mulf %421, %422 : vector<2x3x256xf32>
    %424 = arith.addf %416, %423 : vector<2x3x256xf32>
    %c39 = arith.constant 39 : index
    %c0_115 = arith.constant 0 : index
    %c0_116 = arith.constant 0 : index
    %425 = vector.load %arg1[%c39, %c0_115, %c0_116] : memref<162x3x1xf32, #tpu.memory_space<vmem>>, vector<1x3x1xf32>
    %426 = vector.shape_cast %425 : vector<1x3x1xf32> to vector<3x1xf32>
    %427 = vector.extract_strided_slice %307 {offsets = [0, 0, 0], sizes = [2, 1, 256], strides = [1, 1, 1]} : vector<2x3x256xf32> to vector<2x1x256xf32>
    %428 = vector.shape_cast %426 : vector<3x1xf32> to vector<1x3x1xf32>
    %429 = vector.broadcast %427 : vector<2x1x256xf32> to vector<2x3x256xf32>
    %430 = vector.broadcast %428 : vector<1x3x1xf32> to vector<2x3x256xf32>
    %431 = arith.mulf %429, %430 : vector<2x3x256xf32>
    %432 = arith.addf %424, %431 : vector<2x3x256xf32>
    %c40 = arith.constant 40 : index
    %c0_117 = arith.constant 0 : index
    %c0_118 = arith.constant 0 : index
    %433 = vector.load %arg1[%c40, %c0_117, %c0_118] : memref<162x3x1xf32, #tpu.memory_space<vmem>>, vector<1x3x1xf32>
    %434 = vector.shape_cast %433 : vector<1x3x1xf32> to vector<3x1xf32>
    %435 = vector.extract_strided_slice %307 {offsets = [0, 1, 0], sizes = [2, 1, 256], strides = [1, 1, 1]} : vector<2x3x256xf32> to vector<2x1x256xf32>
    %436 = vector.shape_cast %434 : vector<3x1xf32> to vector<1x3x1xf32>
    %437 = vector.broadcast %435 : vector<2x1x256xf32> to vector<2x3x256xf32>
    %438 = vector.broadcast %436 : vector<1x3x1xf32> to vector<2x3x256xf32>
    %439 = arith.mulf %437, %438 : vector<2x3x256xf32>
    %440 = arith.addf %432, %439 : vector<2x3x256xf32>
    %c41 = arith.constant 41 : index
    %c0_119 = arith.constant 0 : index
    %c0_120 = arith.constant 0 : index
    %441 = vector.load %arg1[%c41, %c0_119, %c0_120] : memref<162x3x1xf32, #tpu.memory_space<vmem>>, vector<1x3x1xf32>
    %442 = vector.shape_cast %441 : vector<1x3x1xf32> to vector<3x1xf32>
    %443 = vector.extract_strided_slice %307 {offsets = [0, 2, 0], sizes = [2, 1, 256], strides = [1, 1, 1]} : vector<2x3x256xf32> to vector<2x1x256xf32>
    %444 = vector.shape_cast %442 : vector<3x1xf32> to vector<1x3x1xf32>
    %445 = vector.broadcast %443 : vector<2x1x256xf32> to vector<2x3x256xf32>
    %446 = vector.broadcast %444 : vector<1x3x1xf32> to vector<2x3x256xf32>
    %447 = arith.mulf %445, %446 : vector<2x3x256xf32>
    %448 = arith.addf %440, %447 : vector<2x3x256xf32>
    %c255_i32_121 = arith.constant 255 : i32
    %449 = tpu.dynamic_rotate %307 by %c255_i32_121 dim 2 : vector<2x3x256xf32>, i32 -> vector<2x3x256xf32>
    %cst_122 = arith.constant 0.000000e+00 : f32
    %450 = vector.shape_cast %10 : vector<1x1x256xi1> to vector<1x1x256xi1>
    %451 = vector.broadcast %450 : vector<1x1x256xi1> to vector<2x3x256xi1>
    %452 = vector.broadcast %cst_122 : f32 to vector<2x3x256xf32>
    %453 = arith.select %451, %449, %452 : vector<2x3x256xi1>, vector<2x3x256xf32>
    %c42 = arith.constant 42 : index
    %c0_123 = arith.constant 0 : index
    %c0_124 = arith.constant 0 : index
    %454 = vector.load %arg1[%c42, %c0_123, %c0_124] : memref<162x3x1xf32, #tpu.memory_space<vmem>>, vector<1x3x1xf32>
    %455 = vector.shape_cast %454 : vector<1x3x1xf32> to vector<3x1xf32>
    %456 = vector.extract_strided_slice %453 {offsets = [0, 0, 0], sizes = [2, 1, 256], strides = [1, 1, 1]} : vector<2x3x256xf32> to vector<2x1x256xf32>
    %457 = vector.shape_cast %455 : vector<3x1xf32> to vector<1x3x1xf32>
    %458 = vector.broadcast %456 : vector<2x1x256xf32> to vector<2x3x256xf32>
    %459 = vector.broadcast %457 : vector<1x3x1xf32> to vector<2x3x256xf32>
    %460 = arith.mulf %458, %459 : vector<2x3x256xf32>
    %461 = arith.addf %448, %460 : vector<2x3x256xf32>
    %c43 = arith.constant 43 : index
    %c0_125 = arith.constant 0 : index
    %c0_126 = arith.constant 0 : index
    %462 = vector.load %arg1[%c43, %c0_125, %c0_126] : memref<162x3x1xf32, #tpu.memory_space<vmem>>, vector<1x3x1xf32>
    %463 = vector.shape_cast %462 : vector<1x3x1xf32> to vector<3x1xf32>
    %464 = vector.extract_strided_slice %453 {offsets = [0, 1, 0], sizes = [2, 1, 256], strides = [1, 1, 1]} : vector<2x3x256xf32> to vector<2x1x256xf32>
    %465 = vector.shape_cast %463 : vector<3x1xf32> to vector<1x3x1xf32>
    %466 = vector.broadcast %464 : vector<2x1x256xf32> to vector<2x3x256xf32>
    %467 = vector.broadcast %465 : vector<1x3x1xf32> to vector<2x3x256xf32>
    %468 = arith.mulf %466, %467 : vector<2x3x256xf32>
    %469 = arith.addf %461, %468 : vector<2x3x256xf32>
    %c44 = arith.constant 44 : index
    %c0_127 = arith.constant 0 : index
    %c0_128 = arith.constant 0 : index
    %470 = vector.load %arg1[%c44, %c0_127, %c0_128] : memref<162x3x1xf32, #tpu.memory_space<vmem>>, vector<1x3x1xf32>
    %471 = vector.shape_cast %470 : vector<1x3x1xf32> to vector<3x1xf32>
    %472 = vector.extract_strided_slice %453 {offsets = [0, 2, 0], sizes = [2, 1, 256], strides = [1, 1, 1]} : vector<2x3x256xf32> to vector<2x1x256xf32>
    %473 = vector.shape_cast %471 : vector<3x1xf32> to vector<1x3x1xf32>
    %474 = vector.broadcast %472 : vector<2x1x256xf32> to vector<2x3x256xf32>
    %475 = vector.broadcast %473 : vector<1x3x1xf32> to vector<2x3x256xf32>
    %476 = arith.mulf %474, %475 : vector<2x3x256xf32>
    %477 = arith.addf %469, %476 : vector<2x3x256xf32>
    %c241_i32_129 = arith.constant 241 : i32
    %478 = tpu.dynamic_rotate %307 by %c241_i32_129 dim 2 : vector<2x3x256xf32>, i32 -> vector<2x3x256xf32>
    %479 = arith.andi %6, %8 : vector<1x1x256xi1>
    %cst_130 = arith.constant 0.000000e+00 : f32
    %480 = vector.shape_cast %479 : vector<1x1x256xi1> to vector<1x1x256xi1>
    %481 = vector.broadcast %480 : vector<1x1x256xi1> to vector<2x3x256xi1>
    %482 = vector.broadcast %cst_130 : f32 to vector<2x3x256xf32>
    %483 = arith.select %481, %478, %482 : vector<2x3x256xi1>, vector<2x3x256xf32>
    %c45 = arith.constant 45 : index
    %c0_131 = arith.constant 0 : index
    %c0_132 = arith.constant 0 : index
    %484 = vector.load %arg1[%c45, %c0_131, %c0_132] : memref<162x3x1xf32, #tpu.memory_space<vmem>>, vector<1x3x1xf32>
    %485 = vector.shape_cast %484 : vector<1x3x1xf32> to vector<3x1xf32>
    %486 = vector.extract_strided_slice %483 {offsets = [0, 0, 0], sizes = [2, 1, 256], strides = [1, 1, 1]} : vector<2x3x256xf32> to vector<2x1x256xf32>
    %487 = vector.shape_cast %485 : vector<3x1xf32> to vector<1x3x1xf32>
    %488 = vector.broadcast %486 : vector<2x1x256xf32> to vector<2x3x256xf32>
    %489 = vector.broadcast %487 : vector<1x3x1xf32> to vector<2x3x256xf32>
    %490 = arith.mulf %488, %489 : vector<2x3x256xf32>
    %491 = arith.addf %477, %490 : vector<2x3x256xf32>
    %c46 = arith.constant 46 : index
    %c0_133 = arith.constant 0 : index
    %c0_134 = arith.constant 0 : index
    %492 = vector.load %arg1[%c46, %c0_133, %c0_134] : memref<162x3x1xf32, #tpu.memory_space<vmem>>, vector<1x3x1xf32>
    %493 = vector.shape_cast %492 : vector<1x3x1xf32> to vector<3x1xf32>
    %494 = vector.extract_strided_slice %483 {offsets = [0, 1, 0], sizes = [2, 1, 256], strides = [1, 1, 1]} : vector<2x3x256xf32> to vector<2x1x256xf32>
    %495 = vector.shape_cast %493 : vector<3x1xf32> to vector<1x3x1xf32>
    %496 = vector.broadcast %494 : vector<2x1x256xf32> to vector<2x3x256xf32>
    %497 = vector.broadcast %495 : vector<1x3x1xf32> to vector<2x3x256xf32>
    %498 = arith.mulf %496, %497 : vector<2x3x256xf32>
    %499 = arith.addf %491, %498 : vector<2x3x256xf32>
    %c47 = arith.constant 47 : index
    %c0_135 = arith.constant 0 : index
    %c0_136 = arith.constant 0 : index
    %500 = vector.load %arg1[%c47, %c0_135, %c0_136] : memref<162x3x1xf32, #tpu.memory_space<vmem>>, vector<1x3x1xf32>
    %501 = vector.shape_cast %500 : vector<1x3x1xf32> to vector<3x1xf32>
    %502 = vector.extract_strided_slice %483 {offsets = [0, 2, 0], sizes = [2, 1, 256], strides = [1, 1, 1]} : vector<2x3x256xf32> to vector<2x1x256xf32>
    %503 = vector.shape_cast %501 : vector<3x1xf32> to vector<1x3x1xf32>
    %504 = vector.broadcast %502 : vector<2x1x256xf32> to vector<2x3x256xf32>
    %505 = vector.broadcast %503 : vector<1x3x1xf32> to vector<2x3x256xf32>
    %506 = arith.mulf %504, %505 : vector<2x3x256xf32>
    %507 = arith.addf %499, %506 : vector<2x3x256xf32>
    %c240_i32_137 = arith.constant 240 : i32
    %508 = tpu.dynamic_rotate %307 by %c240_i32_137 dim 2 : vector<2x3x256xf32>, i32 -> vector<2x3x256xf32>
    %cst_138 = arith.constant 0.000000e+00 : f32
    %509 = vector.shape_cast %6 : vector<1x1x256xi1> to vector<1x1x256xi1>
    %510 = vector.broadcast %509 : vector<1x1x256xi1> to vector<2x3x256xi1>
    %511 = vector.broadcast %cst_138 : f32 to vector<2x3x256xf32>
    %512 = arith.select %510, %508, %511 : vector<2x3x256xi1>, vector<2x3x256xf32>
    %c48 = arith.constant 48 : index
    %c0_139 = arith.constant 0 : index
    %c0_140 = arith.constant 0 : index
    %513 = vector.load %arg1[%c48, %c0_139, %c0_140] : memref<162x3x1xf32, #tpu.memory_space<vmem>>, vector<1x3x1xf32>
    %514 = vector.shape_cast %513 : vector<1x3x1xf32> to vector<3x1xf32>
    %515 = vector.extract_strided_slice %512 {offsets = [0, 0, 0], sizes = [2, 1, 256], strides = [1, 1, 1]} : vector<2x3x256xf32> to vector<2x1x256xf32>
    %516 = vector.shape_cast %514 : vector<3x1xf32> to vector<1x3x1xf32>
    %517 = vector.broadcast %515 : vector<2x1x256xf32> to vector<2x3x256xf32>
    %518 = vector.broadcast %516 : vector<1x3x1xf32> to vector<2x3x256xf32>
    %519 = arith.mulf %517, %518 : vector<2x3x256xf32>
    %520 = arith.addf %507, %519 : vector<2x3x256xf32>
    %c49 = arith.constant 49 : index
    %c0_141 = arith.constant 0 : index
    %c0_142 = arith.constant 0 : index
    %521 = vector.load %arg1[%c49, %c0_141, %c0_142] : memref<162x3x1xf32, #tpu.memory_space<vmem>>, vector<1x3x1xf32>
    %522 = vector.shape_cast %521 : vector<1x3x1xf32> to vector<3x1xf32>
    %523 = vector.extract_strided_slice %512 {offsets = [0, 1, 0], sizes = [2, 1, 256], strides = [1, 1, 1]} : vector<2x3x256xf32> to vector<2x1x256xf32>
    %524 = vector.shape_cast %522 : vector<3x1xf32> to vector<1x3x1xf32>
    %525 = vector.broadcast %523 : vector<2x1x256xf32> to vector<2x3x256xf32>
    %526 = vector.broadcast %524 : vector<1x3x1xf32> to vector<2x3x256xf32>
    %527 = arith.mulf %525, %526 : vector<2x3x256xf32>
    %528 = arith.addf %520, %527 : vector<2x3x256xf32>
    %c50 = arith.constant 50 : index
    %c0_143 = arith.constant 0 : index
    %c0_144 = arith.constant 0 : index
    %529 = vector.load %arg1[%c50, %c0_143, %c0_144] : memref<162x3x1xf32, #tpu.memory_space<vmem>>, vector<1x3x1xf32>
    %530 = vector.shape_cast %529 : vector<1x3x1xf32> to vector<3x1xf32>
    %531 = vector.extract_strided_slice %512 {offsets = [0, 2, 0], sizes = [2, 1, 256], strides = [1, 1, 1]} : vector<2x3x256xf32> to vector<2x1x256xf32>
    %532 = vector.shape_cast %530 : vector<3x1xf32> to vector<1x3x1xf32>
    %533 = vector.broadcast %531 : vector<2x1x256xf32> to vector<2x3x256xf32>
    %534 = vector.broadcast %532 : vector<1x3x1xf32> to vector<2x3x256xf32>
    %535 = arith.mulf %533, %534 : vector<2x3x256xf32>
    %536 = arith.addf %528, %535 : vector<2x3x256xf32>
    %c239_i32_145 = arith.constant 239 : i32
    %537 = tpu.dynamic_rotate %307 by %c239_i32_145 dim 2 : vector<2x3x256xf32>, i32 -> vector<2x3x256xf32>
    %538 = arith.andi %6, %10 : vector<1x1x256xi1>
    %cst_146 = arith.constant 0.000000e+00 : f32
    %539 = vector.shape_cast %538 : vector<1x1x256xi1> to vector<1x1x256xi1>
    %540 = vector.broadcast %539 : vector<1x1x256xi1> to vector<2x3x256xi1>
    %541 = vector.broadcast %cst_146 : f32 to vector<2x3x256xf32>
    %542 = arith.select %540, %537, %541 : vector<2x3x256xi1>, vector<2x3x256xf32>
    %c51 = arith.constant 51 : index
    %c0_147 = arith.constant 0 : index
    %c0_148 = arith.constant 0 : index
    %543 = vector.load %arg1[%c51, %c0_147, %c0_148] : memref<162x3x1xf32, #tpu.memory_space<vmem>>, vector<1x3x1xf32>
    %544 = vector.shape_cast %543 : vector<1x3x1xf32> to vector<3x1xf32>
    %545 = vector.extract_strided_slice %542 {offsets = [0, 0, 0], sizes = [2, 1, 256], strides = [1, 1, 1]} : vector<2x3x256xf32> to vector<2x1x256xf32>
    %546 = vector.shape_cast %544 : vector<3x1xf32> to vector<1x3x1xf32>
    %547 = vector.broadcast %545 : vector<2x1x256xf32> to vector<2x3x256xf32>
    %548 = vector.broadcast %546 : vector<1x3x1xf32> to vector<2x3x256xf32>
    %549 = arith.mulf %547, %548 : vector<2x3x256xf32>
    %550 = arith.addf %536, %549 : vector<2x3x256xf32>
    %c52 = arith.constant 52 : index
    %c0_149 = arith.constant 0 : index
    %c0_150 = arith.constant 0 : index
    %551 = vector.load %arg1[%c52, %c0_149, %c0_150] : memref<162x3x1xf32, #tpu.memory_space<vmem>>, vector<1x3x1xf32>
    %552 = vector.shape_cast %551 : vector<1x3x1xf32> to vector<3x1xf32>
    %553 = vector.extract_strided_slice %542 {offsets = [0, 1, 0], sizes = [2, 1, 256], strides = [1, 1, 1]} : vector<2x3x256xf32> to vector<2x1x256xf32>
    %554 = vector.shape_cast %552 : vector<3x1xf32> to vector<1x3x1xf32>
    %555 = vector.broadcast %553 : vector<2x1x256xf32> to vector<2x3x256xf32>
    %556 = vector.broadcast %554 : vector<1x3x1xf32> to vector<2x3x256xf32>
    %557 = arith.mulf %555, %556 : vector<2x3x256xf32>
    %558 = arith.addf %550, %557 : vector<2x3x256xf32>
    %c53 = arith.constant 53 : index
    %c0_151 = arith.constant 0 : index
    %c0_152 = arith.constant 0 : index
    %559 = vector.load %arg1[%c53, %c0_151, %c0_152] : memref<162x3x1xf32, #tpu.memory_space<vmem>>, vector<1x3x1xf32>
    %560 = vector.shape_cast %559 : vector<1x3x1xf32> to vector<3x1xf32>
    %561 = vector.extract_strided_slice %542 {offsets = [0, 2, 0], sizes = [2, 1, 256], strides = [1, 1, 1]} : vector<2x3x256xf32> to vector<2x1x256xf32>
    %562 = vector.shape_cast %560 : vector<3x1xf32> to vector<1x3x1xf32>
    %563 = vector.broadcast %561 : vector<2x1x256xf32> to vector<2x3x256xf32>
    %564 = vector.broadcast %562 : vector<1x3x1xf32> to vector<2x3x256xf32>
    %565 = arith.mulf %563, %564 : vector<2x3x256xf32>
    %566 = arith.addf %558, %565 : vector<2x3x256xf32>
    %c1_153 = arith.constant 1 : index
    %c0_154 = arith.constant 0 : index
    %c0_155 = arith.constant 0 : index
    %567 = vector.load %arg2[%c1_153, %c0_154, %c0_155] : memref<6x3x1xf32, #tpu.memory_space<vmem>>, vector<1x3x1xf32>
    %568 = vector.shape_cast %567 : vector<1x3x1xf32> to vector<3x1xf32>
    %569 = vector.shape_cast %568 : vector<3x1xf32> to vector<1x3x1xf32>
    %570 = vector.broadcast %569 : vector<1x3x1xf32> to vector<2x3x256xf32>
    %571 = arith.addf %566, %570 : vector<2x3x256xf32>
    %572 = arith.mulf %571, %571 : vector<2x3x256xf32>
    %573 = tpu.concatenate %571, %572 in 1 : vector<2x3x256xf32>, vector<2x3x256xf32> -> vector<2x6x256xf32>
    %cst_156 = arith.constant dense<0.000000e+00> : vector<2x6xf32>
    %574 = vector.multi_reduction <add>, %573, %cst_156 [2] : vector<2x6x256xf32> to vector<2x6xf32>
    %575 = vector.shape_cast %574 : vector<2x6xf32> to vector<2x6x1xf32>
    %cst_157 = arith.constant dense<0.000000e+00> : vector<6x1xf32>
    %576 = vector.multi_reduction <add>, %575, %cst_157 [0] : vector<2x6x1xf32> to vector<6x1xf32>
    %577 = vector.shape_cast %576 : vector<6x1xf32> to vector<1x6x1xf32>
    %578 = vector.extract_strided_slice %577 {offsets = [0, 0, 0], sizes = [1, 3, 1], strides = [1, 1, 1]} : vector<1x6x1xf32> to vector<1x3x1xf32>
    %579 = vector.extract_strided_slice %577 {offsets = [0, 3, 0], sizes = [1, 3, 1], strides = [1, 1, 1]} : vector<1x6x1xf32> to vector<1x3x1xf32>
    %cst_158 = arith.constant 0.001953125 : f32
    %580 = vector.broadcast %cst_158 : f32 to vector<1x3x1xf32>
    %581 = arith.mulf %578, %580 : vector<1x3x1xf32>
    %cst_159 = arith.constant 0.001953125 : f32
    %582 = vector.broadcast %cst_159 : f32 to vector<1x3x1xf32>
    %583 = arith.mulf %579, %582 : vector<1x3x1xf32>
    %584 = arith.mulf %581, %581 : vector<1x3x1xf32>
    %585 = arith.subf %583, %584 : vector<1x3x1xf32>
    %cst_160 = arith.constant 0.000000e+00 : f32
    %586 = vector.broadcast %cst_160 : f32 to vector<1x3x1xf32>
    %587 = arith.maximumf %585, %586 : vector<1x3x1xf32>
    %c1_161 = arith.constant 1 : index
    %c0_162 = arith.constant 0 : index
    %c0_163 = arith.constant 0 : index
    %588 = vector.load %arg3[%c1_161, %c0_162, %c0_163] : memref<6x3x1xf32, #tpu.memory_space<vmem>>, vector<1x3x1xf32>
    %589 = vector.shape_cast %588 : vector<1x3x1xf32> to vector<3x1xf32>
    %cst_164 = arith.constant 9.99999974E-6 : f32
    %590 = vector.broadcast %cst_164 : f32 to vector<1x3x1xf32>
    %591 = arith.addf %587, %590 : vector<1x3x1xf32>
    %592 = math.rsqrt %591 : vector<1x3x1xf32>
    %593 = vector.shape_cast %589 : vector<3x1xf32> to vector<1x3x1xf32>
    %594 = arith.mulf %593, %592 : vector<1x3x1xf32>
    %c1_165 = arith.constant 1 : index
    %c0_166 = arith.constant 0 : index
    %c0_167 = arith.constant 0 : index
    %595 = vector.load %arg4[%c1_165, %c0_166, %c0_167] : memref<6x3x1xf32, #tpu.memory_space<vmem>>, vector<1x3x1xf32>
    %596 = vector.shape_cast %595 : vector<1x3x1xf32> to vector<3x1xf32>
    %597 = arith.mulf %581, %594 : vector<1x3x1xf32>
    %598 = vector.shape_cast %596 : vector<3x1xf32> to vector<1x3x1xf32>
    %599 = arith.subf %598, %597 : vector<1x3x1xf32>
    %600 = vector.broadcast %594 : vector<1x3x1xf32> to vector<2x3x256xf32>
    %601 = arith.mulf %571, %600 : vector<2x3x256xf32>
    %602 = vector.broadcast %599 : vector<1x3x1xf32> to vector<2x3x256xf32>
    %603 = arith.addf %601, %602 : vector<2x3x256xf32>
    %c17_i32_168 = arith.constant 17 : i32
    %604 = tpu.dynamic_rotate %603 by %c17_i32_168 dim 2 : vector<2x3x256xf32>, i32 -> vector<2x3x256xf32>
    %605 = arith.andi %4, %8 : vector<1x1x256xi1>
    %cst_169 = arith.constant 0.000000e+00 : f32
    %606 = vector.shape_cast %605 : vector<1x1x256xi1> to vector<1x1x256xi1>
    %607 = vector.broadcast %606 : vector<1x1x256xi1> to vector<2x3x256xi1>
    %608 = vector.broadcast %cst_169 : f32 to vector<2x3x256xf32>
    %609 = arith.select %607, %604, %608 : vector<2x3x256xi1>, vector<2x3x256xf32>
    %c54 = arith.constant 54 : index
    %c0_170 = arith.constant 0 : index
    %c0_171 = arith.constant 0 : index
    %610 = vector.load %arg1[%c54, %c0_170, %c0_171] : memref<162x3x1xf32, #tpu.memory_space<vmem>>, vector<1x3x1xf32>
    %611 = vector.shape_cast %610 : vector<1x3x1xf32> to vector<3x1xf32>
    %612 = vector.extract_strided_slice %609 {offsets = [0, 0, 0], sizes = [2, 1, 256], strides = [1, 1, 1]} : vector<2x3x256xf32> to vector<2x1x256xf32>
    %613 = vector.shape_cast %611 : vector<3x1xf32> to vector<1x3x1xf32>
    %614 = vector.broadcast %612 : vector<2x1x256xf32> to vector<2x3x256xf32>
    %615 = vector.broadcast %613 : vector<1x3x1xf32> to vector<2x3x256xf32>
    %616 = arith.mulf %614, %615 : vector<2x3x256xf32>
    %c55 = arith.constant 55 : index
    %c0_172 = arith.constant 0 : index
    %c0_173 = arith.constant 0 : index
    %617 = vector.load %arg1[%c55, %c0_172, %c0_173] : memref<162x3x1xf32, #tpu.memory_space<vmem>>, vector<1x3x1xf32>
    %618 = vector.shape_cast %617 : vector<1x3x1xf32> to vector<3x1xf32>
    %619 = vector.extract_strided_slice %609 {offsets = [0, 1, 0], sizes = [2, 1, 256], strides = [1, 1, 1]} : vector<2x3x256xf32> to vector<2x1x256xf32>
    %620 = vector.shape_cast %618 : vector<3x1xf32> to vector<1x3x1xf32>
    %621 = vector.broadcast %619 : vector<2x1x256xf32> to vector<2x3x256xf32>
    %622 = vector.broadcast %620 : vector<1x3x1xf32> to vector<2x3x256xf32>
    %623 = arith.mulf %621, %622 : vector<2x3x256xf32>
    %624 = arith.addf %616, %623 : vector<2x3x256xf32>
    %c56 = arith.constant 56 : index
    %c0_174 = arith.constant 0 : index
    %c0_175 = arith.constant 0 : index
    %625 = vector.load %arg1[%c56, %c0_174, %c0_175] : memref<162x3x1xf32, #tpu.memory_space<vmem>>, vector<1x3x1xf32>
    %626 = vector.shape_cast %625 : vector<1x3x1xf32> to vector<3x1xf32>
    %627 = vector.extract_strided_slice %609 {offsets = [0, 2, 0], sizes = [2, 1, 256], strides = [1, 1, 1]} : vector<2x3x256xf32> to vector<2x1x256xf32>
    %628 = vector.shape_cast %626 : vector<3x1xf32> to vector<1x3x1xf32>
    %629 = vector.broadcast %627 : vector<2x1x256xf32> to vector<2x3x256xf32>
    %630 = vector.broadcast %628 : vector<1x3x1xf32> to vector<2x3x256xf32>
    %631 = arith.mulf %629, %630 : vector<2x3x256xf32>
    %632 = arith.addf %624, %631 : vector<2x3x256xf32>
    %c16_i32_176 = arith.constant 16 : i32
    %633 = tpu.dynamic_rotate %603 by %c16_i32_176 dim 2 : vector<2x3x256xf32>, i32 -> vector<2x3x256xf32>
    %cst_177 = arith.constant 0.000000e+00 : f32
    %634 = vector.shape_cast %4 : vector<1x1x256xi1> to vector<1x1x256xi1>
    %635 = vector.broadcast %634 : vector<1x1x256xi1> to vector<2x3x256xi1>
    %636 = vector.broadcast %cst_177 : f32 to vector<2x3x256xf32>
    %637 = arith.select %635, %633, %636 : vector<2x3x256xi1>, vector<2x3x256xf32>
    %c57 = arith.constant 57 : index
    %c0_178 = arith.constant 0 : index
    %c0_179 = arith.constant 0 : index
    %638 = vector.load %arg1[%c57, %c0_178, %c0_179] : memref<162x3x1xf32, #tpu.memory_space<vmem>>, vector<1x3x1xf32>
    %639 = vector.shape_cast %638 : vector<1x3x1xf32> to vector<3x1xf32>
    %640 = vector.extract_strided_slice %637 {offsets = [0, 0, 0], sizes = [2, 1, 256], strides = [1, 1, 1]} : vector<2x3x256xf32> to vector<2x1x256xf32>
    %641 = vector.shape_cast %639 : vector<3x1xf32> to vector<1x3x1xf32>
    %642 = vector.broadcast %640 : vector<2x1x256xf32> to vector<2x3x256xf32>
    %643 = vector.broadcast %641 : vector<1x3x1xf32> to vector<2x3x256xf32>
    %644 = arith.mulf %642, %643 : vector<2x3x256xf32>
    %645 = arith.addf %632, %644 : vector<2x3x256xf32>
    %c58 = arith.constant 58 : index
    %c0_180 = arith.constant 0 : index
    %c0_181 = arith.constant 0 : index
    %646 = vector.load %arg1[%c58, %c0_180, %c0_181] : memref<162x3x1xf32, #tpu.memory_space<vmem>>, vector<1x3x1xf32>
    %647 = vector.shape_cast %646 : vector<1x3x1xf32> to vector<3x1xf32>
    %648 = vector.extract_strided_slice %637 {offsets = [0, 1, 0], sizes = [2, 1, 256], strides = [1, 1, 1]} : vector<2x3x256xf32> to vector<2x1x256xf32>
    %649 = vector.shape_cast %647 : vector<3x1xf32> to vector<1x3x1xf32>
    %650 = vector.broadcast %648 : vector<2x1x256xf32> to vector<2x3x256xf32>
    %651 = vector.broadcast %649 : vector<1x3x1xf32> to vector<2x3x256xf32>
    %652 = arith.mulf %650, %651 : vector<2x3x256xf32>
    %653 = arith.addf %645, %652 : vector<2x3x256xf32>
    %c59 = arith.constant 59 : index
    %c0_182 = arith.constant 0 : index
    %c0_183 = arith.constant 0 : index
    %654 = vector.load %arg1[%c59, %c0_182, %c0_183] : memref<162x3x1xf32, #tpu.memory_space<vmem>>, vector<1x3x1xf32>
    %655 = vector.shape_cast %654 : vector<1x3x1xf32> to vector<3x1xf32>
    %656 = vector.extract_strided_slice %637 {offsets = [0, 2, 0], sizes = [2, 1, 256], strides = [1, 1, 1]} : vector<2x3x256xf32> to vector<2x1x256xf32>
    %657 = vector.shape_cast %655 : vector<3x1xf32> to vector<1x3x1xf32>
    %658 = vector.broadcast %656 : vector<2x1x256xf32> to vector<2x3x256xf32>
    %659 = vector.broadcast %657 : vector<1x3x1xf32> to vector<2x3x256xf32>
    %660 = arith.mulf %658, %659 : vector<2x3x256xf32>
    %661 = arith.addf %653, %660 : vector<2x3x256xf32>
    %c15_i32_184 = arith.constant 15 : i32
    %662 = tpu.dynamic_rotate %603 by %c15_i32_184 dim 2 : vector<2x3x256xf32>, i32 -> vector<2x3x256xf32>
    %663 = arith.andi %4, %10 : vector<1x1x256xi1>
    %cst_185 = arith.constant 0.000000e+00 : f32
    %664 = vector.shape_cast %663 : vector<1x1x256xi1> to vector<1x1x256xi1>
    %665 = vector.broadcast %664 : vector<1x1x256xi1> to vector<2x3x256xi1>
    %666 = vector.broadcast %cst_185 : f32 to vector<2x3x256xf32>
    %667 = arith.select %665, %662, %666 : vector<2x3x256xi1>, vector<2x3x256xf32>
    %c60 = arith.constant 60 : index
    %c0_186 = arith.constant 0 : index
    %c0_187 = arith.constant 0 : index
    %668 = vector.load %arg1[%c60, %c0_186, %c0_187] : memref<162x3x1xf32, #tpu.memory_space<vmem>>, vector<1x3x1xf32>
    %669 = vector.shape_cast %668 : vector<1x3x1xf32> to vector<3x1xf32>
    %670 = vector.extract_strided_slice %667 {offsets = [0, 0, 0], sizes = [2, 1, 256], strides = [1, 1, 1]} : vector<2x3x256xf32> to vector<2x1x256xf32>
    %671 = vector.shape_cast %669 : vector<3x1xf32> to vector<1x3x1xf32>
    %672 = vector.broadcast %670 : vector<2x1x256xf32> to vector<2x3x256xf32>
    %673 = vector.broadcast %671 : vector<1x3x1xf32> to vector<2x3x256xf32>
    %674 = arith.mulf %672, %673 : vector<2x3x256xf32>
    %675 = arith.addf %661, %674 : vector<2x3x256xf32>
    %c61 = arith.constant 61 : index
    %c0_188 = arith.constant 0 : index
    %c0_189 = arith.constant 0 : index
    %676 = vector.load %arg1[%c61, %c0_188, %c0_189] : memref<162x3x1xf32, #tpu.memory_space<vmem>>, vector<1x3x1xf32>
    %677 = vector.shape_cast %676 : vector<1x3x1xf32> to vector<3x1xf32>
    %678 = vector.extract_strided_slice %667 {offsets = [0, 1, 0], sizes = [2, 1, 256], strides = [1, 1, 1]} : vector<2x3x256xf32> to vector<2x1x256xf32>
    %679 = vector.shape_cast %677 : vector<3x1xf32> to vector<1x3x1xf32>
    %680 = vector.broadcast %678 : vector<2x1x256xf32> to vector<2x3x256xf32>
    %681 = vector.broadcast %679 : vector<1x3x1xf32> to vector<2x3x256xf32>
    %682 = arith.mulf %680, %681 : vector<2x3x256xf32>
    %683 = arith.addf %675, %682 : vector<2x3x256xf32>
    %c62 = arith.constant 62 : index
    %c0_190 = arith.constant 0 : index
    %c0_191 = arith.constant 0 : index
    %684 = vector.load %arg1[%c62, %c0_190, %c0_191] : memref<162x3x1xf32, #tpu.memory_space<vmem>>, vector<1x3x1xf32>
    %685 = vector.shape_cast %684 : vector<1x3x1xf32> to vector<3x1xf32>
    %686 = vector.extract_strided_slice %667 {offsets = [0, 2, 0], sizes = [2, 1, 256], strides = [1, 1, 1]} : vector<2x3x256xf32> to vector<2x1x256xf32>
    %687 = vector.shape_cast %685 : vector<3x1xf32> to vector<1x3x1xf32>
    %688 = vector.broadcast %686 : vector<2x1x256xf32> to vector<2x3x256xf32>
    %689 = vector.broadcast %687 : vector<1x3x1xf32> to vector<2x3x256xf32>
    %690 = arith.mulf %688, %689 : vector<2x3x256xf32>
    %691 = arith.addf %683, %690 : vector<2x3x256xf32>
    %c1_i32_192 = arith.constant 1 : i32
    %692 = tpu.dynamic_rotate %603 by %c1_i32_192 dim 2 : vector<2x3x256xf32>, i32 -> vector<2x3x256xf32>
    %cst_193 = arith.constant 0.000000e+00 : f32
    %693 = vector.shape_cast %8 : vector<1x1x256xi1> to vector<1x1x256xi1>
    %694 = vector.broadcast %693 : vector<1x1x256xi1> to vector<2x3x256xi1>
    %695 = vector.broadcast %cst_193 : f32 to vector<2x3x256xf32>
    %696 = arith.select %694, %692, %695 : vector<2x3x256xi1>, vector<2x3x256xf32>
    %c63 = arith.constant 63 : index
    %c0_194 = arith.constant 0 : index
    %c0_195 = arith.constant 0 : index
    %697 = vector.load %arg1[%c63, %c0_194, %c0_195] : memref<162x3x1xf32, #tpu.memory_space<vmem>>, vector<1x3x1xf32>
    %698 = vector.shape_cast %697 : vector<1x3x1xf32> to vector<3x1xf32>
    %699 = vector.extract_strided_slice %696 {offsets = [0, 0, 0], sizes = [2, 1, 256], strides = [1, 1, 1]} : vector<2x3x256xf32> to vector<2x1x256xf32>
    %700 = vector.shape_cast %698 : vector<3x1xf32> to vector<1x3x1xf32>
    %701 = vector.broadcast %699 : vector<2x1x256xf32> to vector<2x3x256xf32>
    %702 = vector.broadcast %700 : vector<1x3x1xf32> to vector<2x3x256xf32>
    %703 = arith.mulf %701, %702 : vector<2x3x256xf32>
    %704 = arith.addf %691, %703 : vector<2x3x256xf32>
    %c64 = arith.constant 64 : index
    %c0_196 = arith.constant 0 : index
    %c0_197 = arith.constant 0 : index
    %705 = vector.load %arg1[%c64, %c0_196, %c0_197] : memref<162x3x1xf32, #tpu.memory_space<vmem>>, vector<1x3x1xf32>
    %706 = vector.shape_cast %705 : vector<1x3x1xf32> to vector<3x1xf32>
    %707 = vector.extract_strided_slice %696 {offsets = [0, 1, 0], sizes = [2, 1, 256], strides = [1, 1, 1]} : vector<2x3x256xf32> to vector<2x1x256xf32>
    %708 = vector.shape_cast %706 : vector<3x1xf32> to vector<1x3x1xf32>
    %709 = vector.broadcast %707 : vector<2x1x256xf32> to vector<2x3x256xf32>
    %710 = vector.broadcast %708 : vector<1x3x1xf32> to vector<2x3x256xf32>
    %711 = arith.mulf %709, %710 : vector<2x3x256xf32>
    %712 = arith.addf %704, %711 : vector<2x3x256xf32>
    %c65 = arith.constant 65 : index
    %c0_198 = arith.constant 0 : index
    %c0_199 = arith.constant 0 : index
    %713 = vector.load %arg1[%c65, %c0_198, %c0_199] : memref<162x3x1xf32, #tpu.memory_space<vmem>>, vector<1x3x1xf32>
    %714 = vector.shape_cast %713 : vector<1x3x1xf32> to vector<3x1xf32>
    %715 = vector.extract_strided_slice %696 {offsets = [0, 2, 0], sizes = [2, 1, 256], strides = [1, 1, 1]} : vector<2x3x256xf32> to vector<2x1x256xf32>
    %716 = vector.shape_cast %714 : vector<3x1xf32> to vector<1x3x1xf32>
    %717 = vector.broadcast %715 : vector<2x1x256xf32> to vector<2x3x256xf32>
    %718 = vector.broadcast %716 : vector<1x3x1xf32> to vector<2x3x256xf32>
    %719 = arith.mulf %717, %718 : vector<2x3x256xf32>
    %720 = arith.addf %712, %719 : vector<2x3x256xf32>
    %c66 = arith.constant 66 : index
    %c0_200 = arith.constant 0 : index
    %c0_201 = arith.constant 0 : index
    %721 = vector.load %arg1[%c66, %c0_200, %c0_201] : memref<162x3x1xf32, #tpu.memory_space<vmem>>, vector<1x3x1xf32>
    %722 = vector.shape_cast %721 : vector<1x3x1xf32> to vector<3x1xf32>
    %723 = vector.extract_strided_slice %603 {offsets = [0, 0, 0], sizes = [2, 1, 256], strides = [1, 1, 1]} : vector<2x3x256xf32> to vector<2x1x256xf32>
    %724 = vector.shape_cast %722 : vector<3x1xf32> to vector<1x3x1xf32>
    %725 = vector.broadcast %723 : vector<2x1x256xf32> to vector<2x3x256xf32>
    %726 = vector.broadcast %724 : vector<1x3x1xf32> to vector<2x3x256xf32>
    %727 = arith.mulf %725, %726 : vector<2x3x256xf32>
    %728 = arith.addf %720, %727 : vector<2x3x256xf32>
    %c67 = arith.constant 67 : index
    %c0_202 = arith.constant 0 : index
    %c0_203 = arith.constant 0 : index
    %729 = vector.load %arg1[%c67, %c0_202, %c0_203] : memref<162x3x1xf32, #tpu.memory_space<vmem>>, vector<1x3x1xf32>
    %730 = vector.shape_cast %729 : vector<1x3x1xf32> to vector<3x1xf32>
    %731 = vector.extract_strided_slice %603 {offsets = [0, 1, 0], sizes = [2, 1, 256], strides = [1, 1, 1]} : vector<2x3x256xf32> to vector<2x1x256xf32>
    %732 = vector.shape_cast %730 : vector<3x1xf32> to vector<1x3x1xf32>
    %733 = vector.broadcast %731 : vector<2x1x256xf32> to vector<2x3x256xf32>
    %734 = vector.broadcast %732 : vector<1x3x1xf32> to vector<2x3x256xf32>
    %735 = arith.mulf %733, %734 : vector<2x3x256xf32>
    %736 = arith.addf %728, %735 : vector<2x3x256xf32>
    %c68 = arith.constant 68 : index
    %c0_204 = arith.constant 0 : index
    %c0_205 = arith.constant 0 : index
    %737 = vector.load %arg1[%c68, %c0_204, %c0_205] : memref<162x3x1xf32, #tpu.memory_space<vmem>>, vector<1x3x1xf32>
    %738 = vector.shape_cast %737 : vector<1x3x1xf32> to vector<3x1xf32>
    %739 = vector.extract_strided_slice %603 {offsets = [0, 2, 0], sizes = [2, 1, 256], strides = [1, 1, 1]} : vector<2x3x256xf32> to vector<2x1x256xf32>
    %740 = vector.shape_cast %738 : vector<3x1xf32> to vector<1x3x1xf32>
    %741 = vector.broadcast %739 : vector<2x1x256xf32> to vector<2x3x256xf32>
    %742 = vector.broadcast %740 : vector<1x3x1xf32> to vector<2x3x256xf32>
    %743 = arith.mulf %741, %742 : vector<2x3x256xf32>
    %744 = arith.addf %736, %743 : vector<2x3x256xf32>
    %c255_i32_206 = arith.constant 255 : i32
    %745 = tpu.dynamic_rotate %603 by %c255_i32_206 dim 2 : vector<2x3x256xf32>, i32 -> vector<2x3x256xf32>
    %cst_207 = arith.constant 0.000000e+00 : f32
    %746 = vector.shape_cast %10 : vector<1x1x256xi1> to vector<1x1x256xi1>
    %747 = vector.broadcast %746 : vector<1x1x256xi1> to vector<2x3x256xi1>
    %748 = vector.broadcast %cst_207 : f32 to vector<2x3x256xf32>
    %749 = arith.select %747, %745, %748 : vector<2x3x256xi1>, vector<2x3x256xf32>
    %c69 = arith.constant 69 : index
    %c0_208 = arith.constant 0 : index
    %c0_209 = arith.constant 0 : index
    %750 = vector.load %arg1[%c69, %c0_208, %c0_209] : memref<162x3x1xf32, #tpu.memory_space<vmem>>, vector<1x3x1xf32>
    %751 = vector.shape_cast %750 : vector<1x3x1xf32> to vector<3x1xf32>
    %752 = vector.extract_strided_slice %749 {offsets = [0, 0, 0], sizes = [2, 1, 256], strides = [1, 1, 1]} : vector<2x3x256xf32> to vector<2x1x256xf32>
    %753 = vector.shape_cast %751 : vector<3x1xf32> to vector<1x3x1xf32>
    %754 = vector.broadcast %752 : vector<2x1x256xf32> to vector<2x3x256xf32>
    %755 = vector.broadcast %753 : vector<1x3x1xf32> to vector<2x3x256xf32>
    %756 = arith.mulf %754, %755 : vector<2x3x256xf32>
    %757 = arith.addf %744, %756 : vector<2x3x256xf32>
    %c70 = arith.constant 70 : index
    %c0_210 = arith.constant 0 : index
    %c0_211 = arith.constant 0 : index
    %758 = vector.load %arg1[%c70, %c0_210, %c0_211] : memref<162x3x1xf32, #tpu.memory_space<vmem>>, vector<1x3x1xf32>
    %759 = vector.shape_cast %758 : vector<1x3x1xf32> to vector<3x1xf32>
    %760 = vector.extract_strided_slice %749 {offsets = [0, 1, 0], sizes = [2, 1, 256], strides = [1, 1, 1]} : vector<2x3x256xf32> to vector<2x1x256xf32>
    %761 = vector.shape_cast %759 : vector<3x1xf32> to vector<1x3x1xf32>
    %762 = vector.broadcast %760 : vector<2x1x256xf32> to vector<2x3x256xf32>
    %763 = vector.broadcast %761 : vector<1x3x1xf32> to vector<2x3x256xf32>
    %764 = arith.mulf %762, %763 : vector<2x3x256xf32>
    %765 = arith.addf %757, %764 : vector<2x3x256xf32>
    %c71 = arith.constant 71 : index
    %c0_212 = arith.constant 0 : index
    %c0_213 = arith.constant 0 : index
    %766 = vector.load %arg1[%c71, %c0_212, %c0_213] : memref<162x3x1xf32, #tpu.memory_space<vmem>>, vector<1x3x1xf32>
    %767 = vector.shape_cast %766 : vector<1x3x1xf32> to vector<3x1xf32>
    %768 = vector.extract_strided_slice %749 {offsets = [0, 2, 0], sizes = [2, 1, 256], strides = [1, 1, 1]} : vector<2x3x256xf32> to vector<2x1x256xf32>
    %769 = vector.shape_cast %767 : vector<3x1xf32> to vector<1x3x1xf32>
    %770 = vector.broadcast %768 : vector<2x1x256xf32> to vector<2x3x256xf32>
    %771 = vector.broadcast %769 : vector<1x3x1xf32> to vector<2x3x256xf32>
    %772 = arith.mulf %770, %771 : vector<2x3x256xf32>
    %773 = arith.addf %765, %772 : vector<2x3x256xf32>
    %c241_i32_214 = arith.constant 241 : i32
    %774 = tpu.dynamic_rotate %603 by %c241_i32_214 dim 2 : vector<2x3x256xf32>, i32 -> vector<2x3x256xf32>
    %775 = arith.andi %6, %8 : vector<1x1x256xi1>
    %cst_215 = arith.constant 0.000000e+00 : f32
    %776 = vector.shape_cast %775 : vector<1x1x256xi1> to vector<1x1x256xi1>
    %777 = vector.broadcast %776 : vector<1x1x256xi1> to vector<2x3x256xi1>
    %778 = vector.broadcast %cst_215 : f32 to vector<2x3x256xf32>
    %779 = arith.select %777, %774, %778 : vector<2x3x256xi1>, vector<2x3x256xf32>
    %c72 = arith.constant 72 : index
    %c0_216 = arith.constant 0 : index
    %c0_217 = arith.constant 0 : index
    %780 = vector.load %arg1[%c72, %c0_216, %c0_217] : memref<162x3x1xf32, #tpu.memory_space<vmem>>, vector<1x3x1xf32>
    %781 = vector.shape_cast %780 : vector<1x3x1xf32> to vector<3x1xf32>
    %782 = vector.extract_strided_slice %779 {offsets = [0, 0, 0], sizes = [2, 1, 256], strides = [1, 1, 1]} : vector<2x3x256xf32> to vector<2x1x256xf32>
    %783 = vector.shape_cast %781 : vector<3x1xf32> to vector<1x3x1xf32>
    %784 = vector.broadcast %782 : vector<2x1x256xf32> to vector<2x3x256xf32>
    %785 = vector.broadcast %783 : vector<1x3x1xf32> to vector<2x3x256xf32>
    %786 = arith.mulf %784, %785 : vector<2x3x256xf32>
    %787 = arith.addf %773, %786 : vector<2x3x256xf32>
    %c73 = arith.constant 73 : index
    %c0_218 = arith.constant 0 : index
    %c0_219 = arith.constant 0 : index
    %788 = vector.load %arg1[%c73, %c0_218, %c0_219] : memref<162x3x1xf32, #tpu.memory_space<vmem>>, vector<1x3x1xf32>
    %789 = vector.shape_cast %788 : vector<1x3x1xf32> to vector<3x1xf32>
    %790 = vector.extract_strided_slice %779 {offsets = [0, 1, 0], sizes = [2, 1, 256], strides = [1, 1, 1]} : vector<2x3x256xf32> to vector<2x1x256xf32>
    %791 = vector.shape_cast %789 : vector<3x1xf32> to vector<1x3x1xf32>
    %792 = vector.broadcast %790 : vector<2x1x256xf32> to vector<2x3x256xf32>
    %793 = vector.broadcast %791 : vector<1x3x1xf32> to vector<2x3x256xf32>
    %794 = arith.mulf %792, %793 : vector<2x3x256xf32>
    %795 = arith.addf %787, %794 : vector<2x3x256xf32>
    %c74 = arith.constant 74 : index
    %c0_220 = arith.constant 0 : index
    %c0_221 = arith.constant 0 : index
    %796 = vector.load %arg1[%c74, %c0_220, %c0_221] : memref<162x3x1xf32, #tpu.memory_space<vmem>>, vector<1x3x1xf32>
    %797 = vector.shape_cast %796 : vector<1x3x1xf32> to vector<3x1xf32>
    %798 = vector.extract_strided_slice %779 {offsets = [0, 2, 0], sizes = [2, 1, 256], strides = [1, 1, 1]} : vector<2x3x256xf32> to vector<2x1x256xf32>
    %799 = vector.shape_cast %797 : vector<3x1xf32> to vector<1x3x1xf32>
    %800 = vector.broadcast %798 : vector<2x1x256xf32> to vector<2x3x256xf32>
    %801 = vector.broadcast %799 : vector<1x3x1xf32> to vector<2x3x256xf32>
    %802 = arith.mulf %800, %801 : vector<2x3x256xf32>
    %803 = arith.addf %795, %802 : vector<2x3x256xf32>
    %c240_i32_222 = arith.constant 240 : i32
    %804 = tpu.dynamic_rotate %603 by %c240_i32_222 dim 2 : vector<2x3x256xf32>, i32 -> vector<2x3x256xf32>
    %cst_223 = arith.constant 0.000000e+00 : f32
    %805 = vector.shape_cast %6 : vector<1x1x256xi1> to vector<1x1x256xi1>
    %806 = vector.broadcast %805 : vector<1x1x256xi1> to vector<2x3x256xi1>
    %807 = vector.broadcast %cst_223 : f32 to vector<2x3x256xf32>
    %808 = arith.select %806, %804, %807 : vector<2x3x256xi1>, vector<2x3x256xf32>
    %c75 = arith.constant 75 : index
    %c0_224 = arith.constant 0 : index
    %c0_225 = arith.constant 0 : index
    %809 = vector.load %arg1[%c75, %c0_224, %c0_225] : memref<162x3x1xf32, #tpu.memory_space<vmem>>, vector<1x3x1xf32>
    %810 = vector.shape_cast %809 : vector<1x3x1xf32> to vector<3x1xf32>
    %811 = vector.extract_strided_slice %808 {offsets = [0, 0, 0], sizes = [2, 1, 256], strides = [1, 1, 1]} : vector<2x3x256xf32> to vector<2x1x256xf32>
    %812 = vector.shape_cast %810 : vector<3x1xf32> to vector<1x3x1xf32>
    %813 = vector.broadcast %811 : vector<2x1x256xf32> to vector<2x3x256xf32>
    %814 = vector.broadcast %812 : vector<1x3x1xf32> to vector<2x3x256xf32>
    %815 = arith.mulf %813, %814 : vector<2x3x256xf32>
    %816 = arith.addf %803, %815 : vector<2x3x256xf32>
    %c76 = arith.constant 76 : index
    %c0_226 = arith.constant 0 : index
    %c0_227 = arith.constant 0 : index
    %817 = vector.load %arg1[%c76, %c0_226, %c0_227] : memref<162x3x1xf32, #tpu.memory_space<vmem>>, vector<1x3x1xf32>
    %818 = vector.shape_cast %817 : vector<1x3x1xf32> to vector<3x1xf32>
    %819 = vector.extract_strided_slice %808 {offsets = [0, 1, 0], sizes = [2, 1, 256], strides = [1, 1, 1]} : vector<2x3x256xf32> to vector<2x1x256xf32>
    %820 = vector.shape_cast %818 : vector<3x1xf32> to vector<1x3x1xf32>
    %821 = vector.broadcast %819 : vector<2x1x256xf32> to vector<2x3x256xf32>
    %822 = vector.broadcast %820 : vector<1x3x1xf32> to vector<2x3x256xf32>
    %823 = arith.mulf %821, %822 : vector<2x3x256xf32>
    %824 = arith.addf %816, %823 : vector<2x3x256xf32>
    %c77 = arith.constant 77 : index
    %c0_228 = arith.constant 0 : index
    %c0_229 = arith.constant 0 : index
    %825 = vector.load %arg1[%c77, %c0_228, %c0_229] : memref<162x3x1xf32, #tpu.memory_space<vmem>>, vector<1x3x1xf32>
    %826 = vector.shape_cast %825 : vector<1x3x1xf32> to vector<3x1xf32>
    %827 = vector.extract_strided_slice %808 {offsets = [0, 2, 0], sizes = [2, 1, 256], strides = [1, 1, 1]} : vector<2x3x256xf32> to vector<2x1x256xf32>
    %828 = vector.shape_cast %826 : vector<3x1xf32> to vector<1x3x1xf32>
    %829 = vector.broadcast %827 : vector<2x1x256xf32> to vector<2x3x256xf32>
    %830 = vector.broadcast %828 : vector<1x3x1xf32> to vector<2x3x256xf32>
    %831 = arith.mulf %829, %830 : vector<2x3x256xf32>
    %832 = arith.addf %824, %831 : vector<2x3x256xf32>
    %c239_i32_230 = arith.constant 239 : i32
    %833 = tpu.dynamic_rotate %603 by %c239_i32_230 dim 2 : vector<2x3x256xf32>, i32 -> vector<2x3x256xf32>
    %834 = arith.andi %6, %10 : vector<1x1x256xi1>
    %cst_231 = arith.constant 0.000000e+00 : f32
    %835 = vector.shape_cast %834 : vector<1x1x256xi1> to vector<1x1x256xi1>
    %836 = vector.broadcast %835 : vector<1x1x256xi1> to vector<2x3x256xi1>
    %837 = vector.broadcast %cst_231 : f32 to vector<2x3x256xf32>
    %838 = arith.select %836, %833, %837 : vector<2x3x256xi1>, vector<2x3x256xf32>
    %c78 = arith.constant 78 : index
    %c0_232 = arith.constant 0 : index
    %c0_233 = arith.constant 0 : index
    %839 = vector.load %arg1[%c78, %c0_232, %c0_233] : memref<162x3x1xf32, #tpu.memory_space<vmem>>, vector<1x3x1xf32>
    %840 = vector.shape_cast %839 : vector<1x3x1xf32> to vector<3x1xf32>
    %841 = vector.extract_strided_slice %838 {offsets = [0, 0, 0], sizes = [2, 1, 256], strides = [1, 1, 1]} : vector<2x3x256xf32> to vector<2x1x256xf32>
    %842 = vector.shape_cast %840 : vector<3x1xf32> to vector<1x3x1xf32>
    %843 = vector.broadcast %841 : vector<2x1x256xf32> to vector<2x3x256xf32>
    %844 = vector.broadcast %842 : vector<1x3x1xf32> to vector<2x3x256xf32>
    %845 = arith.mulf %843, %844 : vector<2x3x256xf32>
    %846 = arith.addf %832, %845 : vector<2x3x256xf32>
    %c79 = arith.constant 79 : index
    %c0_234 = arith.constant 0 : index
    %c0_235 = arith.constant 0 : index
    %847 = vector.load %arg1[%c79, %c0_234, %c0_235] : memref<162x3x1xf32, #tpu.memory_space<vmem>>, vector<1x3x1xf32>
    %848 = vector.shape_cast %847 : vector<1x3x1xf32> to vector<3x1xf32>
    %849 = vector.extract_strided_slice %838 {offsets = [0, 1, 0], sizes = [2, 1, 256], strides = [1, 1, 1]} : vector<2x3x256xf32> to vector<2x1x256xf32>
    %850 = vector.shape_cast %848 : vector<3x1xf32> to vector<1x3x1xf32>
    %851 = vector.broadcast %849 : vector<2x1x256xf32> to vector<2x3x256xf32>
    %852 = vector.broadcast %850 : vector<1x3x1xf32> to vector<2x3x256xf32>
    %853 = arith.mulf %851, %852 : vector<2x3x256xf32>
    %854 = arith.addf %846, %853 : vector<2x3x256xf32>
    %c80 = arith.constant 80 : index
    %c0_236 = arith.constant 0 : index
    %c0_237 = arith.constant 0 : index
    %855 = vector.load %arg1[%c80, %c0_236, %c0_237] : memref<162x3x1xf32, #tpu.memory_space<vmem>>, vector<1x3x1xf32>
    %856 = vector.shape_cast %855 : vector<1x3x1xf32> to vector<3x1xf32>
    %857 = vector.extract_strided_slice %838 {offsets = [0, 2, 0], sizes = [2, 1, 256], strides = [1, 1, 1]} : vector<2x3x256xf32> to vector<2x1x256xf32>
    %858 = vector.shape_cast %856 : vector<3x1xf32> to vector<1x3x1xf32>
    %859 = vector.broadcast %857 : vector<2x1x256xf32> to vector<2x3x256xf32>
    %860 = vector.broadcast %858 : vector<1x3x1xf32> to vector<2x3x256xf32>
    %861 = arith.mulf %859, %860 : vector<2x3x256xf32>
    %862 = arith.addf %854, %861 : vector<2x3x256xf32>
    %c2_238 = arith.constant 2 : index
    %c0_239 = arith.constant 0 : index
    %c0_240 = arith.constant 0 : index
    %863 = vector.load %arg2[%c2_238, %c0_239, %c0_240] : memref<6x3x1xf32, #tpu.memory_space<vmem>>, vector<1x3x1xf32>
    %864 = vector.shape_cast %863 : vector<1x3x1xf32> to vector<3x1xf32>
    %865 = vector.shape_cast %864 : vector<3x1xf32> to vector<1x3x1xf32>
    %866 = vector.broadcast %865 : vector<1x3x1xf32> to vector<2x3x256xf32>
    %867 = arith.addf %862, %866 : vector<2x3x256xf32>
    %868 = arith.mulf %867, %867 : vector<2x3x256xf32>
    %869 = tpu.concatenate %867, %868 in 1 : vector<2x3x256xf32>, vector<2x3x256xf32> -> vector<2x6x256xf32>
    %cst_241 = arith.constant dense<0.000000e+00> : vector<2x6xf32>
    %870 = vector.multi_reduction <add>, %869, %cst_241 [2] : vector<2x6x256xf32> to vector<2x6xf32>
    %871 = vector.shape_cast %870 : vector<2x6xf32> to vector<2x6x1xf32>
    %cst_242 = arith.constant dense<0.000000e+00> : vector<6x1xf32>
    %872 = vector.multi_reduction <add>, %871, %cst_242 [0] : vector<2x6x1xf32> to vector<6x1xf32>
    %873 = vector.shape_cast %872 : vector<6x1xf32> to vector<1x6x1xf32>
    %874 = vector.extract_strided_slice %873 {offsets = [0, 0, 0], sizes = [1, 3, 1], strides = [1, 1, 1]} : vector<1x6x1xf32> to vector<1x3x1xf32>
    %875 = vector.extract_strided_slice %873 {offsets = [0, 3, 0], sizes = [1, 3, 1], strides = [1, 1, 1]} : vector<1x6x1xf32> to vector<1x3x1xf32>
    %cst_243 = arith.constant 0.001953125 : f32
    %876 = vector.broadcast %cst_243 : f32 to vector<1x3x1xf32>
    %877 = arith.mulf %874, %876 : vector<1x3x1xf32>
    %cst_244 = arith.constant 0.001953125 : f32
    %878 = vector.broadcast %cst_244 : f32 to vector<1x3x1xf32>
    %879 = arith.mulf %875, %878 : vector<1x3x1xf32>
    %880 = arith.mulf %877, %877 : vector<1x3x1xf32>
    %881 = arith.subf %879, %880 : vector<1x3x1xf32>
    %cst_245 = arith.constant 0.000000e+00 : f32
    %882 = vector.broadcast %cst_245 : f32 to vector<1x3x1xf32>
    %883 = arith.maximumf %881, %882 : vector<1x3x1xf32>
    %c2_246 = arith.constant 2 : index
    %c0_247 = arith.constant 0 : index
    %c0_248 = arith.constant 0 : index
    %884 = vector.load %arg3[%c2_246, %c0_247, %c0_248] : memref<6x3x1xf32, #tpu.memory_space<vmem>>, vector<1x3x1xf32>
    %885 = vector.shape_cast %884 : vector<1x3x1xf32> to vector<3x1xf32>
    %cst_249 = arith.constant 9.99999974E-6 : f32
    %886 = vector.broadcast %cst_249 : f32 to vector<1x3x1xf32>
    %887 = arith.addf %883, %886 : vector<1x3x1xf32>
    %888 = math.rsqrt %887 : vector<1x3x1xf32>
    %889 = vector.shape_cast %885 : vector<3x1xf32> to vector<1x3x1xf32>
    %890 = arith.mulf %889, %888 : vector<1x3x1xf32>
    %c2_250 = arith.constant 2 : index
    %c0_251 = arith.constant 0 : index
    %c0_252 = arith.constant 0 : index
    %891 = vector.load %arg4[%c2_250, %c0_251, %c0_252] : memref<6x3x1xf32, #tpu.memory_space<vmem>>, vector<1x3x1xf32>
    %892 = vector.shape_cast %891 : vector<1x3x1xf32> to vector<3x1xf32>
    %893 = arith.mulf %877, %890 : vector<1x3x1xf32>
    %894 = vector.shape_cast %892 : vector<3x1xf32> to vector<1x3x1xf32>
    %895 = arith.subf %894, %893 : vector<1x3x1xf32>
    %896 = vector.broadcast %890 : vector<1x3x1xf32> to vector<2x3x256xf32>
    %897 = arith.mulf %867, %896 : vector<2x3x256xf32>
    %898 = vector.broadcast %895 : vector<1x3x1xf32> to vector<2x3x256xf32>
    %899 = arith.addf %897, %898 : vector<2x3x256xf32>
    %c17_i32_253 = arith.constant 17 : i32
    %900 = tpu.dynamic_rotate %899 by %c17_i32_253 dim 2 : vector<2x3x256xf32>, i32 -> vector<2x3x256xf32>
    %901 = arith.andi %4, %8 : vector<1x1x256xi1>
    %cst_254 = arith.constant 0.000000e+00 : f32
    %902 = vector.shape_cast %901 : vector<1x1x256xi1> to vector<1x1x256xi1>
    %903 = vector.broadcast %902 : vector<1x1x256xi1> to vector<2x3x256xi1>
    %904 = vector.broadcast %cst_254 : f32 to vector<2x3x256xf32>
    %905 = arith.select %903, %900, %904 : vector<2x3x256xi1>, vector<2x3x256xf32>
    %c81 = arith.constant 81 : index
    %c0_255 = arith.constant 0 : index
    %c0_256 = arith.constant 0 : index
    %906 = vector.load %arg1[%c81, %c0_255, %c0_256] : memref<162x3x1xf32, #tpu.memory_space<vmem>>, vector<1x3x1xf32>
    %907 = vector.shape_cast %906 : vector<1x3x1xf32> to vector<3x1xf32>
    %908 = vector.extract_strided_slice %905 {offsets = [0, 0, 0], sizes = [2, 1, 256], strides = [1, 1, 1]} : vector<2x3x256xf32> to vector<2x1x256xf32>
    %909 = vector.shape_cast %907 : vector<3x1xf32> to vector<1x3x1xf32>
    %910 = vector.broadcast %908 : vector<2x1x256xf32> to vector<2x3x256xf32>
    %911 = vector.broadcast %909 : vector<1x3x1xf32> to vector<2x3x256xf32>
    %912 = arith.mulf %910, %911 : vector<2x3x256xf32>
    %c82 = arith.constant 82 : index
    %c0_257 = arith.constant 0 : index
    %c0_258 = arith.constant 0 : index
    %913 = vector.load %arg1[%c82, %c0_257, %c0_258] : memref<162x3x1xf32, #tpu.memory_space<vmem>>, vector<1x3x1xf32>
    %914 = vector.shape_cast %913 : vector<1x3x1xf32> to vector<3x1xf32>
    %915 = vector.extract_strided_slice %905 {offsets = [0, 1, 0], sizes = [2, 1, 256], strides = [1, 1, 1]} : vector<2x3x256xf32> to vector<2x1x256xf32>
    %916 = vector.shape_cast %914 : vector<3x1xf32> to vector<1x3x1xf32>
    %917 = vector.broadcast %915 : vector<2x1x256xf32> to vector<2x3x256xf32>
    %918 = vector.broadcast %916 : vector<1x3x1xf32> to vector<2x3x256xf32>
    %919 = arith.mulf %917, %918 : vector<2x3x256xf32>
    %920 = arith.addf %912, %919 : vector<2x3x256xf32>
    %c83 = arith.constant 83 : index
    %c0_259 = arith.constant 0 : index
    %c0_260 = arith.constant 0 : index
    %921 = vector.load %arg1[%c83, %c0_259, %c0_260] : memref<162x3x1xf32, #tpu.memory_space<vmem>>, vector<1x3x1xf32>
    %922 = vector.shape_cast %921 : vector<1x3x1xf32> to vector<3x1xf32>
    %923 = vector.extract_strided_slice %905 {offsets = [0, 2, 0], sizes = [2, 1, 256], strides = [1, 1, 1]} : vector<2x3x256xf32> to vector<2x1x256xf32>
    %924 = vector.shape_cast %922 : vector<3x1xf32> to vector<1x3x1xf32>
    %925 = vector.broadcast %923 : vector<2x1x256xf32> to vector<2x3x256xf32>
    %926 = vector.broadcast %924 : vector<1x3x1xf32> to vector<2x3x256xf32>
    %927 = arith.mulf %925, %926 : vector<2x3x256xf32>
    %928 = arith.addf %920, %927 : vector<2x3x256xf32>
    %c16_i32_261 = arith.constant 16 : i32
    %929 = tpu.dynamic_rotate %899 by %c16_i32_261 dim 2 : vector<2x3x256xf32>, i32 -> vector<2x3x256xf32>
    %cst_262 = arith.constant 0.000000e+00 : f32
    %930 = vector.shape_cast %4 : vector<1x1x256xi1> to vector<1x1x256xi1>
    %931 = vector.broadcast %930 : vector<1x1x256xi1> to vector<2x3x256xi1>
    %932 = vector.broadcast %cst_262 : f32 to vector<2x3x256xf32>
    %933 = arith.select %931, %929, %932 : vector<2x3x256xi1>, vector<2x3x256xf32>
    %c84 = arith.constant 84 : index
    %c0_263 = arith.constant 0 : index
    %c0_264 = arith.constant 0 : index
    %934 = vector.load %arg1[%c84, %c0_263, %c0_264] : memref<162x3x1xf32, #tpu.memory_space<vmem>>, vector<1x3x1xf32>
    %935 = vector.shape_cast %934 : vector<1x3x1xf32> to vector<3x1xf32>
    %936 = vector.extract_strided_slice %933 {offsets = [0, 0, 0], sizes = [2, 1, 256], strides = [1, 1, 1]} : vector<2x3x256xf32> to vector<2x1x256xf32>
    %937 = vector.shape_cast %935 : vector<3x1xf32> to vector<1x3x1xf32>
    %938 = vector.broadcast %936 : vector<2x1x256xf32> to vector<2x3x256xf32>
    %939 = vector.broadcast %937 : vector<1x3x1xf32> to vector<2x3x256xf32>
    %940 = arith.mulf %938, %939 : vector<2x3x256xf32>
    %941 = arith.addf %928, %940 : vector<2x3x256xf32>
    %c85 = arith.constant 85 : index
    %c0_265 = arith.constant 0 : index
    %c0_266 = arith.constant 0 : index
    %942 = vector.load %arg1[%c85, %c0_265, %c0_266] : memref<162x3x1xf32, #tpu.memory_space<vmem>>, vector<1x3x1xf32>
    %943 = vector.shape_cast %942 : vector<1x3x1xf32> to vector<3x1xf32>
    %944 = vector.extract_strided_slice %933 {offsets = [0, 1, 0], sizes = [2, 1, 256], strides = [1, 1, 1]} : vector<2x3x256xf32> to vector<2x1x256xf32>
    %945 = vector.shape_cast %943 : vector<3x1xf32> to vector<1x3x1xf32>
    %946 = vector.broadcast %944 : vector<2x1x256xf32> to vector<2x3x256xf32>
    %947 = vector.broadcast %945 : vector<1x3x1xf32> to vector<2x3x256xf32>
    %948 = arith.mulf %946, %947 : vector<2x3x256xf32>
    %949 = arith.addf %941, %948 : vector<2x3x256xf32>
    %c86 = arith.constant 86 : index
    %c0_267 = arith.constant 0 : index
    %c0_268 = arith.constant 0 : index
    %950 = vector.load %arg1[%c86, %c0_267, %c0_268] : memref<162x3x1xf32, #tpu.memory_space<vmem>>, vector<1x3x1xf32>
    %951 = vector.shape_cast %950 : vector<1x3x1xf32> to vector<3x1xf32>
    %952 = vector.extract_strided_slice %933 {offsets = [0, 2, 0], sizes = [2, 1, 256], strides = [1, 1, 1]} : vector<2x3x256xf32> to vector<2x1x256xf32>
    %953 = vector.shape_cast %951 : vector<3x1xf32> to vector<1x3x1xf32>
    %954 = vector.broadcast %952 : vector<2x1x256xf32> to vector<2x3x256xf32>
    %955 = vector.broadcast %953 : vector<1x3x1xf32> to vector<2x3x256xf32>
    %956 = arith.mulf %954, %955 : vector<2x3x256xf32>
    %957 = arith.addf %949, %956 : vector<2x3x256xf32>
    %c15_i32_269 = arith.constant 15 : i32
    %958 = tpu.dynamic_rotate %899 by %c15_i32_269 dim 2 : vector<2x3x256xf32>, i32 -> vector<2x3x256xf32>
    %959 = arith.andi %4, %10 : vector<1x1x256xi1>
    %cst_270 = arith.constant 0.000000e+00 : f32
    %960 = vector.shape_cast %959 : vector<1x1x256xi1> to vector<1x1x256xi1>
    %961 = vector.broadcast %960 : vector<1x1x256xi1> to vector<2x3x256xi1>
    %962 = vector.broadcast %cst_270 : f32 to vector<2x3x256xf32>
    %963 = arith.select %961, %958, %962 : vector<2x3x256xi1>, vector<2x3x256xf32>
    %c87 = arith.constant 87 : index
    %c0_271 = arith.constant 0 : index
    %c0_272 = arith.constant 0 : index
    %964 = vector.load %arg1[%c87, %c0_271, %c0_272] : memref<162x3x1xf32, #tpu.memory_space<vmem>>, vector<1x3x1xf32>
    %965 = vector.shape_cast %964 : vector<1x3x1xf32> to vector<3x1xf32>
    %966 = vector.extract_strided_slice %963 {offsets = [0, 0, 0], sizes = [2, 1, 256], strides = [1, 1, 1]} : vector<2x3x256xf32> to vector<2x1x256xf32>
    %967 = vector.shape_cast %965 : vector<3x1xf32> to vector<1x3x1xf32>
    %968 = vector.broadcast %966 : vector<2x1x256xf32> to vector<2x3x256xf32>
    %969 = vector.broadcast %967 : vector<1x3x1xf32> to vector<2x3x256xf32>
    %970 = arith.mulf %968, %969 : vector<2x3x256xf32>
    %971 = arith.addf %957, %970 : vector<2x3x256xf32>
    %c88 = arith.constant 88 : index
    %c0_273 = arith.constant 0 : index
    %c0_274 = arith.constant 0 : index
    %972 = vector.load %arg1[%c88, %c0_273, %c0_274] : memref<162x3x1xf32, #tpu.memory_space<vmem>>, vector<1x3x1xf32>
    %973 = vector.shape_cast %972 : vector<1x3x1xf32> to vector<3x1xf32>
    %974 = vector.extract_strided_slice %963 {offsets = [0, 1, 0], sizes = [2, 1, 256], strides = [1, 1, 1]} : vector<2x3x256xf32> to vector<2x1x256xf32>
    %975 = vector.shape_cast %973 : vector<3x1xf32> to vector<1x3x1xf32>
    %976 = vector.broadcast %974 : vector<2x1x256xf32> to vector<2x3x256xf32>
    %977 = vector.broadcast %975 : vector<1x3x1xf32> to vector<2x3x256xf32>
    %978 = arith.mulf %976, %977 : vector<2x3x256xf32>
    %979 = arith.addf %971, %978 : vector<2x3x256xf32>
    %c89 = arith.constant 89 : index
    %c0_275 = arith.constant 0 : index
    %c0_276 = arith.constant 0 : index
    %980 = vector.load %arg1[%c89, %c0_275, %c0_276] : memref<162x3x1xf32, #tpu.memory_space<vmem>>, vector<1x3x1xf32>
    %981 = vector.shape_cast %980 : vector<1x3x1xf32> to vector<3x1xf32>
    %982 = vector.extract_strided_slice %963 {offsets = [0, 2, 0], sizes = [2, 1, 256], strides = [1, 1, 1]} : vector<2x3x256xf32> to vector<2x1x256xf32>
    %983 = vector.shape_cast %981 : vector<3x1xf32> to vector<1x3x1xf32>
    %984 = vector.broadcast %982 : vector<2x1x256xf32> to vector<2x3x256xf32>
    %985 = vector.broadcast %983 : vector<1x3x1xf32> to vector<2x3x256xf32>
    %986 = arith.mulf %984, %985 : vector<2x3x256xf32>
    %987 = arith.addf %979, %986 : vector<2x3x256xf32>
    %c1_i32_277 = arith.constant 1 : i32
    %988 = tpu.dynamic_rotate %899 by %c1_i32_277 dim 2 : vector<2x3x256xf32>, i32 -> vector<2x3x256xf32>
    %cst_278 = arith.constant 0.000000e+00 : f32
    %989 = vector.shape_cast %8 : vector<1x1x256xi1> to vector<1x1x256xi1>
    %990 = vector.broadcast %989 : vector<1x1x256xi1> to vector<2x3x256xi1>
    %991 = vector.broadcast %cst_278 : f32 to vector<2x3x256xf32>
    %992 = arith.select %990, %988, %991 : vector<2x3x256xi1>, vector<2x3x256xf32>
    %c90 = arith.constant 90 : index
    %c0_279 = arith.constant 0 : index
    %c0_280 = arith.constant 0 : index
    %993 = vector.load %arg1[%c90, %c0_279, %c0_280] : memref<162x3x1xf32, #tpu.memory_space<vmem>>, vector<1x3x1xf32>
    %994 = vector.shape_cast %993 : vector<1x3x1xf32> to vector<3x1xf32>
    %995 = vector.extract_strided_slice %992 {offsets = [0, 0, 0], sizes = [2, 1, 256], strides = [1, 1, 1]} : vector<2x3x256xf32> to vector<2x1x256xf32>
    %996 = vector.shape_cast %994 : vector<3x1xf32> to vector<1x3x1xf32>
    %997 = vector.broadcast %995 : vector<2x1x256xf32> to vector<2x3x256xf32>
    %998 = vector.broadcast %996 : vector<1x3x1xf32> to vector<2x3x256xf32>
    %999 = arith.mulf %997, %998 : vector<2x3x256xf32>
    %1000 = arith.addf %987, %999 : vector<2x3x256xf32>
    %c91 = arith.constant 91 : index
    %c0_281 = arith.constant 0 : index
    %c0_282 = arith.constant 0 : index
    %1001 = vector.load %arg1[%c91, %c0_281, %c0_282] : memref<162x3x1xf32, #tpu.memory_space<vmem>>, vector<1x3x1xf32>
    %1002 = vector.shape_cast %1001 : vector<1x3x1xf32> to vector<3x1xf32>
    %1003 = vector.extract_strided_slice %992 {offsets = [0, 1, 0], sizes = [2, 1, 256], strides = [1, 1, 1]} : vector<2x3x256xf32> to vector<2x1x256xf32>
    %1004 = vector.shape_cast %1002 : vector<3x1xf32> to vector<1x3x1xf32>
    %1005 = vector.broadcast %1003 : vector<2x1x256xf32> to vector<2x3x256xf32>
    %1006 = vector.broadcast %1004 : vector<1x3x1xf32> to vector<2x3x256xf32>
    %1007 = arith.mulf %1005, %1006 : vector<2x3x256xf32>
    %1008 = arith.addf %1000, %1007 : vector<2x3x256xf32>
    %c92 = arith.constant 92 : index
    %c0_283 = arith.constant 0 : index
    %c0_284 = arith.constant 0 : index
    %1009 = vector.load %arg1[%c92, %c0_283, %c0_284] : memref<162x3x1xf32, #tpu.memory_space<vmem>>, vector<1x3x1xf32>
    %1010 = vector.shape_cast %1009 : vector<1x3x1xf32> to vector<3x1xf32>
    %1011 = vector.extract_strided_slice %992 {offsets = [0, 2, 0], sizes = [2, 1, 256], strides = [1, 1, 1]} : vector<2x3x256xf32> to vector<2x1x256xf32>
    %1012 = vector.shape_cast %1010 : vector<3x1xf32> to vector<1x3x1xf32>
    %1013 = vector.broadcast %1011 : vector<2x1x256xf32> to vector<2x3x256xf32>
    %1014 = vector.broadcast %1012 : vector<1x3x1xf32> to vector<2x3x256xf32>
    %1015 = arith.mulf %1013, %1014 : vector<2x3x256xf32>
    %1016 = arith.addf %1008, %1015 : vector<2x3x256xf32>
    %c93 = arith.constant 93 : index
    %c0_285 = arith.constant 0 : index
    %c0_286 = arith.constant 0 : index
    %1017 = vector.load %arg1[%c93, %c0_285, %c0_286] : memref<162x3x1xf32, #tpu.memory_space<vmem>>, vector<1x3x1xf32>
    %1018 = vector.shape_cast %1017 : vector<1x3x1xf32> to vector<3x1xf32>
    %1019 = vector.extract_strided_slice %899 {offsets = [0, 0, 0], sizes = [2, 1, 256], strides = [1, 1, 1]} : vector<2x3x256xf32> to vector<2x1x256xf32>
    %1020 = vector.shape_cast %1018 : vector<3x1xf32> to vector<1x3x1xf32>
    %1021 = vector.broadcast %1019 : vector<2x1x256xf32> to vector<2x3x256xf32>
    %1022 = vector.broadcast %1020 : vector<1x3x1xf32> to vector<2x3x256xf32>
    %1023 = arith.mulf %1021, %1022 : vector<2x3x256xf32>
    %1024 = arith.addf %1016, %1023 : vector<2x3x256xf32>
    %c94 = arith.constant 94 : index
    %c0_287 = arith.constant 0 : index
    %c0_288 = arith.constant 0 : index
    %1025 = vector.load %arg1[%c94, %c0_287, %c0_288] : memref<162x3x1xf32, #tpu.memory_space<vmem>>, vector<1x3x1xf32>
    %1026 = vector.shape_cast %1025 : vector<1x3x1xf32> to vector<3x1xf32>
    %1027 = vector.extract_strided_slice %899 {offsets = [0, 1, 0], sizes = [2, 1, 256], strides = [1, 1, 1]} : vector<2x3x256xf32> to vector<2x1x256xf32>
    %1028 = vector.shape_cast %1026 : vector<3x1xf32> to vector<1x3x1xf32>
    %1029 = vector.broadcast %1027 : vector<2x1x256xf32> to vector<2x3x256xf32>
    %1030 = vector.broadcast %1028 : vector<1x3x1xf32> to vector<2x3x256xf32>
    %1031 = arith.mulf %1029, %1030 : vector<2x3x256xf32>
    %1032 = arith.addf %1024, %1031 : vector<2x3x256xf32>
    %c95 = arith.constant 95 : index
    %c0_289 = arith.constant 0 : index
    %c0_290 = arith.constant 0 : index
    %1033 = vector.load %arg1[%c95, %c0_289, %c0_290] : memref<162x3x1xf32, #tpu.memory_space<vmem>>, vector<1x3x1xf32>
    %1034 = vector.shape_cast %1033 : vector<1x3x1xf32> to vector<3x1xf32>
    %1035 = vector.extract_strided_slice %899 {offsets = [0, 2, 0], sizes = [2, 1, 256], strides = [1, 1, 1]} : vector<2x3x256xf32> to vector<2x1x256xf32>
    %1036 = vector.shape_cast %1034 : vector<3x1xf32> to vector<1x3x1xf32>
    %1037 = vector.broadcast %1035 : vector<2x1x256xf32> to vector<2x3x256xf32>
    %1038 = vector.broadcast %1036 : vector<1x3x1xf32> to vector<2x3x256xf32>
    %1039 = arith.mulf %1037, %1038 : vector<2x3x256xf32>
    %1040 = arith.addf %1032, %1039 : vector<2x3x256xf32>
    %c255_i32_291 = arith.constant 255 : i32
    %1041 = tpu.dynamic_rotate %899 by %c255_i32_291 dim 2 : vector<2x3x256xf32>, i32 -> vector<2x3x256xf32>
    %cst_292 = arith.constant 0.000000e+00 : f32
    %1042 = vector.shape_cast %10 : vector<1x1x256xi1> to vector<1x1x256xi1>
    %1043 = vector.broadcast %1042 : vector<1x1x256xi1> to vector<2x3x256xi1>
    %1044 = vector.broadcast %cst_292 : f32 to vector<2x3x256xf32>
    %1045 = arith.select %1043, %1041, %1044 : vector<2x3x256xi1>, vector<2x3x256xf32>
    %c96 = arith.constant 96 : index
    %c0_293 = arith.constant 0 : index
    %c0_294 = arith.constant 0 : index
    %1046 = vector.load %arg1[%c96, %c0_293, %c0_294] : memref<162x3x1xf32, #tpu.memory_space<vmem>>, vector<1x3x1xf32>
    %1047 = vector.shape_cast %1046 : vector<1x3x1xf32> to vector<3x1xf32>
    %1048 = vector.extract_strided_slice %1045 {offsets = [0, 0, 0], sizes = [2, 1, 256], strides = [1, 1, 1]} : vector<2x3x256xf32> to vector<2x1x256xf32>
    %1049 = vector.shape_cast %1047 : vector<3x1xf32> to vector<1x3x1xf32>
    %1050 = vector.broadcast %1048 : vector<2x1x256xf32> to vector<2x3x256xf32>
    %1051 = vector.broadcast %1049 : vector<1x3x1xf32> to vector<2x3x256xf32>
    %1052 = arith.mulf %1050, %1051 : vector<2x3x256xf32>
    %1053 = arith.addf %1040, %1052 : vector<2x3x256xf32>
    %c97 = arith.constant 97 : index
    %c0_295 = arith.constant 0 : index
    %c0_296 = arith.constant 0 : index
    %1054 = vector.load %arg1[%c97, %c0_295, %c0_296] : memref<162x3x1xf32, #tpu.memory_space<vmem>>, vector<1x3x1xf32>
    %1055 = vector.shape_cast %1054 : vector<1x3x1xf32> to vector<3x1xf32>
    %1056 = vector.extract_strided_slice %1045 {offsets = [0, 1, 0], sizes = [2, 1, 256], strides = [1, 1, 1]} : vector<2x3x256xf32> to vector<2x1x256xf32>
    %1057 = vector.shape_cast %1055 : vector<3x1xf32> to vector<1x3x1xf32>
    %1058 = vector.broadcast %1056 : vector<2x1x256xf32> to vector<2x3x256xf32>
    %1059 = vector.broadcast %1057 : vector<1x3x1xf32> to vector<2x3x256xf32>
    %1060 = arith.mulf %1058, %1059 : vector<2x3x256xf32>
    %1061 = arith.addf %1053, %1060 : vector<2x3x256xf32>
    %c98 = arith.constant 98 : index
    %c0_297 = arith.constant 0 : index
    %c0_298 = arith.constant 0 : index
    %1062 = vector.load %arg1[%c98, %c0_297, %c0_298] : memref<162x3x1xf32, #tpu.memory_space<vmem>>, vector<1x3x1xf32>
    %1063 = vector.shape_cast %1062 : vector<1x3x1xf32> to vector<3x1xf32>
    %1064 = vector.extract_strided_slice %1045 {offsets = [0, 2, 0], sizes = [2, 1, 256], strides = [1, 1, 1]} : vector<2x3x256xf32> to vector<2x1x256xf32>
    %1065 = vector.shape_cast %1063 : vector<3x1xf32> to vector<1x3x1xf32>
    %1066 = vector.broadcast %1064 : vector<2x1x256xf32> to vector<2x3x256xf32>
    %1067 = vector.broadcast %1065 : vector<1x3x1xf32> to vector<2x3x256xf32>
    %1068 = arith.mulf %1066, %1067 : vector<2x3x256xf32>
    %1069 = arith.addf %1061, %1068 : vector<2x3x256xf32>
    %c241_i32_299 = arith.constant 241 : i32
    %1070 = tpu.dynamic_rotate %899 by %c241_i32_299 dim 2 : vector<2x3x256xf32>, i32 -> vector<2x3x256xf32>
    %1071 = arith.andi %6, %8 : vector<1x1x256xi1>
    %cst_300 = arith.constant 0.000000e+00 : f32
    %1072 = vector.shape_cast %1071 : vector<1x1x256xi1> to vector<1x1x256xi1>
    %1073 = vector.broadcast %1072 : vector<1x1x256xi1> to vector<2x3x256xi1>
    %1074 = vector.broadcast %cst_300 : f32 to vector<2x3x256xf32>
    %1075 = arith.select %1073, %1070, %1074 : vector<2x3x256xi1>, vector<2x3x256xf32>
    %c99 = arith.constant 99 : index
    %c0_301 = arith.constant 0 : index
    %c0_302 = arith.constant 0 : index
    %1076 = vector.load %arg1[%c99, %c0_301, %c0_302] : memref<162x3x1xf32, #tpu.memory_space<vmem>>, vector<1x3x1xf32>
    %1077 = vector.shape_cast %1076 : vector<1x3x1xf32> to vector<3x1xf32>
    %1078 = vector.extract_strided_slice %1075 {offsets = [0, 0, 0], sizes = [2, 1, 256], strides = [1, 1, 1]} : vector<2x3x256xf32> to vector<2x1x256xf32>
    %1079 = vector.shape_cast %1077 : vector<3x1xf32> to vector<1x3x1xf32>
    %1080 = vector.broadcast %1078 : vector<2x1x256xf32> to vector<2x3x256xf32>
    %1081 = vector.broadcast %1079 : vector<1x3x1xf32> to vector<2x3x256xf32>
    %1082 = arith.mulf %1080, %1081 : vector<2x3x256xf32>
    %1083 = arith.addf %1069, %1082 : vector<2x3x256xf32>
    %c100 = arith.constant 100 : index
    %c0_303 = arith.constant 0 : index
    %c0_304 = arith.constant 0 : index
    %1084 = vector.load %arg1[%c100, %c0_303, %c0_304] : memref<162x3x1xf32, #tpu.memory_space<vmem>>, vector<1x3x1xf32>
    %1085 = vector.shape_cast %1084 : vector<1x3x1xf32> to vector<3x1xf32>
    %1086 = vector.extract_strided_slice %1075 {offsets = [0, 1, 0], sizes = [2, 1, 256], strides = [1, 1, 1]} : vector<2x3x256xf32> to vector<2x1x256xf32>
    %1087 = vector.shape_cast %1085 : vector<3x1xf32> to vector<1x3x1xf32>
    %1088 = vector.broadcast %1086 : vector<2x1x256xf32> to vector<2x3x256xf32>
    %1089 = vector.broadcast %1087 : vector<1x3x1xf32> to vector<2x3x256xf32>
    %1090 = arith.mulf %1088, %1089 : vector<2x3x256xf32>
    %1091 = arith.addf %1083, %1090 : vector<2x3x256xf32>
    %c101 = arith.constant 101 : index
    %c0_305 = arith.constant 0 : index
    %c0_306 = arith.constant 0 : index
    %1092 = vector.load %arg1[%c101, %c0_305, %c0_306] : memref<162x3x1xf32, #tpu.memory_space<vmem>>, vector<1x3x1xf32>
    %1093 = vector.shape_cast %1092 : vector<1x3x1xf32> to vector<3x1xf32>
    %1094 = vector.extract_strided_slice %1075 {offsets = [0, 2, 0], sizes = [2, 1, 256], strides = [1, 1, 1]} : vector<2x3x256xf32> to vector<2x1x256xf32>
    %1095 = vector.shape_cast %1093 : vector<3x1xf32> to vector<1x3x1xf32>
    %1096 = vector.broadcast %1094 : vector<2x1x256xf32> to vector<2x3x256xf32>
    %1097 = vector.broadcast %1095 : vector<1x3x1xf32> to vector<2x3x256xf32>
    %1098 = arith.mulf %1096, %1097 : vector<2x3x256xf32>
    %1099 = arith.addf %1091, %1098 : vector<2x3x256xf32>
    %c240_i32_307 = arith.constant 240 : i32
    %1100 = tpu.dynamic_rotate %899 by %c240_i32_307 dim 2 : vector<2x3x256xf32>, i32 -> vector<2x3x256xf32>
    %cst_308 = arith.constant 0.000000e+00 : f32
    %1101 = vector.shape_cast %6 : vector<1x1x256xi1> to vector<1x1x256xi1>
    %1102 = vector.broadcast %1101 : vector<1x1x256xi1> to vector<2x3x256xi1>
    %1103 = vector.broadcast %cst_308 : f32 to vector<2x3x256xf32>
    %1104 = arith.select %1102, %1100, %1103 : vector<2x3x256xi1>, vector<2x3x256xf32>
    %c102 = arith.constant 102 : index
    %c0_309 = arith.constant 0 : index
    %c0_310 = arith.constant 0 : index
    %1105 = vector.load %arg1[%c102, %c0_309, %c0_310] : memref<162x3x1xf32, #tpu.memory_space<vmem>>, vector<1x3x1xf32>
    %1106 = vector.shape_cast %1105 : vector<1x3x1xf32> to vector<3x1xf32>
    %1107 = vector.extract_strided_slice %1104 {offsets = [0, 0, 0], sizes = [2, 1, 256], strides = [1, 1, 1]} : vector<2x3x256xf32> to vector<2x1x256xf32>
    %1108 = vector.shape_cast %1106 : vector<3x1xf32> to vector<1x3x1xf32>
    %1109 = vector.broadcast %1107 : vector<2x1x256xf32> to vector<2x3x256xf32>
    %1110 = vector.broadcast %1108 : vector<1x3x1xf32> to vector<2x3x256xf32>
    %1111 = arith.mulf %1109, %1110 : vector<2x3x256xf32>
    %1112 = arith.addf %1099, %1111 : vector<2x3x256xf32>
    %c103 = arith.constant 103 : index
    %c0_311 = arith.constant 0 : index
    %c0_312 = arith.constant 0 : index
    %1113 = vector.load %arg1[%c103, %c0_311, %c0_312] : memref<162x3x1xf32, #tpu.memory_space<vmem>>, vector<1x3x1xf32>
    %1114 = vector.shape_cast %1113 : vector<1x3x1xf32> to vector<3x1xf32>
    %1115 = vector.extract_strided_slice %1104 {offsets = [0, 1, 0], sizes = [2, 1, 256], strides = [1, 1, 1]} : vector<2x3x256xf32> to vector<2x1x256xf32>
    %1116 = vector.shape_cast %1114 : vector<3x1xf32> to vector<1x3x1xf32>
    %1117 = vector.broadcast %1115 : vector<2x1x256xf32> to vector<2x3x256xf32>
    %1118 = vector.broadcast %1116 : vector<1x3x1xf32> to vector<2x3x256xf32>
    %1119 = arith.mulf %1117, %1118 : vector<2x3x256xf32>
    %1120 = arith.addf %1112, %1119 : vector<2x3x256xf32>
    %c104 = arith.constant 104 : index
    %c0_313 = arith.constant 0 : index
    %c0_314 = arith.constant 0 : index
    %1121 = vector.load %arg1[%c104, %c0_313, %c0_314] : memref<162x3x1xf32, #tpu.memory_space<vmem>>, vector<1x3x1xf32>
    %1122 = vector.shape_cast %1121 : vector<1x3x1xf32> to vector<3x1xf32>
    %1123 = vector.extract_strided_slice %1104 {offsets = [0, 2, 0], sizes = [2, 1, 256], strides = [1, 1, 1]} : vector<2x3x256xf32> to vector<2x1x256xf32>
    %1124 = vector.shape_cast %1122 : vector<3x1xf32> to vector<1x3x1xf32>
    %1125 = vector.broadcast %1123 : vector<2x1x256xf32> to vector<2x3x256xf32>
    %1126 = vector.broadcast %1124 : vector<1x3x1xf32> to vector<2x3x256xf32>
    %1127 = arith.mulf %1125, %1126 : vector<2x3x256xf32>
    %1128 = arith.addf %1120, %1127 : vector<2x3x256xf32>
    %c239_i32_315 = arith.constant 239 : i32
    %1129 = tpu.dynamic_rotate %899 by %c239_i32_315 dim 2 : vector<2x3x256xf32>, i32 -> vector<2x3x256xf32>
    %1130 = arith.andi %6, %10 : vector<1x1x256xi1>
    %cst_316 = arith.constant 0.000000e+00 : f32
    %1131 = vector.shape_cast %1130 : vector<1x1x256xi1> to vector<1x1x256xi1>
    %1132 = vector.broadcast %1131 : vector<1x1x256xi1> to vector<2x3x256xi1>
    %1133 = vector.broadcast %cst_316 : f32 to vector<2x3x256xf32>
    %1134 = arith.select %1132, %1129, %1133 : vector<2x3x256xi1>, vector<2x3x256xf32>
    %c105 = arith.constant 105 : index
    %c0_317 = arith.constant 0 : index
    %c0_318 = arith.constant 0 : index
    %1135 = vector.load %arg1[%c105, %c0_317, %c0_318] : memref<162x3x1xf32, #tpu.memory_space<vmem>>, vector<1x3x1xf32>
    %1136 = vector.shape_cast %1135 : vector<1x3x1xf32> to vector<3x1xf32>
    %1137 = vector.extract_strided_slice %1134 {offsets = [0, 0, 0], sizes = [2, 1, 256], strides = [1, 1, 1]} : vector<2x3x256xf32> to vector<2x1x256xf32>
    %1138 = vector.shape_cast %1136 : vector<3x1xf32> to vector<1x3x1xf32>
    %1139 = vector.broadcast %1137 : vector<2x1x256xf32> to vector<2x3x256xf32>
    %1140 = vector.broadcast %1138 : vector<1x3x1xf32> to vector<2x3x256xf32>
    %1141 = arith.mulf %1139, %1140 : vector<2x3x256xf32>
    %1142 = arith.addf %1128, %1141 : vector<2x3x256xf32>
    %c106 = arith.constant 106 : index
    %c0_319 = arith.constant 0 : index
    %c0_320 = arith.constant 0 : index
    %1143 = vector.load %arg1[%c106, %c0_319, %c0_320] : memref<162x3x1xf32, #tpu.memory_space<vmem>>, vector<1x3x1xf32>
    %1144 = vector.shape_cast %1143 : vector<1x3x1xf32> to vector<3x1xf32>
    %1145 = vector.extract_strided_slice %1134 {offsets = [0, 1, 0], sizes = [2, 1, 256], strides = [1, 1, 1]} : vector<2x3x256xf32> to vector<2x1x256xf32>
    %1146 = vector.shape_cast %1144 : vector<3x1xf32> to vector<1x3x1xf32>
    %1147 = vector.broadcast %1145 : vector<2x1x256xf32> to vector<2x3x256xf32>
    %1148 = vector.broadcast %1146 : vector<1x3x1xf32> to vector<2x3x256xf32>
    %1149 = arith.mulf %1147, %1148 : vector<2x3x256xf32>
    %1150 = arith.addf %1142, %1149 : vector<2x3x256xf32>
    %c107 = arith.constant 107 : index
    %c0_321 = arith.constant 0 : index
    %c0_322 = arith.constant 0 : index
    %1151 = vector.load %arg1[%c107, %c0_321, %c0_322] : memref<162x3x1xf32, #tpu.memory_space<vmem>>, vector<1x3x1xf32>
    %1152 = vector.shape_cast %1151 : vector<1x3x1xf32> to vector<3x1xf32>
    %1153 = vector.extract_strided_slice %1134 {offsets = [0, 2, 0], sizes = [2, 1, 256], strides = [1, 1, 1]} : vector<2x3x256xf32> to vector<2x1x256xf32>
    %1154 = vector.shape_cast %1152 : vector<3x1xf32> to vector<1x3x1xf32>
    %1155 = vector.broadcast %1153 : vector<2x1x256xf32> to vector<2x3x256xf32>
    %1156 = vector.broadcast %1154 : vector<1x3x1xf32> to vector<2x3x256xf32>
    %1157 = arith.mulf %1155, %1156 : vector<2x3x256xf32>
    %1158 = arith.addf %1150, %1157 : vector<2x3x256xf32>
    %c3_323 = arith.constant 3 : index
    %c0_324 = arith.constant 0 : index
    %c0_325 = arith.constant 0 : index
    %1159 = vector.load %arg2[%c3_323, %c0_324, %c0_325] : memref<6x3x1xf32, #tpu.memory_space<vmem>>, vector<1x3x1xf32>
    %1160 = vector.shape_cast %1159 : vector<1x3x1xf32> to vector<3x1xf32>
    %1161 = vector.shape_cast %1160 : vector<3x1xf32> to vector<1x3x1xf32>
    %1162 = vector.broadcast %1161 : vector<1x3x1xf32> to vector<2x3x256xf32>
    %1163 = arith.addf %1158, %1162 : vector<2x3x256xf32>
    %1164 = arith.mulf %1163, %1163 : vector<2x3x256xf32>
    %1165 = tpu.concatenate %1163, %1164 in 1 : vector<2x3x256xf32>, vector<2x3x256xf32> -> vector<2x6x256xf32>
    %cst_326 = arith.constant dense<0.000000e+00> : vector<2x6xf32>
    %1166 = vector.multi_reduction <add>, %1165, %cst_326 [2] : vector<2x6x256xf32> to vector<2x6xf32>
    %1167 = vector.shape_cast %1166 : vector<2x6xf32> to vector<2x6x1xf32>
    %cst_327 = arith.constant dense<0.000000e+00> : vector<6x1xf32>
    %1168 = vector.multi_reduction <add>, %1167, %cst_327 [0] : vector<2x6x1xf32> to vector<6x1xf32>
    %1169 = vector.shape_cast %1168 : vector<6x1xf32> to vector<1x6x1xf32>
    %1170 = vector.extract_strided_slice %1169 {offsets = [0, 0, 0], sizes = [1, 3, 1], strides = [1, 1, 1]} : vector<1x6x1xf32> to vector<1x3x1xf32>
    %1171 = vector.extract_strided_slice %1169 {offsets = [0, 3, 0], sizes = [1, 3, 1], strides = [1, 1, 1]} : vector<1x6x1xf32> to vector<1x3x1xf32>
    %cst_328 = arith.constant 0.001953125 : f32
    %1172 = vector.broadcast %cst_328 : f32 to vector<1x3x1xf32>
    %1173 = arith.mulf %1170, %1172 : vector<1x3x1xf32>
    %cst_329 = arith.constant 0.001953125 : f32
    %1174 = vector.broadcast %cst_329 : f32 to vector<1x3x1xf32>
    %1175 = arith.mulf %1171, %1174 : vector<1x3x1xf32>
    %1176 = arith.mulf %1173, %1173 : vector<1x3x1xf32>
    %1177 = arith.subf %1175, %1176 : vector<1x3x1xf32>
    %cst_330 = arith.constant 0.000000e+00 : f32
    %1178 = vector.broadcast %cst_330 : f32 to vector<1x3x1xf32>
    %1179 = arith.maximumf %1177, %1178 : vector<1x3x1xf32>
    %c3_331 = arith.constant 3 : index
    %c0_332 = arith.constant 0 : index
    %c0_333 = arith.constant 0 : index
    %1180 = vector.load %arg3[%c3_331, %c0_332, %c0_333] : memref<6x3x1xf32, #tpu.memory_space<vmem>>, vector<1x3x1xf32>
    %1181 = vector.shape_cast %1180 : vector<1x3x1xf32> to vector<3x1xf32>
    %cst_334 = arith.constant 9.99999974E-6 : f32
    %1182 = vector.broadcast %cst_334 : f32 to vector<1x3x1xf32>
    %1183 = arith.addf %1179, %1182 : vector<1x3x1xf32>
    %1184 = math.rsqrt %1183 : vector<1x3x1xf32>
    %1185 = vector.shape_cast %1181 : vector<3x1xf32> to vector<1x3x1xf32>
    %1186 = arith.mulf %1185, %1184 : vector<1x3x1xf32>
    %c3_335 = arith.constant 3 : index
    %c0_336 = arith.constant 0 : index
    %c0_337 = arith.constant 0 : index
    %1187 = vector.load %arg4[%c3_335, %c0_336, %c0_337] : memref<6x3x1xf32, #tpu.memory_space<vmem>>, vector<1x3x1xf32>
    %1188 = vector.shape_cast %1187 : vector<1x3x1xf32> to vector<3x1xf32>
    %1189 = arith.mulf %1173, %1186 : vector<1x3x1xf32>
    %1190 = vector.shape_cast %1188 : vector<3x1xf32> to vector<1x3x1xf32>
    %1191 = arith.subf %1190, %1189 : vector<1x3x1xf32>
    %1192 = vector.broadcast %1186 : vector<1x3x1xf32> to vector<2x3x256xf32>
    %1193 = arith.mulf %1163, %1192 : vector<2x3x256xf32>
    %1194 = vector.broadcast %1191 : vector<1x3x1xf32> to vector<2x3x256xf32>
    %1195 = arith.addf %1193, %1194 : vector<2x3x256xf32>
    %c17_i32_338 = arith.constant 17 : i32
    %1196 = tpu.dynamic_rotate %1195 by %c17_i32_338 dim 2 : vector<2x3x256xf32>, i32 -> vector<2x3x256xf32>
    %1197 = arith.andi %4, %8 : vector<1x1x256xi1>
    %cst_339 = arith.constant 0.000000e+00 : f32
    %1198 = vector.shape_cast %1197 : vector<1x1x256xi1> to vector<1x1x256xi1>
    %1199 = vector.broadcast %1198 : vector<1x1x256xi1> to vector<2x3x256xi1>
    %1200 = vector.broadcast %cst_339 : f32 to vector<2x3x256xf32>
    %1201 = arith.select %1199, %1196, %1200 : vector<2x3x256xi1>, vector<2x3x256xf32>
    %c108 = arith.constant 108 : index
    %c0_340 = arith.constant 0 : index
    %c0_341 = arith.constant 0 : index
    %1202 = vector.load %arg1[%c108, %c0_340, %c0_341] : memref<162x3x1xf32, #tpu.memory_space<vmem>>, vector<1x3x1xf32>
    %1203 = vector.shape_cast %1202 : vector<1x3x1xf32> to vector<3x1xf32>
    %1204 = vector.extract_strided_slice %1201 {offsets = [0, 0, 0], sizes = [2, 1, 256], strides = [1, 1, 1]} : vector<2x3x256xf32> to vector<2x1x256xf32>
    %1205 = vector.shape_cast %1203 : vector<3x1xf32> to vector<1x3x1xf32>
    %1206 = vector.broadcast %1204 : vector<2x1x256xf32> to vector<2x3x256xf32>
    %1207 = vector.broadcast %1205 : vector<1x3x1xf32> to vector<2x3x256xf32>
    %1208 = arith.mulf %1206, %1207 : vector<2x3x256xf32>
    %c109 = arith.constant 109 : index
    %c0_342 = arith.constant 0 : index
    %c0_343 = arith.constant 0 : index
    %1209 = vector.load %arg1[%c109, %c0_342, %c0_343] : memref<162x3x1xf32, #tpu.memory_space<vmem>>, vector<1x3x1xf32>
    %1210 = vector.shape_cast %1209 : vector<1x3x1xf32> to vector<3x1xf32>
    %1211 = vector.extract_strided_slice %1201 {offsets = [0, 1, 0], sizes = [2, 1, 256], strides = [1, 1, 1]} : vector<2x3x256xf32> to vector<2x1x256xf32>
    %1212 = vector.shape_cast %1210 : vector<3x1xf32> to vector<1x3x1xf32>
    %1213 = vector.broadcast %1211 : vector<2x1x256xf32> to vector<2x3x256xf32>
    %1214 = vector.broadcast %1212 : vector<1x3x1xf32> to vector<2x3x256xf32>
    %1215 = arith.mulf %1213, %1214 : vector<2x3x256xf32>
    %1216 = arith.addf %1208, %1215 : vector<2x3x256xf32>
    %c110 = arith.constant 110 : index
    %c0_344 = arith.constant 0 : index
    %c0_345 = arith.constant 0 : index
    %1217 = vector.load %arg1[%c110, %c0_344, %c0_345] : memref<162x3x1xf32, #tpu.memory_space<vmem>>, vector<1x3x1xf32>
    %1218 = vector.shape_cast %1217 : vector<1x3x1xf32> to vector<3x1xf32>
    %1219 = vector.extract_strided_slice %1201 {offsets = [0, 2, 0], sizes = [2, 1, 256], strides = [1, 1, 1]} : vector<2x3x256xf32> to vector<2x1x256xf32>
    %1220 = vector.shape_cast %1218 : vector<3x1xf32> to vector<1x3x1xf32>
    %1221 = vector.broadcast %1219 : vector<2x1x256xf32> to vector<2x3x256xf32>
    %1222 = vector.broadcast %1220 : vector<1x3x1xf32> to vector<2x3x256xf32>
    %1223 = arith.mulf %1221, %1222 : vector<2x3x256xf32>
    %1224 = arith.addf %1216, %1223 : vector<2x3x256xf32>
    %c16_i32_346 = arith.constant 16 : i32
    %1225 = tpu.dynamic_rotate %1195 by %c16_i32_346 dim 2 : vector<2x3x256xf32>, i32 -> vector<2x3x256xf32>
    %cst_347 = arith.constant 0.000000e+00 : f32
    %1226 = vector.shape_cast %4 : vector<1x1x256xi1> to vector<1x1x256xi1>
    %1227 = vector.broadcast %1226 : vector<1x1x256xi1> to vector<2x3x256xi1>
    %1228 = vector.broadcast %cst_347 : f32 to vector<2x3x256xf32>
    %1229 = arith.select %1227, %1225, %1228 : vector<2x3x256xi1>, vector<2x3x256xf32>
    %c111 = arith.constant 111 : index
    %c0_348 = arith.constant 0 : index
    %c0_349 = arith.constant 0 : index
    %1230 = vector.load %arg1[%c111, %c0_348, %c0_349] : memref<162x3x1xf32, #tpu.memory_space<vmem>>, vector<1x3x1xf32>
    %1231 = vector.shape_cast %1230 : vector<1x3x1xf32> to vector<3x1xf32>
    %1232 = vector.extract_strided_slice %1229 {offsets = [0, 0, 0], sizes = [2, 1, 256], strides = [1, 1, 1]} : vector<2x3x256xf32> to vector<2x1x256xf32>
    %1233 = vector.shape_cast %1231 : vector<3x1xf32> to vector<1x3x1xf32>
    %1234 = vector.broadcast %1232 : vector<2x1x256xf32> to vector<2x3x256xf32>
    %1235 = vector.broadcast %1233 : vector<1x3x1xf32> to vector<2x3x256xf32>
    %1236 = arith.mulf %1234, %1235 : vector<2x3x256xf32>
    %1237 = arith.addf %1224, %1236 : vector<2x3x256xf32>
    %c112 = arith.constant 112 : index
    %c0_350 = arith.constant 0 : index
    %c0_351 = arith.constant 0 : index
    %1238 = vector.load %arg1[%c112, %c0_350, %c0_351] : memref<162x3x1xf32, #tpu.memory_space<vmem>>, vector<1x3x1xf32>
    %1239 = vector.shape_cast %1238 : vector<1x3x1xf32> to vector<3x1xf32>
    %1240 = vector.extract_strided_slice %1229 {offsets = [0, 1, 0], sizes = [2, 1, 256], strides = [1, 1, 1]} : vector<2x3x256xf32> to vector<2x1x256xf32>
    %1241 = vector.shape_cast %1239 : vector<3x1xf32> to vector<1x3x1xf32>
    %1242 = vector.broadcast %1240 : vector<2x1x256xf32> to vector<2x3x256xf32>
    %1243 = vector.broadcast %1241 : vector<1x3x1xf32> to vector<2x3x256xf32>
    %1244 = arith.mulf %1242, %1243 : vector<2x3x256xf32>
    %1245 = arith.addf %1237, %1244 : vector<2x3x256xf32>
    %c113 = arith.constant 113 : index
    %c0_352 = arith.constant 0 : index
    %c0_353 = arith.constant 0 : index
    %1246 = vector.load %arg1[%c113, %c0_352, %c0_353] : memref<162x3x1xf32, #tpu.memory_space<vmem>>, vector<1x3x1xf32>
    %1247 = vector.shape_cast %1246 : vector<1x3x1xf32> to vector<3x1xf32>
    %1248 = vector.extract_strided_slice %1229 {offsets = [0, 2, 0], sizes = [2, 1, 256], strides = [1, 1, 1]} : vector<2x3x256xf32> to vector<2x1x256xf32>
    %1249 = vector.shape_cast %1247 : vector<3x1xf32> to vector<1x3x1xf32>
    %1250 = vector.broadcast %1248 : vector<2x1x256xf32> to vector<2x3x256xf32>
    %1251 = vector.broadcast %1249 : vector<1x3x1xf32> to vector<2x3x256xf32>
    %1252 = arith.mulf %1250, %1251 : vector<2x3x256xf32>
    %1253 = arith.addf %1245, %1252 : vector<2x3x256xf32>
    %c15_i32_354 = arith.constant 15 : i32
    %1254 = tpu.dynamic_rotate %1195 by %c15_i32_354 dim 2 : vector<2x3x256xf32>, i32 -> vector<2x3x256xf32>
    %1255 = arith.andi %4, %10 : vector<1x1x256xi1>
    %cst_355 = arith.constant 0.000000e+00 : f32
    %1256 = vector.shape_cast %1255 : vector<1x1x256xi1> to vector<1x1x256xi1>
    %1257 = vector.broadcast %1256 : vector<1x1x256xi1> to vector<2x3x256xi1>
    %1258 = vector.broadcast %cst_355 : f32 to vector<2x3x256xf32>
    %1259 = arith.select %1257, %1254, %1258 : vector<2x3x256xi1>, vector<2x3x256xf32>
    %c114 = arith.constant 114 : index
    %c0_356 = arith.constant 0 : index
    %c0_357 = arith.constant 0 : index
    %1260 = vector.load %arg1[%c114, %c0_356, %c0_357] : memref<162x3x1xf32, #tpu.memory_space<vmem>>, vector<1x3x1xf32>
    %1261 = vector.shape_cast %1260 : vector<1x3x1xf32> to vector<3x1xf32>
    %1262 = vector.extract_strided_slice %1259 {offsets = [0, 0, 0], sizes = [2, 1, 256], strides = [1, 1, 1]} : vector<2x3x256xf32> to vector<2x1x256xf32>
    %1263 = vector.shape_cast %1261 : vector<3x1xf32> to vector<1x3x1xf32>
    %1264 = vector.broadcast %1262 : vector<2x1x256xf32> to vector<2x3x256xf32>
    %1265 = vector.broadcast %1263 : vector<1x3x1xf32> to vector<2x3x256xf32>
    %1266 = arith.mulf %1264, %1265 : vector<2x3x256xf32>
    %1267 = arith.addf %1253, %1266 : vector<2x3x256xf32>
    %c115 = arith.constant 115 : index
    %c0_358 = arith.constant 0 : index
    %c0_359 = arith.constant 0 : index
    %1268 = vector.load %arg1[%c115, %c0_358, %c0_359] : memref<162x3x1xf32, #tpu.memory_space<vmem>>, vector<1x3x1xf32>
    %1269 = vector.shape_cast %1268 : vector<1x3x1xf32> to vector<3x1xf32>
    %1270 = vector.extract_strided_slice %1259 {offsets = [0, 1, 0], sizes = [2, 1, 256], strides = [1, 1, 1]} : vector<2x3x256xf32> to vector<2x1x256xf32>
    %1271 = vector.shape_cast %1269 : vector<3x1xf32> to vector<1x3x1xf32>
    %1272 = vector.broadcast %1270 : vector<2x1x256xf32> to vector<2x3x256xf32>
    %1273 = vector.broadcast %1271 : vector<1x3x1xf32> to vector<2x3x256xf32>
    %1274 = arith.mulf %1272, %1273 : vector<2x3x256xf32>
    %1275 = arith.addf %1267, %1274 : vector<2x3x256xf32>
    %c116 = arith.constant 116 : index
    %c0_360 = arith.constant 0 : index
    %c0_361 = arith.constant 0 : index
    %1276 = vector.load %arg1[%c116, %c0_360, %c0_361] : memref<162x3x1xf32, #tpu.memory_space<vmem>>, vector<1x3x1xf32>
    %1277 = vector.shape_cast %1276 : vector<1x3x1xf32> to vector<3x1xf32>
    %1278 = vector.extract_strided_slice %1259 {offsets = [0, 2, 0], sizes = [2, 1, 256], strides = [1, 1, 1]} : vector<2x3x256xf32> to vector<2x1x256xf32>
    %1279 = vector.shape_cast %1277 : vector<3x1xf32> to vector<1x3x1xf32>
    %1280 = vector.broadcast %1278 : vector<2x1x256xf32> to vector<2x3x256xf32>
    %1281 = vector.broadcast %1279 : vector<1x3x1xf32> to vector<2x3x256xf32>
    %1282 = arith.mulf %1280, %1281 : vector<2x3x256xf32>
    %1283 = arith.addf %1275, %1282 : vector<2x3x256xf32>
    %c1_i32_362 = arith.constant 1 : i32
    %1284 = tpu.dynamic_rotate %1195 by %c1_i32_362 dim 2 : vector<2x3x256xf32>, i32 -> vector<2x3x256xf32>
    %cst_363 = arith.constant 0.000000e+00 : f32
    %1285 = vector.shape_cast %8 : vector<1x1x256xi1> to vector<1x1x256xi1>
    %1286 = vector.broadcast %1285 : vector<1x1x256xi1> to vector<2x3x256xi1>
    %1287 = vector.broadcast %cst_363 : f32 to vector<2x3x256xf32>
    %1288 = arith.select %1286, %1284, %1287 : vector<2x3x256xi1>, vector<2x3x256xf32>
    %c117 = arith.constant 117 : index
    %c0_364 = arith.constant 0 : index
    %c0_365 = arith.constant 0 : index
    %1289 = vector.load %arg1[%c117, %c0_364, %c0_365] : memref<162x3x1xf32, #tpu.memory_space<vmem>>, vector<1x3x1xf32>
    %1290 = vector.shape_cast %1289 : vector<1x3x1xf32> to vector<3x1xf32>
    %1291 = vector.extract_strided_slice %1288 {offsets = [0, 0, 0], sizes = [2, 1, 256], strides = [1, 1, 1]} : vector<2x3x256xf32> to vector<2x1x256xf32>
    %1292 = vector.shape_cast %1290 : vector<3x1xf32> to vector<1x3x1xf32>
    %1293 = vector.broadcast %1291 : vector<2x1x256xf32> to vector<2x3x256xf32>
    %1294 = vector.broadcast %1292 : vector<1x3x1xf32> to vector<2x3x256xf32>
    %1295 = arith.mulf %1293, %1294 : vector<2x3x256xf32>
    %1296 = arith.addf %1283, %1295 : vector<2x3x256xf32>
    %c118 = arith.constant 118 : index
    %c0_366 = arith.constant 0 : index
    %c0_367 = arith.constant 0 : index
    %1297 = vector.load %arg1[%c118, %c0_366, %c0_367] : memref<162x3x1xf32, #tpu.memory_space<vmem>>, vector<1x3x1xf32>
    %1298 = vector.shape_cast %1297 : vector<1x3x1xf32> to vector<3x1xf32>
    %1299 = vector.extract_strided_slice %1288 {offsets = [0, 1, 0], sizes = [2, 1, 256], strides = [1, 1, 1]} : vector<2x3x256xf32> to vector<2x1x256xf32>
    %1300 = vector.shape_cast %1298 : vector<3x1xf32> to vector<1x3x1xf32>
    %1301 = vector.broadcast %1299 : vector<2x1x256xf32> to vector<2x3x256xf32>
    %1302 = vector.broadcast %1300 : vector<1x3x1xf32> to vector<2x3x256xf32>
    %1303 = arith.mulf %1301, %1302 : vector<2x3x256xf32>
    %1304 = arith.addf %1296, %1303 : vector<2x3x256xf32>
    %c119 = arith.constant 119 : index
    %c0_368 = arith.constant 0 : index
    %c0_369 = arith.constant 0 : index
    %1305 = vector.load %arg1[%c119, %c0_368, %c0_369] : memref<162x3x1xf32, #tpu.memory_space<vmem>>, vector<1x3x1xf32>
    %1306 = vector.shape_cast %1305 : vector<1x3x1xf32> to vector<3x1xf32>
    %1307 = vector.extract_strided_slice %1288 {offsets = [0, 2, 0], sizes = [2, 1, 256], strides = [1, 1, 1]} : vector<2x3x256xf32> to vector<2x1x256xf32>
    %1308 = vector.shape_cast %1306 : vector<3x1xf32> to vector<1x3x1xf32>
    %1309 = vector.broadcast %1307 : vector<2x1x256xf32> to vector<2x3x256xf32>
    %1310 = vector.broadcast %1308 : vector<1x3x1xf32> to vector<2x3x256xf32>
    %1311 = arith.mulf %1309, %1310 : vector<2x3x256xf32>
    %1312 = arith.addf %1304, %1311 : vector<2x3x256xf32>
    %c120 = arith.constant 120 : index
    %c0_370 = arith.constant 0 : index
    %c0_371 = arith.constant 0 : index
    %1313 = vector.load %arg1[%c120, %c0_370, %c0_371] : memref<162x3x1xf32, #tpu.memory_space<vmem>>, vector<1x3x1xf32>
    %1314 = vector.shape_cast %1313 : vector<1x3x1xf32> to vector<3x1xf32>
    %1315 = vector.extract_strided_slice %1195 {offsets = [0, 0, 0], sizes = [2, 1, 256], strides = [1, 1, 1]} : vector<2x3x256xf32> to vector<2x1x256xf32>
    %1316 = vector.shape_cast %1314 : vector<3x1xf32> to vector<1x3x1xf32>
    %1317 = vector.broadcast %1315 : vector<2x1x256xf32> to vector<2x3x256xf32>
    %1318 = vector.broadcast %1316 : vector<1x3x1xf32> to vector<2x3x256xf32>
    %1319 = arith.mulf %1317, %1318 : vector<2x3x256xf32>
    %1320 = arith.addf %1312, %1319 : vector<2x3x256xf32>
    %c121 = arith.constant 121 : index
    %c0_372 = arith.constant 0 : index
    %c0_373 = arith.constant 0 : index
    %1321 = vector.load %arg1[%c121, %c0_372, %c0_373] : memref<162x3x1xf32, #tpu.memory_space<vmem>>, vector<1x3x1xf32>
    %1322 = vector.shape_cast %1321 : vector<1x3x1xf32> to vector<3x1xf32>
    %1323 = vector.extract_strided_slice %1195 {offsets = [0, 1, 0], sizes = [2, 1, 256], strides = [1, 1, 1]} : vector<2x3x256xf32> to vector<2x1x256xf32>
    %1324 = vector.shape_cast %1322 : vector<3x1xf32> to vector<1x3x1xf32>
    %1325 = vector.broadcast %1323 : vector<2x1x256xf32> to vector<2x3x256xf32>
    %1326 = vector.broadcast %1324 : vector<1x3x1xf32> to vector<2x3x256xf32>
    %1327 = arith.mulf %1325, %1326 : vector<2x3x256xf32>
    %1328 = arith.addf %1320, %1327 : vector<2x3x256xf32>
    %c122 = arith.constant 122 : index
    %c0_374 = arith.constant 0 : index
    %c0_375 = arith.constant 0 : index
    %1329 = vector.load %arg1[%c122, %c0_374, %c0_375] : memref<162x3x1xf32, #tpu.memory_space<vmem>>, vector<1x3x1xf32>
    %1330 = vector.shape_cast %1329 : vector<1x3x1xf32> to vector<3x1xf32>
    %1331 = vector.extract_strided_slice %1195 {offsets = [0, 2, 0], sizes = [2, 1, 256], strides = [1, 1, 1]} : vector<2x3x256xf32> to vector<2x1x256xf32>
    %1332 = vector.shape_cast %1330 : vector<3x1xf32> to vector<1x3x1xf32>
    %1333 = vector.broadcast %1331 : vector<2x1x256xf32> to vector<2x3x256xf32>
    %1334 = vector.broadcast %1332 : vector<1x3x1xf32> to vector<2x3x256xf32>
    %1335 = arith.mulf %1333, %1334 : vector<2x3x256xf32>
    %1336 = arith.addf %1328, %1335 : vector<2x3x256xf32>
    %c255_i32_376 = arith.constant 255 : i32
    %1337 = tpu.dynamic_rotate %1195 by %c255_i32_376 dim 2 : vector<2x3x256xf32>, i32 -> vector<2x3x256xf32>
    %cst_377 = arith.constant 0.000000e+00 : f32
    %1338 = vector.shape_cast %10 : vector<1x1x256xi1> to vector<1x1x256xi1>
    %1339 = vector.broadcast %1338 : vector<1x1x256xi1> to vector<2x3x256xi1>
    %1340 = vector.broadcast %cst_377 : f32 to vector<2x3x256xf32>
    %1341 = arith.select %1339, %1337, %1340 : vector<2x3x256xi1>, vector<2x3x256xf32>
    %c123 = arith.constant 123 : index
    %c0_378 = arith.constant 0 : index
    %c0_379 = arith.constant 0 : index
    %1342 = vector.load %arg1[%c123, %c0_378, %c0_379] : memref<162x3x1xf32, #tpu.memory_space<vmem>>, vector<1x3x1xf32>
    %1343 = vector.shape_cast %1342 : vector<1x3x1xf32> to vector<3x1xf32>
    %1344 = vector.extract_strided_slice %1341 {offsets = [0, 0, 0], sizes = [2, 1, 256], strides = [1, 1, 1]} : vector<2x3x256xf32> to vector<2x1x256xf32>
    %1345 = vector.shape_cast %1343 : vector<3x1xf32> to vector<1x3x1xf32>
    %1346 = vector.broadcast %1344 : vector<2x1x256xf32> to vector<2x3x256xf32>
    %1347 = vector.broadcast %1345 : vector<1x3x1xf32> to vector<2x3x256xf32>
    %1348 = arith.mulf %1346, %1347 : vector<2x3x256xf32>
    %1349 = arith.addf %1336, %1348 : vector<2x3x256xf32>
    %c124 = arith.constant 124 : index
    %c0_380 = arith.constant 0 : index
    %c0_381 = arith.constant 0 : index
    %1350 = vector.load %arg1[%c124, %c0_380, %c0_381] : memref<162x3x1xf32, #tpu.memory_space<vmem>>, vector<1x3x1xf32>
    %1351 = vector.shape_cast %1350 : vector<1x3x1xf32> to vector<3x1xf32>
    %1352 = vector.extract_strided_slice %1341 {offsets = [0, 1, 0], sizes = [2, 1, 256], strides = [1, 1, 1]} : vector<2x3x256xf32> to vector<2x1x256xf32>
    %1353 = vector.shape_cast %1351 : vector<3x1xf32> to vector<1x3x1xf32>
    %1354 = vector.broadcast %1352 : vector<2x1x256xf32> to vector<2x3x256xf32>
    %1355 = vector.broadcast %1353 : vector<1x3x1xf32> to vector<2x3x256xf32>
    %1356 = arith.mulf %1354, %1355 : vector<2x3x256xf32>
    %1357 = arith.addf %1349, %1356 : vector<2x3x256xf32>
    %c125 = arith.constant 125 : index
    %c0_382 = arith.constant 0 : index
    %c0_383 = arith.constant 0 : index
    %1358 = vector.load %arg1[%c125, %c0_382, %c0_383] : memref<162x3x1xf32, #tpu.memory_space<vmem>>, vector<1x3x1xf32>
    %1359 = vector.shape_cast %1358 : vector<1x3x1xf32> to vector<3x1xf32>
    %1360 = vector.extract_strided_slice %1341 {offsets = [0, 2, 0], sizes = [2, 1, 256], strides = [1, 1, 1]} : vector<2x3x256xf32> to vector<2x1x256xf32>
    %1361 = vector.shape_cast %1359 : vector<3x1xf32> to vector<1x3x1xf32>
    %1362 = vector.broadcast %1360 : vector<2x1x256xf32> to vector<2x3x256xf32>
    %1363 = vector.broadcast %1361 : vector<1x3x1xf32> to vector<2x3x256xf32>
    %1364 = arith.mulf %1362, %1363 : vector<2x3x256xf32>
    %1365 = arith.addf %1357, %1364 : vector<2x3x256xf32>
    %c241_i32_384 = arith.constant 241 : i32
    %1366 = tpu.dynamic_rotate %1195 by %c241_i32_384 dim 2 : vector<2x3x256xf32>, i32 -> vector<2x3x256xf32>
    %1367 = arith.andi %6, %8 : vector<1x1x256xi1>
    %cst_385 = arith.constant 0.000000e+00 : f32
    %1368 = vector.shape_cast %1367 : vector<1x1x256xi1> to vector<1x1x256xi1>
    %1369 = vector.broadcast %1368 : vector<1x1x256xi1> to vector<2x3x256xi1>
    %1370 = vector.broadcast %cst_385 : f32 to vector<2x3x256xf32>
    %1371 = arith.select %1369, %1366, %1370 : vector<2x3x256xi1>, vector<2x3x256xf32>
    %c126 = arith.constant 126 : index
    %c0_386 = arith.constant 0 : index
    %c0_387 = arith.constant 0 : index
    %1372 = vector.load %arg1[%c126, %c0_386, %c0_387] : memref<162x3x1xf32, #tpu.memory_space<vmem>>, vector<1x3x1xf32>
    %1373 = vector.shape_cast %1372 : vector<1x3x1xf32> to vector<3x1xf32>
    %1374 = vector.extract_strided_slice %1371 {offsets = [0, 0, 0], sizes = [2, 1, 256], strides = [1, 1, 1]} : vector<2x3x256xf32> to vector<2x1x256xf32>
    %1375 = vector.shape_cast %1373 : vector<3x1xf32> to vector<1x3x1xf32>
    %1376 = vector.broadcast %1374 : vector<2x1x256xf32> to vector<2x3x256xf32>
    %1377 = vector.broadcast %1375 : vector<1x3x1xf32> to vector<2x3x256xf32>
    %1378 = arith.mulf %1376, %1377 : vector<2x3x256xf32>
    %1379 = arith.addf %1365, %1378 : vector<2x3x256xf32>
    %c127 = arith.constant 127 : index
    %c0_388 = arith.constant 0 : index
    %c0_389 = arith.constant 0 : index
    %1380 = vector.load %arg1[%c127, %c0_388, %c0_389] : memref<162x3x1xf32, #tpu.memory_space<vmem>>, vector<1x3x1xf32>
    %1381 = vector.shape_cast %1380 : vector<1x3x1xf32> to vector<3x1xf32>
    %1382 = vector.extract_strided_slice %1371 {offsets = [0, 1, 0], sizes = [2, 1, 256], strides = [1, 1, 1]} : vector<2x3x256xf32> to vector<2x1x256xf32>
    %1383 = vector.shape_cast %1381 : vector<3x1xf32> to vector<1x3x1xf32>
    %1384 = vector.broadcast %1382 : vector<2x1x256xf32> to vector<2x3x256xf32>
    %1385 = vector.broadcast %1383 : vector<1x3x1xf32> to vector<2x3x256xf32>
    %1386 = arith.mulf %1384, %1385 : vector<2x3x256xf32>
    %1387 = arith.addf %1379, %1386 : vector<2x3x256xf32>
    %c128 = arith.constant 128 : index
    %c0_390 = arith.constant 0 : index
    %c0_391 = arith.constant 0 : index
    %1388 = vector.load %arg1[%c128, %c0_390, %c0_391] : memref<162x3x1xf32, #tpu.memory_space<vmem>>, vector<1x3x1xf32>
    %1389 = vector.shape_cast %1388 : vector<1x3x1xf32> to vector<3x1xf32>
    %1390 = vector.extract_strided_slice %1371 {offsets = [0, 2, 0], sizes = [2, 1, 256], strides = [1, 1, 1]} : vector<2x3x256xf32> to vector<2x1x256xf32>
    %1391 = vector.shape_cast %1389 : vector<3x1xf32> to vector<1x3x1xf32>
    %1392 = vector.broadcast %1390 : vector<2x1x256xf32> to vector<2x3x256xf32>
    %1393 = vector.broadcast %1391 : vector<1x3x1xf32> to vector<2x3x256xf32>
    %1394 = arith.mulf %1392, %1393 : vector<2x3x256xf32>
    %1395 = arith.addf %1387, %1394 : vector<2x3x256xf32>
    %c240_i32_392 = arith.constant 240 : i32
    %1396 = tpu.dynamic_rotate %1195 by %c240_i32_392 dim 2 : vector<2x3x256xf32>, i32 -> vector<2x3x256xf32>
    %cst_393 = arith.constant 0.000000e+00 : f32
    %1397 = vector.shape_cast %6 : vector<1x1x256xi1> to vector<1x1x256xi1>
    %1398 = vector.broadcast %1397 : vector<1x1x256xi1> to vector<2x3x256xi1>
    %1399 = vector.broadcast %cst_393 : f32 to vector<2x3x256xf32>
    %1400 = arith.select %1398, %1396, %1399 : vector<2x3x256xi1>, vector<2x3x256xf32>
    %c129 = arith.constant 129 : index
    %c0_394 = arith.constant 0 : index
    %c0_395 = arith.constant 0 : index
    %1401 = vector.load %arg1[%c129, %c0_394, %c0_395] : memref<162x3x1xf32, #tpu.memory_space<vmem>>, vector<1x3x1xf32>
    %1402 = vector.shape_cast %1401 : vector<1x3x1xf32> to vector<3x1xf32>
    %1403 = vector.extract_strided_slice %1400 {offsets = [0, 0, 0], sizes = [2, 1, 256], strides = [1, 1, 1]} : vector<2x3x256xf32> to vector<2x1x256xf32>
    %1404 = vector.shape_cast %1402 : vector<3x1xf32> to vector<1x3x1xf32>
    %1405 = vector.broadcast %1403 : vector<2x1x256xf32> to vector<2x3x256xf32>
    %1406 = vector.broadcast %1404 : vector<1x3x1xf32> to vector<2x3x256xf32>
    %1407 = arith.mulf %1405, %1406 : vector<2x3x256xf32>
    %1408 = arith.addf %1395, %1407 : vector<2x3x256xf32>
    %c130 = arith.constant 130 : index
    %c0_396 = arith.constant 0 : index
    %c0_397 = arith.constant 0 : index
    %1409 = vector.load %arg1[%c130, %c0_396, %c0_397] : memref<162x3x1xf32, #tpu.memory_space<vmem>>, vector<1x3x1xf32>
    %1410 = vector.shape_cast %1409 : vector<1x3x1xf32> to vector<3x1xf32>
    %1411 = vector.extract_strided_slice %1400 {offsets = [0, 1, 0], sizes = [2, 1, 256], strides = [1, 1, 1]} : vector<2x3x256xf32> to vector<2x1x256xf32>
    %1412 = vector.shape_cast %1410 : vector<3x1xf32> to vector<1x3x1xf32>
    %1413 = vector.broadcast %1411 : vector<2x1x256xf32> to vector<2x3x256xf32>
    %1414 = vector.broadcast %1412 : vector<1x3x1xf32> to vector<2x3x256xf32>
    %1415 = arith.mulf %1413, %1414 : vector<2x3x256xf32>
    %1416 = arith.addf %1408, %1415 : vector<2x3x256xf32>
    %c131 = arith.constant 131 : index
    %c0_398 = arith.constant 0 : index
    %c0_399 = arith.constant 0 : index
    %1417 = vector.load %arg1[%c131, %c0_398, %c0_399] : memref<162x3x1xf32, #tpu.memory_space<vmem>>, vector<1x3x1xf32>
    %1418 = vector.shape_cast %1417 : vector<1x3x1xf32> to vector<3x1xf32>
    %1419 = vector.extract_strided_slice %1400 {offsets = [0, 2, 0], sizes = [2, 1, 256], strides = [1, 1, 1]} : vector<2x3x256xf32> to vector<2x1x256xf32>
    %1420 = vector.shape_cast %1418 : vector<3x1xf32> to vector<1x3x1xf32>
    %1421 = vector.broadcast %1419 : vector<2x1x256xf32> to vector<2x3x256xf32>
    %1422 = vector.broadcast %1420 : vector<1x3x1xf32> to vector<2x3x256xf32>
    %1423 = arith.mulf %1421, %1422 : vector<2x3x256xf32>
    %1424 = arith.addf %1416, %1423 : vector<2x3x256xf32>
    %c239_i32_400 = arith.constant 239 : i32
    %1425 = tpu.dynamic_rotate %1195 by %c239_i32_400 dim 2 : vector<2x3x256xf32>, i32 -> vector<2x3x256xf32>
    %1426 = arith.andi %6, %10 : vector<1x1x256xi1>
    %cst_401 = arith.constant 0.000000e+00 : f32
    %1427 = vector.shape_cast %1426 : vector<1x1x256xi1> to vector<1x1x256xi1>
    %1428 = vector.broadcast %1427 : vector<1x1x256xi1> to vector<2x3x256xi1>
    %1429 = vector.broadcast %cst_401 : f32 to vector<2x3x256xf32>
    %1430 = arith.select %1428, %1425, %1429 : vector<2x3x256xi1>, vector<2x3x256xf32>
    %c132 = arith.constant 132 : index
    %c0_402 = arith.constant 0 : index
    %c0_403 = arith.constant 0 : index
    %1431 = vector.load %arg1[%c132, %c0_402, %c0_403] : memref<162x3x1xf32, #tpu.memory_space<vmem>>, vector<1x3x1xf32>
    %1432 = vector.shape_cast %1431 : vector<1x3x1xf32> to vector<3x1xf32>
    %1433 = vector.extract_strided_slice %1430 {offsets = [0, 0, 0], sizes = [2, 1, 256], strides = [1, 1, 1]} : vector<2x3x256xf32> to vector<2x1x256xf32>
    %1434 = vector.shape_cast %1432 : vector<3x1xf32> to vector<1x3x1xf32>
    %1435 = vector.broadcast %1433 : vector<2x1x256xf32> to vector<2x3x256xf32>
    %1436 = vector.broadcast %1434 : vector<1x3x1xf32> to vector<2x3x256xf32>
    %1437 = arith.mulf %1435, %1436 : vector<2x3x256xf32>
    %1438 = arith.addf %1424, %1437 : vector<2x3x256xf32>
    %c133 = arith.constant 133 : index
    %c0_404 = arith.constant 0 : index
    %c0_405 = arith.constant 0 : index
    %1439 = vector.load %arg1[%c133, %c0_404, %c0_405] : memref<162x3x1xf32, #tpu.memory_space<vmem>>, vector<1x3x1xf32>
    %1440 = vector.shape_cast %1439 : vector<1x3x1xf32> to vector<3x1xf32>
    %1441 = vector.extract_strided_slice %1430 {offsets = [0, 1, 0], sizes = [2, 1, 256], strides = [1, 1, 1]} : vector<2x3x256xf32> to vector<2x1x256xf32>
    %1442 = vector.shape_cast %1440 : vector<3x1xf32> to vector<1x3x1xf32>
    %1443 = vector.broadcast %1441 : vector<2x1x256xf32> to vector<2x3x256xf32>
    %1444 = vector.broadcast %1442 : vector<1x3x1xf32> to vector<2x3x256xf32>
    %1445 = arith.mulf %1443, %1444 : vector<2x3x256xf32>
    %1446 = arith.addf %1438, %1445 : vector<2x3x256xf32>
    %c134 = arith.constant 134 : index
    %c0_406 = arith.constant 0 : index
    %c0_407 = arith.constant 0 : index
    %1447 = vector.load %arg1[%c134, %c0_406, %c0_407] : memref<162x3x1xf32, #tpu.memory_space<vmem>>, vector<1x3x1xf32>
    %1448 = vector.shape_cast %1447 : vector<1x3x1xf32> to vector<3x1xf32>
    %1449 = vector.extract_strided_slice %1430 {offsets = [0, 2, 0], sizes = [2, 1, 256], strides = [1, 1, 1]} : vector<2x3x256xf32> to vector<2x1x256xf32>
    %1450 = vector.shape_cast %1448 : vector<3x1xf32> to vector<1x3x1xf32>
    %1451 = vector.broadcast %1449 : vector<2x1x256xf32> to vector<2x3x256xf32>
    %1452 = vector.broadcast %1450 : vector<1x3x1xf32> to vector<2x3x256xf32>
    %1453 = arith.mulf %1451, %1452 : vector<2x3x256xf32>
    %1454 = arith.addf %1446, %1453 : vector<2x3x256xf32>
    %c4_408 = arith.constant 4 : index
    %c0_409 = arith.constant 0 : index
    %c0_410 = arith.constant 0 : index
    %1455 = vector.load %arg2[%c4_408, %c0_409, %c0_410] : memref<6x3x1xf32, #tpu.memory_space<vmem>>, vector<1x3x1xf32>
    %1456 = vector.shape_cast %1455 : vector<1x3x1xf32> to vector<3x1xf32>
    %1457 = vector.shape_cast %1456 : vector<3x1xf32> to vector<1x3x1xf32>
    %1458 = vector.broadcast %1457 : vector<1x3x1xf32> to vector<2x3x256xf32>
    %1459 = arith.addf %1454, %1458 : vector<2x3x256xf32>
    %1460 = arith.mulf %1459, %1459 : vector<2x3x256xf32>
    %1461 = tpu.concatenate %1459, %1460 in 1 : vector<2x3x256xf32>, vector<2x3x256xf32> -> vector<2x6x256xf32>
    %cst_411 = arith.constant dense<0.000000e+00> : vector<2x6xf32>
    %1462 = vector.multi_reduction <add>, %1461, %cst_411 [2] : vector<2x6x256xf32> to vector<2x6xf32>
    %1463 = vector.shape_cast %1462 : vector<2x6xf32> to vector<2x6x1xf32>
    %cst_412 = arith.constant dense<0.000000e+00> : vector<6x1xf32>
    %1464 = vector.multi_reduction <add>, %1463, %cst_412 [0] : vector<2x6x1xf32> to vector<6x1xf32>
    %1465 = vector.shape_cast %1464 : vector<6x1xf32> to vector<1x6x1xf32>
    %1466 = vector.extract_strided_slice %1465 {offsets = [0, 0, 0], sizes = [1, 3, 1], strides = [1, 1, 1]} : vector<1x6x1xf32> to vector<1x3x1xf32>
    %1467 = vector.extract_strided_slice %1465 {offsets = [0, 3, 0], sizes = [1, 3, 1], strides = [1, 1, 1]} : vector<1x6x1xf32> to vector<1x3x1xf32>
    %cst_413 = arith.constant 0.001953125 : f32
    %1468 = vector.broadcast %cst_413 : f32 to vector<1x3x1xf32>
    %1469 = arith.mulf %1466, %1468 : vector<1x3x1xf32>
    %cst_414 = arith.constant 0.001953125 : f32
    %1470 = vector.broadcast %cst_414 : f32 to vector<1x3x1xf32>
    %1471 = arith.mulf %1467, %1470 : vector<1x3x1xf32>
    %1472 = arith.mulf %1469, %1469 : vector<1x3x1xf32>
    %1473 = arith.subf %1471, %1472 : vector<1x3x1xf32>
    %cst_415 = arith.constant 0.000000e+00 : f32
    %1474 = vector.broadcast %cst_415 : f32 to vector<1x3x1xf32>
    %1475 = arith.maximumf %1473, %1474 : vector<1x3x1xf32>
    %c4_416 = arith.constant 4 : index
    %c0_417 = arith.constant 0 : index
    %c0_418 = arith.constant 0 : index
    %1476 = vector.load %arg3[%c4_416, %c0_417, %c0_418] : memref<6x3x1xf32, #tpu.memory_space<vmem>>, vector<1x3x1xf32>
    %1477 = vector.shape_cast %1476 : vector<1x3x1xf32> to vector<3x1xf32>
    %cst_419 = arith.constant 9.99999974E-6 : f32
    %1478 = vector.broadcast %cst_419 : f32 to vector<1x3x1xf32>
    %1479 = arith.addf %1475, %1478 : vector<1x3x1xf32>
    %1480 = math.rsqrt %1479 : vector<1x3x1xf32>
    %1481 = vector.shape_cast %1477 : vector<3x1xf32> to vector<1x3x1xf32>
    %1482 = arith.mulf %1481, %1480 : vector<1x3x1xf32>
    %c4_420 = arith.constant 4 : index
    %c0_421 = arith.constant 0 : index
    %c0_422 = arith.constant 0 : index
    %1483 = vector.load %arg4[%c4_420, %c0_421, %c0_422] : memref<6x3x1xf32, #tpu.memory_space<vmem>>, vector<1x3x1xf32>
    %1484 = vector.shape_cast %1483 : vector<1x3x1xf32> to vector<3x1xf32>
    %1485 = arith.mulf %1469, %1482 : vector<1x3x1xf32>
    %1486 = vector.shape_cast %1484 : vector<3x1xf32> to vector<1x3x1xf32>
    %1487 = arith.subf %1486, %1485 : vector<1x3x1xf32>
    %1488 = vector.broadcast %1482 : vector<1x3x1xf32> to vector<2x3x256xf32>
    %1489 = arith.mulf %1459, %1488 : vector<2x3x256xf32>
    %1490 = vector.broadcast %1487 : vector<1x3x1xf32> to vector<2x3x256xf32>
    %1491 = arith.addf %1489, %1490 : vector<2x3x256xf32>
    %c17_i32_423 = arith.constant 17 : i32
    %1492 = tpu.dynamic_rotate %1491 by %c17_i32_423 dim 2 : vector<2x3x256xf32>, i32 -> vector<2x3x256xf32>
    %1493 = arith.andi %4, %8 : vector<1x1x256xi1>
    %cst_424 = arith.constant 0.000000e+00 : f32
    %1494 = vector.shape_cast %1493 : vector<1x1x256xi1> to vector<1x1x256xi1>
    %1495 = vector.broadcast %1494 : vector<1x1x256xi1> to vector<2x3x256xi1>
    %1496 = vector.broadcast %cst_424 : f32 to vector<2x3x256xf32>
    %1497 = arith.select %1495, %1492, %1496 : vector<2x3x256xi1>, vector<2x3x256xf32>
    %c135 = arith.constant 135 : index
    %c0_425 = arith.constant 0 : index
    %c0_426 = arith.constant 0 : index
    %1498 = vector.load %arg1[%c135, %c0_425, %c0_426] : memref<162x3x1xf32, #tpu.memory_space<vmem>>, vector<1x3x1xf32>
    %1499 = vector.shape_cast %1498 : vector<1x3x1xf32> to vector<3x1xf32>
    %1500 = vector.extract_strided_slice %1497 {offsets = [0, 0, 0], sizes = [2, 1, 256], strides = [1, 1, 1]} : vector<2x3x256xf32> to vector<2x1x256xf32>
    %1501 = vector.shape_cast %1499 : vector<3x1xf32> to vector<1x3x1xf32>
    %1502 = vector.broadcast %1500 : vector<2x1x256xf32> to vector<2x3x256xf32>
    %1503 = vector.broadcast %1501 : vector<1x3x1xf32> to vector<2x3x256xf32>
    %1504 = arith.mulf %1502, %1503 : vector<2x3x256xf32>
    %c136 = arith.constant 136 : index
    %c0_427 = arith.constant 0 : index
    %c0_428 = arith.constant 0 : index
    %1505 = vector.load %arg1[%c136, %c0_427, %c0_428] : memref<162x3x1xf32, #tpu.memory_space<vmem>>, vector<1x3x1xf32>
    %1506 = vector.shape_cast %1505 : vector<1x3x1xf32> to vector<3x1xf32>
    %1507 = vector.extract_strided_slice %1497 {offsets = [0, 1, 0], sizes = [2, 1, 256], strides = [1, 1, 1]} : vector<2x3x256xf32> to vector<2x1x256xf32>
    %1508 = vector.shape_cast %1506 : vector<3x1xf32> to vector<1x3x1xf32>
    %1509 = vector.broadcast %1507 : vector<2x1x256xf32> to vector<2x3x256xf32>
    %1510 = vector.broadcast %1508 : vector<1x3x1xf32> to vector<2x3x256xf32>
    %1511 = arith.mulf %1509, %1510 : vector<2x3x256xf32>
    %1512 = arith.addf %1504, %1511 : vector<2x3x256xf32>
    %c137 = arith.constant 137 : index
    %c0_429 = arith.constant 0 : index
    %c0_430 = arith.constant 0 : index
    %1513 = vector.load %arg1[%c137, %c0_429, %c0_430] : memref<162x3x1xf32, #tpu.memory_space<vmem>>, vector<1x3x1xf32>
    %1514 = vector.shape_cast %1513 : vector<1x3x1xf32> to vector<3x1xf32>
    %1515 = vector.extract_strided_slice %1497 {offsets = [0, 2, 0], sizes = [2, 1, 256], strides = [1, 1, 1]} : vector<2x3x256xf32> to vector<2x1x256xf32>
    %1516 = vector.shape_cast %1514 : vector<3x1xf32> to vector<1x3x1xf32>
    %1517 = vector.broadcast %1515 : vector<2x1x256xf32> to vector<2x3x256xf32>
    %1518 = vector.broadcast %1516 : vector<1x3x1xf32> to vector<2x3x256xf32>
    %1519 = arith.mulf %1517, %1518 : vector<2x3x256xf32>
    %1520 = arith.addf %1512, %1519 : vector<2x3x256xf32>
    %c16_i32_431 = arith.constant 16 : i32
    %1521 = tpu.dynamic_rotate %1491 by %c16_i32_431 dim 2 : vector<2x3x256xf32>, i32 -> vector<2x3x256xf32>
    %cst_432 = arith.constant 0.000000e+00 : f32
    %1522 = vector.shape_cast %4 : vector<1x1x256xi1> to vector<1x1x256xi1>
    %1523 = vector.broadcast %1522 : vector<1x1x256xi1> to vector<2x3x256xi1>
    %1524 = vector.broadcast %cst_432 : f32 to vector<2x3x256xf32>
    %1525 = arith.select %1523, %1521, %1524 : vector<2x3x256xi1>, vector<2x3x256xf32>
    %c138 = arith.constant 138 : index
    %c0_433 = arith.constant 0 : index
    %c0_434 = arith.constant 0 : index
    %1526 = vector.load %arg1[%c138, %c0_433, %c0_434] : memref<162x3x1xf32, #tpu.memory_space<vmem>>, vector<1x3x1xf32>
    %1527 = vector.shape_cast %1526 : vector<1x3x1xf32> to vector<3x1xf32>
    %1528 = vector.extract_strided_slice %1525 {offsets = [0, 0, 0], sizes = [2, 1, 256], strides = [1, 1, 1]} : vector<2x3x256xf32> to vector<2x1x256xf32>
    %1529 = vector.shape_cast %1527 : vector<3x1xf32> to vector<1x3x1xf32>
    %1530 = vector.broadcast %1528 : vector<2x1x256xf32> to vector<2x3x256xf32>
    %1531 = vector.broadcast %1529 : vector<1x3x1xf32> to vector<2x3x256xf32>
    %1532 = arith.mulf %1530, %1531 : vector<2x3x256xf32>
    %1533 = arith.addf %1520, %1532 : vector<2x3x256xf32>
    %c139 = arith.constant 139 : index
    %c0_435 = arith.constant 0 : index
    %c0_436 = arith.constant 0 : index
    %1534 = vector.load %arg1[%c139, %c0_435, %c0_436] : memref<162x3x1xf32, #tpu.memory_space<vmem>>, vector<1x3x1xf32>
    %1535 = vector.shape_cast %1534 : vector<1x3x1xf32> to vector<3x1xf32>
    %1536 = vector.extract_strided_slice %1525 {offsets = [0, 1, 0], sizes = [2, 1, 256], strides = [1, 1, 1]} : vector<2x3x256xf32> to vector<2x1x256xf32>
    %1537 = vector.shape_cast %1535 : vector<3x1xf32> to vector<1x3x1xf32>
    %1538 = vector.broadcast %1536 : vector<2x1x256xf32> to vector<2x3x256xf32>
    %1539 = vector.broadcast %1537 : vector<1x3x1xf32> to vector<2x3x256xf32>
    %1540 = arith.mulf %1538, %1539 : vector<2x3x256xf32>
    %1541 = arith.addf %1533, %1540 : vector<2x3x256xf32>
    %c140 = arith.constant 140 : index
    %c0_437 = arith.constant 0 : index
    %c0_438 = arith.constant 0 : index
    %1542 = vector.load %arg1[%c140, %c0_437, %c0_438] : memref<162x3x1xf32, #tpu.memory_space<vmem>>, vector<1x3x1xf32>
    %1543 = vector.shape_cast %1542 : vector<1x3x1xf32> to vector<3x1xf32>
    %1544 = vector.extract_strided_slice %1525 {offsets = [0, 2, 0], sizes = [2, 1, 256], strides = [1, 1, 1]} : vector<2x3x256xf32> to vector<2x1x256xf32>
    %1545 = vector.shape_cast %1543 : vector<3x1xf32> to vector<1x3x1xf32>
    %1546 = vector.broadcast %1544 : vector<2x1x256xf32> to vector<2x3x256xf32>
    %1547 = vector.broadcast %1545 : vector<1x3x1xf32> to vector<2x3x256xf32>
    %1548 = arith.mulf %1546, %1547 : vector<2x3x256xf32>
    %1549 = arith.addf %1541, %1548 : vector<2x3x256xf32>
    %c15_i32_439 = arith.constant 15 : i32
    %1550 = tpu.dynamic_rotate %1491 by %c15_i32_439 dim 2 : vector<2x3x256xf32>, i32 -> vector<2x3x256xf32>
    %1551 = arith.andi %4, %10 : vector<1x1x256xi1>
    %cst_440 = arith.constant 0.000000e+00 : f32
    %1552 = vector.shape_cast %1551 : vector<1x1x256xi1> to vector<1x1x256xi1>
    %1553 = vector.broadcast %1552 : vector<1x1x256xi1> to vector<2x3x256xi1>
    %1554 = vector.broadcast %cst_440 : f32 to vector<2x3x256xf32>
    %1555 = arith.select %1553, %1550, %1554 : vector<2x3x256xi1>, vector<2x3x256xf32>
    %c141 = arith.constant 141 : index
    %c0_441 = arith.constant 0 : index
    %c0_442 = arith.constant 0 : index
    %1556 = vector.load %arg1[%c141, %c0_441, %c0_442] : memref<162x3x1xf32, #tpu.memory_space<vmem>>, vector<1x3x1xf32>
    %1557 = vector.shape_cast %1556 : vector<1x3x1xf32> to vector<3x1xf32>
    %1558 = vector.extract_strided_slice %1555 {offsets = [0, 0, 0], sizes = [2, 1, 256], strides = [1, 1, 1]} : vector<2x3x256xf32> to vector<2x1x256xf32>
    %1559 = vector.shape_cast %1557 : vector<3x1xf32> to vector<1x3x1xf32>
    %1560 = vector.broadcast %1558 : vector<2x1x256xf32> to vector<2x3x256xf32>
    %1561 = vector.broadcast %1559 : vector<1x3x1xf32> to vector<2x3x256xf32>
    %1562 = arith.mulf %1560, %1561 : vector<2x3x256xf32>
    %1563 = arith.addf %1549, %1562 : vector<2x3x256xf32>
    %c142 = arith.constant 142 : index
    %c0_443 = arith.constant 0 : index
    %c0_444 = arith.constant 0 : index
    %1564 = vector.load %arg1[%c142, %c0_443, %c0_444] : memref<162x3x1xf32, #tpu.memory_space<vmem>>, vector<1x3x1xf32>
    %1565 = vector.shape_cast %1564 : vector<1x3x1xf32> to vector<3x1xf32>
    %1566 = vector.extract_strided_slice %1555 {offsets = [0, 1, 0], sizes = [2, 1, 256], strides = [1, 1, 1]} : vector<2x3x256xf32> to vector<2x1x256xf32>
    %1567 = vector.shape_cast %1565 : vector<3x1xf32> to vector<1x3x1xf32>
    %1568 = vector.broadcast %1566 : vector<2x1x256xf32> to vector<2x3x256xf32>
    %1569 = vector.broadcast %1567 : vector<1x3x1xf32> to vector<2x3x256xf32>
    %1570 = arith.mulf %1568, %1569 : vector<2x3x256xf32>
    %1571 = arith.addf %1563, %1570 : vector<2x3x256xf32>
    %c143 = arith.constant 143 : index
    %c0_445 = arith.constant 0 : index
    %c0_446 = arith.constant 0 : index
    %1572 = vector.load %arg1[%c143, %c0_445, %c0_446] : memref<162x3x1xf32, #tpu.memory_space<vmem>>, vector<1x3x1xf32>
    %1573 = vector.shape_cast %1572 : vector<1x3x1xf32> to vector<3x1xf32>
    %1574 = vector.extract_strided_slice %1555 {offsets = [0, 2, 0], sizes = [2, 1, 256], strides = [1, 1, 1]} : vector<2x3x256xf32> to vector<2x1x256xf32>
    %1575 = vector.shape_cast %1573 : vector<3x1xf32> to vector<1x3x1xf32>
    %1576 = vector.broadcast %1574 : vector<2x1x256xf32> to vector<2x3x256xf32>
    %1577 = vector.broadcast %1575 : vector<1x3x1xf32> to vector<2x3x256xf32>
    %1578 = arith.mulf %1576, %1577 : vector<2x3x256xf32>
    %1579 = arith.addf %1571, %1578 : vector<2x3x256xf32>
    %c1_i32_447 = arith.constant 1 : i32
    %1580 = tpu.dynamic_rotate %1491 by %c1_i32_447 dim 2 : vector<2x3x256xf32>, i32 -> vector<2x3x256xf32>
    %cst_448 = arith.constant 0.000000e+00 : f32
    %1581 = vector.shape_cast %8 : vector<1x1x256xi1> to vector<1x1x256xi1>
    %1582 = vector.broadcast %1581 : vector<1x1x256xi1> to vector<2x3x256xi1>
    %1583 = vector.broadcast %cst_448 : f32 to vector<2x3x256xf32>
    %1584 = arith.select %1582, %1580, %1583 : vector<2x3x256xi1>, vector<2x3x256xf32>
    %c144 = arith.constant 144 : index
    %c0_449 = arith.constant 0 : index
    %c0_450 = arith.constant 0 : index
    %1585 = vector.load %arg1[%c144, %c0_449, %c0_450] : memref<162x3x1xf32, #tpu.memory_space<vmem>>, vector<1x3x1xf32>
    %1586 = vector.shape_cast %1585 : vector<1x3x1xf32> to vector<3x1xf32>
    %1587 = vector.extract_strided_slice %1584 {offsets = [0, 0, 0], sizes = [2, 1, 256], strides = [1, 1, 1]} : vector<2x3x256xf32> to vector<2x1x256xf32>
    %1588 = vector.shape_cast %1586 : vector<3x1xf32> to vector<1x3x1xf32>
    %1589 = vector.broadcast %1587 : vector<2x1x256xf32> to vector<2x3x256xf32>
    %1590 = vector.broadcast %1588 : vector<1x3x1xf32> to vector<2x3x256xf32>
    %1591 = arith.mulf %1589, %1590 : vector<2x3x256xf32>
    %1592 = arith.addf %1579, %1591 : vector<2x3x256xf32>
    %c145 = arith.constant 145 : index
    %c0_451 = arith.constant 0 : index
    %c0_452 = arith.constant 0 : index
    %1593 = vector.load %arg1[%c145, %c0_451, %c0_452] : memref<162x3x1xf32, #tpu.memory_space<vmem>>, vector<1x3x1xf32>
    %1594 = vector.shape_cast %1593 : vector<1x3x1xf32> to vector<3x1xf32>
    %1595 = vector.extract_strided_slice %1584 {offsets = [0, 1, 0], sizes = [2, 1, 256], strides = [1, 1, 1]} : vector<2x3x256xf32> to vector<2x1x256xf32>
    %1596 = vector.shape_cast %1594 : vector<3x1xf32> to vector<1x3x1xf32>
    %1597 = vector.broadcast %1595 : vector<2x1x256xf32> to vector<2x3x256xf32>
    %1598 = vector.broadcast %1596 : vector<1x3x1xf32> to vector<2x3x256xf32>
    %1599 = arith.mulf %1597, %1598 : vector<2x3x256xf32>
    %1600 = arith.addf %1592, %1599 : vector<2x3x256xf32>
    %c146 = arith.constant 146 : index
    %c0_453 = arith.constant 0 : index
    %c0_454 = arith.constant 0 : index
    %1601 = vector.load %arg1[%c146, %c0_453, %c0_454] : memref<162x3x1xf32, #tpu.memory_space<vmem>>, vector<1x3x1xf32>
    %1602 = vector.shape_cast %1601 : vector<1x3x1xf32> to vector<3x1xf32>
    %1603 = vector.extract_strided_slice %1584 {offsets = [0, 2, 0], sizes = [2, 1, 256], strides = [1, 1, 1]} : vector<2x3x256xf32> to vector<2x1x256xf32>
    %1604 = vector.shape_cast %1602 : vector<3x1xf32> to vector<1x3x1xf32>
    %1605 = vector.broadcast %1603 : vector<2x1x256xf32> to vector<2x3x256xf32>
    %1606 = vector.broadcast %1604 : vector<1x3x1xf32> to vector<2x3x256xf32>
    %1607 = arith.mulf %1605, %1606 : vector<2x3x256xf32>
    %1608 = arith.addf %1600, %1607 : vector<2x3x256xf32>
    %c147 = arith.constant 147 : index
    %c0_455 = arith.constant 0 : index
    %c0_456 = arith.constant 0 : index
    %1609 = vector.load %arg1[%c147, %c0_455, %c0_456] : memref<162x3x1xf32, #tpu.memory_space<vmem>>, vector<1x3x1xf32>
    %1610 = vector.shape_cast %1609 : vector<1x3x1xf32> to vector<3x1xf32>
    %1611 = vector.extract_strided_slice %1491 {offsets = [0, 0, 0], sizes = [2, 1, 256], strides = [1, 1, 1]} : vector<2x3x256xf32> to vector<2x1x256xf32>
    %1612 = vector.shape_cast %1610 : vector<3x1xf32> to vector<1x3x1xf32>
    %1613 = vector.broadcast %1611 : vector<2x1x256xf32> to vector<2x3x256xf32>
    %1614 = vector.broadcast %1612 : vector<1x3x1xf32> to vector<2x3x256xf32>
    %1615 = arith.mulf %1613, %1614 : vector<2x3x256xf32>
    %1616 = arith.addf %1608, %1615 : vector<2x3x256xf32>
    %c148 = arith.constant 148 : index
    %c0_457 = arith.constant 0 : index
    %c0_458 = arith.constant 0 : index
    %1617 = vector.load %arg1[%c148, %c0_457, %c0_458] : memref<162x3x1xf32, #tpu.memory_space<vmem>>, vector<1x3x1xf32>
    %1618 = vector.shape_cast %1617 : vector<1x3x1xf32> to vector<3x1xf32>
    %1619 = vector.extract_strided_slice %1491 {offsets = [0, 1, 0], sizes = [2, 1, 256], strides = [1, 1, 1]} : vector<2x3x256xf32> to vector<2x1x256xf32>
    %1620 = vector.shape_cast %1618 : vector<3x1xf32> to vector<1x3x1xf32>
    %1621 = vector.broadcast %1619 : vector<2x1x256xf32> to vector<2x3x256xf32>
    %1622 = vector.broadcast %1620 : vector<1x3x1xf32> to vector<2x3x256xf32>
    %1623 = arith.mulf %1621, %1622 : vector<2x3x256xf32>
    %1624 = arith.addf %1616, %1623 : vector<2x3x256xf32>
    %c149 = arith.constant 149 : index
    %c0_459 = arith.constant 0 : index
    %c0_460 = arith.constant 0 : index
    %1625 = vector.load %arg1[%c149, %c0_459, %c0_460] : memref<162x3x1xf32, #tpu.memory_space<vmem>>, vector<1x3x1xf32>
    %1626 = vector.shape_cast %1625 : vector<1x3x1xf32> to vector<3x1xf32>
    %1627 = vector.extract_strided_slice %1491 {offsets = [0, 2, 0], sizes = [2, 1, 256], strides = [1, 1, 1]} : vector<2x3x256xf32> to vector<2x1x256xf32>
    %1628 = vector.shape_cast %1626 : vector<3x1xf32> to vector<1x3x1xf32>
    %1629 = vector.broadcast %1627 : vector<2x1x256xf32> to vector<2x3x256xf32>
    %1630 = vector.broadcast %1628 : vector<1x3x1xf32> to vector<2x3x256xf32>
    %1631 = arith.mulf %1629, %1630 : vector<2x3x256xf32>
    %1632 = arith.addf %1624, %1631 : vector<2x3x256xf32>
    %c255_i32_461 = arith.constant 255 : i32
    %1633 = tpu.dynamic_rotate %1491 by %c255_i32_461 dim 2 : vector<2x3x256xf32>, i32 -> vector<2x3x256xf32>
    %cst_462 = arith.constant 0.000000e+00 : f32
    %1634 = vector.shape_cast %10 : vector<1x1x256xi1> to vector<1x1x256xi1>
    %1635 = vector.broadcast %1634 : vector<1x1x256xi1> to vector<2x3x256xi1>
    %1636 = vector.broadcast %cst_462 : f32 to vector<2x3x256xf32>
    %1637 = arith.select %1635, %1633, %1636 : vector<2x3x256xi1>, vector<2x3x256xf32>
    %c150 = arith.constant 150 : index
    %c0_463 = arith.constant 0 : index
    %c0_464 = arith.constant 0 : index
    %1638 = vector.load %arg1[%c150, %c0_463, %c0_464] : memref<162x3x1xf32, #tpu.memory_space<vmem>>, vector<1x3x1xf32>
    %1639 = vector.shape_cast %1638 : vector<1x3x1xf32> to vector<3x1xf32>
    %1640 = vector.extract_strided_slice %1637 {offsets = [0, 0, 0], sizes = [2, 1, 256], strides = [1, 1, 1]} : vector<2x3x256xf32> to vector<2x1x256xf32>
    %1641 = vector.shape_cast %1639 : vector<3x1xf32> to vector<1x3x1xf32>
    %1642 = vector.broadcast %1640 : vector<2x1x256xf32> to vector<2x3x256xf32>
    %1643 = vector.broadcast %1641 : vector<1x3x1xf32> to vector<2x3x256xf32>
    %1644 = arith.mulf %1642, %1643 : vector<2x3x256xf32>
    %1645 = arith.addf %1632, %1644 : vector<2x3x256xf32>
    %c151 = arith.constant 151 : index
    %c0_465 = arith.constant 0 : index
    %c0_466 = arith.constant 0 : index
    %1646 = vector.load %arg1[%c151, %c0_465, %c0_466] : memref<162x3x1xf32, #tpu.memory_space<vmem>>, vector<1x3x1xf32>
    %1647 = vector.shape_cast %1646 : vector<1x3x1xf32> to vector<3x1xf32>
    %1648 = vector.extract_strided_slice %1637 {offsets = [0, 1, 0], sizes = [2, 1, 256], strides = [1, 1, 1]} : vector<2x3x256xf32> to vector<2x1x256xf32>
    %1649 = vector.shape_cast %1647 : vector<3x1xf32> to vector<1x3x1xf32>
    %1650 = vector.broadcast %1648 : vector<2x1x256xf32> to vector<2x3x256xf32>
    %1651 = vector.broadcast %1649 : vector<1x3x1xf32> to vector<2x3x256xf32>
    %1652 = arith.mulf %1650, %1651 : vector<2x3x256xf32>
    %1653 = arith.addf %1645, %1652 : vector<2x3x256xf32>
    %c152 = arith.constant 152 : index
    %c0_467 = arith.constant 0 : index
    %c0_468 = arith.constant 0 : index
    %1654 = vector.load %arg1[%c152, %c0_467, %c0_468] : memref<162x3x1xf32, #tpu.memory_space<vmem>>, vector<1x3x1xf32>
    %1655 = vector.shape_cast %1654 : vector<1x3x1xf32> to vector<3x1xf32>
    %1656 = vector.extract_strided_slice %1637 {offsets = [0, 2, 0], sizes = [2, 1, 256], strides = [1, 1, 1]} : vector<2x3x256xf32> to vector<2x1x256xf32>
    %1657 = vector.shape_cast %1655 : vector<3x1xf32> to vector<1x3x1xf32>
    %1658 = vector.broadcast %1656 : vector<2x1x256xf32> to vector<2x3x256xf32>
    %1659 = vector.broadcast %1657 : vector<1x3x1xf32> to vector<2x3x256xf32>
    %1660 = arith.mulf %1658, %1659 : vector<2x3x256xf32>
    %1661 = arith.addf %1653, %1660 : vector<2x3x256xf32>
    %c241_i32_469 = arith.constant 241 : i32
    %1662 = tpu.dynamic_rotate %1491 by %c241_i32_469 dim 2 : vector<2x3x256xf32>, i32 -> vector<2x3x256xf32>
    %1663 = arith.andi %6, %8 : vector<1x1x256xi1>
    %cst_470 = arith.constant 0.000000e+00 : f32
    %1664 = vector.shape_cast %1663 : vector<1x1x256xi1> to vector<1x1x256xi1>
    %1665 = vector.broadcast %1664 : vector<1x1x256xi1> to vector<2x3x256xi1>
    %1666 = vector.broadcast %cst_470 : f32 to vector<2x3x256xf32>
    %1667 = arith.select %1665, %1662, %1666 : vector<2x3x256xi1>, vector<2x3x256xf32>
    %c153 = arith.constant 153 : index
    %c0_471 = arith.constant 0 : index
    %c0_472 = arith.constant 0 : index
    %1668 = vector.load %arg1[%c153, %c0_471, %c0_472] : memref<162x3x1xf32, #tpu.memory_space<vmem>>, vector<1x3x1xf32>
    %1669 = vector.shape_cast %1668 : vector<1x3x1xf32> to vector<3x1xf32>
    %1670 = vector.extract_strided_slice %1667 {offsets = [0, 0, 0], sizes = [2, 1, 256], strides = [1, 1, 1]} : vector<2x3x256xf32> to vector<2x1x256xf32>
    %1671 = vector.shape_cast %1669 : vector<3x1xf32> to vector<1x3x1xf32>
    %1672 = vector.broadcast %1670 : vector<2x1x256xf32> to vector<2x3x256xf32>
    %1673 = vector.broadcast %1671 : vector<1x3x1xf32> to vector<2x3x256xf32>
    %1674 = arith.mulf %1672, %1673 : vector<2x3x256xf32>
    %1675 = arith.addf %1661, %1674 : vector<2x3x256xf32>
    %c154 = arith.constant 154 : index
    %c0_473 = arith.constant 0 : index
    %c0_474 = arith.constant 0 : index
    %1676 = vector.load %arg1[%c154, %c0_473, %c0_474] : memref<162x3x1xf32, #tpu.memory_space<vmem>>, vector<1x3x1xf32>
    %1677 = vector.shape_cast %1676 : vector<1x3x1xf32> to vector<3x1xf32>
    %1678 = vector.extract_strided_slice %1667 {offsets = [0, 1, 0], sizes = [2, 1, 256], strides = [1, 1, 1]} : vector<2x3x256xf32> to vector<2x1x256xf32>
    %1679 = vector.shape_cast %1677 : vector<3x1xf32> to vector<1x3x1xf32>
    %1680 = vector.broadcast %1678 : vector<2x1x256xf32> to vector<2x3x256xf32>
    %1681 = vector.broadcast %1679 : vector<1x3x1xf32> to vector<2x3x256xf32>
    %1682 = arith.mulf %1680, %1681 : vector<2x3x256xf32>
    %1683 = arith.addf %1675, %1682 : vector<2x3x256xf32>
    %c155 = arith.constant 155 : index
    %c0_475 = arith.constant 0 : index
    %c0_476 = arith.constant 0 : index
    %1684 = vector.load %arg1[%c155, %c0_475, %c0_476] : memref<162x3x1xf32, #tpu.memory_space<vmem>>, vector<1x3x1xf32>
    %1685 = vector.shape_cast %1684 : vector<1x3x1xf32> to vector<3x1xf32>
    %1686 = vector.extract_strided_slice %1667 {offsets = [0, 2, 0], sizes = [2, 1, 256], strides = [1, 1, 1]} : vector<2x3x256xf32> to vector<2x1x256xf32>
    %1687 = vector.shape_cast %1685 : vector<3x1xf32> to vector<1x3x1xf32>
    %1688 = vector.broadcast %1686 : vector<2x1x256xf32> to vector<2x3x256xf32>
    %1689 = vector.broadcast %1687 : vector<1x3x1xf32> to vector<2x3x256xf32>
    %1690 = arith.mulf %1688, %1689 : vector<2x3x256xf32>
    %1691 = arith.addf %1683, %1690 : vector<2x3x256xf32>
    %c240_i32_477 = arith.constant 240 : i32
    %1692 = tpu.dynamic_rotate %1491 by %c240_i32_477 dim 2 : vector<2x3x256xf32>, i32 -> vector<2x3x256xf32>
    %cst_478 = arith.constant 0.000000e+00 : f32
    %1693 = vector.shape_cast %6 : vector<1x1x256xi1> to vector<1x1x256xi1>
    %1694 = vector.broadcast %1693 : vector<1x1x256xi1> to vector<2x3x256xi1>
    %1695 = vector.broadcast %cst_478 : f32 to vector<2x3x256xf32>
    %1696 = arith.select %1694, %1692, %1695 : vector<2x3x256xi1>, vector<2x3x256xf32>
    %c156 = arith.constant 156 : index
    %c0_479 = arith.constant 0 : index
    %c0_480 = arith.constant 0 : index
    %1697 = vector.load %arg1[%c156, %c0_479, %c0_480] : memref<162x3x1xf32, #tpu.memory_space<vmem>>, vector<1x3x1xf32>
    %1698 = vector.shape_cast %1697 : vector<1x3x1xf32> to vector<3x1xf32>
    %1699 = vector.extract_strided_slice %1696 {offsets = [0, 0, 0], sizes = [2, 1, 256], strides = [1, 1, 1]} : vector<2x3x256xf32> to vector<2x1x256xf32>
    %1700 = vector.shape_cast %1698 : vector<3x1xf32> to vector<1x3x1xf32>
    %1701 = vector.broadcast %1699 : vector<2x1x256xf32> to vector<2x3x256xf32>
    %1702 = vector.broadcast %1700 : vector<1x3x1xf32> to vector<2x3x256xf32>
    %1703 = arith.mulf %1701, %1702 : vector<2x3x256xf32>
    %1704 = arith.addf %1691, %1703 : vector<2x3x256xf32>
    %c157 = arith.constant 157 : index
    %c0_481 = arith.constant 0 : index
    %c0_482 = arith.constant 0 : index
    %1705 = vector.load %arg1[%c157, %c0_481, %c0_482] : memref<162x3x1xf32, #tpu.memory_space<vmem>>, vector<1x3x1xf32>
    %1706 = vector.shape_cast %1705 : vector<1x3x1xf32> to vector<3x1xf32>
    %1707 = vector.extract_strided_slice %1696 {offsets = [0, 1, 0], sizes = [2, 1, 256], strides = [1, 1, 1]} : vector<2x3x256xf32> to vector<2x1x256xf32>
    %1708 = vector.shape_cast %1706 : vector<3x1xf32> to vector<1x3x1xf32>
    %1709 = vector.broadcast %1707 : vector<2x1x256xf32> to vector<2x3x256xf32>
    %1710 = vector.broadcast %1708 : vector<1x3x1xf32> to vector<2x3x256xf32>
    %1711 = arith.mulf %1709, %1710 : vector<2x3x256xf32>
    %1712 = arith.addf %1704, %1711 : vector<2x3x256xf32>
    %c158 = arith.constant 158 : index
    %c0_483 = arith.constant 0 : index
    %c0_484 = arith.constant 0 : index
    %1713 = vector.load %arg1[%c158, %c0_483, %c0_484] : memref<162x3x1xf32, #tpu.memory_space<vmem>>, vector<1x3x1xf32>
    %1714 = vector.shape_cast %1713 : vector<1x3x1xf32> to vector<3x1xf32>
    %1715 = vector.extract_strided_slice %1696 {offsets = [0, 2, 0], sizes = [2, 1, 256], strides = [1, 1, 1]} : vector<2x3x256xf32> to vector<2x1x256xf32>
    %1716 = vector.shape_cast %1714 : vector<3x1xf32> to vector<1x3x1xf32>
    %1717 = vector.broadcast %1715 : vector<2x1x256xf32> to vector<2x3x256xf32>
    %1718 = vector.broadcast %1716 : vector<1x3x1xf32> to vector<2x3x256xf32>
    %1719 = arith.mulf %1717, %1718 : vector<2x3x256xf32>
    %1720 = arith.addf %1712, %1719 : vector<2x3x256xf32>
    %c239_i32_485 = arith.constant 239 : i32
    %1721 = tpu.dynamic_rotate %1491 by %c239_i32_485 dim 2 : vector<2x3x256xf32>, i32 -> vector<2x3x256xf32>
    %1722 = arith.andi %6, %10 : vector<1x1x256xi1>
    %cst_486 = arith.constant 0.000000e+00 : f32
    %1723 = vector.shape_cast %1722 : vector<1x1x256xi1> to vector<1x1x256xi1>
    %1724 = vector.broadcast %1723 : vector<1x1x256xi1> to vector<2x3x256xi1>
    %1725 = vector.broadcast %cst_486 : f32 to vector<2x3x256xf32>
    %1726 = arith.select %1724, %1721, %1725 : vector<2x3x256xi1>, vector<2x3x256xf32>
    %c159 = arith.constant 159 : index
    %c0_487 = arith.constant 0 : index
    %c0_488 = arith.constant 0 : index
    %1727 = vector.load %arg1[%c159, %c0_487, %c0_488] : memref<162x3x1xf32, #tpu.memory_space<vmem>>, vector<1x3x1xf32>
    %1728 = vector.shape_cast %1727 : vector<1x3x1xf32> to vector<3x1xf32>
    %1729 = vector.extract_strided_slice %1726 {offsets = [0, 0, 0], sizes = [2, 1, 256], strides = [1, 1, 1]} : vector<2x3x256xf32> to vector<2x1x256xf32>
    %1730 = vector.shape_cast %1728 : vector<3x1xf32> to vector<1x3x1xf32>
    %1731 = vector.broadcast %1729 : vector<2x1x256xf32> to vector<2x3x256xf32>
    %1732 = vector.broadcast %1730 : vector<1x3x1xf32> to vector<2x3x256xf32>
    %1733 = arith.mulf %1731, %1732 : vector<2x3x256xf32>
    %1734 = arith.addf %1720, %1733 : vector<2x3x256xf32>
    %c160 = arith.constant 160 : index
    %c0_489 = arith.constant 0 : index
    %c0_490 = arith.constant 0 : index
    %1735 = vector.load %arg1[%c160, %c0_489, %c0_490] : memref<162x3x1xf32, #tpu.memory_space<vmem>>, vector<1x3x1xf32>
    %1736 = vector.shape_cast %1735 : vector<1x3x1xf32> to vector<3x1xf32>
    %1737 = vector.extract_strided_slice %1726 {offsets = [0, 1, 0], sizes = [2, 1, 256], strides = [1, 1, 1]} : vector<2x3x256xf32> to vector<2x1x256xf32>
    %1738 = vector.shape_cast %1736 : vector<3x1xf32> to vector<1x3x1xf32>
    %1739 = vector.broadcast %1737 : vector<2x1x256xf32> to vector<2x3x256xf32>
    %1740 = vector.broadcast %1738 : vector<1x3x1xf32> to vector<2x3x256xf32>
    %1741 = arith.mulf %1739, %1740 : vector<2x3x256xf32>
    %1742 = arith.addf %1734, %1741 : vector<2x3x256xf32>
    %c161 = arith.constant 161 : index
    %c0_491 = arith.constant 0 : index
    %c0_492 = arith.constant 0 : index
    %1743 = vector.load %arg1[%c161, %c0_491, %c0_492] : memref<162x3x1xf32, #tpu.memory_space<vmem>>, vector<1x3x1xf32>
    %1744 = vector.shape_cast %1743 : vector<1x3x1xf32> to vector<3x1xf32>
    %1745 = vector.extract_strided_slice %1726 {offsets = [0, 2, 0], sizes = [2, 1, 256], strides = [1, 1, 1]} : vector<2x3x256xf32> to vector<2x1x256xf32>
    %1746 = vector.shape_cast %1744 : vector<3x1xf32> to vector<1x3x1xf32>
    %1747 = vector.broadcast %1745 : vector<2x1x256xf32> to vector<2x3x256xf32>
    %1748 = vector.broadcast %1746 : vector<1x3x1xf32> to vector<2x3x256xf32>
    %1749 = arith.mulf %1747, %1748 : vector<2x3x256xf32>
    %1750 = arith.addf %1742, %1749 : vector<2x3x256xf32>
    %c5_493 = arith.constant 5 : index
    %c0_494 = arith.constant 0 : index
    %c0_495 = arith.constant 0 : index
    %1751 = vector.load %arg2[%c5_493, %c0_494, %c0_495] : memref<6x3x1xf32, #tpu.memory_space<vmem>>, vector<1x3x1xf32>
    %1752 = vector.shape_cast %1751 : vector<1x3x1xf32> to vector<3x1xf32>
    %1753 = vector.shape_cast %1752 : vector<3x1xf32> to vector<1x3x1xf32>
    %1754 = vector.broadcast %1753 : vector<1x3x1xf32> to vector<2x3x256xf32>
    %1755 = arith.addf %1750, %1754 : vector<2x3x256xf32>
    %1756 = arith.mulf %1755, %1755 : vector<2x3x256xf32>
    %1757 = tpu.concatenate %1755, %1756 in 1 : vector<2x3x256xf32>, vector<2x3x256xf32> -> vector<2x6x256xf32>
    %cst_496 = arith.constant dense<0.000000e+00> : vector<2x6xf32>
    %1758 = vector.multi_reduction <add>, %1757, %cst_496 [2] : vector<2x6x256xf32> to vector<2x6xf32>
    %1759 = vector.shape_cast %1758 : vector<2x6xf32> to vector<2x6x1xf32>
    %cst_497 = arith.constant dense<0.000000e+00> : vector<6x1xf32>
    %1760 = vector.multi_reduction <add>, %1759, %cst_497 [0] : vector<2x6x1xf32> to vector<6x1xf32>
    %1761 = vector.shape_cast %1760 : vector<6x1xf32> to vector<1x6x1xf32>
    %1762 = vector.extract_strided_slice %1761 {offsets = [0, 0, 0], sizes = [1, 3, 1], strides = [1, 1, 1]} : vector<1x6x1xf32> to vector<1x3x1xf32>
    %1763 = vector.extract_strided_slice %1761 {offsets = [0, 3, 0], sizes = [1, 3, 1], strides = [1, 1, 1]} : vector<1x6x1xf32> to vector<1x3x1xf32>
    %cst_498 = arith.constant 0.001953125 : f32
    %1764 = vector.broadcast %cst_498 : f32 to vector<1x3x1xf32>
    %1765 = arith.mulf %1762, %1764 : vector<1x3x1xf32>
    %cst_499 = arith.constant 0.001953125 : f32
    %1766 = vector.broadcast %cst_499 : f32 to vector<1x3x1xf32>
    %1767 = arith.mulf %1763, %1766 : vector<1x3x1xf32>
    %1768 = arith.mulf %1765, %1765 : vector<1x3x1xf32>
    %1769 = arith.subf %1767, %1768 : vector<1x3x1xf32>
    %cst_500 = arith.constant 0.000000e+00 : f32
    %1770 = vector.broadcast %cst_500 : f32 to vector<1x3x1xf32>
    %1771 = arith.maximumf %1769, %1770 : vector<1x3x1xf32>
    %c5_501 = arith.constant 5 : index
    %c0_502 = arith.constant 0 : index
    %c0_503 = arith.constant 0 : index
    %1772 = vector.load %arg3[%c5_501, %c0_502, %c0_503] : memref<6x3x1xf32, #tpu.memory_space<vmem>>, vector<1x3x1xf32>
    %1773 = vector.shape_cast %1772 : vector<1x3x1xf32> to vector<3x1xf32>
    %cst_504 = arith.constant 9.99999974E-6 : f32
    %1774 = vector.broadcast %cst_504 : f32 to vector<1x3x1xf32>
    %1775 = arith.addf %1771, %1774 : vector<1x3x1xf32>
    %1776 = math.rsqrt %1775 : vector<1x3x1xf32>
    %1777 = vector.shape_cast %1773 : vector<3x1xf32> to vector<1x3x1xf32>
    %1778 = arith.mulf %1777, %1776 : vector<1x3x1xf32>
    %c5_505 = arith.constant 5 : index
    %c0_506 = arith.constant 0 : index
    %c0_507 = arith.constant 0 : index
    %1779 = vector.load %arg4[%c5_505, %c0_506, %c0_507] : memref<6x3x1xf32, #tpu.memory_space<vmem>>, vector<1x3x1xf32>
    %1780 = vector.shape_cast %1779 : vector<1x3x1xf32> to vector<3x1xf32>
    %1781 = arith.mulf %1765, %1778 : vector<1x3x1xf32>
    %1782 = vector.shape_cast %1780 : vector<3x1xf32> to vector<1x3x1xf32>
    %1783 = arith.subf %1782, %1781 : vector<1x3x1xf32>
    %1784 = vector.broadcast %1778 : vector<1x3x1xf32> to vector<2x3x256xf32>
    %1785 = arith.mulf %1755, %1784 : vector<2x3x256xf32>
    %1786 = vector.broadcast %1783 : vector<1x3x1xf32> to vector<2x3x256xf32>
    %1787 = arith.addf %1785, %1786 : vector<2x3x256xf32>
    %1788 = arith.addf %1787, %11 : vector<2x3x256xf32>
    %c0_508 = arith.constant 0 : index
    %c0_509 = arith.constant 0 : index
    %c0_510 = arith.constant 0 : index
    %1789 = vector.load %arg5[%c0_508, %c0_509, %c0_510] : memref<2x3x256xf32, #tpu.memory_space<vmem>>, vector<2x3x256xf32>
    tpu.vector_store %arg5[%c0_508, %c0_509, %c0_510], %1788 {strides = array<i32>} : memref<2x3x256xf32, #tpu.memory_space<vmem>>, vector<2x3x256xf32>,
    return
  }
}

</mosaic_0001>

<llo_original>
// kernel: tpu_custom_call.1
$region0: #{tpu_custom_call.1}
  #allocation0 [shape = 'u32[]', space=smem, size = 0x4, offset = 0x4, fixed_abs, tag = 'smem constant byte address 0x4 - core index']
  #allocation1 [shape = 'u32[144,128]{1,0:T(1,128)}', space=vmem, size = 0x12000, scoped, tag = 'internal scratch']
  %s0 = inlined_call_operand.vmem [shape: f32[2,3,256], index: 0, kind: input, shape index: {}]
  %s1 = inlined_call_operand.vmem [shape: f32[162,3,1], index: 1, kind: input, shape index: {}]
  %s2 = inlined_call_operand.vmem [shape: f32[6,3,1], index: 2, kind: input, shape index: {}]
  %s3 = inlined_call_operand.vmem [shape: f32[6,3,1], index: 3, kind: input, shape index: {}]
  %s4 = inlined_call_operand.vmem [shape: f32[6,3,1], index: 4, kind: input, shape index: {}]
  %s5 = inlined_call_operand.vmem [shape: f32[2,3,256], index: 5, kind: output, shape index: {}]
  %s6 = sld [smem:[#allocation0]]
  $region30: #{tpu_custom_call.1} parent=0
    _
  %s8 = ssub.s32 1, %s6
  %s9 = scalar_select 0, %s8, %s6
  // Predicated region
  $region2: #{tpu_custom_call.1} parent=0 // pred_check
    _
  $region3: #{tpu_custom_call.1} parent=0 // pred_check_branch
    %11 = sbr.rel (0) target = $region5
  $region4: #{tpu_custom_call.1} parent=0 // pred_region
    _
  $region5: #{tpu_custom_call.1} parent=0 // pred_fallthru
    _
  // Predicated region
  $region6: #{tpu_custom_call.1} parent=0 // pred_check
    _
  $region7: #{tpu_custom_call.1} parent=0 // pred_check_branch
    %13 = sbr.rel (0) target = $region9
  $region8: #{tpu_custom_call.1} parent=0 // pred_region
    _
  $region9: #{tpu_custom_call.1} parent=0 // pred_fallthru
    _
  // Predicated region
  $region10: #{tpu_custom_call.1} parent=0 // pred_check
    _
  $region11: #{tpu_custom_call.1} parent=0 // pred_check_branch
    %15 = sbr.rel (0) target = $region13
  $region12: #{tpu_custom_call.1} parent=0 // pred_region
    _
  $region13: #{tpu_custom_call.1} parent=0 // pred_fallthru
    _
  // Predicated region
  $region14: #{tpu_custom_call.1} parent=0 // pred_check
    _
  $region15: #{tpu_custom_call.1} parent=0 // pred_check_branch
    %17 = sbr.rel (0) target = $region17
  $region16: #{tpu_custom_call.1} parent=0 // pred_region
    _
  $region17: #{tpu_custom_call.1} parent=0 // pred_fallthru
    _
  // Predicated region
  $region18: #{tpu_custom_call.1} parent=0 // pred_check
    _
  $region19: #{tpu_custom_call.1} parent=0 // pred_check_branch
    %19 = sbr.rel (0) target = $region21
  $region20: #{tpu_custom_call.1} parent=0 // pred_region
    _
  $region21: #{tpu_custom_call.1} parent=0 // pred_fallthru
    _
  %v20 = vlaneseq
  %v21 = vand.u32 %v20, 127
  %v22 = vadd.s32 %v21, 128
  %v23 = vand.u32 %v21, 15
  %v24 = vand.u32 %v22, 15
  %vm25 = vcmp.ge.s32.totalorder %v21, 16
  %vm26 = vcmp.ge.s32.totalorder %v22, 16
  %vm27 = vcmp.lt.s32.totalorder %v21, 240
  %vm28 = vcmp.lt.s32.totalorder %v22, 240
  %vm29 = vcmp.ge.s32.totalorder %v23, 1
  %vm30 = vcmp.ge.s32.totalorder %v24, 1
  %vm31 = vcmp.le.s32.totalorder %v23, 14
  %vm32 = vcmp.le.s32.totalorder %v24, 14
  %v33 = vld [vmem:[%s0] sm:$0x77]
  %v34 = vld [vmem:[%s0 + $0x8] sm:$0x77]
  %v37 = vcombine.high %v33, %v33
  %v38 = vcombine.high %v34, %v34
  %41 = vrot.lane.b32.xlu0 %v33, 17
  %v42 = vpop.permute.xlu0 %41
  %43 = vrot.lane.b32.xlu0 %v34, 17
  %v44 = vpop.permute.xlu0 %43
  %45 = vrot.lane.b32.xlu0 %v37, 17
  %v46 = vpop.permute.xlu0 %45
  %47 = vrot.lane.b32.xlu0 %v38, 17
  %v48 = vpop.permute.xlu0 %47
  %vm49 = vcmp.lt.s32.totalorder %v21, 17
  %v50 = vsel %vm49, %v42, %v46
  %v51 = vsel %vm49, %v44, %v48
  %v52 = vsel %vm49, %v46, %v42
  %v53 = vsel %vm49, %v48, %v44
  %vm54 = vmand %vm25, %vm29
  %vm55 = vmand %vm26, %vm30
  %v56 = vsel %vm54, 1, 0
  %v57 = vsel %vm55, 1, 0
  %vm58 = vcmp.eq.s32.totalorder %v56, 1
  %vm59 = vcmp.eq.s32.totalorder %v57, 1
  %v60 = vsel %vm58, %v52, 0.0
  %v61 = vsel %vm59, %v50, 0.0
  %v62 = vsel %vm58, %v53, 0.0
  %v63 = vsel %vm59, %v51, 0.0
  %v64 = vld [vmem:[%s1] sm:$0x7]
  %v65 = vlaneseq
  %v66 = vshrl.u32 %v65, 7
  %v67 = vsub.s32 0, %v66
  %v68 = vrot.slane %v60, %v67
  %v69 = vlaneseq
  %v70 = vshrl.u32 %v69, 7
  %v71 = vsub.s32 0, %v70
  %v72 = vrot.slane %v61, %v71
  %v73 = vlaneseq
  %v74 = vshrl.u32 %v73, 7
  %v75 = vsub.s32 0, %v74
  %v76 = vrot.slane %v62, %v75
  %v77 = vlaneseq
  %v78 = vshrl.u32 %v77, 7
  %v79 = vsub.s32 0, %v78
  %v80 = vrot.slane %v63, %v79
  %82 = vset.pattern.permute.xlu0 0
  %83 = vperm.xlu0 %82, %v64
  %v84 = vpop.permute.xlu0 %83
  %v86 = vmul.f32 %v68, %v84
  %v87 = vmul.f32 %v72, %v84
  %v88 = vmul.f32 %v76, %v84
  %v89 = vmul.f32 %v80, %v84
  %s90 = scalar_lea.vmem %s1, 4
  %v91 = vld [vmem:[%s90] sm:$0x7]
  %v92 = vlaneseq
  %v93 = vshrl.u32 %v92, 7
  %v94 = vsub.s32 1, %v93
  %v95 = vrot.slane %v60, %v94
  %v96 = vlaneseq
  %v97 = vshrl.u32 %v96, 7
  %v98 = vsub.s32 1, %v97
  %v99 = vrot.slane %v61, %v98
  %v100 = vlaneseq
  %v101 = vshrl.u32 %v100, 7
  %v102 = vsub.s32 1, %v101
  %v103 = vrot.slane %v62, %v102
  %v104 = vlaneseq
  %v105 = vshrl.u32 %v104, 7
  %v106 = vsub.s32 1, %v105
  %v107 = vrot.slane %v63, %v106
  %109 = vset.pattern.permute.xlu0 0
  %110 = vperm.xlu0 %109, %v91
  %v111 = vpop.permute.xlu0 %110
  %v113 = vmul.f32 %v95, %v111
  %v114 = vmul.f32 %v99, %v111
  %v115 = vmul.f32 %v103, %v111
  %v116 = vmul.f32 %v107, %v111
  %v117 = vadd.f32 %v86, %v113
  %v118 = vadd.f32 %v87, %v114
  %v119 = vadd.f32 %v88, %v115
  %v120 = vadd.f32 %v89, %v116
  %s121 = scalar_lea.vmem %s1, 8
  %v122 = vld [vmem:[%s121] sm:$0x7]
  %v123 = vlaneseq
  %v124 = vshrl.u32 %v123, 7
  %v125 = vsub.s32 2, %v124
  %v126 = vrot.slane %v60, %v125
  %v127 = vlaneseq
  %v128 = vshrl.u32 %v127, 7
  %v129 = vsub.s32 2, %v128
  %v130 = vrot.slane %v61, %v129
  %v131 = vlaneseq
  %v132 = vshrl.u32 %v131, 7
  %v133 = vsub.s32 2, %v132
  %v134 = vrot.slane %v62, %v133
  %v135 = vlaneseq
  %v136 = vshrl.u32 %v135, 7
  %v137 = vsub.s32 2, %v136
  %v138 = vrot.slane %v63, %v137
  %140 = vset.pattern.permute.xlu0 0
  %141 = vperm.xlu0 %140, %v122
  %v142 = vpop.permute.xlu0 %141
  %v144 = vmul.f32 %v126, %v142
  %v145 = vmul.f32 %v130, %v142
  %v146 = vmul.f32 %v134, %v142
  %v147 = vmul.f32 %v138, %v142
  %v148 = vadd.f32 %v117, %v144
  %v149 = vadd.f32 %v118, %v145
  %v150 = vadd.f32 %v119, %v146
  %v151 = vadd.f32 %v120, %v147
  %152 = vrot.lane.b32.xlu0 %v33, 16
  %v153 = vpop.permute.xlu0 %152
  %154 = vrot.lane.b32.xlu0 %v34, 16
  %v155 = vpop.permute.xlu0 %154
  %156 = vrot.lane.b32.xlu0 %v37, 16
  %v157 = vpop.permute.xlu0 %156
  %158 = vrot.lane.b32.xlu0 %v38, 16
  %v159 = vpop.permute.xlu0 %158
  %vm160 = vcmp.lt.s32.totalorder %v21, 16
  %v161 = vsel %vm160, %v153, %v157
  %v162 = vsel %vm160, %v155, %v159
  %v163 = vsel %vm160, %v157, %v153
  %v164 = vsel %vm160, %v159, %v155
  %v165 = vsel %vm25, 1, 0
  %v166 = vsel %vm26, 1, 0
  %vm167 = vcmp.eq.s32.totalorder %v165, 1
  %vm168 = vcmp.eq.s32.totalorder %v166, 1
  %v169 = vsel %vm167, %v163, 0.0
  %v170 = vsel %vm168, %v161, 0.0
  %v171 = vsel %vm167, %v164, 0.0
  %v172 = vsel %vm168, %v162, 0.0
  %s173 = scalar_lea.vmem %s1, 12
  %v174 = vld [vmem:[%s173] sm:$0x7]
  %v175 = vlaneseq
  %v176 = vshrl.u32 %v175, 7
  %v177 = vsub.s32 0, %v176
  %v178 = vrot.slane %v169, %v177
  %v179 = vlaneseq
  %v180 = vshrl.u32 %v179, 7
  %v181 = vsub.s32 0, %v180
  %v182 = vrot.slane %v170, %v181
  %v183 = vlaneseq
  %v184 = vshrl.u32 %v183, 7
  %v185 = vsub.s32 0, %v184
  %v186 = vrot.slane %v171, %v185
  %v187 = vlaneseq
  %v188 = vshrl.u32 %v187, 7
  %v189 = vsub.s32 0, %v188
  %v190 = vrot.slane %v172, %v189
  %192 = vset.pattern.permute.xlu0 0
  %193 = vperm.xlu0 %192, %v174
  %v194 = vpop.permute.xlu0 %193
  %v196 = vmul.f32 %v178, %v194
  %v197 = vmul.f32 %v182, %v194
  %v198 = vmul.f32 %v186, %v194
  %v199 = vmul.f32 %v190, %v194
  %v200 = vadd.f32 %v148, %v196
  %v201 = vadd.f32 %v149, %v197
  %v202 = vadd.f32 %v150, %v198
  %v203 = vadd.f32 %v151, %v199
  %s204 = scalar_lea.vmem %s1, 16
  %v205 = vld [vmem:[%s204] sm:$0x7]
  %v206 = vlaneseq
  %v207 = vshrl.u32 %v206, 7
  %v208 = vsub.s32 1, %v207
  %v209 = vrot.slane %v169, %v208
  %v210 = vlaneseq
  %v211 = vshrl.u32 %v210, 7
  %v212 = vsub.s32 1, %v211
  %v213 = vrot.slane %v170, %v212
  %v214 = vlaneseq
  %v215 = vshrl.u32 %v214, 7
  %v216 = vsub.s32 1, %v215
  %v217 = vrot.slane %v171, %v216
  %v218 = vlaneseq
  %v219 = vshrl.u32 %v218, 7
  %v220 = vsub.s32 1, %v219
  %v221 = vrot.slane %v172, %v220
  %223 = vset.pattern.permute.xlu0 0
  %224 = vperm.xlu0 %223, %v205
  %v225 = vpop.permute.xlu0 %224
  %v227 = vmul.f32 %v209, %v225
  %v228 = vmul.f32 %v213, %v225
  %v229 = vmul.f32 %v217, %v225
  %v230 = vmul.f32 %v221, %v225
  %v231 = vadd.f32 %v200, %v227
  %v232 = vadd.f32 %v201, %v228
  %v233 = vadd.f32 %v202, %v229
  %v234 = vadd.f32 %v203, %v230
  %s235 = scalar_lea.vmem %s1, 20
  %v236 = vld [vmem:[%s235] sm:$0x7]
  %v237 = vlaneseq
  %v238 = vshrl.u32 %v237, 7
  %v239 = vsub.s32 2, %v238
  %v240 = vrot.slane %v169, %v239
  %v241 = vlaneseq
  %v242 = vshrl.u32 %v241, 7
  %v243 = vsub.s32 2, %v242
  %v244 = vrot.slane %v170, %v243
  %v245 = vlaneseq
  %v246 = vshrl.u32 %v245, 7
  %v247 = vsub.s32 2, %v246
  %v248 = vrot.slane %v171, %v247
  %v249 = vlaneseq
  %v250 = vshrl.u32 %v249, 7
  %v251 = vsub.s32 2, %v250
  %v252 = vrot.slane %v172, %v251
  %254 = vset.pattern.permute.xlu0 0
  %255 = vperm.xlu0 %254, %v236
  %v256 = vpop.permute.xlu0 %255
  %v258 = vmul.f32 %v240, %v256
  %v259 = vmul.f32 %v244, %v256
  %v260 = vmul.f32 %v248, %v256
  %v261 = vmul.f32 %v252, %v256
  %v262 = vadd.f32 %v231, %v258
  %v263 = vadd.f32 %v232, %v259
  %v264 = vadd.f32 %v233, %v260
  %v265 = vadd.f32 %v234, %v261
  %266 = vrot.lane.b32.xlu0 %v33, 15
  %v267 = vpop.permute.xlu0 %266
  %268 = vrot.lane.b32.xlu0 %v34, 15
  %v269 = vpop.permute.xlu0 %268
  %270 = vrot.lane.b32.xlu0 %v37, 15
  %v271 = vpop.permute.xlu0 %270
  %272 = vrot.lane.b32.xlu0 %v38, 15
  %v273 = vpop.permute.xlu0 %272
  %vm274 = vcmp.lt.s32.totalorder %v21, 15
  %v275 = vsel %vm274, %v267, %v271
  %v276 = vsel %vm274, %v269, %v273
  %v277 = vsel %vm274, %v271, %v267
  %v278 = vsel %vm274, %v273, %v269
  %vm279 = vmand %vm25, %vm31
  %vm280 = vmand %vm26, %vm32
  %v281 = vsel %vm279, 1, 0
  %v282 = vsel %vm280, 1, 0
  %vm283 = vcmp.eq.s32.totalorder %v281, 1
  %vm284 = vcmp.eq.s32.totalorder %v282, 1
  %v285 = vsel %vm283, %v277, 0.0
  %v286 = vsel %vm284, %v275, 0.0
  %v287 = vsel %vm283, %v278, 0.0
  %v288 = vsel %vm284, %v276, 0.0
  %s289 = scalar_lea.vmem %s1, 24
  %v290 = vld [vmem:[%s289] sm:$0x7]
  %v291 = vlaneseq
  %v292 = vshrl.u32 %v291, 7
  %v293 = vsub.s32 0, %v292
  %v294 = vrot.slane %v285, %v293
  %v295 = vlaneseq
  %v296 = vshrl.u32 %v295, 7
  %v297 = vsub.s32 0, %v296
  %v298 = vrot.slane %v286, %v297
  %v299 = vlaneseq
  %v300 = vshrl.u32 %v299, 7
  %v301 = vsub.s32 0, %v300
  %v302 = vrot.slane %v287, %v301
  %v303 = vlaneseq
  %v304 = vshrl.u32 %v303, 7
  %v305 = vsub.s32 0, %v304
  %v306 = vrot.slane %v288, %v305
  %308 = vset.pattern.permute.xlu0 0
  %309 = vperm.xlu0 %308, %v290
  %v310 = vpop.permute.xlu0 %309
  %v312 = vmul.f32 %v294, %v310
  %v313 = vmul.f32 %v298, %v310
  %v314 = vmul.f32 %v302, %v310
  %v315 = vmul.f32 %v306, %v310
  %v316 = vadd.f32 %v262, %v312
  %v317 = vadd.f32 %v263, %v313
  %v318 = vadd.f32 %v264, %v314
  %v319 = vadd.f32 %v265, %v315
  %s320 = scalar_lea.vmem %s1, 28
  %v321 = vld [vmem:[%s320] sm:$0x7]
  %v322 = vlaneseq
  %v323 = vshrl.u32 %v322, 7
  %v324 = vsub.s32 1, %v323
  %v325 = vrot.slane %v285, %v324
  %v326 = vlaneseq
  %v327 = vshrl.u32 %v326, 7
  %v328 = vsub.s32 1, %v327
  %v329 = vrot.slane %v286, %v328
  %v330 = vlaneseq
  %v331 = vshrl.u32 %v330, 7
  %v332 = vsub.s32 1, %v331
  %v333 = vrot.slane %v287, %v332
  %v334 = vlaneseq
  %v335 = vshrl.u32 %v334, 7
  %v336 = vsub.s32 1, %v335
  %v337 = vrot.slane %v288, %v336
  %339 = vset.pattern.permute.xlu0 0
  %340 = vperm.xlu0 %339, %v321
  %v341 = vpop.permute.xlu0 %340
  %v343 = vmul.f32 %v325, %v341
  %v344 = vmul.f32 %v329, %v341
  %v345 = vmul.f32 %v333, %v341
  %v346 = vmul.f32 %v337, %v341
  %v347 = vadd.f32 %v316, %v343
  %v348 = vadd.f32 %v317, %v344
  %v349 = vadd.f32 %v318, %v345
  %v350 = vadd.f32 %v319, %v346
  %s351 = scalar_lea.vmem %s1, 32
  %v352 = vld [vmem:[%s351] sm:$0x7]
  %v353 = vlaneseq
  %v354 = vshrl.u32 %v353, 7
  %v355 = vsub.s32 2, %v354
  %v356 = vrot.slane %v285, %v355
  %v357 = vlaneseq
  %v358 = vshrl.u32 %v357, 7
  %v359 = vsub.s32 2, %v358
  %v360 = vrot.slane %v286, %v359
  %v361 = vlaneseq
  %v362 = vshrl.u32 %v361, 7
  %v363 = vsub.s32 2, %v362
  %v364 = vrot.slane %v287, %v363
  %v365 = vlaneseq
  %v366 = vshrl.u32 %v365, 7
  %v367 = vsub.s32 2, %v366
  %v368 = vrot.slane %v288, %v367
  %370 = vset.pattern.permute.xlu0 0
  %371 = vperm.xlu0 %370, %v352
  %v372 = vpop.permute.xlu0 %371
  %v374 = vmul.f32 %v356, %v372
  %v375 = vmul.f32 %v360, %v372
  %v376 = vmul.f32 %v364, %v372
  %v377 = vmul.f32 %v368, %v372
  %v378 = vadd.f32 %v347, %v374
  %v379 = vadd.f32 %v348, %v375
  %v380 = vadd.f32 %v349, %v376
  %v381 = vadd.f32 %v350, %v377
  %382 = vrot.lane.b32.xlu0 %v33, 1
  %v383 = vpop.permute.xlu0 %382
  %384 = vrot.lane.b32.xlu0 %v34, 1
  %v385 = vpop.permute.xlu0 %384
  %386 = vrot.lane.b32.xlu0 %v37, 1
  %v387 = vpop.permute.xlu0 %386
  %388 = vrot.lane.b32.xlu0 %v38, 1
  %v389 = vpop.permute.xlu0 %388
  %vm390 = vcmp.lt.s32.totalorder %v21, 1
  %v391 = vsel %vm390, %v383, %v387
  %v392 = vsel %vm390, %v385, %v389
  %v393 = vsel %vm390, %v387, %v383
  %v394 = vsel %vm390, %v389, %v385
  %v395 = vsel %vm29, 1, 0
  %v396 = vsel %vm30, 1, 0
  %vm397 = vcmp.eq.s32.totalorder %v395, 1
  %vm398 = vcmp.eq.s32.totalorder %v396, 1
  %v399 = vsel %vm397, %v393, 0.0
  %v400 = vsel %vm398, %v391, 0.0
  %v401 = vsel %vm397, %v394, 0.0
  %v402 = vsel %vm398, %v392, 0.0
  %s403 = scalar_lea.vmem %s1, 36
  %v404 = vld [vmem:[%s403] sm:$0x7]
  %v405 = vlaneseq
  %v406 = vshrl.u32 %v405, 7
  %v407 = vsub.s32 0, %v406
  %v408 = vrot.slane %v399, %v407
  %v409 = vlaneseq
  %v410 = vshrl.u32 %v409, 7
  %v411 = vsub.s32 0, %v410
  %v412 = vrot.slane %v400, %v411
  %v413 = vlaneseq
  %v414 = vshrl.u32 %v413, 7
  %v415 = vsub.s32 0, %v414
  %v416 = vrot.slane %v401, %v415
  %v417 = vlaneseq
  %v418 = vshrl.u32 %v417, 7
  %v419 = vsub.s32 0, %v418
  %v420 = vrot.slane %v402, %v419
  %422 = vset.pattern.permute.xlu0 0
  %423 = vperm.xlu0 %422, %v404
  %v424 = vpop.permute.xlu0 %423
  %v426 = vmul.f32 %v408, %v424
  %v427 = vmul.f32 %v412, %v424
  %v428 = vmul.f32 %v416, %v424
  %v429 = vmul.f32 %v420, %v424
  %v430 = vadd.f32 %v378, %v426
  %v431 = vadd.f32 %v379, %v427
  %v432 = vadd.f32 %v380, %v428
  %v433 = vadd.f32 %v381, %v429
  %s434 = scalar_lea.vmem %s1, 40
  %v435 = vld [vmem:[%s434] sm:$0x7]
  %v436 = vlaneseq
  %v437 = vshrl.u32 %v436, 7
  %v438 = vsub.s32 1, %v437
  %v439 = vrot.slane %v399, %v438
  %v440 = vlaneseq
  %v441 = vshrl.u32 %v440, 7
  %v442 = vsub.s32 1, %v441
  %v443 = vrot.slane %v400, %v442
  %v444 = vlaneseq
  %v445 = vshrl.u32 %v444, 7
  %v446 = vsub.s32 1, %v445
  %v447 = vrot.slane %v401, %v446
  %v448 = vlaneseq
  %v449 = vshrl.u32 %v448, 7
  %v450 = vsub.s32 1, %v449
  %v451 = vrot.slane %v402, %v450
  %453 = vset.pattern.permute.xlu0 0
  %454 = vperm.xlu0 %453, %v435
  %v455 = vpop.permute.xlu0 %454
  %v457 = vmul.f32 %v439, %v455
  %v458 = vmul.f32 %v443, %v455
  %v459 = vmul.f32 %v447, %v455
  %v460 = vmul.f32 %v451, %v455
  %v461 = vadd.f32 %v430, %v457
  %v462 = vadd.f32 %v431, %v458
  %v463 = vadd.f32 %v432, %v459
  %v464 = vadd.f32 %v433, %v460
  %s465 = scalar_lea.vmem %s1, 44
  %v466 = vld [vmem:[%s465] sm:$0x7]
  %v467 = vlaneseq
  %v468 = vshrl.u32 %v467, 7
  %v469 = vsub.s32 2, %v468
  %v470 = vrot.slane %v399, %v469
  %v471 = vlaneseq
  %v472 = vshrl.u32 %v471, 7
  %v473 = vsub.s32 2, %v472
  %v474 = vrot.slane %v400, %v473
  %v475 = vlaneseq
  %v476 = vshrl.u32 %v475, 7
  %v477 = vsub.s32 2, %v476
  %v478 = vrot.slane %v401, %v477
  %v479 = vlaneseq
  %v480 = vshrl.u32 %v479, 7
  %v481 = vsub.s32 2, %v480
  %v482 = vrot.slane %v402, %v481
  %484 = vset.pattern.permute.xlu0 0
  %485 = vperm.xlu0 %484, %v466
  %v486 = vpop.permute.xlu0 %485
  %v488 = vmul.f32 %v470, %v486
  %v489 = vmul.f32 %v474, %v486
  %v490 = vmul.f32 %v478, %v486
  %v491 = vmul.f32 %v482, %v486
  %v492 = vadd.f32 %v461, %v488
  %v493 = vadd.f32 %v462, %v489
  %v494 = vadd.f32 %v463, %v490
  %v495 = vadd.f32 %v464, %v491
  %s496 = scalar_lea.vmem %s1, 48
  %v497 = vld [vmem:[%s496] sm:$0x7]
  %v498 = vlaneseq
  %v499 = vshrl.u32 %v498, 7
  %v500 = vsub.s32 0, %v499
  %v501 = vrot.slane %v33, %v500
  %v502 = vlaneseq
  %v503 = vshrl.u32 %v502, 7
  %v504 = vsub.s32 4, %v503
  %v505 = vrot.slane %v33, %v504
  %v506 = vlaneseq
  %v507 = vshrl.u32 %v506, 7
  %v508 = vsub.s32 0, %v507
  %v509 = vrot.slane %v34, %v508
  %v510 = vlaneseq
  %v511 = vshrl.u32 %v510, 7
  %v512 = vsub.s32 4, %v511
  %v513 = vrot.slane %v34, %v512
  %v518 = vlaneseq
  %v519 = vshrl.u32 %v518, 7
  %v520 = vsub.s32 0, %v519
  %v521 = vrot.slane %v501, %v520
  %v522 = vlaneseq
  %v523 = vshrl.u32 %v522, 7
  %v524 = vsub.s32 0, %v523
  %v525 = vrot.slane %v505, %v524
  %v526 = vlaneseq
  %v527 = vshrl.u32 %v526, 7
  %v528 = vsub.s32 0, %v527
  %v529 = vrot.slane %v509, %v528
  %v530 = vlaneseq
  %v531 = vshrl.u32 %v530, 7
  %v532 = vsub.s32 0, %v531
  %v533 = vrot.slane %v513, %v532
  %535 = vset.pattern.permute.xlu0 0
  %536 = vperm.xlu0 %535, %v497
  %v537 = vpop.permute.xlu0 %536
  %v539 = vmul.f32 %v521, %v537
  %v540 = vmul.f32 %v525, %v537
  %v541 = vmul.f32 %v529, %v537
  %v542 = vmul.f32 %v533, %v537
  %v543 = vadd.f32 %v492, %v539
  %v544 = vadd.f32 %v493, %v540
  %v545 = vadd.f32 %v494, %v541
  %v546 = vadd.f32 %v495, %v542
  %s547 = scalar_lea.vmem %s1, 52
  %v548 = vld [vmem:[%s547] sm:$0x7]
  %v549 = vlaneseq
  %v550 = vshrl.u32 %v549, 7
  %v551 = vsub.s32 1, %v550
  %v552 = vrot.slane %v33, %v551
  %v553 = vlaneseq
  %v554 = vshrl.u32 %v553, 7
  %v555 = vsub.s32 5, %v554
  %v556 = vrot.slane %v33, %v555
  %v557 = vlaneseq
  %v558 = vshrl.u32 %v557, 7
  %v559 = vsub.s32 1, %v558
  %v560 = vrot.slane %v34, %v559
  %v561 = vlaneseq
  %v562 = vshrl.u32 %v561, 7
  %v563 = vsub.s32 5, %v562
  %v564 = vrot.slane %v34, %v563
  %v569 = vlaneseq
  %v570 = vshrl.u32 %v569, 7
  %v571 = vsub.s32 1, %v570
  %v572 = vrot.slane %v552, %v571
  %v573 = vlaneseq
  %v574 = vshrl.u32 %v573, 7
  %v575 = vsub.s32 1, %v574
  %v576 = vrot.slane %v556, %v575
  %v577 = vlaneseq
  %v578 = vshrl.u32 %v577, 7
  %v579 = vsub.s32 1, %v578
  %v580 = vrot.slane %v560, %v579
  %v581 = vlaneseq
  %v582 = vshrl.u32 %v581, 7
  %v583 = vsub.s32 1, %v582
  %v584 = vrot.slane %v564, %v583
  %586 = vset.pattern.permute.xlu0 0
  %587 = vperm.xlu0 %586, %v548
  %v588 = vpop.permute.xlu0 %587
  %v590 = vmul.f32 %v572, %v588
  %v591 = vmul.f32 %v576, %v588
  %v592 = vmul.f32 %v580, %v588
  %v593 = vmul.f32 %v584, %v588
  %v594 = vadd.f32 %v543, %v590
  %v595 = vadd.f32 %v544, %v591
  %v596 = vadd.f32 %v545, %v592
  %v597 = vadd.f32 %v546, %v593
  %s598 = scalar_lea.vmem %s1, 56
  %v599 = vld [vmem:[%s598] sm:$0x7]
  %v600 = vlaneseq
  %v601 = vshrl.u32 %v600, 7
  %v602 = vsub.s32 2, %v601
  %v603 = vrot.slane %v33, %v602
  %v604 = vlaneseq
  %v605 = vshrl.u32 %v604, 7
  %v606 = vsub.s32 6, %v605
  %v607 = vrot.slane %v33, %v606
  %v608 = vlaneseq
  %v609 = vshrl.u32 %v608, 7
  %v610 = vsub.s32 2, %v609
  %v611 = vrot.slane %v34, %v610
  %v612 = vlaneseq
  %v613 = vshrl.u32 %v612, 7
  %v614 = vsub.s32 6, %v613
  %v615 = vrot.slane %v34, %v614
  %v620 = vlaneseq
  %v621 = vshrl.u32 %v620, 7
  %v622 = vsub.s32 2, %v621
  %v623 = vrot.slane %v603, %v622
  %v624 = vlaneseq
  %v625 = vshrl.u32 %v624, 7
  %v626 = vsub.s32 2, %v625
  %v627 = vrot.slane %v607, %v626
  %v628 = vlaneseq
  %v629 = vshrl.u32 %v628, 7
  %v630 = vsub.s32 2, %v629
  %v631 = vrot.slane %v611, %v630
  %v632 = vlaneseq
  %v633 = vshrl.u32 %v632, 7
  %v634 = vsub.s32 2, %v633
  %v635 = vrot.slane %v615, %v634
  %637 = vset.pattern.permute.xlu0 0
  %638 = vperm.xlu0 %637, %v599
  %v639 = vpop.permute.xlu0 %638
  %v641 = vmul.f32 %v623, %v639
  %v642 = vmul.f32 %v627, %v639
  %v643 = vmul.f32 %v631, %v639
  %v644 = vmul.f32 %v635, %v639
  %v645 = vadd.f32 %v594, %v641
  %v646 = vadd.f32 %v595, %v642
  %v647 = vadd.f32 %v596, %v643
  %v648 = vadd.f32 %v597, %v644
  %649 = vrot.lane.b32.xlu0 %v33, 127
  %v650 = vpop.permute.xlu0 %649
  %651 = vrot.lane.b32.xlu0 %v34, 127
  %v652 = vpop.permute.xlu0 %651
  %653 = vrot.lane.b32.xlu0 %v37, 127
  %v654 = vpop.permute.xlu0 %653
  %655 = vrot.lane.b32.xlu0 %v38, 127
  %v656 = vpop.permute.xlu0 %655
  %vm657 = vcmp.lt.s32.totalorder %v21, 127
  %v658 = vsel %vm657, %v650, %v654
  %v659 = vsel %vm657, %v652, %v656
  %v660 = vsel %vm657, %v654, %v650
  %v661 = vsel %vm657, %v656, %v652
  %v662 = vsel %vm31, 1, 0
  %v663 = vsel %vm32, 1, 0
  %vm664 = vcmp.eq.s32.totalorder %v662, 1
  %vm665 = vcmp.eq.s32.totalorder %v663, 1
  %v666 = vsel %vm664, %v658, 0.0
  %v667 = vsel %vm665, %v660, 0.0
  %v668 = vsel %vm664, %v659, 0.0
  %v669 = vsel %vm665, %v661, 0.0
  %s670 = scalar_lea.vmem %s1, 60
  %v671 = vld [vmem:[%s670] sm:$0x7]
  %v672 = vlaneseq
  %v673 = vshrl.u32 %v672, 7
  %v674 = vsub.s32 0, %v673
  %v675 = vrot.slane %v666, %v674
  %v676 = vlaneseq
  %v677 = vshrl.u32 %v676, 7
  %v678 = vsub.s32 0, %v677
  %v679 = vrot.slane %v667, %v678
  %v680 = vlaneseq
  %v681 = vshrl.u32 %v680, 7
  %v682 = vsub.s32 0, %v681
  %v683 = vrot.slane %v668, %v682
  %v684 = vlaneseq
  %v685 = vshrl.u32 %v684, 7
  %v686 = vsub.s32 0, %v685
  %v687 = vrot.slane %v669, %v686
  %689 = vset.pattern.permute.xlu0 0
  %690 = vperm.xlu0 %689, %v671
  %v691 = vpop.permute.xlu0 %690
  %v693 = vmul.f32 %v675, %v691
  %v694 = vmul.f32 %v679, %v691
  %v695 = vmul.f32 %v683, %v691
  %v696 = vmul.f32 %v687, %v691
  %v697 = vadd.f32 %v645, %v693
  %v698 = vadd.f32 %v646, %v694
  %v699 = vadd.f32 %v647, %v695
  %v700 = vadd.f32 %v648, %v696
  %s701 = scalar_lea.vmem %s1, 64
  %v702 = vld [vmem:[%s701] sm:$0x7]
  %v703 = vlaneseq
  %v704 = vshrl.u32 %v703, 7
  %v705 = vsub.s32 1, %v704
  %v706 = vrot.slane %v666, %v705
  %v707 = vlaneseq
  %v708 = vshrl.u32 %v707, 7
  %v709 = vsub.s32 1, %v708
  %v710 = vrot.slane %v667, %v709
  %v711 = vlaneseq
  %v712 = vshrl.u32 %v711, 7
  %v713 = vsub.s32 1, %v712
  %v714 = vrot.slane %v668, %v713
  %v715 = vlaneseq
  %v716 = vshrl.u32 %v715, 7
  %v717 = vsub.s32 1, %v716
  %v718 = vrot.slane %v669, %v717
  %720 = vset.pattern.permute.xlu0 0
  %721 = vperm.xlu0 %720, %v702
  %v722 = vpop.permute.xlu0 %721
  %v724 = vmul.f32 %v706, %v722
  %v725 = vmul.f32 %v710, %v722
  %v726 = vmul.f32 %v714, %v722
  %v727 = vmul.f32 %v718, %v722
  %v728 = vadd.f32 %v697, %v724
  %v729 = vadd.f32 %v698, %v725
  %v730 = vadd.f32 %v699, %v726
  %v731 = vadd.f32 %v700, %v727
  %s732 = scalar_lea.vmem %s1, 68
  %v733 = vld [vmem:[%s732] sm:$0x7]
  %v734 = vlaneseq
  %v735 = vshrl.u32 %v734, 7
  %v736 = vsub.s32 2, %v735
  %v737 = vrot.slane %v666, %v736
  %v738 = vlaneseq
  %v739 = vshrl.u32 %v738, 7
  %v740 = vsub.s32 2, %v739
  %v741 = vrot.slane %v667, %v740
  %v742 = vlaneseq
  %v743 = vshrl.u32 %v742, 7
  %v744 = vsub.s32 2, %v743
  %v745 = vrot.slane %v668, %v744
  %v746 = vlaneseq
  %v747 = vshrl.u32 %v746, 7
  %v748 = vsub.s32 2, %v747
  %v749 = vrot.slane %v669, %v748
  %751 = vset.pattern.permute.xlu0 0
  %752 = vperm.xlu0 %751, %v733
  %v753 = vpop.permute.xlu0 %752
  %v755 = vmul.f32 %v737, %v753
  %v756 = vmul.f32 %v741, %v753
  %v757 = vmul.f32 %v745, %v753
  %v758 = vmul.f32 %v749, %v753
  %v759 = vadd.f32 %v728, %v755
  %v760 = vadd.f32 %v729, %v756
  %v761 = vadd.f32 %v730, %v757
  %v762 = vadd.f32 %v731, %v758
  %763 = vrot.lane.b32.xlu0 %v33, 113
  %v764 = vpop.permute.xlu0 %763
  %765 = vrot.lane.b32.xlu0 %v34, 113
  %v766 = vpop.permute.xlu0 %765
  %767 = vrot.lane.b32.xlu0 %v37, 113
  %v768 = vpop.permute.xlu0 %767
  %769 = vrot.lane.b32.xlu0 %v38, 113
  %v770 = vpop.permute.xlu0 %769
  %vm771 = vcmp.lt.s32.totalorder %v21, 113
  %v772 = vsel %vm771, %v764, %v768
  %v773 = vsel %vm771, %v766, %v770
  %v774 = vsel %vm771, %v768, %v764
  %v775 = vsel %vm771, %v770, %v766
  %vm776 = vmand %vm27, %vm29
  %vm777 = vmand %vm28, %vm30
  %v778 = vsel %vm776, 1, 0
  %v779 = vsel %vm777, 1, 0
  %vm780 = vcmp.eq.s32.totalorder %v778, 1
  %vm781 = vcmp.eq.s32.totalorder %v779, 1
  %v782 = vsel %vm780, %v772, 0.0
  %v783 = vsel %vm781, %v774, 0.0
  %v784 = vsel %vm780, %v773, 0.0
  %v785 = vsel %vm781, %v775, 0.0
  %s786 = scalar_lea.vmem %s1, 72
  %v787 = vld [vmem:[%s786] sm:$0x7]
  %v788 = vlaneseq
  %v789 = vshrl.u32 %v788, 7
  %v790 = vsub.s32 0, %v789
  %v791 = vrot.slane %v782, %v790
  %v792 = vlaneseq
  %v793 = vshrl.u32 %v792, 7
  %v794 = vsub.s32 0, %v793
  %v795 = vrot.slane %v783, %v794
  %v796 = vlaneseq
  %v797 = vshrl.u32 %v796, 7
  %v798 = vsub.s32 0, %v797
  %v799 = vrot.slane %v784, %v798
  %v800 = vlaneseq
  %v801 = vshrl.u32 %v800, 7
  %v802 = vsub.s32 0, %v801
  %v803 = vrot.slane %v785, %v802
  %805 = vset.pattern.permute.xlu0 0
  %806 = vperm.xlu0 %805, %v787
  %v807 = vpop.permute.xlu0 %806
  %v809 = vmul.f32 %v791, %v807
  %v810 = vmul.f32 %v795, %v807
  %v811 = vmul.f32 %v799, %v807
  %v812 = vmul.f32 %v803, %v807
  %v813 = vadd.f32 %v759, %v809
  %v814 = vadd.f32 %v760, %v810
  %v815 = vadd.f32 %v761, %v811
  %v816 = vadd.f32 %v762, %v812
  %s817 = scalar_lea.vmem %s1, 76
  %v818 = vld [vmem:[%s817] sm:$0x7]
  %v819 = vlaneseq
  %v820 = vshrl.u32 %v819, 7
  %v821 = vsub.s32 1, %v820
  %v822 = vrot.slane %v782, %v821
  %v823 = vlaneseq
  %v824 = vshrl.u32 %v823, 7
  %v825 = vsub.s32 1, %v824
  %v826 = vrot.slane %v783, %v825
  %v827 = vlaneseq
  %v828 = vshrl.u32 %v827, 7
  %v829 = vsub.s32 1, %v828
  %v830 = vrot.slane %v784, %v829
  %v831 = vlaneseq
  %v832 = vshrl.u32 %v831, 7
  %v833 = vsub.s32 1, %v832
  %v834 = vrot.slane %v785, %v833
  %836 = vset.pattern.permute.xlu0 0
  %837 = vperm.xlu0 %836, %v818
  %v838 = vpop.permute.xlu0 %837
  %v840 = vmul.f32 %v822, %v838
  %v841 = vmul.f32 %v826, %v838
  %v842 = vmul.f32 %v830, %v838
  %v843 = vmul.f32 %v834, %v838
  %v844 = vadd.f32 %v813, %v840
  %v845 = vadd.f32 %v814, %v841
  %v846 = vadd.f32 %v815, %v842
  %v847 = vadd.f32 %v816, %v843
  %s848 = scalar_lea.vmem %s1, 80
  %v849 = vld [vmem:[%s848] sm:$0x7]
  %v850 = vlaneseq
  %v851 = vshrl.u32 %v850, 7
  %v852 = vsub.s32 2, %v851
  %v853 = vrot.slane %v782, %v852
  %v854 = vlaneseq
  %v855 = vshrl.u32 %v854, 7
  %v856 = vsub.s32 2, %v855
  %v857 = vrot.slane %v783, %v856
  %v858 = vlaneseq
  %v859 = vshrl.u32 %v858, 7
  %v860 = vsub.s32 2, %v859
  %v861 = vrot.slane %v784, %v860
  %v862 = vlaneseq
  %v863 = vshrl.u32 %v862, 7
  %v864 = vsub.s32 2, %v863
  %v865 = vrot.slane %v785, %v864
  %867 = vset.pattern.permute.xlu0 0
  %868 = vperm.xlu0 %867, %v849
  %v869 = vpop.permute.xlu0 %868
  %v871 = vmul.f32 %v853, %v869
  %v872 = vmul.f32 %v857, %v869
  %v873 = vmul.f32 %v861, %v869
  %v874 = vmul.f32 %v865, %v869
  %v875 = vadd.f32 %v844, %v871
  %v876 = vadd.f32 %v845, %v872
  %v877 = vadd.f32 %v846, %v873
  %v878 = vadd.f32 %v847, %v874
  %879 = vrot.lane.b32.xlu0 %v33, 112
  %v880 = vpop.permute.xlu0 %879
  %881 = vrot.lane.b32.xlu0 %v34, 112
  %v882 = vpop.permute.xlu0 %881
  %883 = vrot.lane.b32.xlu0 %v37, 112
  %v884 = vpop.permute.xlu0 %883
  %885 = vrot.lane.b32.xlu0 %v38, 112
  %v886 = vpop.permute.xlu0 %885
  %vm887 = vcmp.lt.s32.totalorder %v21, 112
  %v888 = vsel %vm887, %v880, %v884
  %v889 = vsel %vm887, %v882, %v886
  %v890 = vsel %vm887, %v884, %v880
  %v891 = vsel %vm887, %v886, %v882
  %v892 = vsel %vm27, 1, 0
  %v893 = vsel %vm28, 1, 0
  %vm894 = vcmp.eq.s32.totalorder %v892, 1
  %vm895 = vcmp.eq.s32.totalorder %v893, 1
  %v896 = vsel %vm894, %v888, 0.0
  %v897 = vsel %vm895, %v890, 0.0
  %v898 = vsel %vm894, %v889, 0.0
  %v899 = vsel %vm895, %v891, 0.0
  %s900 = scalar_lea.vmem %s1, 84
  %v901 = vld [vmem:[%s900] sm:$0x7]
  %v902 = vlaneseq
  %v903 = vshrl.u32 %v902, 7
  %v904 = vsub.s32 0, %v903
  %v905 = vrot.slane %v896, %v904
  %v906 = vlaneseq
  %v907 = vshrl.u32 %v906, 7
  %v908 = vsub.s32 0, %v907
  %v909 = vrot.slane %v897, %v908
  %v910 = vlaneseq
  %v911 = vshrl.u32 %v910, 7
  %v912 = vsub.s32 0, %v911
  %v913 = vrot.slane %v898, %v912
  %v914 = vlaneseq
  %v915 = vshrl.u32 %v914, 7
  %v916 = vsub.s32 0, %v915
  %v917 = vrot.slane %v899, %v916
  %919 = vset.pattern.permute.xlu0 0
  %920 = vperm.xlu0 %919, %v901
  %v921 = vpop.permute.xlu0 %920
  %v923 = vmul.f32 %v905, %v921
  %v924 = vmul.f32 %v909, %v921
  %v925 = vmul.f32 %v913, %v921
  %v926 = vmul.f32 %v917, %v921
  %v927 = vadd.f32 %v875, %v923
  %v928 = vadd.f32 %v876, %v924
  %v929 = vadd.f32 %v877, %v925
  %v930 = vadd.f32 %v878, %v926
  %s931 = scalar_lea.vmem %s1, 88
  %v932 = vld [vmem:[%s931] sm:$0x7]
  %v933 = vlaneseq
  %v934 = vshrl.u32 %v933, 7
  %v935 = vsub.s32 1, %v934
  %v936 = vrot.slane %v896, %v935
  %v937 = vlaneseq
  %v938 = vshrl.u32 %v937, 7
  %v939 = vsub.s32 1, %v938
  %v940 = vrot.slane %v897, %v939
  %v941 = vlaneseq
  %v942 = vshrl.u32 %v941, 7
  %v943 = vsub.s32 1, %v942
  %v944 = vrot.slane %v898, %v943
  %v945 = vlaneseq
  %v946 = vshrl.u32 %v945, 7
  %v947 = vsub.s32 1, %v946
  %v948 = vrot.slane %v899, %v947
  %950 = vset.pattern.permute.xlu0 0
  %951 = vperm.xlu0 %950, %v932
  %v952 = vpop.permute.xlu0 %951
  %v954 = vmul.f32 %v936, %v952
  %v955 = vmul.f32 %v940, %v952
  %v956 = vmul.f32 %v944, %v952
  %v957 = vmul.f32 %v948, %v952
  %v958 = vadd.f32 %v927, %v954
  %v959 = vadd.f32 %v928, %v955
  %v960 = vadd.f32 %v929, %v956
  %v961 = vadd.f32 %v930, %v957
  %s962 = scalar_lea.vmem %s1, 92
  %v963 = vld [vmem:[%s962] sm:$0x7]
  %v964 = vlaneseq
  %v965 = vshrl.u32 %v964, 7
  %v966 = vsub.s32 2, %v965
  %v967 = vrot.slane %v896, %v966
  %v968 = vlaneseq
  %v969 = vshrl.u32 %v968, 7
  %v970 = vsub.s32 2, %v969
  %v971 = vrot.slane %v897, %v970
  %v972 = vlaneseq
  %v973 = vshrl.u32 %v972, 7
  %v974 = vsub.s32 2, %v973
  %v975 = vrot.slane %v898, %v974
  %v976 = vlaneseq
  %v977 = vshrl.u32 %v976, 7
  %v978 = vsub.s32 2, %v977
  %v979 = vrot.slane %v899, %v978
  %981 = vset.pattern.permute.xlu0 0
  %982 = vperm.xlu0 %981, %v963
  %v983 = vpop.permute.xlu0 %982
  %v985 = vmul.f32 %v967, %v983
  %v986 = vmul.f32 %v971, %v983
  %v987 = vmul.f32 %v975, %v983
  %v988 = vmul.f32 %v979, %v983
  %v989 = vadd.f32 %v958, %v985
  %v990 = vadd.f32 %v959, %v986
  %v991 = vadd.f32 %v960, %v987
  %v992 = vadd.f32 %v961, %v988
  %993 = vrot.lane.b32.xlu0 %v33, 111
  %v994 = vpop.permute.xlu0 %993
  %995 = vrot.lane.b32.xlu0 %v34, 111
  %v996 = vpop.permute.xlu0 %995
  %997 = vrot.lane.b32.xlu0 %v37, 111
  %v998 = vpop.permute.xlu0 %997
  %999 = vrot.lane.b32.xlu0 %v38, 111
  %v1000 = vpop.permute.xlu0 %999
  %vm1001 = vcmp.lt.s32.totalorder %v21, 111
  %v1002 = vsel %vm1001, %v994, %v998
  %v1003 = vsel %vm1001, %v996, %v1000
  %v1004 = vsel %vm1001, %v998, %v994
  %v1005 = vsel %vm1001, %v1000, %v996
  %vm1006 = vmand %vm27, %vm31
  %vm1007 = vmand %vm28, %vm32
  %v1008 = vsel %vm1006, 1, 0
  %v1009 = vsel %vm1007, 1, 0
  %vm1010 = vcmp.eq.s32.totalorder %v1008, 1
  %vm1011 = vcmp.eq.s32.totalorder %v1009, 1
  %v1012 = vsel %vm1010, %v1002, 0.0
  %v1013 = vsel %vm1011, %v1004, 0.0
  %v1014 = vsel %vm1010, %v1003, 0.0
  %v1015 = vsel %vm1011, %v1005, 0.0
  %s1016 = scalar_lea.vmem %s1, 96
  %v1017 = vld [vmem:[%s1016] sm:$0x7]
  %v1018 = vlaneseq
  %v1019 = vshrl.u32 %v1018, 7
  %v1020 = vsub.s32 0, %v1019
  %v1021 = vrot.slane %v1012, %v1020
  %v1022 = vlaneseq
  %v1023 = vshrl.u32 %v1022, 7
  %v1024 = vsub.s32 0, %v1023
  %v1025 = vrot.slane %v1013, %v1024
  %v1026 = vlaneseq
  %v1027 = vshrl.u32 %v1026, 7
  %v1028 = vsub.s32 0, %v1027
  %v1029 = vrot.slane %v1014, %v1028
  %v1030 = vlaneseq
  %v1031 = vshrl.u32 %v1030, 7
  %v1032 = vsub.s32 0, %v1031
  %v1033 = vrot.slane %v1015, %v1032
  %1035 = vset.pattern.permute.xlu0 0
  %1036 = vperm.xlu0 %1035, %v1017
  %v1037 = vpop.permute.xlu0 %1036
  %v1039 = vmul.f32 %v1021, %v1037
  %v1040 = vmul.f32 %v1025, %v1037
  %v1041 = vmul.f32 %v1029, %v1037
  %v1042 = vmul.f32 %v1033, %v1037
  %v1043 = vadd.f32 %v989, %v1039
  %v1044 = vadd.f32 %v990, %v1040
  %v1045 = vadd.f32 %v991, %v1041
  %v1046 = vadd.f32 %v992, %v1042
  %s1047 = scalar_lea.vmem %s1, 100
  %v1048 = vld [vmem:[%s1047] sm:$0x7]
  %v1049 = vlaneseq
  %v1050 = vshrl.u32 %v1049, 7
  %v1051 = vsub.s32 1, %v1050
  %v1052 = vrot.slane %v1012, %v1051
  %v1053 = vlaneseq
  %v1054 = vshrl.u32 %v1053, 7
  %v1055 = vsub.s32 1, %v1054
  %v1056 = vrot.slane %v1013, %v1055
  %v1057 = vlaneseq
  %v1058 = vshrl.u32 %v1057, 7
  %v1059 = vsub.s32 1, %v1058
  %v1060 = vrot.slane %v1014, %v1059
  %v1061 = vlaneseq
  %v1062 = vshrl.u32 %v1061, 7
  %v1063 = vsub.s32 1, %v1062
  %v1064 = vrot.slane %v1015, %v1063
  %1066 = vset.pattern.permute.xlu0 0
  %1067 = vperm.xlu0 %1066, %v1048
  %v1068 = vpop.permute.xlu0 %1067
  %v1070 = vmul.f32 %v1052, %v1068
  %v1071 = vmul.f32 %v1056, %v1068
  %v1072 = vmul.f32 %v1060, %v1068
  %v1073 = vmul.f32 %v1064, %v1068
  %v1074 = vadd.f32 %v1043, %v1070
  %v1075 = vadd.f32 %v1044, %v1071
  %v1076 = vadd.f32 %v1045, %v1072
  %v1077 = vadd.f32 %v1046, %v1073
  %s1078 = scalar_lea.vmem %s1, 104
  %v1079 = vld [vmem:[%s1078] sm:$0x7]
  %v1080 = vlaneseq
  %v1081 = vshrl.u32 %v1080, 7
  %v1082 = vsub.s32 2, %v1081
  %v1083 = vrot.slane %v1012, %v1082
  %v1084 = vlaneseq
  %v1085 = vshrl.u32 %v1084, 7
  %v1086 = vsub.s32 2, %v1085
  %v1087 = vrot.slane %v1013, %v1086
  %v1088 = vlaneseq
  %v1089 = vshrl.u32 %v1088, 7
  %v1090 = vsub.s32 2, %v1089
  %v1091 = vrot.slane %v1014, %v1090
  %v1092 = vlaneseq
  %v1093 = vshrl.u32 %v1092, 7
  %v1094 = vsub.s32 2, %v1093
  %v1095 = vrot.slane %v1015, %v1094
  %1097 = vset.pattern.permute.xlu0 0
  %1098 = vperm.xlu0 %1097, %v1079
  %v1099 = vpop.permute.xlu0 %1098
  %v1101 = vmul.f32 %v1083, %v1099
  %v1102 = vmul.f32 %v1087, %v1099
  %v1103 = vmul.f32 %v1091, %v1099
  %v1104 = vmul.f32 %v1095, %v1099
  %v1105 = vadd.f32 %v1074, %v1101
  %v1106 = vadd.f32 %v1075, %v1102
  %v1107 = vadd.f32 %v1076, %v1103
  %v1108 = vadd.f32 %v1077, %v1104
  %v1109 = vld [vmem:[%s2] sm:$0x7]
  %1111 = vset.pattern.permute.xlu0 0
  %1112 = vperm.xlu0 %1111, %v1109
  %v1113 = vpop.permute.xlu0 %1112
  %v1115 = vadd.f32 %v1105, %v1113
  %v1116 = vadd.f32 %v1106, %v1113
  %v1117 = vadd.f32 %v1107, %v1113
  %v1118 = vadd.f32 %v1108, %v1113
  %v1119 = vmul.f32 %v1115, %v1115
  %v1120 = vmul.f32 %v1116, %v1116
  %v1121 = vmul.f32 %v1117, %v1117
  %v1122 = vmul.f32 %v1118, %v1118
  %v1127 = vrot.slane %v1119, 5
  %v1128 = vrot.slane %v1120, 5
  %v1129 = vrot.slane %v1121, 5
  %v1130 = vrot.slane %v1122, 5
  %vm1135 = vcmask 1042432
  %v1136 = vsel %vm1135, %v1115, %v1127
  %v1137 = vsel %vm1135, %v1116, %v1128
  %v1138 = vsel %vm1135, %v1117, %v1129
  %v1139 = vsel %vm1135, %v1118, %v1130
  %vm1140 = vcmask 1045504
  %v1141 = vsel %vm1140, %v1136, 0.0
  %v1142 = vsel %vm1140, %v1137, 0.0
  %v1143 = vadd.f32 %v1141, %v1142
  %1144 = vadd.xlane.f32.xlu0 %v1143
  %v1145 = vpop.xlane.xlu0 %1144
  %v1146 = vsel %vm1140, %v1138, 0.0
  %v1147 = vsel %vm1140, %v1139, 0.0
  %v1148 = vadd.f32 %v1146, %v1147
  %1149 = vadd.xlane.f32.xlu0 %v1148
  %v1150 = vpop.xlane.xlu0 %1149
  %v1151 = vsel %vm1140, %v1145, 0.0
  %v1152 = vsel %vm1140, %v1150, 0.0
  %v1153 = vadd.f32 %v1151, %v1152
  %v1154 = vmul.f32 %v1153, 0.001953125
  %v1155 = vmul.f32 %v1154, %v1154
  %v1157 = vrot.slane %v1155, 5
  %v1159 = vsub.f32 %v1154, %v1157
  %v1160 = vmax.f32 %v1159, 0.0
  %v1161 = vld [vmem:[%s3] sm:$0x7]
  %v1162 = vadd.f32 %v1160, 1e-05
  %v1163 = vrsqrt.pop %v1162
  %v1165 = vrot.slane %v1163, 3
  %v1167 = vmul.f32 %v1161, %v1165
  %v1168 = vld [vmem:[%s4] sm:$0x7]
  %v1169 = vmul.f32 %v1154, %v1167
  %v1170 = vsub.f32 %v1168, %v1169
  %1172 = vset.pattern.permute.xlu0 0
  %1173 = vperm.xlu0 %1172, %v1167
  %v1174 = vpop.permute.xlu0 %1173
  %v1176 = vmul.f32 %v1115, %v1174
  %v1177 = vmul.f32 %v1116, %v1174
  %v1178 = vmul.f32 %v1117, %v1174
  %v1179 = vmul.f32 %v1118, %v1174
  %1181 = vset.pattern.permute.xlu0 0
  %1182 = vperm.xlu0 %1181, %v1170
  %v1183 = vpop.permute.xlu0 %1182
  %v1185 = vadd.f32 %v1176, %v1183
  %v1186 = vadd.f32 %v1177, %v1183
  %v1187 = vadd.f32 %v1178, %v1183
  %v1188 = vadd.f32 %v1179, %v1183
  %1189 = vrot.lane.b32.xlu0 %v1185, 17
  %v1190 = vpop.permute.xlu0 %1189
  %1191 = vrot.lane.b32.xlu0 %v1187, 17
  %v1192 = vpop.permute.xlu0 %1191
  %1193 = vrot.lane.b32.xlu0 %v1186, 17
  %v1194 = vpop.permute.xlu0 %1193
  %1195 = vrot.lane.b32.xlu0 %v1188, 17
  %v1196 = vpop.permute.xlu0 %1195
  %v1197 = vsel %vm49, %v1190, %v1194
  %v1198 = vsel %vm49, %v1192, %v1196
  %v1199 = vsel %vm49, %v1194, %v1190
  %v1200 = vsel %vm49, %v1196, %v1192
  %v1201 = vsel %vm58, %v1199, 0.0
  %v1202 = vsel %vm59, %v1197, 0.0
  %v1203 = vsel %vm58, %v1200, 0.0
  %v1204 = vsel %vm59, %v1198, 0.0
  %s1205 = scalar_lea.vmem %s1, 108
  %v1206 = vld [vmem:[%s1205] sm:$0x7]
  %v1207 = vlaneseq
  %v1208 = vshrl.u32 %v1207, 7
  %v1209 = vsub.s32 0, %v1208
  %v1210 = vrot.slane %v1201, %v1209
  %v1211 = vlaneseq
  %v1212 = vshrl.u32 %v1211, 7
  %v1213 = vsub.s32 0, %v1212
  %v1214 = vrot.slane %v1202, %v1213
  %v1215 = vlaneseq
  %v1216 = vshrl.u32 %v1215, 7
  %v1217 = vsub.s32 0, %v1216
  %v1218 = vrot.slane %v1203, %v1217
  %v1219 = vlaneseq
  %v1220 = vshrl.u32 %v1219, 7
  %v1221 = vsub.s32 0, %v1220
  %v1222 = vrot.slane %v1204, %v1221
  %1224 = vset.pattern.permute.xlu0 0
  %1225 = vperm.xlu0 %1224, %v1206
  %v1226 = vpop.permute.xlu0 %1225
  %v1228 = vmul.f32 %v1210, %v1226
  %v1229 = vmul.f32 %v1214, %v1226
  %v1230 = vmul.f32 %v1218, %v1226
  %v1231 = vmul.f32 %v1222, %v1226
  %s1232 = scalar_lea.vmem %s1, 112
  %v1233 = vld [vmem:[%s1232] sm:$0x7]
  %v1234 = vlaneseq
  %v1235 = vshrl.u32 %v1234, 7
  %v1236 = vsub.s32 1, %v1235
  %v1237 = vrot.slane %v1201, %v1236
  %v1238 = vlaneseq
  %v1239 = vshrl.u32 %v1238, 7
  %v1240 = vsub.s32 1, %v1239
  %v1241 = vrot.slane %v1202, %v1240
  %v1242 = vlaneseq
  %v1243 = vshrl.u32 %v1242, 7
  %v1244 = vsub.s32 1, %v1243
  %v1245 = vrot.slane %v1203, %v1244
  %v1246 = vlaneseq
  %v1247 = vshrl.u32 %v1246, 7
  %v1248 = vsub.s32 1, %v1247
  %v1249 = vrot.slane %v1204, %v1248
  %1251 = vset.pattern.permute.xlu0 0
  %1252 = vperm.xlu0 %1251, %v1233
  %v1253 = vpop.permute.xlu0 %1252
  %v1255 = vmul.f32 %v1237, %v1253
  %v1256 = vmul.f32 %v1241, %v1253
  %v1257 = vmul.f32 %v1245, %v1253
  %v1258 = vmul.f32 %v1249, %v1253
  %v1259 = vadd.f32 %v1228, %v1255
  %v1260 = vadd.f32 %v1229, %v1256
  %v1261 = vadd.f32 %v1230, %v1257
  %v1262 = vadd.f32 %v1231, %v1258
  %s1263 = scalar_lea.vmem %s1, 116
  %v1264 = vld [vmem:[%s1263] sm:$0x7]
  %v1265 = vlaneseq
  %v1266 = vshrl.u32 %v1265, 7
  %v1267 = vsub.s32 2, %v1266
  %v1268 = vrot.slane %v1201, %v1267
  %v1269 = vlaneseq
  %v1270 = vshrl.u32 %v1269, 7
  %v1271 = vsub.s32 2, %v1270
  %v1272 = vrot.slane %v1202, %v1271
  %v1273 = vlaneseq
  %v1274 = vshrl.u32 %v1273, 7
  %v1275 = vsub.s32 2, %v1274
  %v1276 = vrot.slane %v1203, %v1275
  %v1277 = vlaneseq
  %v1278 = vshrl.u32 %v1277, 7
  %v1279 = vsub.s32 2, %v1278
  %v1280 = vrot.slane %v1204, %v1279
  %1282 = vset.pattern.permute.xlu0 0
  %1283 = vperm.xlu0 %1282, %v1264
  %v1284 = vpop.permute.xlu0 %1283
  %v1286 = vmul.f32 %v1268, %v1284
  %v1287 = vmul.f32 %v1272, %v1284
  %v1288 = vmul.f32 %v1276, %v1284
  %v1289 = vmul.f32 %v1280, %v1284
  %v1290 = vadd.f32 %v1259, %v1286
  %v1291 = vadd.f32 %v1260, %v1287
  %v1292 = vadd.f32 %v1261, %v1288
  %v1293 = vadd.f32 %v1262, %v1289
  %1294 = vrot.lane.b32.xlu0 %v1185, 16
  %v1295 = vpop.permute.xlu0 %1294
  %1296 = vrot.lane.b32.xlu0 %v1187, 16
  %v1297 = vpop.permute.xlu0 %1296
  %1298 = vrot.lane.b32.xlu0 %v1186, 16
  %v1299 = vpop.permute.xlu0 %1298
  %1300 = vrot.lane.b32.xlu0 %v1188, 16
  %v1301 = vpop.permute.xlu0 %1300
  %v1302 = vsel %vm160, %v1295, %v1299
  %v1303 = vsel %vm160, %v1297, %v1301
  %v1304 = vsel %vm160, %v1299, %v1295
  %v1305 = vsel %vm160, %v1301, %v1297
  %v1306 = vsel %vm167, %v1304, 0.0
  %v1307 = vsel %vm168, %v1302, 0.0
  %v1308 = vsel %vm167, %v1305, 0.0
  %v1309 = vsel %vm168, %v1303, 0.0
  %s1310 = scalar_lea.vmem %s1, 120
  %v1311 = vld [vmem:[%s1310] sm:$0x7]
  %v1312 = vlaneseq
  %v1313 = vshrl.u32 %v1312, 7
  %v1314 = vsub.s32 0, %v1313
  %v1315 = vrot.slane %v1306, %v1314
  %v1316 = vlaneseq
  %v1317 = vshrl.u32 %v1316, 7
  %v1318 = vsub.s32 0, %v1317
  %v1319 = vrot.slane %v1307, %v1318
  %v1320 = vlaneseq
  %v1321 = vshrl.u32 %v1320, 7
  %v1322 = vsub.s32 0, %v1321
  %v1323 = vrot.slane %v1308, %v1322
  %v1324 = vlaneseq
  %v1325 = vshrl.u32 %v1324, 7
  %v1326 = vsub.s32 0, %v1325
  %v1327 = vrot.slane %v1309, %v1326
  %1329 = vset.pattern.permute.xlu0 0
  %1330 = vperm.xlu0 %1329, %v1311
  %v1331 = vpop.permute.xlu0 %1330
  %v1333 = vmul.f32 %v1315, %v1331
  %v1334 = vmul.f32 %v1319, %v1331
  %v1335 = vmul.f32 %v1323, %v1331
  %v1336 = vmul.f32 %v1327, %v1331
  %v1337 = vadd.f32 %v1290, %v1333
  %v1338 = vadd.f32 %v1291, %v1334
  %v1339 = vadd.f32 %v1292, %v1335
  %v1340 = vadd.f32 %v1293, %v1336
  %s1341 = scalar_lea.vmem %s1, 124
  %v1342 = vld [vmem:[%s1341] sm:$0x7]
  %v1343 = vlaneseq
  %v1344 = vshrl.u32 %v1343, 7
  %v1345 = vsub.s32 1, %v1344
  %v1346 = vrot.slane %v1306, %v1345
  %v1347 = vlaneseq
  %v1348 = vshrl.u32 %v1347, 7
  %v1349 = vsub.s32 1, %v1348
  %v1350 = vrot.slane %v1307, %v1349
  %v1351 = vlaneseq
  %v1352 = vshrl.u32 %v1351, 7
  %v1353 = vsub.s32 1, %v1352
  %v1354 = vrot.slane %v1308, %v1353
  %v1355 = vlaneseq
  %v1356 = vshrl.u32 %v1355, 7
  %v1357 = vsub.s32 1, %v1356
  %v1358 = vrot.slane %v1309, %v1357
  %1360 = vset.pattern.permute.xlu0 0
  %1361 = vperm.xlu0 %1360, %v1342
  %v1362 = vpop.permute.xlu0 %1361
  %v1364 = vmul.f32 %v1346, %v1362
  %v1365 = vmul.f32 %v1350, %v1362
  %v1366 = vmul.f32 %v1354, %v1362
  %v1367 = vmul.f32 %v1358, %v1362
  %v1368 = vadd.f32 %v1337, %v1364
  %v1369 = vadd.f32 %v1338, %v1365
  %v1370 = vadd.f32 %v1339, %v1366
  %v1371 = vadd.f32 %v1340, %v1367
  %s1372 = scalar_lea.vmem %s1, 128
  %v1373 = vld [vmem:[%s1372] sm:$0x7]
  %v1374 = vlaneseq
  %v1375 = vshrl.u32 %v1374, 7
  %v1376 = vsub.s32 2, %v1375
  %v1377 = vrot.slane %v1306, %v1376
  %v1378 = vlaneseq
  %v1379 = vshrl.u32 %v1378, 7
  %v1380 = vsub.s32 2, %v1379
  %v1381 = vrot.slane %v1307, %v1380
  %v1382 = vlaneseq
  %v1383 = vshrl.u32 %v1382, 7
  %v1384 = vsub.s32 2, %v1383
  %v1385 = vrot.slane %v1308, %v1384
  %v1386 = vlaneseq
  %v1387 = vshrl.u32 %v1386, 7
  %v1388 = vsub.s32 2, %v1387
  %v1389 = vrot.slane %v1309, %v1388
  %1391 = vset.pattern.permute.xlu0 0
  %1392 = vperm.xlu0 %1391, %v1373
  %v1393 = vpop.permute.xlu0 %1392
  %v1395 = vmul.f32 %v1377, %v1393
  %v1396 = vmul.f32 %v1381, %v1393
  %v1397 = vmul.f32 %v1385, %v1393
  %v1398 = vmul.f32 %v1389, %v1393
  %v1399 = vadd.f32 %v1368, %v1395
  %v1400 = vadd.f32 %v1369, %v1396
  %v1401 = vadd.f32 %v1370, %v1397
  %v1402 = vadd.f32 %v1371, %v1398
  %1403 = vrot.lane.b32.xlu0 %v1185, 15
  %v1404 = vpop.permute.xlu0 %1403
  %1405 = vrot.lane.b32.xlu0 %v1187, 15
  %v1406 = vpop.permute.xlu0 %1405
  %1407 = vrot.lane.b32.xlu0 %v1186, 15
  %v1408 = vpop.permute.xlu0 %1407
  %1409 = vrot.lane.b32.xlu0 %v1188, 15
  %v1410 = vpop.permute.xlu0 %1409
  %v1411 = vsel %vm274, %v1404, %v1408
  %v1412 = vsel %vm274, %v1406, %v1410
  %v1413 = vsel %vm274, %v1408, %v1404
  %v1414 = vsel %vm274, %v1410, %v1406
  %v1415 = vsel %vm283, %v1413, 0.0
  %v1416 = vsel %vm284, %v1411, 0.0
  %v1417 = vsel %vm283, %v1414, 0.0
  %v1418 = vsel %vm284, %v1412, 0.0
  %s1419 = scalar_lea.vmem %s1, 132
  %v1420 = vld [vmem:[%s1419] sm:$0x7]
  %v1421 = vlaneseq
  %v1422 = vshrl.u32 %v1421, 7
  %v1423 = vsub.s32 0, %v1422
  %v1424 = vrot.slane %v1415, %v1423
  %v1425 = vlaneseq
  %v1426 = vshrl.u32 %v1425, 7
  %v1427 = vsub.s32 0, %v1426
  %v1428 = vrot.slane %v1416, %v1427
  %v1429 = vlaneseq
  %v1430 = vshrl.u32 %v1429, 7
  %v1431 = vsub.s32 0, %v1430
  %v1432 = vrot.slane %v1417, %v1431
  %v1433 = vlaneseq
  %v1434 = vshrl.u32 %v1433, 7
  %v1435 = vsub.s32 0, %v1434
  %v1436 = vrot.slane %v1418, %v1435
  %1438 = vset.pattern.permute.xlu0 0
  %1439 = vperm.xlu0 %1438, %v1420
  %v1440 = vpop.permute.xlu0 %1439
  %v1442 = vmul.f32 %v1424, %v1440
  %v1443 = vmul.f32 %v1428, %v1440
  %v1444 = vmul.f32 %v1432, %v1440
  %v1445 = vmul.f32 %v1436, %v1440
  %v1446 = vadd.f32 %v1399, %v1442
  %v1447 = vadd.f32 %v1400, %v1443
  %v1448 = vadd.f32 %v1401, %v1444
  %v1449 = vadd.f32 %v1402, %v1445
  %s1450 = scalar_lea.vmem %s1, 136
  %v1451 = vld [vmem:[%s1450] sm:$0x7]
  %v1452 = vlaneseq
  %v1453 = vshrl.u32 %v1452, 7
  %v1454 = vsub.s32 1, %v1453
  %v1455 = vrot.slane %v1415, %v1454
  %v1456 = vlaneseq
  %v1457 = vshrl.u32 %v1456, 7
  %v1458 = vsub.s32 1, %v1457
  %v1459 = vrot.slane %v1416, %v1458
  %v1460 = vlaneseq
  %v1461 = vshrl.u32 %v1460, 7
  %v1462 = vsub.s32 1, %v1461
  %v1463 = vrot.slane %v1417, %v1462
  %v1464 = vlaneseq
  %v1465 = vshrl.u32 %v1464, 7
  %v1466 = vsub.s32 1, %v1465
  %v1467 = vrot.slane %v1418, %v1466
  %1469 = vset.pattern.permute.xlu0 0
  %1470 = vperm.xlu0 %1469, %v1451
  %v1471 = vpop.permute.xlu0 %1470
  %v1473 = vmul.f32 %v1455, %v1471
  %v1474 = vmul.f32 %v1459, %v1471
  %v1475 = vmul.f32 %v1463, %v1471
  %v1476 = vmul.f32 %v1467, %v1471
  %v1477 = vadd.f32 %v1446, %v1473
  %v1478 = vadd.f32 %v1447, %v1474
  %v1479 = vadd.f32 %v1448, %v1475
  %v1480 = vadd.f32 %v1449, %v1476
  %s1481 = scalar_lea.vmem %s1, 140
  %v1482 = vld [vmem:[%s1481] sm:$0x7]
  %v1483 = vlaneseq
  %v1484 = vshrl.u32 %v1483, 7
  %v1485 = vsub.s32 2, %v1484
  %v1486 = vrot.slane %v1415, %v1485
  %v1487 = vlaneseq
  %v1488 = vshrl.u32 %v1487, 7
  %v1489 = vsub.s32 2, %v1488
  %v1490 = vrot.slane %v1416, %v1489
  %v1491 = vlaneseq
  %v1492 = vshrl.u32 %v1491, 7
  %v1493 = vsub.s32 2, %v1492
  %v1494 = vrot.slane %v1417, %v1493
  %v1495 = vlaneseq
  %v1496 = vshrl.u32 %v1495, 7
  %v1497 = vsub.s32 2, %v1496
  %v1498 = vrot.slane %v1418, %v1497
  %1500 = vset.pattern.permute.xlu0 0
  %1501 = vperm.xlu0 %1500, %v1482
  %v1502 = vpop.permute.xlu0 %1501
  %v1504 = vmul.f32 %v1486, %v1502
  %v1505 = vmul.f32 %v1490, %v1502
  %v1506 = vmul.f32 %v1494, %v1502
  %v1507 = vmul.f32 %v1498, %v1502
  %v1508 = vadd.f32 %v1477, %v1504
  %v1509 = vadd.f32 %v1478, %v1505
  %v1510 = vadd.f32 %v1479, %v1506
  %v1511 = vadd.f32 %v1480, %v1507
  %1512 = vrot.lane.b32.xlu0 %v1185, 1
  %v1513 = vpop.permute.xlu0 %1512
  %1514 = vrot.lane.b32.xlu0 %v1187, 1
  %v1515 = vpop.permute.xlu0 %1514
  %1516 = vrot.lane.b32.xlu0 %v1186, 1
  %v1517 = vpop.permute.xlu0 %1516
  %1518 = vrot.lane.b32.xlu0 %v1188, 1
  %v1519 = vpop.permute.xlu0 %1518
  %v1520 = vsel %vm390, %v1513, %v1517
  %v1521 = vsel %vm390, %v1515, %v1519
  %v1522 = vsel %vm390, %v1517, %v1513
  %v1523 = vsel %vm390, %v1519, %v1515
  %v1524 = vsel %vm397, %v1522, 0.0
  %v1525 = vsel %vm398, %v1520, 0.0
  %v1526 = vsel %vm397, %v1523, 0.0
  %v1527 = vsel %vm398, %v1521, 0.0
  %s1528 = scalar_lea.vmem %s1, 144
  %v1529 = vld [vmem:[%s1528] sm:$0x7]
  %v1530 = vlaneseq
  %v1531 = vshrl.u32 %v1530, 7
  %v1532 = vsub.s32 0, %v1531
  %v1533 = vrot.slane %v1524, %v1532
  %v1534 = vlaneseq
  %v1535 = vshrl.u32 %v1534, 7
  %v1536 = vsub.s32 0, %v1535
  %v1537 = vrot.slane %v1525, %v1536
  %v1538 = vlaneseq
  %v1539 = vshrl.u32 %v1538, 7
  %v1540 = vsub.s32 0, %v1539
  %v1541 = vrot.slane %v1526, %v1540
  %v1542 = vlaneseq
  %v1543 = vshrl.u32 %v1542, 7
  %v1544 = vsub.s32 0, %v1543
  %v1545 = vrot.slane %v1527, %v1544
  %1547 = vset.pattern.permute.xlu0 0
  %1548 = vperm.xlu0 %1547, %v1529
  %v1549 = vpop.permute.xlu0 %1548
  %v1551 = vmul.f32 %v1533, %v1549
  %v1552 = vmul.f32 %v1537, %v1549
  %v1553 = vmul.f32 %v1541, %v1549
  %v1554 = vmul.f32 %v1545, %v1549
  %v1555 = vadd.f32 %v1508, %v1551
  %v1556 = vadd.f32 %v1509, %v1552
  %v1557 = vadd.f32 %v1510, %v1553
  %v1558 = vadd.f32 %v1511, %v1554
  %s1559 = scalar_lea.vmem %s1, 148
  %v1560 = vld [vmem:[%s1559] sm:$0x7]
  %v1561 = vlaneseq
  %v1562 = vshrl.u32 %v1561, 7
  %v1563 = vsub.s32 1, %v1562
  %v1564 = vrot.slane %v1524, %v1563
  %v1565 = vlaneseq
  %v1566 = vshrl.u32 %v1565, 7
  %v1567 = vsub.s32 1, %v1566
  %v1568 = vrot.slane %v1525, %v1567
  %v1569 = vlaneseq
  %v1570 = vshrl.u32 %v1569, 7
  %v1571 = vsub.s32 1, %v1570
  %v1572 = vrot.slane %v1526, %v1571
  %v1573 = vlaneseq
  %v1574 = vshrl.u32 %v1573, 7
  %v1575 = vsub.s32 1, %v1574
  %v1576 = vrot.slane %v1527, %v1575
  %1578 = vset.pattern.permute.xlu0 0
  %1579 = vperm.xlu0 %1578, %v1560
  %v1580 = vpop.permute.xlu0 %1579
  %v1582 = vmul.f32 %v1564, %v1580
  %v1583 = vmul.f32 %v1568, %v1580
  %v1584 = vmul.f32 %v1572, %v1580
  %v1585 = vmul.f32 %v1576, %v1580
  %v1586 = vadd.f32 %v1555, %v1582
  %v1587 = vadd.f32 %v1556, %v1583
  %v1588 = vadd.f32 %v1557, %v1584
  %v1589 = vadd.f32 %v1558, %v1585
  %s1590 = scalar_lea.vmem %s1, 152
  %v1591 = vld [vmem:[%s1590] sm:$0x7]
  %v1592 = vlaneseq
  %v1593 = vshrl.u32 %v1592, 7
  %v1594 = vsub.s32 2, %v1593
  %v1595 = vrot.slane %v1524, %v1594
  %v1596 = vlaneseq
  %v1597 = vshrl.u32 %v1596, 7
  %v1598 = vsub.s32 2, %v1597
  %v1599 = vrot.slane %v1525, %v1598
  %v1600 = vlaneseq
  %v1601 = vshrl.u32 %v1600, 7
  %v1602 = vsub.s32 2, %v1601
  %v1603 = vrot.slane %v1526, %v1602
  %v1604 = vlaneseq
  %v1605 = vshrl.u32 %v1604, 7
  %v1606 = vsub.s32 2, %v1605
  %v1607 = vrot.slane %v1527, %v1606
  %1609 = vset.pattern.permute.xlu0 0
  %1610 = vperm.xlu0 %1609, %v1591
  %v1611 = vpop.permute.xlu0 %1610
  %v1613 = vmul.f32 %v1595, %v1611
  %v1614 = vmul.f32 %v1599, %v1611
  %v1615 = vmul.f32 %v1603, %v1611
  %v1616 = vmul.f32 %v1607, %v1611
  %v1617 = vadd.f32 %v1586, %v1613
  %v1618 = vadd.f32 %v1587, %v1614
  %v1619 = vadd.f32 %v1588, %v1615
  %v1620 = vadd.f32 %v1589, %v1616
  %s1621 = scalar_lea.vmem %s1, 156
  %v1622 = vld [vmem:[%s1621] sm:$0x7]
  %v1623 = vlaneseq
  %v1624 = vshrl.u32 %v1623, 7
  %v1625 = vsub.s32 0, %v1624
  %v1626 = vrot.slane %v1185, %v1625
  %v1627 = vlaneseq
  %v1628 = vshrl.u32 %v1627, 7
  %v1629 = vsub.s32 0, %v1628
  %v1630 = vrot.slane %v1186, %v1629
  %v1631 = vlaneseq
  %v1632 = vshrl.u32 %v1631, 7
  %v1633 = vsub.s32 0, %v1632
  %v1634 = vrot.slane %v1187, %v1633
  %v1635 = vlaneseq
  %v1636 = vshrl.u32 %v1635, 7
  %v1637 = vsub.s32 0, %v1636
  %v1638 = vrot.slane %v1188, %v1637
  %1640 = vset.pattern.permute.xlu0 0
  %1641 = vperm.xlu0 %1640, %v1622
  %v1642 = vpop.permute.xlu0 %1641
  %v1644 = vmul.f32 %v1626, %v1642
  %v1645 = vmul.f32 %v1630, %v1642
  %v1646 = vmul.f32 %v1634, %v1642
  %v1647 = vmul.f32 %v1638, %v1642
  %v1648 = vadd.f32 %v1617, %v1644
  %v1649 = vadd.f32 %v1618, %v1645
  %v1650 = vadd.f32 %v1619, %v1646
  %v1651 = vadd.f32 %v1620, %v1647
  %s1652 = scalar_lea.vmem %s1, 160
  %v1653 = vld [vmem:[%s1652] sm:$0x7]
  %v1654 = vlaneseq
  %v1655 = vshrl.u32 %v1654, 7
  %v1656 = vsub.s32 1, %v1655
  %v1657 = vrot.slane %v1185, %v1656
  %v1658 = vlaneseq
  %v1659 = vshrl.u32 %v1658, 7
  %v1660 = vsub.s32 1, %v1659
  %v1661 = vrot.slane %v1186, %v1660
  %v1662 = vlaneseq
  %v1663 = vshrl.u32 %v1662, 7
  %v1664 = vsub.s32 1, %v1663
  %v1665 = vrot.slane %v1187, %v1664
  %v1666 = vlaneseq
  %v1667 = vshrl.u32 %v1666, 7
  %v1668 = vsub.s32 1, %v1667
  %v1669 = vrot.slane %v1188, %v1668
  %1671 = vset.pattern.permute.xlu0 0
  %1672 = vperm.xlu0 %1671, %v1653
  %v1673 = vpop.permute.xlu0 %1672
  %v1675 = vmul.f32 %v1657, %v1673
  %v1676 = vmul.f32 %v1661, %v1673
  %v1677 = vmul.f32 %v1665, %v1673
  %v1678 = vmul.f32 %v1669, %v1673
  %v1679 = vadd.f32 %v1648, %v1675
  %v1680 = vadd.f32 %v1649, %v1676
  %v1681 = vadd.f32 %v1650, %v1677
  %v1682 = vadd.f32 %v1651, %v1678
  %s1683 = scalar_lea.vmem %s1, 164
  %v1684 = vld [vmem:[%s1683] sm:$0x7]
  %v1685 = vlaneseq
  %v1686 = vshrl.u32 %v1685, 7
  %v1687 = vsub.s32 2, %v1686
  %v1688 = vrot.slane %v1185, %v1687
  %v1689 = vlaneseq
  %v1690 = vshrl.u32 %v1689, 7
  %v1691 = vsub.s32 2, %v1690
  %v1692 = vrot.slane %v1186, %v1691
  %v1693 = vlaneseq
  %v1694 = vshrl.u32 %v1693, 7
  %v1695 = vsub.s32 2, %v1694
  %v1696 = vrot.slane %v1187, %v1695
  %v1697 = vlaneseq
  %v1698 = vshrl.u32 %v1697, 7
  %v1699 = vsub.s32 2, %v1698
  %v1700 = vrot.slane %v1188, %v1699
  %1702 = vset.pattern.permute.xlu0 0
  %1703 = vperm.xlu0 %1702, %v1684
  %v1704 = vpop.permute.xlu0 %1703
  %v1706 = vmul.f32 %v1688, %v1704
  %v1707 = vmul.f32 %v1692, %v1704
  %v1708 = vmul.f32 %v1696, %v1704
  %v1709 = vmul.f32 %v1700, %v1704
  %v1710 = vadd.f32 %v1679, %v1706
  %v1711 = vadd.f32 %v1680, %v1707
  %v1712 = vadd.f32 %v1681, %v1708
  %v1713 = vadd.f32 %v1682, %v1709
  %1714 = vrot.lane.b32.xlu0 %v1185, 127
  %v1715 = vpop.permute.xlu0 %1714
  %1716 = vrot.lane.b32.xlu0 %v1187, 127
  %v1717 = vpop.permute.xlu0 %1716
  %1718 = vrot.lane.b32.xlu0 %v1186, 127
  %v1719 = vpop.permute.xlu0 %1718
  %1720 = vrot.lane.b32.xlu0 %v1188, 127
  %v1721 = vpop.permute.xlu0 %1720
  %v1722 = vsel %vm657, %v1715, %v1719
  %v1723 = vsel %vm657, %v1717, %v1721
  %v1724 = vsel %vm657, %v1719, %v1715
  %v1725 = vsel %vm657, %v1721, %v1717
  %v1726 = vsel %vm664, %v1722, 0.0
  %v1727 = vsel %vm665, %v1724, 0.0
  %v1728 = vsel %vm664, %v1723, 0.0
  %v1729 = vsel %vm665, %v1725, 0.0
  %s1730 = scalar_lea.vmem %s1, 168
  %v1731 = vld [vmem:[%s1730] sm:$0x7]
  %v1732 = vlaneseq
  %v1733 = vshrl.u32 %v1732, 7
  %v1734 = vsub.s32 0, %v1733
  %v1735 = vrot.slane %v1726, %v1734
  %v1736 = vlaneseq
  %v1737 = vshrl.u32 %v1736, 7
  %v1738 = vsub.s32 0, %v1737
  %v1739 = vrot.slane %v1727, %v1738
  %v1740 = vlaneseq
  %v1741 = vshrl.u32 %v1740, 7
  %v1742 = vsub.s32 0, %v1741
  %v1743 = vrot.slane %v1728, %v1742
  %v1744 = vlaneseq
  %v1745 = vshrl.u32 %v1744, 7
  %v1746 = vsub.s32 0, %v1745
  %v1747 = vrot.slane %v1729, %v1746
  %1749 = vset.pattern.permute.xlu0 0
  %1750 = vperm.xlu0 %1749, %v1731
  %v1751 = vpop.permute.xlu0 %1750
  %v1753 = vmul.f32 %v1735, %v1751
  %v1754 = vmul.f32 %v1739, %v1751
  %v1755 = vmul.f32 %v1743, %v1751
  %v1756 = vmul.f32 %v1747, %v1751
  %v1757 = vadd.f32 %v1710, %v1753
  %v1758 = vadd.f32 %v1711, %v1754
  %v1759 = vadd.f32 %v1712, %v1755
  %v1760 = vadd.f32 %v1713, %v1756
  %s1761 = scalar_lea.vmem %s1, 172
  %v1762 = vld [vmem:[%s1761] sm:$0x7]
  %v1763 = vlaneseq
  %v1764 = vshrl.u32 %v1763, 7
  %v1765 = vsub.s32 1, %v1764
  %v1766 = vrot.slane %v1726, %v1765
  %v1767 = vlaneseq
  %v1768 = vshrl.u32 %v1767, 7
  %v1769 = vsub.s32 1, %v1768
  %v1770 = vrot.slane %v1727, %v1769
  %v1771 = vlaneseq
  %v1772 = vshrl.u32 %v1771, 7
  %v1773 = vsub.s32 1, %v1772
  %v1774 = vrot.slane %v1728, %v1773
  %v1775 = vlaneseq
  %v1776 = vshrl.u32 %v1775, 7
  %v1777 = vsub.s32 1, %v1776
  %v1778 = vrot.slane %v1729, %v1777
  %1780 = vset.pattern.permute.xlu0 0
  %1781 = vperm.xlu0 %1780, %v1762
  %v1782 = vpop.permute.xlu0 %1781
  %v1784 = vmul.f32 %v1766, %v1782
  %v1785 = vmul.f32 %v1770, %v1782
  %v1786 = vmul.f32 %v1774, %v1782
  %v1787 = vmul.f32 %v1778, %v1782
  %v1788 = vadd.f32 %v1757, %v1784
  %v1789 = vadd.f32 %v1758, %v1785
  %v1790 = vadd.f32 %v1759, %v1786
  %v1791 = vadd.f32 %v1760, %v1787
  %s1792 = scalar_lea.vmem %s1, 176
  %v1793 = vld [vmem:[%s1792] sm:$0x7]
  %v1794 = vlaneseq
  %v1795 = vshrl.u32 %v1794, 7
  %v1796 = vsub.s32 2, %v1795
  %v1797 = vrot.slane %v1726, %v1796
  %v1798 = vlaneseq
  %v1799 = vshrl.u32 %v1798, 7
  %v1800 = vsub.s32 2, %v1799
  %v1801 = vrot.slane %v1727, %v1800
  %v1802 = vlaneseq
  %v1803 = vshrl.u32 %v1802, 7
  %v1804 = vsub.s32 2, %v1803
  %v1805 = vrot.slane %v1728, %v1804
  %v1806 = vlaneseq
  %v1807 = vshrl.u32 %v1806, 7
  %v1808 = vsub.s32 2, %v1807
  %v1809 = vrot.slane %v1729, %v1808
  %1811 = vset.pattern.permute.xlu0 0
  %1812 = vperm.xlu0 %1811, %v1793
  %v1813 = vpop.permute.xlu0 %1812
  %v1815 = vmul.f32 %v1797, %v1813
  %v1816 = vmul.f32 %v1801, %v1813
  %v1817 = vmul.f32 %v1805, %v1813
  %v1818 = vmul.f32 %v1809, %v1813
  %v1819 = vadd.f32 %v1788, %v1815
  %v1820 = vadd.f32 %v1789, %v1816
  %v1821 = vadd.f32 %v1790, %v1817
  %v1822 = vadd.f32 %v1791, %v1818
  %1823 = vrot.lane.b32.xlu0 %v1185, 113
  %v1824 = vpop.permute.xlu0 %1823
  %1825 = vrot.lane.b32.xlu0 %v1187, 113
  %v1826 = vpop.permute.xlu0 %1825
  %1827 = vrot.lane.b32.xlu0 %v1186, 113
  %v1828 = vpop.permute.xlu0 %1827
  %1829 = vrot.lane.b32.xlu0 %v1188, 113
  %v1830 = vpop.permute.xlu0 %1829
  %v1831 = vsel %vm771, %v1824, %v1828
  %v1832 = vsel %vm771, %v1826, %v1830
  %v1833 = vsel %vm771, %v1828, %v1824
  %v1834 = vsel %vm771, %v1830, %v1826
  %v1835 = vsel %vm780, %v1831, 0.0
  %v1836 = vsel %vm781, %v1833, 0.0
  %v1837 = vsel %vm780, %v1832, 0.0
  %v1838 = vsel %vm781, %v1834, 0.0
  %s1839 = scalar_lea.vmem %s1, 180
  %v1840 = vld [vmem:[%s1839] sm:$0x7]
  %v1841 = vlaneseq
  %v1842 = vshrl.u32 %v1841, 7
  %v1843 = vsub.s32 0, %v1842
  %v1844 = vrot.slane %v1835, %v1843
  %v1845 = vlaneseq
  %v1846 = vshrl.u32 %v1845, 7
  %v1847 = vsub.s32 0, %v1846
  %v1848 = vrot.slane %v1836, %v1847
  %v1849 = vlaneseq
  %v1850 = vshrl.u32 %v1849, 7
  %v1851 = vsub.s32 0, %v1850
  %v1852 = vrot.slane %v1837, %v1851
  %v1853 = vlaneseq
  %v1854 = vshrl.u32 %v1853, 7
  %v1855 = vsub.s32 0, %v1854
  %v1856 = vrot.slane %v1838, %v1855
  %1858 = vset.pattern.permute.xlu0 0
  %1859 = vperm.xlu0 %1858, %v1840
  %v1860 = vpop.permute.xlu0 %1859
  %v1862 = vmul.f32 %v1844, %v1860
  %v1863 = vmul.f32 %v1848, %v1860
  %v1864 = vmul.f32 %v1852, %v1860
  %v1865 = vmul.f32 %v1856, %v1860
  %v1866 = vadd.f32 %v1819, %v1862
  %v1867 = vadd.f32 %v1820, %v1863
  %v1868 = vadd.f32 %v1821, %v1864
  %v1869 = vadd.f32 %v1822, %v1865
  %s1870 = scalar_lea.vmem %s1, 184
  %v1871 = vld [vmem:[%s1870] sm:$0x7]
  %v1872 = vlaneseq
  %v1873 = vshrl.u32 %v1872, 7
  %v1874 = vsub.s32 1, %v1873
  %v1875 = vrot.slane %v1835, %v1874
  %v1876 = vlaneseq
  %v1877 = vshrl.u32 %v1876, 7
  %v1878 = vsub.s32 1, %v1877
  %v1879 = vrot.slane %v1836, %v1878
  %v1880 = vlaneseq
  %v1881 = vshrl.u32 %v1880, 7
  %v1882 = vsub.s32 1, %v1881
  %v1883 = vrot.slane %v1837, %v1882
  %v1884 = vlaneseq
  %v1885 = vshrl.u32 %v1884, 7
  %v1886 = vsub.s32 1, %v1885
  %v1887 = vrot.slane %v1838, %v1886
  %1889 = vset.pattern.permute.xlu0 0
  %1890 = vperm.xlu0 %1889, %v1871
  %v1891 = vpop.permute.xlu0 %1890
  %v1893 = vmul.f32 %v1875, %v1891
  %v1894 = vmul.f32 %v1879, %v1891
  %v1895 = vmul.f32 %v1883, %v1891
  %v1896 = vmul.f32 %v1887, %v1891
  %v1897 = vadd.f32 %v1866, %v1893
  %v1898 = vadd.f32 %v1867, %v1894
  %v1899 = vadd.f32 %v1868, %v1895
  %v1900 = vadd.f32 %v1869, %v1896
  %s1901 = scalar_lea.vmem %s1, 188
  %v1902 = vld [vmem:[%s1901] sm:$0x7]
  %v1903 = vlaneseq
  %v1904 = vshrl.u32 %v1903, 7
  %v1905 = vsub.s32 2, %v1904
  %v1906 = vrot.slane %v1835, %v1905
  %v1907 = vlaneseq
  %v1908 = vshrl.u32 %v1907, 7
  %v1909 = vsub.s32 2, %v1908
  %v1910 = vrot.slane %v1836, %v1909
  %v1911 = vlaneseq
  %v1912 = vshrl.u32 %v1911, 7
  %v1913 = vsub.s32 2, %v1912
  %v1914 = vrot.slane %v1837, %v1913
  %v1915 = vlaneseq
  %v1916 = vshrl.u32 %v1915, 7
  %v1917 = vsub.s32 2, %v1916
  %v1918 = vrot.slane %v1838, %v1917
  %1920 = vset.pattern.permute.xlu0 0
  %1921 = vperm.xlu0 %1920, %v1902
  %v1922 = vpop.permute.xlu0 %1921
  %v1924 = vmul.f32 %v1906, %v1922
  %v1925 = vmul.f32 %v1910, %v1922
  %v1926 = vmul.f32 %v1914, %v1922
  %v1927 = vmul.f32 %v1918, %v1922
  %v1928 = vadd.f32 %v1897, %v1924
  %v1929 = vadd.f32 %v1898, %v1925
  %v1930 = vadd.f32 %v1899, %v1926
  %v1931 = vadd.f32 %v1900, %v1927
  %1932 = vrot.lane.b32.xlu0 %v1185, 112
  %v1933 = vpop.permute.xlu0 %1932
  %1934 = vrot.lane.b32.xlu0 %v1187, 112
  %v1935 = vpop.permute.xlu0 %1934
  %1936 = vrot.lane.b32.xlu0 %v1186, 112
  %v1937 = vpop.permute.xlu0 %1936
  %1938 = vrot.lane.b32.xlu0 %v1188, 112
  %v1939 = vpop.permute.xlu0 %1938
  %v1940 = vsel %vm887, %v1933, %v1937
  %v1941 = vsel %vm887, %v1935, %v1939
  %v1942 = vsel %vm887, %v1937, %v1933
  %v1943 = vsel %vm887, %v1939, %v1935
  %v1944 = vsel %vm894, %v1940, 0.0
  %v1945 = vsel %vm895, %v1942, 0.0
  %v1946 = vsel %vm894, %v1941, 0.0
  %v1947 = vsel %vm895, %v1943, 0.0
  %s1948 = scalar_lea.vmem %s1, 192
  %v1949 = vld [vmem:[%s1948] sm:$0x7]
  %v1950 = vlaneseq
  %v1951 = vshrl.u32 %v1950, 7
  %v1952 = vsub.s32 0, %v1951
  %v1953 = vrot.slane %v1944, %v1952
  %v1954 = vlaneseq
  %v1955 = vshrl.u32 %v1954, 7
  %v1956 = vsub.s32 0, %v1955
  %v1957 = vrot.slane %v1945, %v1956
  %v1958 = vlaneseq
  %v1959 = vshrl.u32 %v1958, 7
  %v1960 = vsub.s32 0, %v1959
  %v1961 = vrot.slane %v1946, %v1960
  %v1962 = vlaneseq
  %v1963 = vshrl.u32 %v1962, 7
  %v1964 = vsub.s32 0, %v1963
  %v1965 = vrot.slane %v1947, %v1964
  %1967 = vset.pattern.permute.xlu0 0
  %1968 = vperm.xlu0 %1967, %v1949
  %v1969 = vpop.permute.xlu0 %1968
  %v1971 = vmul.f32 %v1953, %v1969
  %v1972 = vmul.f32 %v1957, %v1969
  %v1973 = vmul.f32 %v1961, %v1969
  %v1974 = vmul.f32 %v1965, %v1969
  %v1975 = vadd.f32 %v1928, %v1971
  %v1976 = vadd.f32 %v1929, %v1972
  %v1977 = vadd.f32 %v1930, %v1973
  %v1978 = vadd.f32 %v1931, %v1974
  %s1979 = scalar_lea.vmem %s1, 196
  %v1980 = vld [vmem:[%s1979] sm:$0x7]
  %v1981 = vlaneseq
  %v1982 = vshrl.u32 %v1981, 7
  %v1983 = vsub.s32 1, %v1982
  %v1984 = vrot.slane %v1944, %v1983
  %v1985 = vlaneseq
  %v1986 = vshrl.u32 %v1985, 7
  %v1987 = vsub.s32 1, %v1986
  %v1988 = vrot.slane %v1945, %v1987
  %v1989 = vlaneseq
  %v1990 = vshrl.u32 %v1989, 7
  %v1991 = vsub.s32 1, %v1990
  %v1992 = vrot.slane %v1946, %v1991
  %v1993 = vlaneseq
  %v1994 = vshrl.u32 %v1993, 7
  %v1995 = vsub.s32 1, %v1994
  %v1996 = vrot.slane %v1947, %v1995
  %1998 = vset.pattern.permute.xlu0 0
  %1999 = vperm.xlu0 %1998, %v1980
  %v2000 = vpop.permute.xlu0 %1999
  %v2002 = vmul.f32 %v1984, %v2000
  %v2003 = vmul.f32 %v1988, %v2000
  %v2004 = vmul.f32 %v1992, %v2000
  %v2005 = vmul.f32 %v1996, %v2000
  %v2006 = vadd.f32 %v1975, %v2002
  %v2007 = vadd.f32 %v1976, %v2003
  %v2008 = vadd.f32 %v1977, %v2004
  %v2009 = vadd.f32 %v1978, %v2005
  %s2010 = scalar_lea.vmem %s1, 200
  %v2011 = vld [vmem:[%s2010] sm:$0x7]
  %v2012 = vlaneseq
  %v2013 = vshrl.u32 %v2012, 7
  %v2014 = vsub.s32 2, %v2013
  %v2015 = vrot.slane %v1944, %v2014
  %v2016 = vlaneseq
  %v2017 = vshrl.u32 %v2016, 7
  %v2018 = vsub.s32 2, %v2017
  %v2019 = vrot.slane %v1945, %v2018
  %v2020 = vlaneseq
  %v2021 = vshrl.u32 %v2020, 7
  %v2022 = vsub.s32 2, %v2021
  %v2023 = vrot.slane %v1946, %v2022
  %v2024 = vlaneseq
  %v2025 = vshrl.u32 %v2024, 7
  %v2026 = vsub.s32 2, %v2025
  %v2027 = vrot.slane %v1947, %v2026
  %2029 = vset.pattern.permute.xlu0 0
  %2030 = vperm.xlu0 %2029, %v2011
  %v2031 = vpop.permute.xlu0 %2030
  %v2033 = vmul.f32 %v2015, %v2031
  %v2034 = vmul.f32 %v2019, %v2031
  %v2035 = vmul.f32 %v2023, %v2031
  %v2036 = vmul.f32 %v2027, %v2031
  %v2037 = vadd.f32 %v2006, %v2033
  %v2038 = vadd.f32 %v2007, %v2034
  %v2039 = vadd.f32 %v2008, %v2035
  %v2040 = vadd.f32 %v2009, %v2036
  %2041 = vrot.lane.b32.xlu0 %v1185, 111
  %v2042 = vpop.permute.xlu0 %2041
  %2043 = vrot.lane.b32.xlu0 %v1187, 111
  %v2044 = vpop.permute.xlu0 %2043
  %2045 = vrot.lane.b32.xlu0 %v1186, 111
  %v2046 = vpop.permute.xlu0 %2045
  %2047 = vrot.lane.b32.xlu0 %v1188, 111
  %v2048 = vpop.permute.xlu0 %2047
  %v2049 = vsel %vm1001, %v2042, %v2046
  %v2050 = vsel %vm1001, %v2044, %v2048
  %v2051 = vsel %vm1001, %v2046, %v2042
  %v2052 = vsel %vm1001, %v2048, %v2044
  %v2053 = vsel %vm1010, %v2049, 0.0
  %v2054 = vsel %vm1011, %v2051, 0.0
  %v2055 = vsel %vm1010, %v2050, 0.0
  %v2056 = vsel %vm1011, %v2052, 0.0
  %s2057 = scalar_lea.vmem %s1, 204
  %v2058 = vld [vmem:[%s2057] sm:$0x7]
  %v2059 = vlaneseq
  %v2060 = vshrl.u32 %v2059, 7
  %v2061 = vsub.s32 0, %v2060
  %v2062 = vrot.slane %v2053, %v2061
  %v2063 = vlaneseq
  %v2064 = vshrl.u32 %v2063, 7
  %v2065 = vsub.s32 0, %v2064
  %v2066 = vrot.slane %v2054, %v2065
  %v2067 = vlaneseq
  %v2068 = vshrl.u32 %v2067, 7
  %v2069 = vsub.s32 0, %v2068
  %v2070 = vrot.slane %v2055, %v2069
  %v2071 = vlaneseq
  %v2072 = vshrl.u32 %v2071, 7
  %v2073 = vsub.s32 0, %v2072
  %v2074 = vrot.slane %v2056, %v2073
  %2076 = vset.pattern.permute.xlu0 0
  %2077 = vperm.xlu0 %2076, %v2058
  %v2078 = vpop.permute.xlu0 %2077
  %v2080 = vmul.f32 %v2062, %v2078
  %v2081 = vmul.f32 %v2066, %v2078
  %v2082 = vmul.f32 %v2070, %v2078
  %v2083 = vmul.f32 %v2074, %v2078
  %v2084 = vadd.f32 %v2037, %v2080
  %v2085 = vadd.f32 %v2038, %v2081
  %v2086 = vadd.f32 %v2039, %v2082
  %v2087 = vadd.f32 %v2040, %v2083
  %s2088 = scalar_lea.vmem %s1, 208
  %v2089 = vld [vmem:[%s2088] sm:$0x7]
  %v2090 = vlaneseq
  %v2091 = vshrl.u32 %v2090, 7
  %v2092 = vsub.s32 1, %v2091
  %v2093 = vrot.slane %v2053, %v2092
  %v2094 = vlaneseq
  %v2095 = vshrl.u32 %v2094, 7
  %v2096 = vsub.s32 1, %v2095
  %v2097 = vrot.slane %v2054, %v2096
  %v2098 = vlaneseq
  %v2099 = vshrl.u32 %v2098, 7
  %v2100 = vsub.s32 1, %v2099
  %v2101 = vrot.slane %v2055, %v2100
  %v2102 = vlaneseq
  %v2103 = vshrl.u32 %v2102, 7
  %v2104 = vsub.s32 1, %v2103
  %v2105 = vrot.slane %v2056, %v2104
  %2107 = vset.pattern.permute.xlu0 0
  %2108 = vperm.xlu0 %2107, %v2089
  %v2109 = vpop.permute.xlu0 %2108
  %v2111 = vmul.f32 %v2093, %v2109
  %v2112 = vmul.f32 %v2097, %v2109
  %v2113 = vmul.f32 %v2101, %v2109
  %v2114 = vmul.f32 %v2105, %v2109
  %v2115 = vadd.f32 %v2084, %v2111
  %v2116 = vadd.f32 %v2085, %v2112
  %v2117 = vadd.f32 %v2086, %v2113
  %v2118 = vadd.f32 %v2087, %v2114
  %s2119 = scalar_lea.vmem %s1, 212
  %v2120 = vld [vmem:[%s2119] sm:$0x7]
  %v2121 = vlaneseq
  %v2122 = vshrl.u32 %v2121, 7
  %v2123 = vsub.s32 2, %v2122
  %v2124 = vrot.slane %v2053, %v2123
  %v2125 = vlaneseq
  %v2126 = vshrl.u32 %v2125, 7
  %v2127 = vsub.s32 2, %v2126
  %v2128 = vrot.slane %v2054, %v2127
  %v2129 = vlaneseq
  %v2130 = vshrl.u32 %v2129, 7
  %v2131 = vsub.s32 2, %v2130
  %v2132 = vrot.slane %v2055, %v2131
  %v2133 = vlaneseq
  %v2134 = vshrl.u32 %v2133, 7
  %v2135 = vsub.s32 2, %v2134
  %v2136 = vrot.slane %v2056, %v2135
  %2138 = vset.pattern.permute.xlu0 0
  %2139 = vperm.xlu0 %2138, %v2120
  %v2140 = vpop.permute.xlu0 %2139
  %v2142 = vmul.f32 %v2124, %v2140
  %v2143 = vmul.f32 %v2128, %v2140
  %v2144 = vmul.f32 %v2132, %v2140
  %v2145 = vmul.f32 %v2136, %v2140
  %v2146 = vadd.f32 %v2115, %v2142
  %v2147 = vadd.f32 %v2116, %v2143
  %v2148 = vadd.f32 %v2117, %v2144
  %v2149 = vadd.f32 %v2118, %v2145
  %s2150 = scalar_lea.vmem %s2, 4
  %v2151 = vld [vmem:[%s2150] sm:$0x7]
  %2153 = vset.pattern.permute.xlu0 0
  %2154 = vperm.xlu0 %2153, %v2151
  %v2155 = vpop.permute.xlu0 %2154
  %v2157 = vadd.f32 %v2146, %v2155
  %v2158 = vadd.f32 %v2147, %v2155
  %v2159 = vadd.f32 %v2148, %v2155
  %v2160 = vadd.f32 %v2149, %v2155
  %v2161 = vmul.f32 %v2157, %v2157
  %v2162 = vmul.f32 %v2158, %v2158
  %v2163 = vmul.f32 %v2159, %v2159
  %v2164 = vmul.f32 %v2160, %v2160
  %v2169 = vrot.slane %v2161, 5
  %v2170 = vrot.slane %v2162, 5
  %v2171 = vrot.slane %v2163, 5
  %v2172 = vrot.slane %v2164, 5
  %v2177 = vsel %vm1135, %v2157, %v2169
  %v2178 = vsel %vm1135, %v2158, %v2170
  %v2179 = vsel %vm1135, %v2159, %v2171
  %v2180 = vsel %vm1135, %v2160, %v2172
  %v2181 = vsel %vm1140, %v2177, 0.0
  %v2182 = vsel %vm1140, %v2178, 0.0
  %v2183 = vadd.f32 %v2181, %v2182
  %2184 = vadd.xlane.f32.xlu0 %v2183
  %v2185 = vpop.xlane.xlu0 %2184
  %v2186 = vsel %vm1140, %v2179, 0.0
  %v2187 = vsel %vm1140, %v2180, 0.0
  %v2188 = vadd.f32 %v2186, %v2187
  %2189 = vadd.xlane.f32.xlu0 %v2188
  %v2190 = vpop.xlane.xlu0 %2189
  %v2191 = vsel %vm1140, %v2185, 0.0
  %v2192 = vsel %vm1140, %v2190, 0.0
  %v2193 = vadd.f32 %v2191, %v2192
  %v2194 = vmul.f32 %v2193, 0.001953125
  %v2195 = vmul.f32 %v2194, %v2194
  %v2197 = vrot.slane %v2195, 5
  %v2199 = vsub.f32 %v2194, %v2197
  %v2200 = vmax.f32 %v2199, 0.0
  %s2201 = scalar_lea.vmem %s3, 4
  %v2202 = vld [vmem:[%s2201] sm:$0x7]
  %v2203 = vadd.f32 %v2200, 1e-05
  %v2204 = vrsqrt.pop %v2203
  %v2206 = vrot.slane %v2204, 3
  %v2208 = vmul.f32 %v2202, %v2206
  %s2209 = scalar_lea.vmem %s4, 4
  %v2210 = vld [vmem:[%s2209] sm:$0x7]
  %v2211 = vmul.f32 %v2194, %v2208
  %v2212 = vsub.f32 %v2210, %v2211
  %2214 = vset.pattern.permute.xlu0 0
  %2215 = vperm.xlu0 %2214, %v2208
  %v2216 = vpop.permute.xlu0 %2215
  %v2218 = vmul.f32 %v2157, %v2216
  %v2219 = vmul.f32 %v2158, %v2216
  %v2220 = vmul.f32 %v2159, %v2216
  %v2221 = vmul.f32 %v2160, %v2216
  %2223 = vset.pattern.permute.xlu0 0
  %2224 = vperm.xlu0 %2223, %v2212
  %v2225 = vpop.permute.xlu0 %2224
  %v2227 = vadd.f32 %v2218, %v2225
  %v2228 = vadd.f32 %v2219, %v2225
  %v2229 = vadd.f32 %v2220, %v2225
  %v2230 = vadd.f32 %v2221, %v2225
  %2231 = vrot.lane.b32.xlu0 %v2227, 17
  %v2232 = vpop.permute.xlu0 %2231
  %2233 = vrot.lane.b32.xlu0 %v2229, 17
  %v2234 = vpop.permute.xlu0 %2233
  %2235 = vrot.lane.b32.xlu0 %v2228, 17
  %v2236 = vpop.permute.xlu0 %2235
  %2237 = vrot.lane.b32.xlu0 %v2230, 17
  %v2238 = vpop.permute.xlu0 %2237
  %v2239 = vsel %vm49, %v2232, %v2236
  %v2240 = vsel %vm49, %v2234, %v2238
  %v2241 = vsel %vm49, %v2236, %v2232
  %v2242 = vsel %vm49, %v2238, %v2234
  %v2243 = vsel %vm58, %v2241, 0.0
  %v2244 = vsel %vm59, %v2239, 0.0
  %v2245 = vsel %vm58, %v2242, 0.0
  %v2246 = vsel %vm59, %v2240, 0.0
  %s2247 = scalar_lea.vmem %s1, 216
  %v2248 = vld [vmem:[%s2247] sm:$0x7]
  %v2249 = vlaneseq
  %v2250 = vshrl.u32 %v2249, 7
  %v2251 = vsub.s32 0, %v2250
  %v2252 = vrot.slane %v2243, %v2251
  %v2253 = vlaneseq
  %v2254 = vshrl.u32 %v2253, 7
  %v2255 = vsub.s32 0, %v2254
  %v2256 = vrot.slane %v2244, %v2255
  %v2257 = vlaneseq
  %v2258 = vshrl.u32 %v2257, 7
  %v2259 = vsub.s32 0, %v2258
  %v2260 = vrot.slane %v2245, %v2259
  %v2261 = vlaneseq
  %v2262 = vshrl.u32 %v2261, 7
  %v2263 = vsub.s32 0, %v2262
  %v2264 = vrot.slane %v2246, %v2263
  %2266 = vset.pattern.permute.xlu0 0
  %2267 = vperm.xlu0 %2266, %v2248
  %v2268 = vpop.permute.xlu0 %2267
  %v2270 = vmul.f32 %v2252, %v2268
  %v2271 = vmul.f32 %v2256, %v2268
  %v2272 = vmul.f32 %v2260, %v2268
  %v2273 = vmul.f32 %v2264, %v2268
  %s2274 = scalar_lea.vmem %s1, 220
  %v2275 = vld [vmem:[%s2274] sm:$0x7]
  %v2276 = vlaneseq
  %v2277 = vshrl.u32 %v2276, 7
  %v2278 = vsub.s32 1, %v2277
  %v2279 = vrot.slane %v2243, %v2278
  %v2280 = vlaneseq
  %v2281 = vshrl.u32 %v2280, 7
  %v2282 = vsub.s32 1, %v2281
  %v2283 = vrot.slane %v2244, %v2282
  %v2284 = vlaneseq
  %v2285 = vshrl.u32 %v2284, 7
  %v2286 = vsub.s32 1, %v2285
  %v2287 = vrot.slane %v2245, %v2286
  %v2288 = vlaneseq
  %v2289 = vshrl.u32 %v2288, 7
  %v2290 = vsub.s32 1, %v2289
  %v2291 = vrot.slane %v2246, %v2290
  %2293 = vset.pattern.permute.xlu0 0
  %2294 = vperm.xlu0 %2293, %v2275
  %v2295 = vpop.permute.xlu0 %2294
  %v2297 = vmul.f32 %v2279, %v2295
  %v2298 = vmul.f32 %v2283, %v2295
  %v2299 = vmul.f32 %v2287, %v2295
  %v2300 = vmul.f32 %v2291, %v2295
  %v2301 = vadd.f32 %v2270, %v2297
  %v2302 = vadd.f32 %v2271, %v2298
  %v2303 = vadd.f32 %v2272, %v2299
  %v2304 = vadd.f32 %v2273, %v2300
  %s2305 = scalar_lea.vmem %s1, 224
  %v2306 = vld [vmem:[%s2305] sm:$0x7]
  %v2307 = vlaneseq
  %v2308 = vshrl.u32 %v2307, 7
  %v2309 = vsub.s32 2, %v2308
  %v2310 = vrot.slane %v2243, %v2309
  %v2311 = vlaneseq
  %v2312 = vshrl.u32 %v2311, 7
  %v2313 = vsub.s32 2, %v2312
  %v2314 = vrot.slane %v2244, %v2313
  %v2315 = vlaneseq
  %v2316 = vshrl.u32 %v2315, 7
  %v2317 = vsub.s32 2, %v2316
  %v2318 = vrot.slane %v2245, %v2317
  %v2319 = vlaneseq
  %v2320 = vshrl.u32 %v2319, 7
  %v2321 = vsub.s32 2, %v2320
  %v2322 = vrot.slane %v2246, %v2321
  %2324 = vset.pattern.permute.xlu0 0
  %2325 = vperm.xlu0 %2324, %v2306
  %v2326 = vpop.permute.xlu0 %2325
  %v2328 = vmul.f32 %v2310, %v2326
  %v2329 = vmul.f32 %v2314, %v2326
  %v2330 = vmul.f32 %v2318, %v2326
  %v2331 = vmul.f32 %v2322, %v2326
  %v2332 = vadd.f32 %v2301, %v2328
  %v2333 = vadd.f32 %v2302, %v2329
  %v2334 = vadd.f32 %v2303, %v2330
  %v2335 = vadd.f32 %v2304, %v2331
  %2336 = vrot.lane.b32.xlu0 %v2227, 16
  %v2337 = vpop.permute.xlu0 %2336
  %2338 = vrot.lane.b32.xlu0 %v2229, 16
  %v2339 = vpop.permute.xlu0 %2338
  %2340 = vrot.lane.b32.xlu0 %v2228, 16
  %v2341 = vpop.permute.xlu0 %2340
  %2342 = vrot.lane.b32.xlu0 %v2230, 16
  %v2343 = vpop.permute.xlu0 %2342
  %v2344 = vsel %vm160, %v2337, %v2341
  %v2345 = vsel %vm160, %v2339, %v2343
  %v2346 = vsel %vm160, %v2341, %v2337
  %v2347 = vsel %vm160, %v2343, %v2339
  %v2348 = vsel %vm167, %v2346, 0.0
  %v2349 = vsel %vm168, %v2344, 0.0
  %v2350 = vsel %vm167, %v2347, 0.0
  %v2351 = vsel %vm168, %v2345, 0.0
  %s2352 = scalar_lea.vmem %s1, 228
  %v2353 = vld [vmem:[%s2352] sm:$0x7]
  %v2354 = vlaneseq
  %v2355 = vshrl.u32 %v2354, 7
  %v2356 = vsub.s32 0, %v2355
  %v2357 = vrot.slane %v2348, %v2356
  %v2358 = vlaneseq
  %v2359 = vshrl.u32 %v2358, 7
  %v2360 = vsub.s32 0, %v2359
  %v2361 = vrot.slane %v2349, %v2360
  %v2362 = vlaneseq
  %v2363 = vshrl.u32 %v2362, 7
  %v2364 = vsub.s32 0, %v2363
  %v2365 = vrot.slane %v2350, %v2364
  %v2366 = vlaneseq
  %v2367 = vshrl.u32 %v2366, 7
  %v2368 = vsub.s32 0, %v2367
  %v2369 = vrot.slane %v2351, %v2368
  %2371 = vset.pattern.permute.xlu0 0
  %2372 = vperm.xlu0 %2371, %v2353
  %v2373 = vpop.permute.xlu0 %2372
  %v2375 = vmul.f32 %v2357, %v2373
  %v2376 = vmul.f32 %v2361, %v2373
  %v2377 = vmul.f32 %v2365, %v2373
  %v2378 = vmul.f32 %v2369, %v2373
  %v2379 = vadd.f32 %v2332, %v2375
  %v2380 = vadd.f32 %v2333, %v2376
  %v2381 = vadd.f32 %v2334, %v2377
  %v2382 = vadd.f32 %v2335, %v2378
  %s2383 = scalar_lea.vmem %s1, 232
  %v2384 = vld [vmem:[%s2383] sm:$0x7]
  %v2385 = vlaneseq
  %v2386 = vshrl.u32 %v2385, 7
  %v2387 = vsub.s32 1, %v2386
  %v2388 = vrot.slane %v2348, %v2387
  %v2389 = vlaneseq
  %v2390 = vshrl.u32 %v2389, 7
  %v2391 = vsub.s32 1, %v2390
  %v2392 = vrot.slane %v2349, %v2391
  %v2393 = vlaneseq
  %v2394 = vshrl.u32 %v2393, 7
  %v2395 = vsub.s32 1, %v2394
  %v2396 = vrot.slane %v2350, %v2395
  %v2397 = vlaneseq
  %v2398 = vshrl.u32 %v2397, 7
  %v2399 = vsub.s32 1, %v2398
  %v2400 = vrot.slane %v2351, %v2399
  %2402 = vset.pattern.permute.xlu0 0
  %2403 = vperm.xlu0 %2402, %v2384
  %v2404 = vpop.permute.xlu0 %2403
  %v2406 = vmul.f32 %v2388, %v2404
  %v2407 = vmul.f32 %v2392, %v2404
  %v2408 = vmul.f32 %v2396, %v2404
  %v2409 = vmul.f32 %v2400, %v2404
  %v2410 = vadd.f32 %v2379, %v2406
  %v2411 = vadd.f32 %v2380, %v2407
  %v2412 = vadd.f32 %v2381, %v2408
  %v2413 = vadd.f32 %v2382, %v2409
  %s2414 = scalar_lea.vmem %s1, 236
  %v2415 = vld [vmem:[%s2414] sm:$0x7]
  %v2416 = vlaneseq
  %v2417 = vshrl.u32 %v2416, 7
  %v2418 = vsub.s32 2, %v2417
  %v2419 = vrot.slane %v2348, %v2418
  %v2420 = vlaneseq
  %v2421 = vshrl.u32 %v2420, 7
  %v2422 = vsub.s32 2, %v2421
  %v2423 = vrot.slane %v2349, %v2422
  %v2424 = vlaneseq
  %v2425 = vshrl.u32 %v2424, 7
  %v2426 = vsub.s32 2, %v2425
  %v2427 = vrot.slane %v2350, %v2426
  %v2428 = vlaneseq
  %v2429 = vshrl.u32 %v2428, 7
  %v2430 = vsub.s32 2, %v2429
  %v2431 = vrot.slane %v2351, %v2430
  %2433 = vset.pattern.permute.xlu0 0
  %2434 = vperm.xlu0 %2433, %v2415
  %v2435 = vpop.permute.xlu0 %2434
  %v2437 = vmul.f32 %v2419, %v2435
  %v2438 = vmul.f32 %v2423, %v2435
  %v2439 = vmul.f32 %v2427, %v2435
  %v2440 = vmul.f32 %v2431, %v2435
  %v2441 = vadd.f32 %v2410, %v2437
  %v2442 = vadd.f32 %v2411, %v2438
  %v2443 = vadd.f32 %v2412, %v2439
  %v2444 = vadd.f32 %v2413, %v2440
  %2445 = vrot.lane.b32.xlu0 %v2227, 15
  %v2446 = vpop.permute.xlu0 %2445
  %2447 = vrot.lane.b32.xlu0 %v2229, 15
  %v2448 = vpop.permute.xlu0 %2447
  %2449 = vrot.lane.b32.xlu0 %v2228, 15
  %v2450 = vpop.permute.xlu0 %2449
  %2451 = vrot.lane.b32.xlu0 %v2230, 15
  %v2452 = vpop.permute.xlu0 %2451
  %v2453 = vsel %vm274, %v2446, %v2450
  %v2454 = vsel %vm274, %v2448, %v2452
  %v2455 = vsel %vm274, %v2450, %v2446
  %v2456 = vsel %vm274, %v2452, %v2448
  %v2457 = vsel %vm283, %v2455, 0.0
  %v2458 = vsel %vm284, %v2453, 0.0
  %v2459 = vsel %vm283, %v2456, 0.0
  %v2460 = vsel %vm284, %v2454, 0.0
  %s2461 = scalar_lea.vmem %s1, 240
  %v2462 = vld [vmem:[%s2461] sm:$0x7]
  %v2463 = vlaneseq
  %v2464 = vshrl.u32 %v2463, 7
  %v2465 = vsub.s32 0, %v2464
  %v2466 = vrot.slane %v2457, %v2465
  %v2467 = vlaneseq
  %v2468 = vshrl.u32 %v2467, 7
  %v2469 = vsub.s32 0, %v2468
  %v2470 = vrot.slane %v2458, %v2469
  %v2471 = vlaneseq
  %v2472 = vshrl.u32 %v2471, 7
  %v2473 = vsub.s32 0, %v2472
  %v2474 = vrot.slane %v2459, %v2473
  %v2475 = vlaneseq
  %v2476 = vshrl.u32 %v2475, 7
  %v2477 = vsub.s32 0, %v2476
  %v2478 = vrot.slane %v2460, %v2477
  %2480 = vset.pattern.permute.xlu0 0
  %2481 = vperm.xlu0 %2480, %v2462
  %v2482 = vpop.permute.xlu0 %2481
  %v2484 = vmul.f32 %v2466, %v2482
  %v2485 = vmul.f32 %v2470, %v2482
  %v2486 = vmul.f32 %v2474, %v2482
  %v2487 = vmul.f32 %v2478, %v2482
  %v2488 = vadd.f32 %v2441, %v2484
  %v2489 = vadd.f32 %v2442, %v2485
  %v2490 = vadd.f32 %v2443, %v2486
  %v2491 = vadd.f32 %v2444, %v2487
  %s2492 = scalar_lea.vmem %s1, 244
  %v2493 = vld [vmem:[%s2492] sm:$0x7]
  %v2494 = vlaneseq
  %v2495 = vshrl.u32 %v2494, 7
  %v2496 = vsub.s32 1, %v2495
  %v2497 = vrot.slane %v2457, %v2496
  %v2498 = vlaneseq
  %v2499 = vshrl.u32 %v2498, 7
  %v2500 = vsub.s32 1, %v2499
  %v2501 = vrot.slane %v2458, %v2500
  %v2502 = vlaneseq
  %v2503 = vshrl.u32 %v2502, 7
  %v2504 = vsub.s32 1, %v2503
  %v2505 = vrot.slane %v2459, %v2504
  %v2506 = vlaneseq
  %v2507 = vshrl.u32 %v2506, 7
  %v2508 = vsub.s32 1, %v2507
  %v2509 = vrot.slane %v2460, %v2508
  %2511 = vset.pattern.permute.xlu0 0
  %2512 = vperm.xlu0 %2511, %v2493
  %v2513 = vpop.permute.xlu0 %2512
  %v2515 = vmul.f32 %v2497, %v2513
  %v2516 = vmul.f32 %v2501, %v2513
  %v2517 = vmul.f32 %v2505, %v2513
  %v2518 = vmul.f32 %v2509, %v2513
  %v2519 = vadd.f32 %v2488, %v2515
  %v2520 = vadd.f32 %v2489, %v2516
  %v2521 = vadd.f32 %v2490, %v2517
  %v2522 = vadd.f32 %v2491, %v2518
  %s2523 = scalar_lea.vmem %s1, 248
  %v2524 = vld [vmem:[%s2523] sm:$0x7]
  %v2525 = vlaneseq
  %v2526 = vshrl.u32 %v2525, 7
  %v2527 = vsub.s32 2, %v2526
  %v2528 = vrot.slane %v2457, %v2527
  %v2529 = vlaneseq
  %v2530 = vshrl.u32 %v2529, 7
  %v2531 = vsub.s32 2, %v2530
  %v2532 = vrot.slane %v2458, %v2531
  %v2533 = vlaneseq
  %v2534 = vshrl.u32 %v2533, 7
  %v2535 = vsub.s32 2, %v2534
  %v2536 = vrot.slane %v2459, %v2535
  %v2537 = vlaneseq
  %v2538 = vshrl.u32 %v2537, 7
  %v2539 = vsub.s32 2, %v2538
  %v2540 = vrot.slane %v2460, %v2539
  %2542 = vset.pattern.permute.xlu0 0
  %2543 = vperm.xlu0 %2542, %v2524
  %v2544 = vpop.permute.xlu0 %2543
  %v2546 = vmul.f32 %v2528, %v2544
  %v2547 = vmul.f32 %v2532, %v2544
  %v2548 = vmul.f32 %v2536, %v2544
  %v2549 = vmul.f32 %v2540, %v2544
  %v2550 = vadd.f32 %v2519, %v2546
  %v2551 = vadd.f32 %v2520, %v2547
  %v2552 = vadd.f32 %v2521, %v2548
  %v2553 = vadd.f32 %v2522, %v2549
  %2554 = vrot.lane.b32.xlu0 %v2227, 1
  %v2555 = vpop.permute.xlu0 %2554
  %2556 = vrot.lane.b32.xlu0 %v2229, 1
  %v2557 = vpop.permute.xlu0 %2556
  %2558 = vrot.lane.b32.xlu0 %v2228, 1
  %v2559 = vpop.permute.xlu0 %2558
  %2560 = vrot.lane.b32.xlu0 %v2230, 1
  %v2561 = vpop.permute.xlu0 %2560
  %v2562 = vsel %vm390, %v2555, %v2559
  %v2563 = vsel %vm390, %v2557, %v2561
  %v2564 = vsel %vm390, %v2559, %v2555
  %v2565 = vsel %vm390, %v2561, %v2557
  %v2566 = vsel %vm397, %v2564, 0.0
  %v2567 = vsel %vm398, %v2562, 0.0
  %v2568 = vsel %vm397, %v2565, 0.0
  %v2569 = vsel %vm398, %v2563, 0.0
  %s2570 = scalar_lea.vmem %s1, 252
  %v2571 = vld [vmem:[%s2570] sm:$0x7]
  %v2572 = vlaneseq
  %v2573 = vshrl.u32 %v2572, 7
  %v2574 = vsub.s32 0, %v2573
  %v2575 = vrot.slane %v2566, %v2574
  %v2576 = vlaneseq
  %v2577 = vshrl.u32 %v2576, 7
  %v2578 = vsub.s32 0, %v2577
  %v2579 = vrot.slane %v2567, %v2578
  %v2580 = vlaneseq
  %v2581 = vshrl.u32 %v2580, 7
  %v2582 = vsub.s32 0, %v2581
  %v2583 = vrot.slane %v2568, %v2582
  %v2584 = vlaneseq
  %v2585 = vshrl.u32 %v2584, 7
  %v2586 = vsub.s32 0, %v2585
  %v2587 = vrot.slane %v2569, %v2586
  %2589 = vset.pattern.permute.xlu0 0
  %2590 = vperm.xlu0 %2589, %v2571
  %v2591 = vpop.permute.xlu0 %2590
  %v2593 = vmul.f32 %v2575, %v2591
  %v2594 = vmul.f32 %v2579, %v2591
  %v2595 = vmul.f32 %v2583, %v2591
  %v2596 = vmul.f32 %v2587, %v2591
  %v2597 = vadd.f32 %v2550, %v2593
  %v2598 = vadd.f32 %v2551, %v2594
  %v2599 = vadd.f32 %v2552, %v2595
  %v2600 = vadd.f32 %v2553, %v2596
  %s2601 = scalar_lea.vmem %s1, 256
  %v2602 = vld [vmem:[%s2601] sm:$0x7]
  %v2603 = vlaneseq
  %v2604 = vshrl.u32 %v2603, 7
  %v2605 = vsub.s32 1, %v2604
  %v2606 = vrot.slane %v2566, %v2605
  %v2607 = vlaneseq
  %v2608 = vshrl.u32 %v2607, 7
  %v2609 = vsub.s32 1, %v2608
  %v2610 = vrot.slane %v2567, %v2609
  %v2611 = vlaneseq
  %v2612 = vshrl.u32 %v2611, 7
  %v2613 = vsub.s32 1, %v2612
  %v2614 = vrot.slane %v2568, %v2613
  %v2615 = vlaneseq
  %v2616 = vshrl.u32 %v2615, 7
  %v2617 = vsub.s32 1, %v2616
  %v2618 = vrot.slane %v2569, %v2617
  %2620 = vset.pattern.permute.xlu0 0
  %2621 = vperm.xlu0 %2620, %v2602
  %v2622 = vpop.permute.xlu0 %2621
  %v2624 = vmul.f32 %v2606, %v2622
  %v2625 = vmul.f32 %v2610, %v2622
  %v2626 = vmul.f32 %v2614, %v2622
  %v2627 = vmul.f32 %v2618, %v2622
  %v2628 = vadd.f32 %v2597, %v2624
  %v2629 = vadd.f32 %v2598, %v2625
  %v2630 = vadd.f32 %v2599, %v2626
  %v2631 = vadd.f32 %v2600, %v2627
  %s2632 = scalar_lea.vmem %s1, 260
  %v2633 = vld [vmem:[%s2632] sm:$0x7]
  %v2634 = vlaneseq
  %v2635 = vshrl.u32 %v2634, 7
  %v2636 = vsub.s32 2, %v2635
  %v2637 = vrot.slane %v2566, %v2636
  %v2638 = vlaneseq
  %v2639 = vshrl.u32 %v2638, 7
  %v2640 = vsub.s32 2, %v2639
  %v2641 = vrot.slane %v2567, %v2640
  %v2642 = vlaneseq
  %v2643 = vshrl.u32 %v2642, 7
  %v2644 = vsub.s32 2, %v2643
  %v2645 = vrot.slane %v2568, %v2644
  %v2646 = vlaneseq
  %v2647 = vshrl.u32 %v2646, 7
  %v2648 = vsub.s32 2, %v2647
  %v2649 = vrot.slane %v2569, %v2648
  %2651 = vset.pattern.permute.xlu0 0
  %2652 = vperm.xlu0 %2651, %v2633
  %v2653 = vpop.permute.xlu0 %2652
  %v2655 = vmul.f32 %v2637, %v2653
  %v2656 = vmul.f32 %v2641, %v2653
  %v2657 = vmul.f32 %v2645, %v2653
  %v2658 = vmul.f32 %v2649, %v2653
  %v2659 = vadd.f32 %v2628, %v2655
  %v2660 = vadd.f32 %v2629, %v2656
  %v2661 = vadd.f32 %v2630, %v2657
  %v2662 = vadd.f32 %v2631, %v2658
  %s2663 = scalar_lea.vmem %s1, 264
  %v2664 = vld [vmem:[%s2663] sm:$0x7]
  %v2665 = vlaneseq
  %v2666 = vshrl.u32 %v2665, 7
  %v2667 = vsub.s32 0, %v2666
  %v2668 = vrot.slane %v2227, %v2667
  %v2669 = vlaneseq
  %v2670 = vshrl.u32 %v2669, 7
  %v2671 = vsub.s32 0, %v2670
  %v2672 = vrot.slane %v2228, %v2671
  %v2673 = vlaneseq
  %v2674 = vshrl.u32 %v2673, 7
  %v2675 = vsub.s32 0, %v2674
  %v2676 = vrot.slane %v2229, %v2675
  %v2677 = vlaneseq
  %v2678 = vshrl.u32 %v2677, 7
  %v2679 = vsub.s32 0, %v2678
  %v2680 = vrot.slane %v2230, %v2679
  %2682 = vset.pattern.permute.xlu0 0
  %2683 = vperm.xlu0 %2682, %v2664
  %v2684 = vpop.permute.xlu0 %2683
  %v2686 = vmul.f32 %v2668, %v2684
  %v2687 = vmul.f32 %v2672, %v2684
  %v2688 = vmul.f32 %v2676, %v2684
  %v2689 = vmul.f32 %v2680, %v2684
  %v2690 = vadd.f32 %v2659, %v2686
  %v2691 = vadd.f32 %v2660, %v2687
  %v2692 = vadd.f32 %v2661, %v2688
  %v2693 = vadd.f32 %v2662, %v2689
  %s2694 = scalar_lea.vmem %s1, 268
  %v2695 = vld [vmem:[%s2694] sm:$0x7]
  %v2696 = vlaneseq
  %v2697 = vshrl.u32 %v2696, 7
  %v2698 = vsub.s32 1, %v2697
  %v2699 = vrot.slane %v2227, %v2698
  %v2700 = vlaneseq
  %v2701 = vshrl.u32 %v2700, 7
  %v2702 = vsub.s32 1, %v2701
  %v2703 = vrot.slane %v2228, %v2702
  %v2704 = vlaneseq
  %v2705 = vshrl.u32 %v2704, 7
  %v2706 = vsub.s32 1, %v2705
  %v2707 = vrot.slane %v2229, %v2706
  %v2708 = vlaneseq
  %v2709 = vshrl.u32 %v2708, 7
  %v2710 = vsub.s32 1, %v2709
  %v2711 = vrot.slane %v2230, %v2710
  %2713 = vset.pattern.permute.xlu0 0
  %2714 = vperm.xlu0 %2713, %v2695
  %v2715 = vpop.permute.xlu0 %2714
  %v2717 = vmul.f32 %v2699, %v2715
  %v2718 = vmul.f32 %v2703, %v2715
  %v2719 = vmul.f32 %v2707, %v2715
  %v2720 = vmul.f32 %v2711, %v2715
  %v2721 = vadd.f32 %v2690, %v2717
  %v2722 = vadd.f32 %v2691, %v2718
  %v2723 = vadd.f32 %v2692, %v2719
  %v2724 = vadd.f32 %v2693, %v2720
  %s2725 = scalar_lea.vmem %s1, 272
  %v2726 = vld [vmem:[%s2725] sm:$0x7]
  %v2727 = vlaneseq
  %v2728 = vshrl.u32 %v2727, 7
  %v2729 = vsub.s32 2, %v2728
  %v2730 = vrot.slane %v2227, %v2729
  %v2731 = vlaneseq
  %v2732 = vshrl.u32 %v2731, 7
  %v2733 = vsub.s32 2, %v2732
  %v2734 = vrot.slane %v2228, %v2733
  %v2735 = vlaneseq
  %v2736 = vshrl.u32 %v2735, 7
  %v2737 = vsub.s32 2, %v2736
  %v2738 = vrot.slane %v2229, %v2737
  %v2739 = vlaneseq
  %v2740 = vshrl.u32 %v2739, 7
  %v2741 = vsub.s32 2, %v2740
  %v2742 = vrot.slane %v2230, %v2741
  %2744 = vset.pattern.permute.xlu0 0
  %2745 = vperm.xlu0 %2744, %v2726
  %v2746 = vpop.permute.xlu0 %2745
  %v2748 = vmul.f32 %v2730, %v2746
  %v2749 = vmul.f32 %v2734, %v2746
  %v2750 = vmul.f32 %v2738, %v2746
  %v2751 = vmul.f32 %v2742, %v2746
  %v2752 = vadd.f32 %v2721, %v2748
  %v2753 = vadd.f32 %v2722, %v2749
  %v2754 = vadd.f32 %v2723, %v2750
  %v2755 = vadd.f32 %v2724, %v2751
  %2756 = vrot.lane.b32.xlu0 %v2227, 127
  %v2757 = vpop.permute.xlu0 %2756
  %2758 = vrot.lane.b32.xlu0 %v2229, 127
  %v2759 = vpop.permute.xlu0 %2758
  %2760 = vrot.lane.b32.xlu0 %v2228, 127
  %v2761 = vpop.permute.xlu0 %2760
  %2762 = vrot.lane.b32.xlu0 %v2230, 127
  %v2763 = vpop.permute.xlu0 %2762
  %v2764 = vsel %vm657, %v2757, %v2761
  %v2765 = vsel %vm657, %v2759, %v2763
  %v2766 = vsel %vm657, %v2761, %v2757
  %v2767 = vsel %vm657, %v2763, %v2759
  %v2768 = vsel %vm664, %v2764, 0.0
  %v2769 = vsel %vm665, %v2766, 0.0
  %v2770 = vsel %vm664, %v2765, 0.0
  %v2771 = vsel %vm665, %v2767, 0.0
  %s2772 = scalar_lea.vmem %s1, 276
  %v2773 = vld [vmem:[%s2772] sm:$0x7]
  %v2774 = vlaneseq
  %v2775 = vshrl.u32 %v2774, 7
  %v2776 = vsub.s32 0, %v2775
  %v2777 = vrot.slane %v2768, %v2776
  %v2778 = vlaneseq
  %v2779 = vshrl.u32 %v2778, 7
  %v2780 = vsub.s32 0, %v2779
  %v2781 = vrot.slane %v2769, %v2780
  %v2782 = vlaneseq
  %v2783 = vshrl.u32 %v2782, 7
  %v2784 = vsub.s32 0, %v2783
  %v2785 = vrot.slane %v2770, %v2784
  %v2786 = vlaneseq
  %v2787 = vshrl.u32 %v2786, 7
  %v2788 = vsub.s32 0, %v2787
  %v2789 = vrot.slane %v2771, %v2788
  %2791 = vset.pattern.permute.xlu0 0
  %2792 = vperm.xlu0 %2791, %v2773
  %v2793 = vpop.permute.xlu0 %2792
  %v2795 = vmul.f32 %v2777, %v2793
  %v2796 = vmul.f32 %v2781, %v2793
  %v2797 = vmul.f32 %v2785, %v2793
  %v2798 = vmul.f32 %v2789, %v2793
  %v2799 = vadd.f32 %v2752, %v2795
  %v2800 = vadd.f32 %v2753, %v2796
  %v2801 = vadd.f32 %v2754, %v2797
  %v2802 = vadd.f32 %v2755, %v2798
  %s2803 = scalar_lea.vmem %s1, 280
  %v2804 = vld [vmem:[%s2803] sm:$0x7]
  %v2805 = vlaneseq
  %v2806 = vshrl.u32 %v2805, 7
  %v2807 = vsub.s32 1, %v2806
  %v2808 = vrot.slane %v2768, %v2807
  %v2809 = vlaneseq
  %v2810 = vshrl.u32 %v2809, 7
  %v2811 = vsub.s32 1, %v2810
  %v2812 = vrot.slane %v2769, %v2811
  %v2813 = vlaneseq
  %v2814 = vshrl.u32 %v2813, 7
  %v2815 = vsub.s32 1, %v2814
  %v2816 = vrot.slane %v2770, %v2815
  %v2817 = vlaneseq
  %v2818 = vshrl.u32 %v2817, 7
  %v2819 = vsub.s32 1, %v2818
  %v2820 = vrot.slane %v2771, %v2819
  %2822 = vset.pattern.permute.xlu0 0
  %2823 = vperm.xlu0 %2822, %v2804
  %v2824 = vpop.permute.xlu0 %2823
  %v2826 = vmul.f32 %v2808, %v2824
  %v2827 = vmul.f32 %v2812, %v2824
  %v2828 = vmul.f32 %v2816, %v2824
  %v2829 = vmul.f32 %v2820, %v2824
  %v2830 = vadd.f32 %v2799, %v2826
  %v2831 = vadd.f32 %v2800, %v2827
  %v2832 = vadd.f32 %v2801, %v2828
  %v2833 = vadd.f32 %v2802, %v2829
  %s2834 = scalar_lea.vmem %s1, 284
  %v2835 = vld [vmem:[%s2834] sm:$0x7]
  %v2836 = vlaneseq
  %v2837 = vshrl.u32 %v2836, 7
  %v2838 = vsub.s32 2, %v2837
  %v2839 = vrot.slane %v2768, %v2838
  %v2840 = vlaneseq
  %v2841 = vshrl.u32 %v2840, 7
  %v2842 = vsub.s32 2, %v2841
  %v2843 = vrot.slane %v2769, %v2842
  %v2844 = vlaneseq
  %v2845 = vshrl.u32 %v2844, 7
  %v2846 = vsub.s32 2, %v2845
  %v2847 = vrot.slane %v2770, %v2846
  %v2848 = vlaneseq
  %v2849 = vshrl.u32 %v2848, 7
  %v2850 = vsub.s32 2, %v2849
  %v2851 = vrot.slane %v2771, %v2850
  %2853 = vset.pattern.permute.xlu0 0
  %2854 = vperm.xlu0 %2853, %v2835
  %v2855 = vpop.permute.xlu0 %2854
  %v2857 = vmul.f32 %v2839, %v2855
  %v2858 = vmul.f32 %v2843, %v2855
  %v2859 = vmul.f32 %v2847, %v2855
  %v2860 = vmul.f32 %v2851, %v2855
  %v2861 = vadd.f32 %v2830, %v2857
  %v2862 = vadd.f32 %v2831, %v2858
  %v2863 = vadd.f32 %v2832, %v2859
  %v2864 = vadd.f32 %v2833, %v2860
  %2865 = vrot.lane.b32.xlu0 %v2227, 113
  %v2866 = vpop.permute.xlu0 %2865
  %2867 = vrot.lane.b32.xlu0 %v2229, 113
  %v2868 = vpop.permute.xlu0 %2867
  %2869 = vrot.lane.b32.xlu0 %v2228, 113
  %v2870 = vpop.permute.xlu0 %2869
  %2871 = vrot.lane.b32.xlu0 %v2230, 113
  %v2872 = vpop.permute.xlu0 %2871
  %v2873 = vsel %vm771, %v2866, %v2870
  %v2874 = vsel %vm771, %v2868, %v2872
  %v2875 = vsel %vm771, %v2870, %v2866
  %v2876 = vsel %vm771, %v2872, %v2868
  %v2877 = vsel %vm780, %v2873, 0.0
  %v2878 = vsel %vm781, %v2875, 0.0
  %v2879 = vsel %vm780, %v2874, 0.0
  %v2880 = vsel %vm781, %v2876, 0.0
  %s2881 = scalar_lea.vmem %s1, 288
  %v2882 = vld [vmem:[%s2881] sm:$0x7]
  %v2883 = vlaneseq
  %v2884 = vshrl.u32 %v2883, 7
  %v2885 = vsub.s32 0, %v2884
  %v2886 = vrot.slane %v2877, %v2885
  %v2887 = vlaneseq
  %v2888 = vshrl.u32 %v2887, 7
  %v2889 = vsub.s32 0, %v2888
  %v2890 = vrot.slane %v2878, %v2889
  %v2891 = vlaneseq
  %v2892 = vshrl.u32 %v2891, 7
  %v2893 = vsub.s32 0, %v2892
  %v2894 = vrot.slane %v2879, %v2893
  %v2895 = vlaneseq
  %v2896 = vshrl.u32 %v2895, 7
  %v2897 = vsub.s32 0, %v2896
  %v2898 = vrot.slane %v2880, %v2897
  %2900 = vset.pattern.permute.xlu0 0
  %2901 = vperm.xlu0 %2900, %v2882
  %v2902 = vpop.permute.xlu0 %2901
  %v2904 = vmul.f32 %v2886, %v2902
  %v2905 = vmul.f32 %v2890, %v2902
  %v2906 = vmul.f32 %v2894, %v2902
  %v2907 = vmul.f32 %v2898, %v2902
  %v2908 = vadd.f32 %v2861, %v2904
  %v2909 = vadd.f32 %v2862, %v2905
  %v2910 = vadd.f32 %v2863, %v2906
  %v2911 = vadd.f32 %v2864, %v2907
  %s2912 = scalar_lea.vmem %s1, 292
  %v2913 = vld [vmem:[%s2912] sm:$0x7]
  %v2914 = vlaneseq
  %v2915 = vshrl.u32 %v2914, 7
  %v2916 = vsub.s32 1, %v2915
  %v2917 = vrot.slane %v2877, %v2916
  %v2918 = vlaneseq
  %v2919 = vshrl.u32 %v2918, 7
  %v2920 = vsub.s32 1, %v2919
  %v2921 = vrot.slane %v2878, %v2920
  %v2922 = vlaneseq
  %v2923 = vshrl.u32 %v2922, 7
  %v2924 = vsub.s32 1, %v2923
  %v2925 = vrot.slane %v2879, %v2924
  %v2926 = vlaneseq
  %v2927 = vshrl.u32 %v2926, 7
  %v2928 = vsub.s32 1, %v2927
  %v2929 = vrot.slane %v2880, %v2928
  %2931 = vset.pattern.permute.xlu0 0
  %2932 = vperm.xlu0 %2931, %v2913
  %v2933 = vpop.permute.xlu0 %2932
  %v2935 = vmul.f32 %v2917, %v2933
  %v2936 = vmul.f32 %v2921, %v2933
  %v2937 = vmul.f32 %v2925, %v2933
  %v2938 = vmul.f32 %v2929, %v2933
  %v2939 = vadd.f32 %v2908, %v2935
  %v2940 = vadd.f32 %v2909, %v2936
  %v2941 = vadd.f32 %v2910, %v2937
  %v2942 = vadd.f32 %v2911, %v2938
  %s2943 = scalar_lea.vmem %s1, 296
  %v2944 = vld [vmem:[%s2943] sm:$0x7]
  %v2945 = vlaneseq
  %v2946 = vshrl.u32 %v2945, 7
  %v2947 = vsub.s32 2, %v2946
  %v2948 = vrot.slane %v2877, %v2947
  %v2949 = vlaneseq
  %v2950 = vshrl.u32 %v2949, 7
  %v2951 = vsub.s32 2, %v2950
  %v2952 = vrot.slane %v2878, %v2951
  %v2953 = vlaneseq
  %v2954 = vshrl.u32 %v2953, 7
  %v2955 = vsub.s32 2, %v2954
  %v2956 = vrot.slane %v2879, %v2955
  %v2957 = vlaneseq
  %v2958 = vshrl.u32 %v2957, 7
  %v2959 = vsub.s32 2, %v2958
  %v2960 = vrot.slane %v2880, %v2959
  %2962 = vset.pattern.permute.xlu0 0
  %2963 = vperm.xlu0 %2962, %v2944
  %v2964 = vpop.permute.xlu0 %2963
  %v2966 = vmul.f32 %v2948, %v2964
  %v2967 = vmul.f32 %v2952, %v2964
  %v2968 = vmul.f32 %v2956, %v2964
  %v2969 = vmul.f32 %v2960, %v2964
  %v2970 = vadd.f32 %v2939, %v2966
  %v2971 = vadd.f32 %v2940, %v2967
  %v2972 = vadd.f32 %v2941, %v2968
  %v2973 = vadd.f32 %v2942, %v2969
  %2974 = vrot.lane.b32.xlu0 %v2227, 112
  %v2975 = vpop.permute.xlu0 %2974
  %2976 = vrot.lane.b32.xlu0 %v2229, 112
  %v2977 = vpop.permute.xlu0 %2976
  %2978 = vrot.lane.b32.xlu0 %v2228, 112
  %v2979 = vpop.permute.xlu0 %2978
  %2980 = vrot.lane.b32.xlu0 %v2230, 112
  %v2981 = vpop.permute.xlu0 %2980
  %v2982 = vsel %vm887, %v2975, %v2979
  %v2983 = vsel %vm887, %v2977, %v2981
  %v2984 = vsel %vm887, %v2979, %v2975
  %v2985 = vsel %vm887, %v2981, %v2977
  %v2986 = vsel %vm894, %v2982, 0.0
  %v2987 = vsel %vm895, %v2984, 0.0
  %v2988 = vsel %vm894, %v2983, 0.0
  %v2989 = vsel %vm895, %v2985, 0.0
  %s2990 = scalar_lea.vmem %s1, 300
  %v2991 = vld [vmem:[%s2990] sm:$0x7]
  %v2992 = vlaneseq
  %v2993 = vshrl.u32 %v2992, 7
  %v2994 = vsub.s32 0, %v2993
  %v2995 = vrot.slane %v2986, %v2994
  %v2996 = vlaneseq
  %v2997 = vshrl.u32 %v2996, 7
  %v2998 = vsub.s32 0, %v2997
  %v2999 = vrot.slane %v2987, %v2998
  %v3000 = vlaneseq
  %v3001 = vshrl.u32 %v3000, 7
  %v3002 = vsub.s32 0, %v3001
  %v3003 = vrot.slane %v2988, %v3002
  %v3004 = vlaneseq
  %v3005 = vshrl.u32 %v3004, 7
  %v3006 = vsub.s32 0, %v3005
  %v3007 = vrot.slane %v2989, %v3006
  %3009 = vset.pattern.permute.xlu0 0
  %3010 = vperm.xlu0 %3009, %v2991
  %v3011 = vpop.permute.xlu0 %3010
  %v3013 = vmul.f32 %v2995, %v3011
  %v3014 = vmul.f32 %v2999, %v3011
  %v3015 = vmul.f32 %v3003, %v3011
  %v3016 = vmul.f32 %v3007, %v3011
  %v3017 = vadd.f32 %v2970, %v3013
  %v3018 = vadd.f32 %v2971, %v3014
  %v3019 = vadd.f32 %v2972, %v3015
  %v3020 = vadd.f32 %v2973, %v3016
  %s3021 = scalar_lea.vmem %s1, 304
  %v3022 = vld [vmem:[%s3021] sm:$0x7]
  %v3023 = vlaneseq
  %v3024 = vshrl.u32 %v3023, 7
  %v3025 = vsub.s32 1, %v3024
  %v3026 = vrot.slane %v2986, %v3025
  %v3027 = vlaneseq
  %v3028 = vshrl.u32 %v3027, 7
  %v3029 = vsub.s32 1, %v3028
  %v3030 = vrot.slane %v2987, %v3029
  %v3031 = vlaneseq
  %v3032 = vshrl.u32 %v3031, 7
  %v3033 = vsub.s32 1, %v3032
  %v3034 = vrot.slane %v2988, %v3033
  %v3035 = vlaneseq
  %v3036 = vshrl.u32 %v3035, 7
  %v3037 = vsub.s32 1, %v3036
  %v3038 = vrot.slane %v2989, %v3037
  %3040 = vset.pattern.permute.xlu0 0
  %3041 = vperm.xlu0 %3040, %v3022
  %v3042 = vpop.permute.xlu0 %3041
  %v3044 = vmul.f32 %v3026, %v3042
  %v3045 = vmul.f32 %v3030, %v3042
  %v3046 = vmul.f32 %v3034, %v3042
  %v3047 = vmul.f32 %v3038, %v3042
  %v3048 = vadd.f32 %v3017, %v3044
  %v3049 = vadd.f32 %v3018, %v3045
  %v3050 = vadd.f32 %v3019, %v3046
  %v3051 = vadd.f32 %v3020, %v3047
  %s3052 = scalar_lea.vmem %s1, 308
  %v3053 = vld [vmem:[%s3052] sm:$0x7]
  %v3054 = vlaneseq
  %v3055 = vshrl.u32 %v3054, 7
  %v3056 = vsub.s32 2, %v3055
  %v3057 = vrot.slane %v2986, %v3056
  %v3058 = vlaneseq
  %v3059 = vshrl.u32 %v3058, 7
  %v3060 = vsub.s32 2, %v3059
  %v3061 = vrot.slane %v2987, %v3060
  %v3062 = vlaneseq
  %v3063 = vshrl.u32 %v3062, 7
  %v3064 = vsub.s32 2, %v3063
  %v3065 = vrot.slane %v2988, %v3064
  %v3066 = vlaneseq
  %v3067 = vshrl.u32 %v3066, 7
  %v3068 = vsub.s32 2, %v3067
  %v3069 = vrot.slane %v2989, %v3068
  %3071 = vset.pattern.permute.xlu0 0
  %3072 = vperm.xlu0 %3071, %v3053
  %v3073 = vpop.permute.xlu0 %3072
  %v3075 = vmul.f32 %v3057, %v3073
  %v3076 = vmul.f32 %v3061, %v3073
  %v3077 = vmul.f32 %v3065, %v3073
  %v3078 = vmul.f32 %v3069, %v3073
  %v3079 = vadd.f32 %v3048, %v3075
  %v3080 = vadd.f32 %v3049, %v3076
  %v3081 = vadd.f32 %v3050, %v3077
  %v3082 = vadd.f32 %v3051, %v3078
  %3083 = vrot.lane.b32.xlu0 %v2227, 111
  %v3084 = vpop.permute.xlu0 %3083
  %3085 = vrot.lane.b32.xlu0 %v2229, 111
  %v3086 = vpop.permute.xlu0 %3085
  %3087 = vrot.lane.b32.xlu0 %v2228, 111
  %v3088 = vpop.permute.xlu0 %3087
  %3089 = vrot.lane.b32.xlu0 %v2230, 111
  %v3090 = vpop.permute.xlu0 %3089
  %v3091 = vsel %vm1001, %v3084, %v3088
  %v3092 = vsel %vm1001, %v3086, %v3090
  %v3093 = vsel %vm1001, %v3088, %v3084
  %v3094 = vsel %vm1001, %v3090, %v3086
  %v3095 = vsel %vm1010, %v3091, 0.0
  %v3096 = vsel %vm1011, %v3093, 0.0
  %v3097 = vsel %vm1010, %v3092, 0.0
  %v3098 = vsel %vm1011, %v3094, 0.0
  %s3099 = scalar_lea.vmem %s1, 312
  %v3100 = vld [vmem:[%s3099] sm:$0x7]
  %v3101 = vlaneseq
  %v3102 = vshrl.u32 %v3101, 7
  %v3103 = vsub.s32 0, %v3102
  %v3104 = vrot.slane %v3095, %v3103
  %v3105 = vlaneseq
  %v3106 = vshrl.u32 %v3105, 7
  %v3107 = vsub.s32 0, %v3106
  %v3108 = vrot.slane %v3096, %v3107
  %v3109 = vlaneseq
  %v3110 = vshrl.u32 %v3109, 7
  %v3111 = vsub.s32 0, %v3110
  %v3112 = vrot.slane %v3097, %v3111
  %v3113 = vlaneseq
  %v3114 = vshrl.u32 %v3113, 7
  %v3115 = vsub.s32 0, %v3114
  %v3116 = vrot.slane %v3098, %v3115
  %3118 = vset.pattern.permute.xlu0 0
  %3119 = vperm.xlu0 %3118, %v3100
  %v3120 = vpop.permute.xlu0 %3119
  %v3122 = vmul.f32 %v3104, %v3120
  %v3123 = vmul.f32 %v3108, %v3120
  %v3124 = vmul.f32 %v3112, %v3120
  %v3125 = vmul.f32 %v3116, %v3120
  %v3126 = vadd.f32 %v3079, %v3122
  %v3127 = vadd.f32 %v3080, %v3123
  %v3128 = vadd.f32 %v3081, %v3124
  %v3129 = vadd.f32 %v3082, %v3125
  %s3130 = scalar_lea.vmem %s1, 316
  %v3131 = vld [vmem:[%s3130] sm:$0x7]
  %v3132 = vlaneseq
  %v3133 = vshrl.u32 %v3132, 7
  %v3134 = vsub.s32 1, %v3133
  %v3135 = vrot.slane %v3095, %v3134
  %v3136 = vlaneseq
  %v3137 = vshrl.u32 %v3136, 7
  %v3138 = vsub.s32 1, %v3137
  %v3139 = vrot.slane %v3096, %v3138
  %v3140 = vlaneseq
  %v3141 = vshrl.u32 %v3140, 7
  %v3142 = vsub.s32 1, %v3141
  %v3143 = vrot.slane %v3097, %v3142
  %v3144 = vlaneseq
  %v3145 = vshrl.u32 %v3144, 7
  %v3146 = vsub.s32 1, %v3145
  %v3147 = vrot.slane %v3098, %v3146
  %3149 = vset.pattern.permute.xlu0 0
  %3150 = vperm.xlu0 %3149, %v3131
  %v3151 = vpop.permute.xlu0 %3150
  %v3153 = vmul.f32 %v3135, %v3151
  %v3154 = vmul.f32 %v3139, %v3151
  %v3155 = vmul.f32 %v3143, %v3151
  %v3156 = vmul.f32 %v3147, %v3151
  %v3157 = vadd.f32 %v3126, %v3153
  %v3158 = vadd.f32 %v3127, %v3154
  %v3159 = vadd.f32 %v3128, %v3155
  %v3160 = vadd.f32 %v3129, %v3156
  %s3161 = scalar_lea.vmem %s1, 320
  %v3162 = vld [vmem:[%s3161] sm:$0x7]
  %v3163 = vlaneseq
  %v3164 = vshrl.u32 %v3163, 7
  %v3165 = vsub.s32 2, %v3164
  %v3166 = vrot.slane %v3095, %v3165
  %v3167 = vlaneseq
  %v3168 = vshrl.u32 %v3167, 7
  %v3169 = vsub.s32 2, %v3168
  %v3170 = vrot.slane %v3096, %v3169
  %v3171 = vlaneseq
  %v3172 = vshrl.u32 %v3171, 7
  %v3173 = vsub.s32 2, %v3172
  %v3174 = vrot.slane %v3097, %v3173
  %v3175 = vlaneseq
  %v3176 = vshrl.u32 %v3175, 7
  %v3177 = vsub.s32 2, %v3176
  %v3178 = vrot.slane %v3098, %v3177
  %3180 = vset.pattern.permute.xlu0 0
  %3181 = vperm.xlu0 %3180, %v3162
  %v3182 = vpop.permute.xlu0 %3181
  %v3184 = vmul.f32 %v3166, %v3182
  %v3185 = vmul.f32 %v3170, %v3182
  %v3186 = vmul.f32 %v3174, %v3182
  %v3187 = vmul.f32 %v3178, %v3182
  %v3188 = vadd.f32 %v3157, %v3184
  %v3189 = vadd.f32 %v3158, %v3185
  %v3190 = vadd.f32 %v3159, %v3186
  %v3191 = vadd.f32 %v3160, %v3187
  %s3192 = scalar_lea.vmem %s2, 8
  %v3193 = vld [vmem:[%s3192] sm:$0x7]
  %3195 = vset.pattern.permute.xlu0 0
  %3196 = vperm.xlu0 %3195, %v3193
  %v3197 = vpop.permute.xlu0 %3196
  %v3199 = vadd.f32 %v3188, %v3197
  %v3200 = vadd.f32 %v3189, %v3197
  %v3201 = vadd.f32 %v3190, %v3197
  %v3202 = vadd.f32 %v3191, %v3197
  %v3203 = vmul.f32 %v3199, %v3199
  %v3204 = vmul.f32 %v3200, %v3200
  %v3205 = vmul.f32 %v3201, %v3201
  %v3206 = vmul.f32 %v3202, %v3202
  %v3211 = vrot.slane %v3203, 5
  %v3212 = vrot.slane %v3204, 5
  %v3213 = vrot.slane %v3205, 5
  %v3214 = vrot.slane %v3206, 5
  %v3219 = vsel %vm1135, %v3199, %v3211
  %v3220 = vsel %vm1135, %v3200, %v3212
  %v3221 = vsel %vm1135, %v3201, %v3213
  %v3222 = vsel %vm1135, %v3202, %v3214
  %v3223 = vsel %vm1140, %v3219, 0.0
  %v3224 = vsel %vm1140, %v3220, 0.0
  %v3225 = vadd.f32 %v3223, %v3224
  %3226 = vadd.xlane.f32.xlu0 %v3225
  %v3227 = vpop.xlane.xlu0 %3226
  %v3228 = vsel %vm1140, %v3221, 0.0
  %v3229 = vsel %vm1140, %v3222, 0.0
  %v3230 = vadd.f32 %v3228, %v3229
  %3231 = vadd.xlane.f32.xlu0 %v3230
  %v3232 = vpop.xlane.xlu0 %3231
  %v3233 = vsel %vm1140, %v3227, 0.0
  %v3234 = vsel %vm1140, %v3232, 0.0
  %v3235 = vadd.f32 %v3233, %v3234
  %v3236 = vmul.f32 %v3235, 0.001953125
  %v3237 = vmul.f32 %v3236, %v3236
  %v3239 = vrot.slane %v3237, 5
  %v3241 = vsub.f32 %v3236, %v3239
  %v3242 = vmax.f32 %v3241, 0.0
  %s3243 = scalar_lea.vmem %s3, 8
  %v3244 = vld [vmem:[%s3243] sm:$0x7]
  %v3245 = vadd.f32 %v3242, 1e-05
  %v3246 = vrsqrt.pop %v3245
  %v3248 = vrot.slane %v3246, 3
  %v3250 = vmul.f32 %v3244, %v3248
  %s3251 = scalar_lea.vmem %s4, 8
  %v3252 = vld [vmem:[%s3251] sm:$0x7]
  %v3253 = vmul.f32 %v3236, %v3250
  %v3254 = vsub.f32 %v3252, %v3253
  %3256 = vset.pattern.permute.xlu0 0
  %3257 = vperm.xlu0 %3256, %v3250
  %v3258 = vpop.permute.xlu0 %3257
  %v3260 = vmul.f32 %v3199, %v3258
  %v3261 = vmul.f32 %v3200, %v3258
  %v3262 = vmul.f32 %v3201, %v3258
  %v3263 = vmul.f32 %v3202, %v3258
  %3265 = vset.pattern.permute.xlu0 0
  %3266 = vperm.xlu0 %3265, %v3254
  %v3267 = vpop.permute.xlu0 %3266
  %v3269 = vadd.f32 %v3260, %v3267
  %v3270 = vadd.f32 %v3261, %v3267
  %v3271 = vadd.f32 %v3262, %v3267
  %v3272 = vadd.f32 %v3263, %v3267
  %3273 = vrot.lane.b32.xlu0 %v3269, 17
  %v3274 = vpop.permute.xlu0 %3273
  %3275 = vrot.lane.b32.xlu0 %v3271, 17
  %v3276 = vpop.permute.xlu0 %3275
  %3277 = vrot.lane.b32.xlu0 %v3270, 17
  %v3278 = vpop.permute.xlu0 %3277
  %3279 = vrot.lane.b32.xlu0 %v3272, 17
  %v3280 = vpop.permute.xlu0 %3279
  %v3281 = vsel %vm49, %v3274, %v3278
  %v3282 = vsel %vm49, %v3276, %v3280
  %v3283 = vsel %vm49, %v3278, %v3274
  %v3284 = vsel %vm49, %v3280, %v3276
  %v3285 = vsel %vm58, %v3283, 0.0
  %v3286 = vsel %vm59, %v3281, 0.0
  %v3287 = vsel %vm58, %v3284, 0.0
  %v3288 = vsel %vm59, %v3282, 0.0
  %s3289 = scalar_lea.vmem %s1, 324
  %v3290 = vld [vmem:[%s3289] sm:$0x7]
  %v3291 = vlaneseq
  %v3292 = vshrl.u32 %v3291, 7
  %v3293 = vsub.s32 0, %v3292
  %v3294 = vrot.slane %v3285, %v3293
  %v3295 = vlaneseq
  %v3296 = vshrl.u32 %v3295, 7
  %v3297 = vsub.s32 0, %v3296
  %v3298 = vrot.slane %v3286, %v3297
  %v3299 = vlaneseq
  %v3300 = vshrl.u32 %v3299, 7
  %v3301 = vsub.s32 0, %v3300
  %v3302 = vrot.slane %v3287, %v3301
  %v3303 = vlaneseq
  %v3304 = vshrl.u32 %v3303, 7
  %v3305 = vsub.s32 0, %v3304
  %v3306 = vrot.slane %v3288, %v3305
  %3308 = vset.pattern.permute.xlu0 0
  %3309 = vperm.xlu0 %3308, %v3290
  %v3310 = vpop.permute.xlu0 %3309
  %v3312 = vmul.f32 %v3294, %v3310
  %v3313 = vmul.f32 %v3298, %v3310
  %v3314 = vmul.f32 %v3302, %v3310
  %v3315 = vmul.f32 %v3306, %v3310
  %s3316 = scalar_lea.vmem %s1, 328
  %v3317 = vld [vmem:[%s3316] sm:$0x7]
  %v3318 = vlaneseq
  %v3319 = vshrl.u32 %v3318, 7
  %v3320 = vsub.s32 1, %v3319
  %v3321 = vrot.slane %v3285, %v3320
  %v3322 = vlaneseq
  %v3323 = vshrl.u32 %v3322, 7
  %v3324 = vsub.s32 1, %v3323
  %v3325 = vrot.slane %v3286, %v3324
  %v3326 = vlaneseq
  %v3327 = vshrl.u32 %v3326, 7
  %v3328 = vsub.s32 1, %v3327
  %v3329 = vrot.slane %v3287, %v3328
  %v3330 = vlaneseq
  %v3331 = vshrl.u32 %v3330, 7
  %v3332 = vsub.s32 1, %v3331
  %v3333 = vrot.slane %v3288, %v3332
  %3335 = vset.pattern.permute.xlu0 0
  %3336 = vperm.xlu0 %3335, %v3317
  %v3337 = vpop.permute.xlu0 %3336
  %v3339 = vmul.f32 %v3321, %v3337
  %v3340 = vmul.f32 %v3325, %v3337
  %v3341 = vmul.f32 %v3329, %v3337
  %v3342 = vmul.f32 %v3333, %v3337
  %v3343 = vadd.f32 %v3312, %v3339
  %v3344 = vadd.f32 %v3313, %v3340
  %v3345 = vadd.f32 %v3314, %v3341
  %v3346 = vadd.f32 %v3315, %v3342
  %s3347 = scalar_lea.vmem %s1, 332
  %v3348 = vld [vmem:[%s3347] sm:$0x7]
  %v3349 = vlaneseq
  %v3350 = vshrl.u32 %v3349, 7
  %v3351 = vsub.s32 2, %v3350
  %v3352 = vrot.slane %v3285, %v3351
  %v3353 = vlaneseq
  %v3354 = vshrl.u32 %v3353, 7
  %v3355 = vsub.s32 2, %v3354
  %v3356 = vrot.slane %v3286, %v3355
  %v3357 = vlaneseq
  %v3358 = vshrl.u32 %v3357, 7
  %v3359 = vsub.s32 2, %v3358
  %v3360 = vrot.slane %v3287, %v3359
  %v3361 = vlaneseq
  %v3362 = vshrl.u32 %v3361, 7
  %v3363 = vsub.s32 2, %v3362
  %v3364 = vrot.slane %v3288, %v3363
  %3366 = vset.pattern.permute.xlu0 0
  %3367 = vperm.xlu0 %3366, %v3348
  %v3368 = vpop.permute.xlu0 %3367
  %v3370 = vmul.f32 %v3352, %v3368
  %v3371 = vmul.f32 %v3356, %v3368
  %v3372 = vmul.f32 %v3360, %v3368
  %v3373 = vmul.f32 %v3364, %v3368
  %v3374 = vadd.f32 %v3343, %v3370
  %v3375 = vadd.f32 %v3344, %v3371
  %v3376 = vadd.f32 %v3345, %v3372
  %v3377 = vadd.f32 %v3346, %v3373
  %3378 = vrot.lane.b32.xlu0 %v3269, 16
  %v3379 = vpop.permute.xlu0 %3378
  %3380 = vrot.lane.b32.xlu0 %v3271, 16
  %v3381 = vpop.permute.xlu0 %3380
  %3382 = vrot.lane.b32.xlu0 %v3270, 16
  %v3383 = vpop.permute.xlu0 %3382
  %3384 = vrot.lane.b32.xlu0 %v3272, 16
  %v3385 = vpop.permute.xlu0 %3384
  %v3386 = vsel %vm160, %v3379, %v3383
  %v3387 = vsel %vm160, %v3381, %v3385
  %v3388 = vsel %vm160, %v3383, %v3379
  %v3389 = vsel %vm160, %v3385, %v3381
  %v3390 = vsel %vm167, %v3388, 0.0
  %v3391 = vsel %vm168, %v3386, 0.0
  %v3392 = vsel %vm167, %v3389, 0.0
  %v3393 = vsel %vm168, %v3387, 0.0
  %s3394 = scalar_lea.vmem %s1, 336
  %v3395 = vld [vmem:[%s3394] sm:$0x7]
  %v3396 = vlaneseq
  %v3397 = vshrl.u32 %v3396, 7
  %v3398 = vsub.s32 0, %v3397
  %v3399 = vrot.slane %v3390, %v3398
  %v3400 = vlaneseq
  %v3401 = vshrl.u32 %v3400, 7
  %v3402 = vsub.s32 0, %v3401
  %v3403 = vrot.slane %v3391, %v3402
  %v3404 = vlaneseq
  %v3405 = vshrl.u32 %v3404, 7
  %v3406 = vsub.s32 0, %v3405
  %v3407 = vrot.slane %v3392, %v3406
  %v3408 = vlaneseq
  %v3409 = vshrl.u32 %v3408, 7
  %v3410 = vsub.s32 0, %v3409
  %v3411 = vrot.slane %v3393, %v3410
  %3413 = vset.pattern.permute.xlu0 0
  %3414 = vperm.xlu0 %3413, %v3395
  %v3415 = vpop.permute.xlu0 %3414
  %v3417 = vmul.f32 %v3399, %v3415
  %v3418 = vmul.f32 %v3403, %v3415
  %v3419 = vmul.f32 %v3407, %v3415
  %v3420 = vmul.f32 %v3411, %v3415
  %v3421 = vadd.f32 %v3374, %v3417
  %v3422 = vadd.f32 %v3375, %v3418
  %v3423 = vadd.f32 %v3376, %v3419
  %v3424 = vadd.f32 %v3377, %v3420
  %s3425 = scalar_lea.vmem %s1, 340
  %v3426 = vld [vmem:[%s3425] sm:$0x7]
  %v3427 = vlaneseq
  %v3428 = vshrl.u32 %v3427, 7
  %v3429 = vsub.s32 1, %v3428
  %v3430 = vrot.slane %v3390, %v3429
  %v3431 = vlaneseq
  %v3432 = vshrl.u32 %v3431, 7
  %v3433 = vsub.s32 1, %v3432
  %v3434 = vrot.slane %v3391, %v3433
  %v3435 = vlaneseq
  %v3436 = vshrl.u32 %v3435, 7
  %v3437 = vsub.s32 1, %v3436
  %v3438 = vrot.slane %v3392, %v3437
  %v3439 = vlaneseq
  %v3440 = vshrl.u32 %v3439, 7
  %v3441 = vsub.s32 1, %v3440
  %v3442 = vrot.slane %v3393, %v3441
  %3444 = vset.pattern.permute.xlu0 0
  %3445 = vperm.xlu0 %3444, %v3426
  %v3446 = vpop.permute.xlu0 %3445
  %v3448 = vmul.f32 %v3430, %v3446
  %v3449 = vmul.f32 %v3434, %v3446
  %v3450 = vmul.f32 %v3438, %v3446
  %v3451 = vmul.f32 %v3442, %v3446
  %v3452 = vadd.f32 %v3421, %v3448
  %v3453 = vadd.f32 %v3422, %v3449
  %v3454 = vadd.f32 %v3423, %v3450
  %v3455 = vadd.f32 %v3424, %v3451
  %s3456 = scalar_lea.vmem %s1, 344
  %v3457 = vld [vmem:[%s3456] sm:$0x7]
  %v3458 = vlaneseq
  %v3459 = vshrl.u32 %v3458, 7
  %v3460 = vsub.s32 2, %v3459
  %v3461 = vrot.slane %v3390, %v3460
  %v3462 = vlaneseq
  %v3463 = vshrl.u32 %v3462, 7
  %v3464 = vsub.s32 2, %v3463
  %v3465 = vrot.slane %v3391, %v3464
  %v3466 = vlaneseq
  %v3467 = vshrl.u32 %v3466, 7
  %v3468 = vsub.s32 2, %v3467
  %v3469 = vrot.slane %v3392, %v3468
  %v3470 = vlaneseq
  %v3471 = vshrl.u32 %v3470, 7
  %v3472 = vsub.s32 2, %v3471
  %v3473 = vrot.slane %v3393, %v3472
  %3475 = vset.pattern.permute.xlu0 0
  %3476 = vperm.xlu0 %3475, %v3457
  %v3477 = vpop.permute.xlu0 %3476
  %v3479 = vmul.f32 %v3461, %v3477
  %v3480 = vmul.f32 %v3465, %v3477
  %v3481 = vmul.f32 %v3469, %v3477
  %v3482 = vmul.f32 %v3473, %v3477
  %v3483 = vadd.f32 %v3452, %v3479
  %v3484 = vadd.f32 %v3453, %v3480
  %v3485 = vadd.f32 %v3454, %v3481
  %v3486 = vadd.f32 %v3455, %v3482
  %3487 = vrot.lane.b32.xlu0 %v3269, 15
  %v3488 = vpop.permute.xlu0 %3487
  %3489 = vrot.lane.b32.xlu0 %v3271, 15
  %v3490 = vpop.permute.xlu0 %3489
  %3491 = vrot.lane.b32.xlu0 %v3270, 15
  %v3492 = vpop.permute.xlu0 %3491
  %3493 = vrot.lane.b32.xlu0 %v3272, 15
  %v3494 = vpop.permute.xlu0 %3493
  %v3495 = vsel %vm274, %v3488, %v3492
  %v3496 = vsel %vm274, %v3490, %v3494
  %v3497 = vsel %vm274, %v3492, %v3488
  %v3498 = vsel %vm274, %v3494, %v3490
  %v3499 = vsel %vm283, %v3497, 0.0
  %v3500 = vsel %vm284, %v3495, 0.0
  %v3501 = vsel %vm283, %v3498, 0.0
  %v3502 = vsel %vm284, %v3496, 0.0
  %s3503 = scalar_lea.vmem %s1, 348
  %v3504 = vld [vmem:[%s3503] sm:$0x7]
  %v3505 = vlaneseq
  %v3506 = vshrl.u32 %v3505, 7
  %v3507 = vsub.s32 0, %v3506
  %v3508 = vrot.slane %v3499, %v3507
  %v3509 = vlaneseq
  %v3510 = vshrl.u32 %v3509, 7
  %v3511 = vsub.s32 0, %v3510
  %v3512 = vrot.slane %v3500, %v3511
  %v3513 = vlaneseq
  %v3514 = vshrl.u32 %v3513, 7
  %v3515 = vsub.s32 0, %v3514
  %v3516 = vrot.slane %v3501, %v3515
  %v3517 = vlaneseq
  %v3518 = vshrl.u32 %v3517, 7
  %v3519 = vsub.s32 0, %v3518
  %v3520 = vrot.slane %v3502, %v3519
  %3522 = vset.pattern.permute.xlu0 0
  %3523 = vperm.xlu0 %3522, %v3504
  %v3524 = vpop.permute.xlu0 %3523
  %v3526 = vmul.f32 %v3508, %v3524
  %v3527 = vmul.f32 %v3512, %v3524
  %v3528 = vmul.f32 %v3516, %v3524
  %v3529 = vmul.f32 %v3520, %v3524
  %v3530 = vadd.f32 %v3483, %v3526
  %v3531 = vadd.f32 %v3484, %v3527
  %v3532 = vadd.f32 %v3485, %v3528
  %v3533 = vadd.f32 %v3486, %v3529
  %s3534 = scalar_lea.vmem %s1, 352
  %v3535 = vld [vmem:[%s3534] sm:$0x7]
  %v3536 = vlaneseq
  %v3537 = vshrl.u32 %v3536, 7
  %v3538 = vsub.s32 1, %v3537
  %v3539 = vrot.slane %v3499, %v3538
  %v3540 = vlaneseq
  %v3541 = vshrl.u32 %v3540, 7
  %v3542 = vsub.s32 1, %v3541
  %v3543 = vrot.slane %v3500, %v3542
  %v3544 = vlaneseq
  %v3545 = vshrl.u32 %v3544, 7
  %v3546 = vsub.s32 1, %v3545
  %v3547 = vrot.slane %v3501, %v3546
  %v3548 = vlaneseq
  %v3549 = vshrl.u32 %v3548, 7
  %v3550 = vsub.s32 1, %v3549
  %v3551 = vrot.slane %v3502, %v3550
  %3553 = vset.pattern.permute.xlu0 0
  %3554 = vperm.xlu0 %3553, %v3535
  %v3555 = vpop.permute.xlu0 %3554
  %v3557 = vmul.f32 %v3539, %v3555
  %v3558 = vmul.f32 %v3543, %v3555
  %v3559 = vmul.f32 %v3547, %v3555
  %v3560 = vmul.f32 %v3551, %v3555
  %v3561 = vadd.f32 %v3530, %v3557
  %v3562 = vadd.f32 %v3531, %v3558
  %v3563 = vadd.f32 %v3532, %v3559
  %v3564 = vadd.f32 %v3533, %v3560
  %s3565 = scalar_lea.vmem %s1, 356
  %v3566 = vld [vmem:[%s3565] sm:$0x7]
  %v3567 = vlaneseq
  %v3568 = vshrl.u32 %v3567, 7
  %v3569 = vsub.s32 2, %v3568
  %v3570 = vrot.slane %v3499, %v3569
  %v3571 = vlaneseq
  %v3572 = vshrl.u32 %v3571, 7
  %v3573 = vsub.s32 2, %v3572
  %v3574 = vrot.slane %v3500, %v3573
  %v3575 = vlaneseq
  %v3576 = vshrl.u32 %v3575, 7
  %v3577 = vsub.s32 2, %v3576
  %v3578 = vrot.slane %v3501, %v3577
  %v3579 = vlaneseq
  %v3580 = vshrl.u32 %v3579, 7
  %v3581 = vsub.s32 2, %v3580
  %v3582 = vrot.slane %v3502, %v3581
  %3584 = vset.pattern.permute.xlu0 0
  %3585 = vperm.xlu0 %3584, %v3566
  %v3586 = vpop.permute.xlu0 %3585
  %v3588 = vmul.f32 %v3570, %v3586
  %v3589 = vmul.f32 %v3574, %v3586
  %v3590 = vmul.f32 %v3578, %v3586
  %v3591 = vmul.f32 %v3582, %v3586
  %v3592 = vadd.f32 %v3561, %v3588
  %v3593 = vadd.f32 %v3562, %v3589
  %v3594 = vadd.f32 %v3563, %v3590
  %v3595 = vadd.f32 %v3564, %v3591
  %3596 = vrot.lane.b32.xlu0 %v3269, 1
  %v3597 = vpop.permute.xlu0 %3596
  %3598 = vrot.lane.b32.xlu0 %v3271, 1
  %v3599 = vpop.permute.xlu0 %3598
  %3600 = vrot.lane.b32.xlu0 %v3270, 1
  %v3601 = vpop.permute.xlu0 %3600
  %3602 = vrot.lane.b32.xlu0 %v3272, 1
  %v3603 = vpop.permute.xlu0 %3602
  %v3604 = vsel %vm390, %v3597, %v3601
  %v3605 = vsel %vm390, %v3599, %v3603
  %v3606 = vsel %vm390, %v3601, %v3597
  %v3607 = vsel %vm390, %v3603, %v3599
  %v3608 = vsel %vm397, %v3606, 0.0
  %v3609 = vsel %vm398, %v3604, 0.0
  %v3610 = vsel %vm397, %v3607, 0.0
  %v3611 = vsel %vm398, %v3605, 0.0
  %s3612 = scalar_lea.vmem %s1, 360
  %v3613 = vld [vmem:[%s3612] sm:$0x7]
  %v3614 = vlaneseq
  %v3615 = vshrl.u32 %v3614, 7
  %v3616 = vsub.s32 0, %v3615
  %v3617 = vrot.slane %v3608, %v3616
  %v3618 = vlaneseq
  %v3619 = vshrl.u32 %v3618, 7
  %v3620 = vsub.s32 0, %v3619
  %v3621 = vrot.slane %v3609, %v3620
  %v3622 = vlaneseq
  %v3623 = vshrl.u32 %v3622, 7
  %v3624 = vsub.s32 0, %v3623
  %v3625 = vrot.slane %v3610, %v3624
  %v3626 = vlaneseq
  %v3627 = vshrl.u32 %v3626, 7
  %v3628 = vsub.s32 0, %v3627
  %v3629 = vrot.slane %v3611, %v3628
  %3631 = vset.pattern.permute.xlu0 0
  %3632 = vperm.xlu0 %3631, %v3613
  %v3633 = vpop.permute.xlu0 %3632
  %v3635 = vmul.f32 %v3617, %v3633
  %v3636 = vmul.f32 %v3621, %v3633
  %v3637 = vmul.f32 %v3625, %v3633
  %v3638 = vmul.f32 %v3629, %v3633
  %v3639 = vadd.f32 %v3592, %v3635
  %v3640 = vadd.f32 %v3593, %v3636
  %v3641 = vadd.f32 %v3594, %v3637
  %v3642 = vadd.f32 %v3595, %v3638
  %s3643 = scalar_lea.vmem %s1, 364
  %v3644 = vld [vmem:[%s3643] sm:$0x7]
  %v3645 = vlaneseq
  %v3646 = vshrl.u32 %v3645, 7
  %v3647 = vsub.s32 1, %v3646
  %v3648 = vrot.slane %v3608, %v3647
  %v3649 = vlaneseq
  %v3650 = vshrl.u32 %v3649, 7
  %v3651 = vsub.s32 1, %v3650
  %v3652 = vrot.slane %v3609, %v3651
  %v3653 = vlaneseq
  %v3654 = vshrl.u32 %v3653, 7
  %v3655 = vsub.s32 1, %v3654
  %v3656 = vrot.slane %v3610, %v3655
  %v3657 = vlaneseq
  %v3658 = vshrl.u32 %v3657, 7
  %v3659 = vsub.s32 1, %v3658
  %v3660 = vrot.slane %v3611, %v3659
  %3662 = vset.pattern.permute.xlu0 0
  %3663 = vperm.xlu0 %3662, %v3644
  %v3664 = vpop.permute.xlu0 %3663
  %v3666 = vmul.f32 %v3648, %v3664
  %v3667 = vmul.f32 %v3652, %v3664
  %v3668 = vmul.f32 %v3656, %v3664
  %v3669 = vmul.f32 %v3660, %v3664
  %v3670 = vadd.f32 %v3639, %v3666
  %v3671 = vadd.f32 %v3640, %v3667
  %v3672 = vadd.f32 %v3641, %v3668
  %v3673 = vadd.f32 %v3642, %v3669
  %s3674 = scalar_lea.vmem %s1, 368
  %v3675 = vld [vmem:[%s3674] sm:$0x7]
  %v3676 = vlaneseq
  %v3677 = vshrl.u32 %v3676, 7
  %v3678 = vsub.s32 2, %v3677
  %v3679 = vrot.slane %v3608, %v3678
  %v3680 = vlaneseq
  %v3681 = vshrl.u32 %v3680, 7
  %v3682 = vsub.s32 2, %v3681
  %v3683 = vrot.slane %v3609, %v3682
  %v3684 = vlaneseq
  %v3685 = vshrl.u32 %v3684, 7
  %v3686 = vsub.s32 2, %v3685
  %v3687 = vrot.slane %v3610, %v3686
  %v3688 = vlaneseq
  %v3689 = vshrl.u32 %v3688, 7
  %v3690 = vsub.s32 2, %v3689
  %v3691 = vrot.slane %v3611, %v3690
  %3693 = vset.pattern.permute.xlu0 0
  %3694 = vperm.xlu0 %3693, %v3675
  %v3695 = vpop.permute.xlu0 %3694
  %v3697 = vmul.f32 %v3679, %v3695
  %v3698 = vmul.f32 %v3683, %v3695
  %v3699 = vmul.f32 %v3687, %v3695
  %v3700 = vmul.f32 %v3691, %v3695
  %v3701 = vadd.f32 %v3670, %v3697
  %v3702 = vadd.f32 %v3671, %v3698
  %v3703 = vadd.f32 %v3672, %v3699
  %v3704 = vadd.f32 %v3673, %v3700
  %s3705 = scalar_lea.vmem %s1, 372
  %v3706 = vld [vmem:[%s3705] sm:$0x7]
  %v3707 = vlaneseq
  %v3708 = vshrl.u32 %v3707, 7
  %v3709 = vsub.s32 0, %v3708
  %v3710 = vrot.slane %v3269, %v3709
  %v3711 = vlaneseq
  %v3712 = vshrl.u32 %v3711, 7
  %v3713 = vsub.s32 0, %v3712
  %v3714 = vrot.slane %v3270, %v3713
  %v3715 = vlaneseq
  %v3716 = vshrl.u32 %v3715, 7
  %v3717 = vsub.s32 0, %v3716
  %v3718 = vrot.slane %v3271, %v3717
  %v3719 = vlaneseq
  %v3720 = vshrl.u32 %v3719, 7
  %v3721 = vsub.s32 0, %v3720
  %v3722 = vrot.slane %v3272, %v3721
  %3724 = vset.pattern.permute.xlu0 0
  %3725 = vperm.xlu0 %3724, %v3706
  %v3726 = vpop.permute.xlu0 %3725
  %v3728 = vmul.f32 %v3710, %v3726
  %v3729 = vmul.f32 %v3714, %v3726
  %v3730 = vmul.f32 %v3718, %v3726
  %v3731 = vmul.f32 %v3722, %v3726
  %v3732 = vadd.f32 %v3701, %v3728
  %v3733 = vadd.f32 %v3702, %v3729
  %v3734 = vadd.f32 %v3703, %v3730
  %v3735 = vadd.f32 %v3704, %v3731
  %s3736 = scalar_lea.vmem %s1, 376
  %v3737 = vld [vmem:[%s3736] sm:$0x7]
  %v3738 = vlaneseq
  %v3739 = vshrl.u32 %v3738, 7
  %v3740 = vsub.s32 1, %v3739
  %v3741 = vrot.slane %v3269, %v3740
  %v3742 = vlaneseq
  %v3743 = vshrl.u32 %v3742, 7
  %v3744 = vsub.s32 1, %v3743
  %v3745 = vrot.slane %v3270, %v3744
  %v3746 = vlaneseq
  %v3747 = vshrl.u32 %v3746, 7
  %v3748 = vsub.s32 1, %v3747
  %v3749 = vrot.slane %v3271, %v3748
  %v3750 = vlaneseq
  %v3751 = vshrl.u32 %v3750, 7
  %v3752 = vsub.s32 1, %v3751
  %v3753 = vrot.slane %v3272, %v3752
  %3755 = vset.pattern.permute.xlu0 0
  %3756 = vperm.xlu0 %3755, %v3737
  %v3757 = vpop.permute.xlu0 %3756
  %v3759 = vmul.f32 %v3741, %v3757
  %v3760 = vmul.f32 %v3745, %v3757
  %v3761 = vmul.f32 %v3749, %v3757
  %v3762 = vmul.f32 %v3753, %v3757
  %v3763 = vadd.f32 %v3732, %v3759
  %v3764 = vadd.f32 %v3733, %v3760
  %v3765 = vadd.f32 %v3734, %v3761
  %v3766 = vadd.f32 %v3735, %v3762
  %s3767 = scalar_lea.vmem %s1, 380
  %v3768 = vld [vmem:[%s3767] sm:$0x7]
  %v3769 = vlaneseq
  %v3770 = vshrl.u32 %v3769, 7
  %v3771 = vsub.s32 2, %v3770
  %v3772 = vrot.slane %v3269, %v3771
  %v3773 = vlaneseq
  %v3774 = vshrl.u32 %v3773, 7
  %v3775 = vsub.s32 2, %v3774
  %v3776 = vrot.slane %v3270, %v3775
  %v3777 = vlaneseq
  %v3778 = vshrl.u32 %v3777, 7
  %v3779 = vsub.s32 2, %v3778
  %v3780 = vrot.slane %v3271, %v3779
  %v3781 = vlaneseq
  %v3782 = vshrl.u32 %v3781, 7
  %v3783 = vsub.s32 2, %v3782
  %v3784 = vrot.slane %v3272, %v3783
  %3786 = vset.pattern.permute.xlu0 0
  %3787 = vperm.xlu0 %3786, %v3768
  %v3788 = vpop.permute.xlu0 %3787
  %v3790 = vmul.f32 %v3772, %v3788
  %v3791 = vmul.f32 %v3776, %v3788
  %v3792 = vmul.f32 %v3780, %v3788
  %v3793 = vmul.f32 %v3784, %v3788
  %v3794 = vadd.f32 %v3763, %v3790
  %v3795 = vadd.f32 %v3764, %v3791
  %v3796 = vadd.f32 %v3765, %v3792
  %v3797 = vadd.f32 %v3766, %v3793
  %3798 = vrot.lane.b32.xlu0 %v3269, 127
  %v3799 = vpop.permute.xlu0 %3798
  %3800 = vrot.lane.b32.xlu0 %v3271, 127
  %v3801 = vpop.permute.xlu0 %3800
  %3802 = vrot.lane.b32.xlu0 %v3270, 127
  %v3803 = vpop.permute.xlu0 %3802
  %3804 = vrot.lane.b32.xlu0 %v3272, 127
  %v3805 = vpop.permute.xlu0 %3804
  %v3806 = vsel %vm657, %v3799, %v3803
  %v3807 = vsel %vm657, %v3801, %v3805
  %v3808 = vsel %vm657, %v3803, %v3799
  %v3809 = vsel %vm657, %v3805, %v3801
  %v3810 = vsel %vm664, %v3806, 0.0
  %v3811 = vsel %vm665, %v3808, 0.0
  %v3812 = vsel %vm664, %v3807, 0.0
  %v3813 = vsel %vm665, %v3809, 0.0
  %s3814 = scalar_lea.vmem %s1, 384
  %v3815 = vld [vmem:[%s3814] sm:$0x7]
  %v3816 = vlaneseq
  %v3817 = vshrl.u32 %v3816, 7
  %v3818 = vsub.s32 0, %v3817
  %v3819 = vrot.slane %v3810, %v3818
  %v3820 = vlaneseq
  %v3821 = vshrl.u32 %v3820, 7
  %v3822 = vsub.s32 0, %v3821
  %v3823 = vrot.slane %v3811, %v3822
  %v3824 = vlaneseq
  %v3825 = vshrl.u32 %v3824, 7
  %v3826 = vsub.s32 0, %v3825
  %v3827 = vrot.slane %v3812, %v3826
  %v3828 = vlaneseq
  %v3829 = vshrl.u32 %v3828, 7
  %v3830 = vsub.s32 0, %v3829
  %v3831 = vrot.slane %v3813, %v3830
  %3833 = vset.pattern.permute.xlu0 0
  %3834 = vperm.xlu0 %3833, %v3815
  %v3835 = vpop.permute.xlu0 %3834
  %v3837 = vmul.f32 %v3819, %v3835
  %v3838 = vmul.f32 %v3823, %v3835
  %v3839 = vmul.f32 %v3827, %v3835
  %v3840 = vmul.f32 %v3831, %v3835
  %v3841 = vadd.f32 %v3794, %v3837
  %v3842 = vadd.f32 %v3795, %v3838
  %v3843 = vadd.f32 %v3796, %v3839
  %v3844 = vadd.f32 %v3797, %v3840
  %s3845 = scalar_lea.vmem %s1, 388
  %v3846 = vld [vmem:[%s3845] sm:$0x7]
  %v3847 = vlaneseq
  %v3848 = vshrl.u32 %v3847, 7
  %v3849 = vsub.s32 1, %v3848
  %v3850 = vrot.slane %v3810, %v3849
  %v3851 = vlaneseq
  %v3852 = vshrl.u32 %v3851, 7
  %v3853 = vsub.s32 1, %v3852
  %v3854 = vrot.slane %v3811, %v3853
  %v3855 = vlaneseq
  %v3856 = vshrl.u32 %v3855, 7
  %v3857 = vsub.s32 1, %v3856
  %v3858 = vrot.slane %v3812, %v3857
  %v3859 = vlaneseq
  %v3860 = vshrl.u32 %v3859, 7
  %v3861 = vsub.s32 1, %v3860
  %v3862 = vrot.slane %v3813, %v3861
  %3864 = vset.pattern.permute.xlu0 0
  %3865 = vperm.xlu0 %3864, %v3846
  %v3866 = vpop.permute.xlu0 %3865
  %v3868 = vmul.f32 %v3850, %v3866
  %v3869 = vmul.f32 %v3854, %v3866
  %v3870 = vmul.f32 %v3858, %v3866
  %v3871 = vmul.f32 %v3862, %v3866
  %v3872 = vadd.f32 %v3841, %v3868
  %v3873 = vadd.f32 %v3842, %v3869
  %v3874 = vadd.f32 %v3843, %v3870
  %v3875 = vadd.f32 %v3844, %v3871
  %s3876 = scalar_lea.vmem %s1, 392
  %v3877 = vld [vmem:[%s3876] sm:$0x7]
  %v3878 = vlaneseq
  %v3879 = vshrl.u32 %v3878, 7
  %v3880 = vsub.s32 2, %v3879
  %v3881 = vrot.slane %v3810, %v3880
  %v3882 = vlaneseq
  %v3883 = vshrl.u32 %v3882, 7
  %v3884 = vsub.s32 2, %v3883
  %v3885 = vrot.slane %v3811, %v3884
  %v3886 = vlaneseq
  %v3887 = vshrl.u32 %v3886, 7
  %v3888 = vsub.s32 2, %v3887
  %v3889 = vrot.slane %v3812, %v3888
  %v3890 = vlaneseq
  %v3891 = vshrl.u32 %v3890, 7
  %v3892 = vsub.s32 2, %v3891
  %v3893 = vrot.slane %v3813, %v3892
  %3895 = vset.pattern.permute.xlu0 0
  %3896 = vperm.xlu0 %3895, %v3877
  %v3897 = vpop.permute.xlu0 %3896
  %v3899 = vmul.f32 %v3881, %v3897
  %v3900 = vmul.f32 %v3885, %v3897
  %v3901 = vmul.f32 %v3889, %v3897
  %v3902 = vmul.f32 %v3893, %v3897
  %v3903 = vadd.f32 %v3872, %v3899
  %v3904 = vadd.f32 %v3873, %v3900
  %v3905 = vadd.f32 %v3874, %v3901
  %v3906 = vadd.f32 %v3875, %v3902
  %3907 = vrot.lane.b32.xlu0 %v3269, 113
  %v3908 = vpop.permute.xlu0 %3907
  %3909 = vrot.lane.b32.xlu0 %v3271, 113
  %v3910 = vpop.permute.xlu0 %3909
  %3911 = vrot.lane.b32.xlu0 %v3270, 113
  %v3912 = vpop.permute.xlu0 %3911
  %3913 = vrot.lane.b32.xlu0 %v3272, 113
  %v3914 = vpop.permute.xlu0 %3913
  %v3915 = vsel %vm771, %v3908, %v3912
  %v3916 = vsel %vm771, %v3910, %v3914
  %v3917 = vsel %vm771, %v3912, %v3908
  %v3918 = vsel %vm771, %v3914, %v3910
  %v3919 = vsel %vm780, %v3915, 0.0
  %v3920 = vsel %vm781, %v3917, 0.0
  %v3921 = vsel %vm780, %v3916, 0.0
  %v3922 = vsel %vm781, %v3918, 0.0
  %s3923 = scalar_lea.vmem %s1, 396
  %v3924 = vld [vmem:[%s3923] sm:$0x7]
  %v3925 = vlaneseq
  %v3926 = vshrl.u32 %v3925, 7
  %v3927 = vsub.s32 0, %v3926
  %v3928 = vrot.slane %v3919, %v3927
  %v3929 = vlaneseq
  %v3930 = vshrl.u32 %v3929, 7
  %v3931 = vsub.s32 0, %v3930
  %v3932 = vrot.slane %v3920, %v3931
  %v3933 = vlaneseq
  %v3934 = vshrl.u32 %v3933, 7
  %v3935 = vsub.s32 0, %v3934
  %v3936 = vrot.slane %v3921, %v3935
  %v3937 = vlaneseq
  %v3938 = vshrl.u32 %v3937, 7
  %v3939 = vsub.s32 0, %v3938
  %v3940 = vrot.slane %v3922, %v3939
  %3942 = vset.pattern.permute.xlu0 0
  %3943 = vperm.xlu0 %3942, %v3924
  %v3944 = vpop.permute.xlu0 %3943
  %v3946 = vmul.f32 %v3928, %v3944
  %v3947 = vmul.f32 %v3932, %v3944
  %v3948 = vmul.f32 %v3936, %v3944
  %v3949 = vmul.f32 %v3940, %v3944
  %v3950 = vadd.f32 %v3903, %v3946
  %v3951 = vadd.f32 %v3904, %v3947
  %v3952 = vadd.f32 %v3905, %v3948
  %v3953 = vadd.f32 %v3906, %v3949
  %s3954 = scalar_lea.vmem %s1, 400
  %v3955 = vld [vmem:[%s3954] sm:$0x7]
  %v3956 = vlaneseq
  %v3957 = vshrl.u32 %v3956, 7
  %v3958 = vsub.s32 1, %v3957
  %v3959 = vrot.slane %v3919, %v3958
  %v3960 = vlaneseq
  %v3961 = vshrl.u32 %v3960, 7
  %v3962 = vsub.s32 1, %v3961
  %v3963 = vrot.slane %v3920, %v3962
  %v3964 = vlaneseq
  %v3965 = vshrl.u32 %v3964, 7
  %v3966 = vsub.s32 1, %v3965
  %v3967 = vrot.slane %v3921, %v3966
  %v3968 = vlaneseq
  %v3969 = vshrl.u32 %v3968, 7
  %v3970 = vsub.s32 1, %v3969
  %v3971 = vrot.slane %v3922, %v3970
  %3973 = vset.pattern.permute.xlu0 0
  %3974 = vperm.xlu0 %3973, %v3955
  %v3975 = vpop.permute.xlu0 %3974
  %v3977 = vmul.f32 %v3959, %v3975
  %v3978 = vmul.f32 %v3963, %v3975
  %v3979 = vmul.f32 %v3967, %v3975
  %v3980 = vmul.f32 %v3971, %v3975
  %v3981 = vadd.f32 %v3950, %v3977
  %v3982 = vadd.f32 %v3951, %v3978
  %v3983 = vadd.f32 %v3952, %v3979
  %v3984 = vadd.f32 %v3953, %v3980
  %s3985 = scalar_lea.vmem %s1, 404
  %v3986 = vld [vmem:[%s3985] sm:$0x7]
  %v3987 = vlaneseq
  %v3988 = vshrl.u32 %v3987, 7
  %v3989 = vsub.s32 2, %v3988
  %v3990 = vrot.slane %v3919, %v3989
  %v3991 = vlaneseq
  %v3992 = vshrl.u32 %v3991, 7
  %v3993 = vsub.s32 2, %v3992
  %v3994 = vrot.slane %v3920, %v3993
  %v3995 = vlaneseq
  %v3996 = vshrl.u32 %v3995, 7
  %v3997 = vsub.s32 2, %v3996
  %v3998 = vrot.slane %v3921, %v3997
  %v3999 = vlaneseq
  %v4000 = vshrl.u32 %v3999, 7
  %v4001 = vsub.s32 2, %v4000
  %v4002 = vrot.slane %v3922, %v4001
  %4004 = vset.pattern.permute.xlu0 0
  %4005 = vperm.xlu0 %4004, %v3986
  %v4006 = vpop.permute.xlu0 %4005
  %v4008 = vmul.f32 %v3990, %v4006
  %v4009 = vmul.f32 %v3994, %v4006
  %v4010 = vmul.f32 %v3998, %v4006
  %v4011 = vmul.f32 %v4002, %v4006
  %v4012 = vadd.f32 %v3981, %v4008
  %v4013 = vadd.f32 %v3982, %v4009
  %v4014 = vadd.f32 %v3983, %v4010
  %v4015 = vadd.f32 %v3984, %v4011
  %4016 = vrot.lane.b32.xlu0 %v3269, 112
  %v4017 = vpop.permute.xlu0 %4016
  %4018 = vrot.lane.b32.xlu0 %v3271, 112
  %v4019 = vpop.permute.xlu0 %4018
  %4020 = vrot.lane.b32.xlu0 %v3270, 112
  %v4021 = vpop.permute.xlu0 %4020
  %4022 = vrot.lane.b32.xlu0 %v3272, 112
  %v4023 = vpop.permute.xlu0 %4022
  %v4024 = vsel %vm887, %v4017, %v4021
  %v4025 = vsel %vm887, %v4019, %v4023
  %v4026 = vsel %vm887, %v4021, %v4017
  %v4027 = vsel %vm887, %v4023, %v4019
  %v4028 = vsel %vm894, %v4024, 0.0
  %v4029 = vsel %vm895, %v4026, 0.0
  %v4030 = vsel %vm894, %v4025, 0.0
  %v4031 = vsel %vm895, %v4027, 0.0
  %s4032 = scalar_lea.vmem %s1, 408
  %v4033 = vld [vmem:[%s4032] sm:$0x7]
  %v4034 = vlaneseq
  %v4035 = vshrl.u32 %v4034, 7
  %v4036 = vsub.s32 0, %v4035
  %v4037 = vrot.slane %v4028, %v4036
  %v4038 = vlaneseq
  %v4039 = vshrl.u32 %v4038, 7
  %v4040 = vsub.s32 0, %v4039
  %v4041 = vrot.slane %v4029, %v4040
  %v4042 = vlaneseq
  %v4043 = vshrl.u32 %v4042, 7
  %v4044 = vsub.s32 0, %v4043
  %v4045 = vrot.slane %v4030, %v4044
  %v4046 = vlaneseq
  %v4047 = vshrl.u32 %v4046, 7
  %v4048 = vsub.s32 0, %v4047
  %v4049 = vrot.slane %v4031, %v4048
  %4051 = vset.pattern.permute.xlu0 0
  %4052 = vperm.xlu0 %4051, %v4033
  %v4053 = vpop.permute.xlu0 %4052
  %v4055 = vmul.f32 %v4037, %v4053
  %v4056 = vmul.f32 %v4041, %v4053
  %v4057 = vmul.f32 %v4045, %v4053
  %v4058 = vmul.f32 %v4049, %v4053
  %v4059 = vadd.f32 %v4012, %v4055
  %v4060 = vadd.f32 %v4013, %v4056
  %v4061 = vadd.f32 %v4014, %v4057
  %v4062 = vadd.f32 %v4015, %v4058
  %s4063 = scalar_lea.vmem %s1, 412
  %v4064 = vld [vmem:[%s4063] sm:$0x7]
  %v4065 = vlaneseq
  %v4066 = vshrl.u32 %v4065, 7
  %v4067 = vsub.s32 1, %v4066
  %v4068 = vrot.slane %v4028, %v4067
  %v4069 = vlaneseq
  %v4070 = vshrl.u32 %v4069, 7
  %v4071 = vsub.s32 1, %v4070
  %v4072 = vrot.slane %v4029, %v4071
  %v4073 = vlaneseq
  %v4074 = vshrl.u32 %v4073, 7
  %v4075 = vsub.s32 1, %v4074
  %v4076 = vrot.slane %v4030, %v4075
  %v4077 = vlaneseq
  %v4078 = vshrl.u32 %v4077, 7
  %v4079 = vsub.s32 1, %v4078
  %v4080 = vrot.slane %v4031, %v4079
  %4082 = vset.pattern.permute.xlu0 0
  %4083 = vperm.xlu0 %4082, %v4064
  %v4084 = vpop.permute.xlu0 %4083
  %v4086 = vmul.f32 %v4068, %v4084
  %v4087 = vmul.f32 %v4072, %v4084
  %v4088 = vmul.f32 %v4076, %v4084
  %v4089 = vmul.f32 %v4080, %v4084
  %v4090 = vadd.f32 %v4059, %v4086
  %v4091 = vadd.f32 %v4060, %v4087
  %v4092 = vadd.f32 %v4061, %v4088
  %v4093 = vadd.f32 %v4062, %v4089
  %s4094 = scalar_lea.vmem %s1, 416
  %v4095 = vld [vmem:[%s4094] sm:$0x7]
  %v4096 = vlaneseq
  %v4097 = vshrl.u32 %v4096, 7
  %v4098 = vsub.s32 2, %v4097
  %v4099 = vrot.slane %v4028, %v4098
  %v4100 = vlaneseq
  %v4101 = vshrl.u32 %v4100, 7
  %v4102 = vsub.s32 2, %v4101
  %v4103 = vrot.slane %v4029, %v4102
  %v4104 = vlaneseq
  %v4105 = vshrl.u32 %v4104, 7
  %v4106 = vsub.s32 2, %v4105
  %v4107 = vrot.slane %v4030, %v4106
  %v4108 = vlaneseq
  %v4109 = vshrl.u32 %v4108, 7
  %v4110 = vsub.s32 2, %v4109
  %v4111 = vrot.slane %v4031, %v4110
  %4113 = vset.pattern.permute.xlu0 0
  %4114 = vperm.xlu0 %4113, %v4095
  %v4115 = vpop.permute.xlu0 %4114
  %v4117 = vmul.f32 %v4099, %v4115
  %v4118 = vmul.f32 %v4103, %v4115
  %v4119 = vmul.f32 %v4107, %v4115
  %v4120 = vmul.f32 %v4111, %v4115
  %v4121 = vadd.f32 %v4090, %v4117
  %v4122 = vadd.f32 %v4091, %v4118
  %v4123 = vadd.f32 %v4092, %v4119
  %v4124 = vadd.f32 %v4093, %v4120
  %4125 = vrot.lane.b32.xlu0 %v3269, 111
  %v4126 = vpop.permute.xlu0 %4125
  %4127 = vrot.lane.b32.xlu0 %v3271, 111
  %v4128 = vpop.permute.xlu0 %4127
  %4129 = vrot.lane.b32.xlu0 %v3270, 111
  %v4130 = vpop.permute.xlu0 %4129
  %4131 = vrot.lane.b32.xlu0 %v3272, 111
  %v4132 = vpop.permute.xlu0 %4131
  %v4133 = vsel %vm1001, %v4126, %v4130
  %v4134 = vsel %vm1001, %v4128, %v4132
  %v4135 = vsel %vm1001, %v4130, %v4126
  %v4136 = vsel %vm1001, %v4132, %v4128
  %v4137 = vsel %vm1010, %v4133, 0.0
  %v4138 = vsel %vm1011, %v4135, 0.0
  %v4139 = vsel %vm1010, %v4134, 0.0
  %v4140 = vsel %vm1011, %v4136, 0.0
  %s4141 = scalar_lea.vmem %s1, 420
  %v4142 = vld [vmem:[%s4141] sm:$0x7]
  %v4143 = vlaneseq
  %v4144 = vshrl.u32 %v4143, 7
  %v4145 = vsub.s32 0, %v4144
  %v4146 = vrot.slane %v4137, %v4145
  %v4147 = vlaneseq
  %v4148 = vshrl.u32 %v4147, 7
  %v4149 = vsub.s32 0, %v4148
  %v4150 = vrot.slane %v4138, %v4149
  %v4151 = vlaneseq
  %v4152 = vshrl.u32 %v4151, 7
  %v4153 = vsub.s32 0, %v4152
  %v4154 = vrot.slane %v4139, %v4153
  %v4155 = vlaneseq
  %v4156 = vshrl.u32 %v4155, 7
  %v4157 = vsub.s32 0, %v4156
  %v4158 = vrot.slane %v4140, %v4157
  %4160 = vset.pattern.permute.xlu0 0
  %4161 = vperm.xlu0 %4160, %v4142
  %v4162 = vpop.permute.xlu0 %4161
  %v4164 = vmul.f32 %v4146, %v4162
  %v4165 = vmul.f32 %v4150, %v4162
  %v4166 = vmul.f32 %v4154, %v4162
  %v4167 = vmul.f32 %v4158, %v4162
  %v4168 = vadd.f32 %v4121, %v4164
  %v4169 = vadd.f32 %v4122, %v4165
  %v4170 = vadd.f32 %v4123, %v4166
  %v4171 = vadd.f32 %v4124, %v4167
  %s4172 = scalar_lea.vmem %s1, 424
  %v4173 = vld [vmem:[%s4172] sm:$0x7]
  %v4174 = vlaneseq
  %v4175 = vshrl.u32 %v4174, 7
  %v4176 = vsub.s32 1, %v4175
  %v4177 = vrot.slane %v4137, %v4176
  %v4178 = vlaneseq
  %v4179 = vshrl.u32 %v4178, 7
  %v4180 = vsub.s32 1, %v4179
  %v4181 = vrot.slane %v4138, %v4180
  %v4182 = vlaneseq
  %v4183 = vshrl.u32 %v4182, 7
  %v4184 = vsub.s32 1, %v4183
  %v4185 = vrot.slane %v4139, %v4184
  %v4186 = vlaneseq
  %v4187 = vshrl.u32 %v4186, 7
  %v4188 = vsub.s32 1, %v4187
  %v4189 = vrot.slane %v4140, %v4188
  %4191 = vset.pattern.permute.xlu0 0
  %4192 = vperm.xlu0 %4191, %v4173
  %v4193 = vpop.permute.xlu0 %4192
  %v4195 = vmul.f32 %v4177, %v4193
  %v4196 = vmul.f32 %v4181, %v4193
  %v4197 = vmul.f32 %v4185, %v4193
  %v4198 = vmul.f32 %v4189, %v4193
  %v4199 = vadd.f32 %v4168, %v4195
  %v4200 = vadd.f32 %v4169, %v4196
  %v4201 = vadd.f32 %v4170, %v4197
  %v4202 = vadd.f32 %v4171, %v4198
  %s4203 = scalar_lea.vmem %s1, 428
  %v4204 = vld [vmem:[%s4203] sm:$0x7]
  %v4205 = vlaneseq
  %v4206 = vshrl.u32 %v4205, 7
  %v4207 = vsub.s32 2, %v4206
  %v4208 = vrot.slane %v4137, %v4207
  %v4209 = vlaneseq
  %v4210 = vshrl.u32 %v4209, 7
  %v4211 = vsub.s32 2, %v4210
  %v4212 = vrot.slane %v4138, %v4211
  %v4213 = vlaneseq
  %v4214 = vshrl.u32 %v4213, 7
  %v4215 = vsub.s32 2, %v4214
  %v4216 = vrot.slane %v4139, %v4215
  %v4217 = vlaneseq
  %v4218 = vshrl.u32 %v4217, 7
  %v4219 = vsub.s32 2, %v4218
  %v4220 = vrot.slane %v4140, %v4219
  %4222 = vset.pattern.permute.xlu0 0
  %4223 = vperm.xlu0 %4222, %v4204
  %v4224 = vpop.permute.xlu0 %4223
  %v4226 = vmul.f32 %v4208, %v4224
  %v4227 = vmul.f32 %v4212, %v4224
  %v4228 = vmul.f32 %v4216, %v4224
  %v4229 = vmul.f32 %v4220, %v4224
  %v4230 = vadd.f32 %v4199, %v4226
  %v4231 = vadd.f32 %v4200, %v4227
  %v4232 = vadd.f32 %v4201, %v4228
  %v4233 = vadd.f32 %v4202, %v4229
  %s4234 = scalar_lea.vmem %s2, 12
  %v4235 = vld [vmem:[%s4234] sm:$0x7]
  %4237 = vset.pattern.permute.xlu0 0
  %4238 = vperm.xlu0 %4237, %v4235
  %v4239 = vpop.permute.xlu0 %4238
  %v4241 = vadd.f32 %v4230, %v4239
  %v4242 = vadd.f32 %v4231, %v4239
  %v4243 = vadd.f32 %v4232, %v4239
  %v4244 = vadd.f32 %v4233, %v4239
  %v4245 = vmul.f32 %v4241, %v4241
  %v4246 = vmul.f32 %v4242, %v4242
  %v4247 = vmul.f32 %v4243, %v4243
  %v4248 = vmul.f32 %v4244, %v4244
  %v4253 = vrot.slane %v4245, 5
  %v4254 = vrot.slane %v4246, 5
  %v4255 = vrot.slane %v4247, 5
  %v4256 = vrot.slane %v4248, 5
  %v4261 = vsel %vm1135, %v4241, %v4253
  %v4262 = vsel %vm1135, %v4242, %v4254
  %v4263 = vsel %vm1135, %v4243, %v4255
  %v4264 = vsel %vm1135, %v4244, %v4256
  %v4265 = vsel %vm1140, %v4261, 0.0
  %v4266 = vsel %vm1140, %v4262, 0.0
  %v4267 = vadd.f32 %v4265, %v4266
  %4268 = vadd.xlane.f32.xlu0 %v4267
  %v4269 = vpop.xlane.xlu0 %4268
  %v4270 = vsel %vm1140, %v4263, 0.0
  %v4271 = vsel %vm1140, %v4264, 0.0
  %v4272 = vadd.f32 %v4270, %v4271
  %4273 = vadd.xlane.f32.xlu0 %v4272
  %v4274 = vpop.xlane.xlu0 %4273
  %v4275 = vsel %vm1140, %v4269, 0.0
  %v4276 = vsel %vm1140, %v4274, 0.0
  %v4277 = vadd.f32 %v4275, %v4276
  %v4278 = vmul.f32 %v4277, 0.001953125
  %v4279 = vmul.f32 %v4278, %v4278
  %v4281 = vrot.slane %v4279, 5
  %v4283 = vsub.f32 %v4278, %v4281
  %v4284 = vmax.f32 %v4283, 0.0
  %s4285 = scalar_lea.vmem %s3, 12
  %v4286 = vld [vmem:[%s4285] sm:$0x7]
  %v4287 = vadd.f32 %v4284, 1e-05
  %v4288 = vrsqrt.pop %v4287
  %v4290 = vrot.slane %v4288, 3
  %v4292 = vmul.f32 %v4286, %v4290
  %s4293 = scalar_lea.vmem %s4, 12
  %v4294 = vld [vmem:[%s4293] sm:$0x7]
  %v4295 = vmul.f32 %v4278, %v4292
  %v4296 = vsub.f32 %v4294, %v4295
  %4298 = vset.pattern.permute.xlu0 0
  %4299 = vperm.xlu0 %4298, %v4292
  %v4300 = vpop.permute.xlu0 %4299
  %v4302 = vmul.f32 %v4241, %v4300
  %v4303 = vmul.f32 %v4242, %v4300
  %v4304 = vmul.f32 %v4243, %v4300
  %v4305 = vmul.f32 %v4244, %v4300
  %4307 = vset.pattern.permute.xlu0 0
  %4308 = vperm.xlu0 %4307, %v4296
  %v4309 = vpop.permute.xlu0 %4308
  %v4311 = vadd.f32 %v4302, %v4309
  %v4312 = vadd.f32 %v4303, %v4309
  %v4313 = vadd.f32 %v4304, %v4309
  %v4314 = vadd.f32 %v4305, %v4309
  %4315 = vrot.lane.b32.xlu0 %v4311, 17
  %v4316 = vpop.permute.xlu0 %4315
  %4317 = vrot.lane.b32.xlu0 %v4313, 17
  %v4318 = vpop.permute.xlu0 %4317
  %4319 = vrot.lane.b32.xlu0 %v4312, 17
  %v4320 = vpop.permute.xlu0 %4319
  %4321 = vrot.lane.b32.xlu0 %v4314, 17
  %v4322 = vpop.permute.xlu0 %4321
  %v4323 = vsel %vm49, %v4316, %v4320
  %v4324 = vsel %vm49, %v4318, %v4322
  %v4325 = vsel %vm49, %v4320, %v4316
  %v4326 = vsel %vm49, %v4322, %v4318
  %v4327 = vsel %vm58, %v4325, 0.0
  %v4328 = vsel %vm59, %v4323, 0.0
  %v4329 = vsel %vm58, %v4326, 0.0
  %v4330 = vsel %vm59, %v4324, 0.0
  %s4331 = scalar_lea.vmem %s1, 432
  %v4332 = vld [vmem:[%s4331] sm:$0x7]
  %v4333 = vlaneseq
  %v4334 = vshrl.u32 %v4333, 7
  %v4335 = vsub.s32 0, %v4334
  %v4336 = vrot.slane %v4327, %v4335
  %v4337 = vlaneseq
  %v4338 = vshrl.u32 %v4337, 7
  %v4339 = vsub.s32 0, %v4338
  %v4340 = vrot.slane %v4328, %v4339
  %v4341 = vlaneseq
  %v4342 = vshrl.u32 %v4341, 7
  %v4343 = vsub.s32 0, %v4342
  %v4344 = vrot.slane %v4329, %v4343
  %v4345 = vlaneseq
  %v4346 = vshrl.u32 %v4345, 7
  %v4347 = vsub.s32 0, %v4346
  %v4348 = vrot.slane %v4330, %v4347
  %4350 = vset.pattern.permute.xlu0 0
  %4351 = vperm.xlu0 %4350, %v4332
  %v4352 = vpop.permute.xlu0 %4351
  %v4354 = vmul.f32 %v4336, %v4352
  %v4355 = vmul.f32 %v4340, %v4352
  %v4356 = vmul.f32 %v4344, %v4352
  %v4357 = vmul.f32 %v4348, %v4352
  %s4358 = scalar_lea.vmem %s1, 436
  %v4359 = vld [vmem:[%s4358] sm:$0x7]
  %v4360 = vlaneseq
  %v4361 = vshrl.u32 %v4360, 7
  %v4362 = vsub.s32 1, %v4361
  %v4363 = vrot.slane %v4327, %v4362
  %v4364 = vlaneseq
  %v4365 = vshrl.u32 %v4364, 7
  %v4366 = vsub.s32 1, %v4365
  %v4367 = vrot.slane %v4328, %v4366
  %v4368 = vlaneseq
  %v4369 = vshrl.u32 %v4368, 7
  %v4370 = vsub.s32 1, %v4369
  %v4371 = vrot.slane %v4329, %v4370
  %v4372 = vlaneseq
  %v4373 = vshrl.u32 %v4372, 7
  %v4374 = vsub.s32 1, %v4373
  %v4375 = vrot.slane %v4330, %v4374
  %4377 = vset.pattern.permute.xlu0 0
  %4378 = vperm.xlu0 %4377, %v4359
  %v4379 = vpop.permute.xlu0 %4378
  %v4381 = vmul.f32 %v4363, %v4379
  %v4382 = vmul.f32 %v4367, %v4379
  %v4383 = vmul.f32 %v4371, %v4379
  %v4384 = vmul.f32 %v4375, %v4379
  %v4385 = vadd.f32 %v4354, %v4381
  %v4386 = vadd.f32 %v4355, %v4382
  %v4387 = vadd.f32 %v4356, %v4383
  %v4388 = vadd.f32 %v4357, %v4384
  %s4389 = scalar_lea.vmem %s1, 440
  %v4390 = vld [vmem:[%s4389] sm:$0x7]
  %v4391 = vlaneseq
  %v4392 = vshrl.u32 %v4391, 7
  %v4393 = vsub.s32 2, %v4392
  %v4394 = vrot.slane %v4327, %v4393
  %v4395 = vlaneseq
  %v4396 = vshrl.u32 %v4395, 7
  %v4397 = vsub.s32 2, %v4396
  %v4398 = vrot.slane %v4328, %v4397
  %v4399 = vlaneseq
  %v4400 = vshrl.u32 %v4399, 7
  %v4401 = vsub.s32 2, %v4400
  %v4402 = vrot.slane %v4329, %v4401
  %v4403 = vlaneseq
  %v4404 = vshrl.u32 %v4403, 7
  %v4405 = vsub.s32 2, %v4404
  %v4406 = vrot.slane %v4330, %v4405
  %4408 = vset.pattern.permute.xlu0 0
  %4409 = vperm.xlu0 %4408, %v4390
  %v4410 = vpop.permute.xlu0 %4409
  %v4412 = vmul.f32 %v4394, %v4410
  %v4413 = vmul.f32 %v4398, %v4410
  %v4414 = vmul.f32 %v4402, %v4410
  %v4415 = vmul.f32 %v4406, %v4410
  %v4416 = vadd.f32 %v4385, %v4412
  %v4417 = vadd.f32 %v4386, %v4413
  %v4418 = vadd.f32 %v4387, %v4414
  %v4419 = vadd.f32 %v4388, %v4415
  %4420 = vrot.lane.b32.xlu0 %v4311, 16
  %v4421 = vpop.permute.xlu0 %4420
  %4422 = vrot.lane.b32.xlu0 %v4313, 16
  %v4423 = vpop.permute.xlu0 %4422
  %4424 = vrot.lane.b32.xlu0 %v4312, 16
  %v4425 = vpop.permute.xlu0 %4424
  %4426 = vrot.lane.b32.xlu0 %v4314, 16
  %v4427 = vpop.permute.xlu0 %4426
  %v4428 = vsel %vm160, %v4421, %v4425
  %v4429 = vsel %vm160, %v4423, %v4427
  %v4430 = vsel %vm160, %v4425, %v4421
  %v4431 = vsel %vm160, %v4427, %v4423
  %v4432 = vsel %vm167, %v4430, 0.0
  %v4433 = vsel %vm168, %v4428, 0.0
  %v4434 = vsel %vm167, %v4431, 0.0
  %v4435 = vsel %vm168, %v4429, 0.0
  %s4436 = scalar_lea.vmem %s1, 444
  %v4437 = vld [vmem:[%s4436] sm:$0x7]
  %v4438 = vlaneseq
  %v4439 = vshrl.u32 %v4438, 7
  %v4440 = vsub.s32 0, %v4439
  %v4441 = vrot.slane %v4432, %v4440
  %v4442 = vlaneseq
  %v4443 = vshrl.u32 %v4442, 7
  %v4444 = vsub.s32 0, %v4443
  %v4445 = vrot.slane %v4433, %v4444
  %v4446 = vlaneseq
  %v4447 = vshrl.u32 %v4446, 7
  %v4448 = vsub.s32 0, %v4447
  %v4449 = vrot.slane %v4434, %v4448
  %v4450 = vlaneseq
  %v4451 = vshrl.u32 %v4450, 7
  %v4452 = vsub.s32 0, %v4451
  %v4453 = vrot.slane %v4435, %v4452
  %4455 = vset.pattern.permute.xlu0 0
  %4456 = vperm.xlu0 %4455, %v4437
  %v4457 = vpop.permute.xlu0 %4456
  %v4459 = vmul.f32 %v4441, %v4457
  %v4460 = vmul.f32 %v4445, %v4457
  %v4461 = vmul.f32 %v4449, %v4457
  %v4462 = vmul.f32 %v4453, %v4457
  %v4463 = vadd.f32 %v4416, %v4459
  %v4464 = vadd.f32 %v4417, %v4460
  %v4465 = vadd.f32 %v4418, %v4461
  %v4466 = vadd.f32 %v4419, %v4462
  %s4467 = scalar_lea.vmem %s1, 448
  %v4468 = vld [vmem:[%s4467] sm:$0x7]
  %v4469 = vlaneseq
  %v4470 = vshrl.u32 %v4469, 7
  %v4471 = vsub.s32 1, %v4470
  %v4472 = vrot.slane %v4432, %v4471
  %v4473 = vlaneseq
  %v4474 = vshrl.u32 %v4473, 7
  %v4475 = vsub.s32 1, %v4474
  %v4476 = vrot.slane %v4433, %v4475
  %v4477 = vlaneseq
  %v4478 = vshrl.u32 %v4477, 7
  %v4479 = vsub.s32 1, %v4478
  %v4480 = vrot.slane %v4434, %v4479
  %v4481 = vlaneseq
  %v4482 = vshrl.u32 %v4481, 7
  %v4483 = vsub.s32 1, %v4482
  %v4484 = vrot.slane %v4435, %v4483
  %4486 = vset.pattern.permute.xlu0 0
  %4487 = vperm.xlu0 %4486, %v4468
  %v4488 = vpop.permute.xlu0 %4487
  %v4490 = vmul.f32 %v4472, %v4488
  %v4491 = vmul.f32 %v4476, %v4488
  %v4492 = vmul.f32 %v4480, %v4488
  %v4493 = vmul.f32 %v4484, %v4488
  %v4494 = vadd.f32 %v4463, %v4490
  %v4495 = vadd.f32 %v4464, %v4491
  %v4496 = vadd.f32 %v4465, %v4492
  %v4497 = vadd.f32 %v4466, %v4493
  %s4498 = scalar_lea.vmem %s1, 452
  %v4499 = vld [vmem:[%s4498] sm:$0x7]
  %v4500 = vlaneseq
  %v4501 = vshrl.u32 %v4500, 7
  %v4502 = vsub.s32 2, %v4501
  %v4503 = vrot.slane %v4432, %v4502
  %v4504 = vlaneseq
  %v4505 = vshrl.u32 %v4504, 7
  %v4506 = vsub.s32 2, %v4505
  %v4507 = vrot.slane %v4433, %v4506
  %v4508 = vlaneseq
  %v4509 = vshrl.u32 %v4508, 7
  %v4510 = vsub.s32 2, %v4509
  %v4511 = vrot.slane %v4434, %v4510
  %v4512 = vlaneseq
  %v4513 = vshrl.u32 %v4512, 7
  %v4514 = vsub.s32 2, %v4513
  %v4515 = vrot.slane %v4435, %v4514
  %4517 = vset.pattern.permute.xlu0 0
  %4518 = vperm.xlu0 %4517, %v4499
  %v4519 = vpop.permute.xlu0 %4518
  %v4521 = vmul.f32 %v4503, %v4519
  %v4522 = vmul.f32 %v4507, %v4519
  %v4523 = vmul.f32 %v4511, %v4519
  %v4524 = vmul.f32 %v4515, %v4519
  %v4525 = vadd.f32 %v4494, %v4521
  %v4526 = vadd.f32 %v4495, %v4522
  %v4527 = vadd.f32 %v4496, %v4523
  %v4528 = vadd.f32 %v4497, %v4524
  %4529 = vrot.lane.b32.xlu0 %v4311, 15
  %v4530 = vpop.permute.xlu0 %4529
  %4531 = vrot.lane.b32.xlu0 %v4313, 15
  %v4532 = vpop.permute.xlu0 %4531
  %4533 = vrot.lane.b32.xlu0 %v4312, 15
  %v4534 = vpop.permute.xlu0 %4533
  %4535 = vrot.lane.b32.xlu0 %v4314, 15
  %v4536 = vpop.permute.xlu0 %4535
  %v4537 = vsel %vm274, %v4530, %v4534
  %v4538 = vsel %vm274, %v4532, %v4536
  %v4539 = vsel %vm274, %v4534, %v4530
  %v4540 = vsel %vm274, %v4536, %v4532
  %v4541 = vsel %vm283, %v4539, 0.0
  %v4542 = vsel %vm284, %v4537, 0.0
  %v4543 = vsel %vm283, %v4540, 0.0
  %v4544 = vsel %vm284, %v4538, 0.0
  %s4545 = scalar_lea.vmem %s1, 456
  %v4546 = vld [vmem:[%s4545] sm:$0x7]
  %v4547 = vlaneseq
  %v4548 = vshrl.u32 %v4547, 7
  %v4549 = vsub.s32 0, %v4548
  %v4550 = vrot.slane %v4541, %v4549
  %v4551 = vlaneseq
  %v4552 = vshrl.u32 %v4551, 7
  %v4553 = vsub.s32 0, %v4552
  %v4554 = vrot.slane %v4542, %v4553
  %v4555 = vlaneseq
  %v4556 = vshrl.u32 %v4555, 7
  %v4557 = vsub.s32 0, %v4556
  %v4558 = vrot.slane %v4543, %v4557
  %v4559 = vlaneseq
  %v4560 = vshrl.u32 %v4559, 7
  %v4561 = vsub.s32 0, %v4560
  %v4562 = vrot.slane %v4544, %v4561
  %4564 = vset.pattern.permute.xlu0 0
  %4565 = vperm.xlu0 %4564, %v4546
  %v4566 = vpop.permute.xlu0 %4565
  %v4568 = vmul.f32 %v4550, %v4566
  %v4569 = vmul.f32 %v4554, %v4566
  %v4570 = vmul.f32 %v4558, %v4566
  %v4571 = vmul.f32 %v4562, %v4566
  %v4572 = vadd.f32 %v4525, %v4568
  %v4573 = vadd.f32 %v4526, %v4569
  %v4574 = vadd.f32 %v4527, %v4570
  %v4575 = vadd.f32 %v4528, %v4571
  %s4576 = scalar_lea.vmem %s1, 460
  %v4577 = vld [vmem:[%s4576] sm:$0x7]
  %v4578 = vlaneseq
  %v4579 = vshrl.u32 %v4578, 7
  %v4580 = vsub.s32 1, %v4579
  %v4581 = vrot.slane %v4541, %v4580
  %v4582 = vlaneseq
  %v4583 = vshrl.u32 %v4582, 7
  %v4584 = vsub.s32 1, %v4583
  %v4585 = vrot.slane %v4542, %v4584
  %v4586 = vlaneseq
  %v4587 = vshrl.u32 %v4586, 7
  %v4588 = vsub.s32 1, %v4587
  %v4589 = vrot.slane %v4543, %v4588
  %v4590 = vlaneseq
  %v4591 = vshrl.u32 %v4590, 7
  %v4592 = vsub.s32 1, %v4591
  %v4593 = vrot.slane %v4544, %v4592
  %4595 = vset.pattern.permute.xlu0 0
  %4596 = vperm.xlu0 %4595, %v4577
  %v4597 = vpop.permute.xlu0 %4596
  %v4599 = vmul.f32 %v4581, %v4597
  %v4600 = vmul.f32 %v4585, %v4597
  %v4601 = vmul.f32 %v4589, %v4597
  %v4602 = vmul.f32 %v4593, %v4597
  %v4603 = vadd.f32 %v4572, %v4599
  %v4604 = vadd.f32 %v4573, %v4600
  %v4605 = vadd.f32 %v4574, %v4601
  %v4606 = vadd.f32 %v4575, %v4602
  %s4607 = scalar_lea.vmem %s1, 464
  %v4608 = vld [vmem:[%s4607] sm:$0x7]
  %v4609 = vlaneseq
  %v4610 = vshrl.u32 %v4609, 7
  %v4611 = vsub.s32 2, %v4610
  %v4612 = vrot.slane %v4541, %v4611
  %v4613 = vlaneseq
  %v4614 = vshrl.u32 %v4613, 7
  %v4615 = vsub.s32 2, %v4614
  %v4616 = vrot.slane %v4542, %v4615
  %v4617 = vlaneseq
  %v4618 = vshrl.u32 %v4617, 7
  %v4619 = vsub.s32 2, %v4618
  %v4620 = vrot.slane %v4543, %v4619
  %v4621 = vlaneseq
  %v4622 = vshrl.u32 %v4621, 7
  %v4623 = vsub.s32 2, %v4622
  %v4624 = vrot.slane %v4544, %v4623
  %4626 = vset.pattern.permute.xlu0 0
  %4627 = vperm.xlu0 %4626, %v4608
  %v4628 = vpop.permute.xlu0 %4627
  %v4630 = vmul.f32 %v4612, %v4628
  %v4631 = vmul.f32 %v4616, %v4628
  %v4632 = vmul.f32 %v4620, %v4628
  %v4633 = vmul.f32 %v4624, %v4628
  %v4634 = vadd.f32 %v4603, %v4630
  %v4635 = vadd.f32 %v4604, %v4631
  %v4636 = vadd.f32 %v4605, %v4632
  %v4637 = vadd.f32 %v4606, %v4633
  %4638 = vrot.lane.b32.xlu0 %v4311, 1
  %v4639 = vpop.permute.xlu0 %4638
  %4640 = vrot.lane.b32.xlu0 %v4313, 1
  %v4641 = vpop.permute.xlu0 %4640
  %4642 = vrot.lane.b32.xlu0 %v4312, 1
  %v4643 = vpop.permute.xlu0 %4642
  %4644 = vrot.lane.b32.xlu0 %v4314, 1
  %v4645 = vpop.permute.xlu0 %4644
  %v4646 = vsel %vm390, %v4639, %v4643
  %v4647 = vsel %vm390, %v4641, %v4645
  %v4648 = vsel %vm390, %v4643, %v4639
  %v4649 = vsel %vm390, %v4645, %v4641
  %v4650 = vsel %vm397, %v4648, 0.0
  %v4651 = vsel %vm398, %v4646, 0.0
  %v4652 = vsel %vm397, %v4649, 0.0
  %v4653 = vsel %vm398, %v4647, 0.0
  %s4654 = scalar_lea.vmem %s1, 468
  %v4655 = vld [vmem:[%s4654] sm:$0x7]
  %v4656 = vlaneseq
  %v4657 = vshrl.u32 %v4656, 7
  %v4658 = vsub.s32 0, %v4657
  %v4659 = vrot.slane %v4650, %v4658
  %v4660 = vlaneseq
  %v4661 = vshrl.u32 %v4660, 7
  %v4662 = vsub.s32 0, %v4661
  %v4663 = vrot.slane %v4651, %v4662
  %v4664 = vlaneseq
  %v4665 = vshrl.u32 %v4664, 7
  %v4666 = vsub.s32 0, %v4665
  %v4667 = vrot.slane %v4652, %v4666
  %v4668 = vlaneseq
  %v4669 = vshrl.u32 %v4668, 7
  %v4670 = vsub.s32 0, %v4669
  %v4671 = vrot.slane %v4653, %v4670
  %4673 = vset.pattern.permute.xlu0 0
  %4674 = vperm.xlu0 %4673, %v4655
  %v4675 = vpop.permute.xlu0 %4674
  %v4677 = vmul.f32 %v4659, %v4675
  %v4678 = vmul.f32 %v4663, %v4675
  %v4679 = vmul.f32 %v4667, %v4675
  %v4680 = vmul.f32 %v4671, %v4675
  %v4681 = vadd.f32 %v4634, %v4677
  %v4682 = vadd.f32 %v4635, %v4678
  %v4683 = vadd.f32 %v4636, %v4679
  %v4684 = vadd.f32 %v4637, %v4680
  %s4685 = scalar_lea.vmem %s1, 472
  %v4686 = vld [vmem:[%s4685] sm:$0x7]
  %v4687 = vlaneseq
  %v4688 = vshrl.u32 %v4687, 7
  %v4689 = vsub.s32 1, %v4688
  %v4690 = vrot.slane %v4650, %v4689
  %v4691 = vlaneseq
  %v4692 = vshrl.u32 %v4691, 7
  %v4693 = vsub.s32 1, %v4692
  %v4694 = vrot.slane %v4651, %v4693
  %v4695 = vlaneseq
  %v4696 = vshrl.u32 %v4695, 7
  %v4697 = vsub.s32 1, %v4696
  %v4698 = vrot.slane %v4652, %v4697
  %v4699 = vlaneseq
  %v4700 = vshrl.u32 %v4699, 7
  %v4701 = vsub.s32 1, %v4700
  %v4702 = vrot.slane %v4653, %v4701
  %4704 = vset.pattern.permute.xlu0 0
  %4705 = vperm.xlu0 %4704, %v4686
  %v4706 = vpop.permute.xlu0 %4705
  %v4708 = vmul.f32 %v4690, %v4706
  %v4709 = vmul.f32 %v4694, %v4706
  %v4710 = vmul.f32 %v4698, %v4706
  %v4711 = vmul.f32 %v4702, %v4706
  %v4712 = vadd.f32 %v4681, %v4708
  %v4713 = vadd.f32 %v4682, %v4709
  %v4714 = vadd.f32 %v4683, %v4710
  %v4715 = vadd.f32 %v4684, %v4711
  %s4716 = scalar_lea.vmem %s1, 476
  %v4717 = vld [vmem:[%s4716] sm:$0x7]
  %v4718 = vlaneseq
  %v4719 = vshrl.u32 %v4718, 7
  %v4720 = vsub.s32 2, %v4719
  %v4721 = vrot.slane %v4650, %v4720
  %v4722 = vlaneseq
  %v4723 = vshrl.u32 %v4722, 7
  %v4724 = vsub.s32 2, %v4723
  %v4725 = vrot.slane %v4651, %v4724
  %v4726 = vlaneseq
  %v4727 = vshrl.u32 %v4726, 7
  %v4728 = vsub.s32 2, %v4727
  %v4729 = vrot.slane %v4652, %v4728
  %v4730 = vlaneseq
  %v4731 = vshrl.u32 %v4730, 7
  %v4732 = vsub.s32 2, %v4731
  %v4733 = vrot.slane %v4653, %v4732
  %4735 = vset.pattern.permute.xlu0 0
  %4736 = vperm.xlu0 %4735, %v4717
  %v4737 = vpop.permute.xlu0 %4736
  %v4739 = vmul.f32 %v4721, %v4737
  %v4740 = vmul.f32 %v4725, %v4737
  %v4741 = vmul.f32 %v4729, %v4737
  %v4742 = vmul.f32 %v4733, %v4737
  %v4743 = vadd.f32 %v4712, %v4739
  %v4744 = vadd.f32 %v4713, %v4740
  %v4745 = vadd.f32 %v4714, %v4741
  %v4746 = vadd.f32 %v4715, %v4742
  %s4747 = scalar_lea.vmem %s1, 480
  %v4748 = vld [vmem:[%s4747] sm:$0x7]
  %v4749 = vlaneseq
  %v4750 = vshrl.u32 %v4749, 7
  %v4751 = vsub.s32 0, %v4750
  %v4752 = vrot.slane %v4311, %v4751
  %v4753 = vlaneseq
  %v4754 = vshrl.u32 %v4753, 7
  %v4755 = vsub.s32 0, %v4754
  %v4756 = vrot.slane %v4312, %v4755
  %v4757 = vlaneseq
  %v4758 = vshrl.u32 %v4757, 7
  %v4759 = vsub.s32 0, %v4758
  %v4760 = vrot.slane %v4313, %v4759
  %v4761 = vlaneseq
  %v4762 = vshrl.u32 %v4761, 7
  %v4763 = vsub.s32 0, %v4762
  %v4764 = vrot.slane %v4314, %v4763
  %4766 = vset.pattern.permute.xlu0 0
  %4767 = vperm.xlu0 %4766, %v4748
  %v4768 = vpop.permute.xlu0 %4767
  %v4770 = vmul.f32 %v4752, %v4768
  %v4771 = vmul.f32 %v4756, %v4768
  %v4772 = vmul.f32 %v4760, %v4768
  %v4773 = vmul.f32 %v4764, %v4768
  %v4774 = vadd.f32 %v4743, %v4770
  %v4775 = vadd.f32 %v4744, %v4771
  %v4776 = vadd.f32 %v4745, %v4772
  %v4777 = vadd.f32 %v4746, %v4773
  %s4778 = scalar_lea.vmem %s1, 484
  %v4779 = vld [vmem:[%s4778] sm:$0x7]
  %v4780 = vlaneseq
  %v4781 = vshrl.u32 %v4780, 7
  %v4782 = vsub.s32 1, %v4781
  %v4783 = vrot.slane %v4311, %v4782
  %v4784 = vlaneseq
  %v4785 = vshrl.u32 %v4784, 7
  %v4786 = vsub.s32 1, %v4785
  %v4787 = vrot.slane %v4312, %v4786
  %v4788 = vlaneseq
  %v4789 = vshrl.u32 %v4788, 7
  %v4790 = vsub.s32 1, %v4789
  %v4791 = vrot.slane %v4313, %v4790
  %v4792 = vlaneseq
  %v4793 = vshrl.u32 %v4792, 7
  %v4794 = vsub.s32 1, %v4793
  %v4795 = vrot.slane %v4314, %v4794
  %4797 = vset.pattern.permute.xlu0 0
  %4798 = vperm.xlu0 %4797, %v4779
  %v4799 = vpop.permute.xlu0 %4798
  %v4801 = vmul.f32 %v4783, %v4799
  %v4802 = vmul.f32 %v4787, %v4799
  %v4803 = vmul.f32 %v4791, %v4799
  %v4804 = vmul.f32 %v4795, %v4799
  %v4805 = vadd.f32 %v4774, %v4801
  %v4806 = vadd.f32 %v4775, %v4802
  %v4807 = vadd.f32 %v4776, %v4803
  %v4808 = vadd.f32 %v4777, %v4804
  %s4809 = scalar_lea.vmem %s1, 488
  %v4810 = vld [vmem:[%s4809] sm:$0x7]
  %v4811 = vlaneseq
  %v4812 = vshrl.u32 %v4811, 7
  %v4813 = vsub.s32 2, %v4812
  %v4814 = vrot.slane %v4311, %v4813
  %v4815 = vlaneseq
  %v4816 = vshrl.u32 %v4815, 7
  %v4817 = vsub.s32 2, %v4816
  %v4818 = vrot.slane %v4312, %v4817
  %v4819 = vlaneseq
  %v4820 = vshrl.u32 %v4819, 7
  %v4821 = vsub.s32 2, %v4820
  %v4822 = vrot.slane %v4313, %v4821
  %v4823 = vlaneseq
  %v4824 = vshrl.u32 %v4823, 7
  %v4825 = vsub.s32 2, %v4824
  %v4826 = vrot.slane %v4314, %v4825
  %4828 = vset.pattern.permute.xlu0 0
  %4829 = vperm.xlu0 %4828, %v4810
  %v4830 = vpop.permute.xlu0 %4829
  %v4832 = vmul.f32 %v4814, %v4830
  %v4833 = vmul.f32 %v4818, %v4830
  %v4834 = vmul.f32 %v4822, %v4830
  %v4835 = vmul.f32 %v4826, %v4830
  %v4836 = vadd.f32 %v4805, %v4832
  %v4837 = vadd.f32 %v4806, %v4833
  %v4838 = vadd.f32 %v4807, %v4834
  %v4839 = vadd.f32 %v4808, %v4835
  %4840 = vrot.lane.b32.xlu0 %v4311, 127
  %v4841 = vpop.permute.xlu0 %4840
  %4842 = vrot.lane.b32.xlu0 %v4313, 127
  %v4843 = vpop.permute.xlu0 %4842
  %4844 = vrot.lane.b32.xlu0 %v4312, 127
  %v4845 = vpop.permute.xlu0 %4844
  %4846 = vrot.lane.b32.xlu0 %v4314, 127
  %v4847 = vpop.permute.xlu0 %4846
  %v4848 = vsel %vm657, %v4841, %v4845
  %v4849 = vsel %vm657, %v4843, %v4847
  %v4850 = vsel %vm657, %v4845, %v4841
  %v4851 = vsel %vm657, %v4847, %v4843
  %v4852 = vsel %vm664, %v4848, 0.0
  %v4853 = vsel %vm665, %v4850, 0.0
  %v4854 = vsel %vm664, %v4849, 0.0
  %v4855 = vsel %vm665, %v4851, 0.0
  %s4856 = scalar_lea.vmem %s1, 492
  %v4857 = vld [vmem:[%s4856] sm:$0x7]
  %v4858 = vlaneseq
  %v4859 = vshrl.u32 %v4858, 7
  %v4860 = vsub.s32 0, %v4859
  %v4861 = vrot.slane %v4852, %v4860
  %v4862 = vlaneseq
  %v4863 = vshrl.u32 %v4862, 7
  %v4864 = vsub.s32 0, %v4863
  %v4865 = vrot.slane %v4853, %v4864
  %v4866 = vlaneseq
  %v4867 = vshrl.u32 %v4866, 7
  %v4868 = vsub.s32 0, %v4867
  %v4869 = vrot.slane %v4854, %v4868
  %v4870 = vlaneseq
  %v4871 = vshrl.u32 %v4870, 7
  %v4872 = vsub.s32 0, %v4871
  %v4873 = vrot.slane %v4855, %v4872
  %4875 = vset.pattern.permute.xlu0 0
  %4876 = vperm.xlu0 %4875, %v4857
  %v4877 = vpop.permute.xlu0 %4876
  %v4879 = vmul.f32 %v4861, %v4877
  %v4880 = vmul.f32 %v4865, %v4877
  %v4881 = vmul.f32 %v4869, %v4877
  %v4882 = vmul.f32 %v4873, %v4877
  %v4883 = vadd.f32 %v4836, %v4879
  %v4884 = vadd.f32 %v4837, %v4880
  %v4885 = vadd.f32 %v4838, %v4881
  %v4886 = vadd.f32 %v4839, %v4882
  %s4887 = scalar_lea.vmem %s1, 496
  %v4888 = vld [vmem:[%s4887] sm:$0x7]
  %v4889 = vlaneseq
  %v4890 = vshrl.u32 %v4889, 7
  %v4891 = vsub.s32 1, %v4890
  %v4892 = vrot.slane %v4852, %v4891
  %v4893 = vlaneseq
  %v4894 = vshrl.u32 %v4893, 7
  %v4895 = vsub.s32 1, %v4894
  %v4896 = vrot.slane %v4853, %v4895
  %v4897 = vlaneseq
  %v4898 = vshrl.u32 %v4897, 7
  %v4899 = vsub.s32 1, %v4898
  %v4900 = vrot.slane %v4854, %v4899
  %v4901 = vlaneseq
  %v4902 = vshrl.u32 %v4901, 7
  %v4903 = vsub.s32 1, %v4902
  %v4904 = vrot.slane %v4855, %v4903
  %4906 = vset.pattern.permute.xlu0 0
  %4907 = vperm.xlu0 %4906, %v4888
  %v4908 = vpop.permute.xlu0 %4907
  %v4910 = vmul.f32 %v4892, %v4908
  %v4911 = vmul.f32 %v4896, %v4908
  %v4912 = vmul.f32 %v4900, %v4908
  %v4913 = vmul.f32 %v4904, %v4908
  %v4914 = vadd.f32 %v4883, %v4910
  %v4915 = vadd.f32 %v4884, %v4911
  %v4916 = vadd.f32 %v4885, %v4912
  %v4917 = vadd.f32 %v4886, %v4913
  %s4918 = scalar_lea.vmem %s1, 500
  %v4919 = vld [vmem:[%s4918] sm:$0x7]
  %v4920 = vlaneseq
  %v4921 = vshrl.u32 %v4920, 7
  %v4922 = vsub.s32 2, %v4921
  %v4923 = vrot.slane %v4852, %v4922
  %v4924 = vlaneseq
  %v4925 = vshrl.u32 %v4924, 7
  %v4926 = vsub.s32 2, %v4925
  %v4927 = vrot.slane %v4853, %v4926
  %v4928 = vlaneseq
  %v4929 = vshrl.u32 %v4928, 7
  %v4930 = vsub.s32 2, %v4929
  %v4931 = vrot.slane %v4854, %v4930
  %v4932 = vlaneseq
  %v4933 = vshrl.u32 %v4932, 7
  %v4934 = vsub.s32 2, %v4933
  %v4935 = vrot.slane %v4855, %v4934
  %4937 = vset.pattern.permute.xlu0 0
  %4938 = vperm.xlu0 %4937, %v4919
  %v4939 = vpop.permute.xlu0 %4938
  %v4941 = vmul.f32 %v4923, %v4939
  %v4942 = vmul.f32 %v4927, %v4939
  %v4943 = vmul.f32 %v4931, %v4939
  %v4944 = vmul.f32 %v4935, %v4939
  %v4945 = vadd.f32 %v4914, %v4941
  %v4946 = vadd.f32 %v4915, %v4942
  %v4947 = vadd.f32 %v4916, %v4943
  %v4948 = vadd.f32 %v4917, %v4944
  %4949 = vrot.lane.b32.xlu0 %v4311, 113
  %v4950 = vpop.permute.xlu0 %4949
  %4951 = vrot.lane.b32.xlu0 %v4313, 113
  %v4952 = vpop.permute.xlu0 %4951
  %4953 = vrot.lane.b32.xlu0 %v4312, 113
  %v4954 = vpop.permute.xlu0 %4953
  %4955 = vrot.lane.b32.xlu0 %v4314, 113
  %v4956 = vpop.permute.xlu0 %4955
  %v4957 = vsel %vm771, %v4950, %v4954
  %v4958 = vsel %vm771, %v4952, %v4956
  %v4959 = vsel %vm771, %v4954, %v4950
  %v4960 = vsel %vm771, %v4956, %v4952
  %v4961 = vsel %vm780, %v4957, 0.0
  %v4962 = vsel %vm781, %v4959, 0.0
  %v4963 = vsel %vm780, %v4958, 0.0
  %v4964 = vsel %vm781, %v4960, 0.0
  %s4965 = scalar_lea.vmem %s1, 504
  %v4966 = vld [vmem:[%s4965] sm:$0x7]
  %v4967 = vlaneseq
  %v4968 = vshrl.u32 %v4967, 7
  %v4969 = vsub.s32 0, %v4968
  %v4970 = vrot.slane %v4961, %v4969
  %v4971 = vlaneseq
  %v4972 = vshrl.u32 %v4971, 7
  %v4973 = vsub.s32 0, %v4972
  %v4974 = vrot.slane %v4962, %v4973
  %v4975 = vlaneseq
  %v4976 = vshrl.u32 %v4975, 7
  %v4977 = vsub.s32 0, %v4976
  %v4978 = vrot.slane %v4963, %v4977
  %v4979 = vlaneseq
  %v4980 = vshrl.u32 %v4979, 7
  %v4981 = vsub.s32 0, %v4980
  %v4982 = vrot.slane %v4964, %v4981
  %4984 = vset.pattern.permute.xlu0 0
  %4985 = vperm.xlu0 %4984, %v4966
  %v4986 = vpop.permute.xlu0 %4985
  %v4988 = vmul.f32 %v4970, %v4986
  %v4989 = vmul.f32 %v4974, %v4986
  %v4990 = vmul.f32 %v4978, %v4986
  %v4991 = vmul.f32 %v4982, %v4986
  %v4992 = vadd.f32 %v4945, %v4988
  %v4993 = vadd.f32 %v4946, %v4989
  %v4994 = vadd.f32 %v4947, %v4990
  %v4995 = vadd.f32 %v4948, %v4991
  %s4996 = scalar_lea.vmem %s1, 508
  %v4997 = vld [vmem:[%s4996] sm:$0x7]
  %v4998 = vlaneseq
  %v4999 = vshrl.u32 %v4998, 7
  %v5000 = vsub.s32 1, %v4999
  %v5001 = vrot.slane %v4961, %v5000
  %v5002 = vlaneseq
  %v5003 = vshrl.u32 %v5002, 7
  %v5004 = vsub.s32 1, %v5003
  %v5005 = vrot.slane %v4962, %v5004
  %v5006 = vlaneseq
  %v5007 = vshrl.u32 %v5006, 7
  %v5008 = vsub.s32 1, %v5007
  %v5009 = vrot.slane %v4963, %v5008
  %v5010 = vlaneseq
  %v5011 = vshrl.u32 %v5010, 7
  %v5012 = vsub.s32 1, %v5011
  %v5013 = vrot.slane %v4964, %v5012
  %5015 = vset.pattern.permute.xlu0 0
  %5016 = vperm.xlu0 %5015, %v4997
  %v5017 = vpop.permute.xlu0 %5016
  %v5019 = vmul.f32 %v5001, %v5017
  %v5020 = vmul.f32 %v5005, %v5017
  %v5021 = vmul.f32 %v5009, %v5017
  %v5022 = vmul.f32 %v5013, %v5017
  %v5023 = vadd.f32 %v4992, %v5019
  %v5024 = vadd.f32 %v4993, %v5020
  %v5025 = vadd.f32 %v4994, %v5021
  %v5026 = vadd.f32 %v4995, %v5022
  %s5027 = scalar_lea.vmem %s1, 512
  %v5028 = vld [vmem:[%s5027] sm:$0x7]
  %v5029 = vlaneseq
  %v5030 = vshrl.u32 %v5029, 7
  %v5031 = vsub.s32 2, %v5030
  %v5032 = vrot.slane %v4961, %v5031
  %v5033 = vlaneseq
  %v5034 = vshrl.u32 %v5033, 7
  %v5035 = vsub.s32 2, %v5034
  %v5036 = vrot.slane %v4962, %v5035
  %v5037 = vlaneseq
  %v5038 = vshrl.u32 %v5037, 7
  %v5039 = vsub.s32 2, %v5038
  %v5040 = vrot.slane %v4963, %v5039
  %v5041 = vlaneseq
  %v5042 = vshrl.u32 %v5041, 7
  %v5043 = vsub.s32 2, %v5042
  %v5044 = vrot.slane %v4964, %v5043
  %5046 = vset.pattern.permute.xlu0 0
  %5047 = vperm.xlu0 %5046, %v5028
  %v5048 = vpop.permute.xlu0 %5047
  %v5050 = vmul.f32 %v5032, %v5048
  %v5051 = vmul.f32 %v5036, %v5048
  %v5052 = vmul.f32 %v5040, %v5048
  %v5053 = vmul.f32 %v5044, %v5048
  %v5054 = vadd.f32 %v5023, %v5050
  %v5055 = vadd.f32 %v5024, %v5051
  %v5056 = vadd.f32 %v5025, %v5052
  %v5057 = vadd.f32 %v5026, %v5053
  %5058 = vrot.lane.b32.xlu0 %v4311, 112
  %v5059 = vpop.permute.xlu0 %5058
  %5060 = vrot.lane.b32.xlu0 %v4313, 112
  %v5061 = vpop.permute.xlu0 %5060
  %5062 = vrot.lane.b32.xlu0 %v4312, 112
  %v5063 = vpop.permute.xlu0 %5062
  %5064 = vrot.lane.b32.xlu0 %v4314, 112
  %v5065 = vpop.permute.xlu0 %5064
  %v5066 = vsel %vm887, %v5059, %v5063
  %v5067 = vsel %vm887, %v5061, %v5065
  %v5068 = vsel %vm887, %v5063, %v5059
  %v5069 = vsel %vm887, %v5065, %v5061
  %v5070 = vsel %vm894, %v5066, 0.0
  %v5071 = vsel %vm895, %v5068, 0.0
  %v5072 = vsel %vm894, %v5067, 0.0
  %v5073 = vsel %vm895, %v5069, 0.0
  %s5074 = scalar_lea.vmem %s1, 516
  %v5075 = vld [vmem:[%s5074] sm:$0x7]
  %v5076 = vlaneseq
  %v5077 = vshrl.u32 %v5076, 7
  %v5078 = vsub.s32 0, %v5077
  %v5079 = vrot.slane %v5070, %v5078
  %v5080 = vlaneseq
  %v5081 = vshrl.u32 %v5080, 7
  %v5082 = vsub.s32 0, %v5081
  %v5083 = vrot.slane %v5071, %v5082
  %v5084 = vlaneseq
  %v5085 = vshrl.u32 %v5084, 7
  %v5086 = vsub.s32 0, %v5085
  %v5087 = vrot.slane %v5072, %v5086
  %v5088 = vlaneseq
  %v5089 = vshrl.u32 %v5088, 7
  %v5090 = vsub.s32 0, %v5089
  %v5091 = vrot.slane %v5073, %v5090
  %5093 = vset.pattern.permute.xlu0 0
  %5094 = vperm.xlu0 %5093, %v5075
  %v5095 = vpop.permute.xlu0 %5094
  %v5097 = vmul.f32 %v5079, %v5095
  %v5098 = vmul.f32 %v5083, %v5095
  %v5099 = vmul.f32 %v5087, %v5095
  %v5100 = vmul.f32 %v5091, %v5095
  %v5101 = vadd.f32 %v5054, %v5097
  %v5102 = vadd.f32 %v5055, %v5098
  %v5103 = vadd.f32 %v5056, %v5099
  %v5104 = vadd.f32 %v5057, %v5100
  %s5105 = scalar_lea.vmem %s1, 520
  %v5106 = vld [vmem:[%s5105] sm:$0x7]
  %v5107 = vlaneseq
  %v5108 = vshrl.u32 %v5107, 7
  %v5109 = vsub.s32 1, %v5108
  %v5110 = vrot.slane %v5070, %v5109
  %v5111 = vlaneseq
  %v5112 = vshrl.u32 %v5111, 7
  %v5113 = vsub.s32 1, %v5112
  %v5114 = vrot.slane %v5071, %v5113
  %v5115 = vlaneseq
  %v5116 = vshrl.u32 %v5115, 7
  %v5117 = vsub.s32 1, %v5116
  %v5118 = vrot.slane %v5072, %v5117
  %v5119 = vlaneseq
  %v5120 = vshrl.u32 %v5119, 7
  %v5121 = vsub.s32 1, %v5120
  %v5122 = vrot.slane %v5073, %v5121
  %5124 = vset.pattern.permute.xlu0 0
  %5125 = vperm.xlu0 %5124, %v5106
  %v5126 = vpop.permute.xlu0 %5125
  %v5128 = vmul.f32 %v5110, %v5126
  %v5129 = vmul.f32 %v5114, %v5126
  %v5130 = vmul.f32 %v5118, %v5126
  %v5131 = vmul.f32 %v5122, %v5126
  %v5132 = vadd.f32 %v5101, %v5128
  %v5133 = vadd.f32 %v5102, %v5129
  %v5134 = vadd.f32 %v5103, %v5130
  %v5135 = vadd.f32 %v5104, %v5131
  %s5136 = scalar_lea.vmem %s1, 524
  %v5137 = vld [vmem:[%s5136] sm:$0x7]
  %v5138 = vlaneseq
  %v5139 = vshrl.u32 %v5138, 7
  %v5140 = vsub.s32 2, %v5139
  %v5141 = vrot.slane %v5070, %v5140
  %v5142 = vlaneseq
  %v5143 = vshrl.u32 %v5142, 7
  %v5144 = vsub.s32 2, %v5143
  %v5145 = vrot.slane %v5071, %v5144
  %v5146 = vlaneseq
  %v5147 = vshrl.u32 %v5146, 7
  %v5148 = vsub.s32 2, %v5147
  %v5149 = vrot.slane %v5072, %v5148
  %v5150 = vlaneseq
  %v5151 = vshrl.u32 %v5150, 7
  %v5152 = vsub.s32 2, %v5151
  %v5153 = vrot.slane %v5073, %v5152
  %5155 = vset.pattern.permute.xlu0 0
  %5156 = vperm.xlu0 %5155, %v5137
  %v5157 = vpop.permute.xlu0 %5156
  %v5159 = vmul.f32 %v5141, %v5157
  %v5160 = vmul.f32 %v5145, %v5157
  %v5161 = vmul.f32 %v5149, %v5157
  %v5162 = vmul.f32 %v5153, %v5157
  %v5163 = vadd.f32 %v5132, %v5159
  %v5164 = vadd.f32 %v5133, %v5160
  %v5165 = vadd.f32 %v5134, %v5161
  %v5166 = vadd.f32 %v5135, %v5162
  %5167 = vrot.lane.b32.xlu0 %v4311, 111
  %v5168 = vpop.permute.xlu0 %5167
  %5169 = vrot.lane.b32.xlu0 %v4313, 111
  %v5170 = vpop.permute.xlu0 %5169
  %5171 = vrot.lane.b32.xlu0 %v4312, 111
  %v5172 = vpop.permute.xlu0 %5171
  %5173 = vrot.lane.b32.xlu0 %v4314, 111
  %v5174 = vpop.permute.xlu0 %5173
  %v5175 = vsel %vm1001, %v5168, %v5172
  %v5176 = vsel %vm1001, %v5170, %v5174
  %v5177 = vsel %vm1001, %v5172, %v5168
  %v5178 = vsel %vm1001, %v5174, %v5170
  %v5179 = vsel %vm1010, %v5175, 0.0
  %v5180 = vsel %vm1011, %v5177, 0.0
  %v5181 = vsel %vm1010, %v5176, 0.0
  %v5182 = vsel %vm1011, %v5178, 0.0
  %s5183 = scalar_lea.vmem %s1, 528
  %v5184 = vld [vmem:[%s5183] sm:$0x7]
  %v5185 = vlaneseq
  %v5186 = vshrl.u32 %v5185, 7
  %v5187 = vsub.s32 0, %v5186
  %v5188 = vrot.slane %v5179, %v5187
  %v5189 = vlaneseq
  %v5190 = vshrl.u32 %v5189, 7
  %v5191 = vsub.s32 0, %v5190
  %v5192 = vrot.slane %v5180, %v5191
  %v5193 = vlaneseq
  %v5194 = vshrl.u32 %v5193, 7
  %v5195 = vsub.s32 0, %v5194
  %v5196 = vrot.slane %v5181, %v5195
  %v5197 = vlaneseq
  %v5198 = vshrl.u32 %v5197, 7
  %v5199 = vsub.s32 0, %v5198
  %v5200 = vrot.slane %v5182, %v5199
  %5202 = vset.pattern.permute.xlu0 0
  %5203 = vperm.xlu0 %5202, %v5184
  %v5204 = vpop.permute.xlu0 %5203
  %v5206 = vmul.f32 %v5188, %v5204
  %v5207 = vmul.f32 %v5192, %v5204
  %v5208 = vmul.f32 %v5196, %v5204
  %v5209 = vmul.f32 %v5200, %v5204
  %v5210 = vadd.f32 %v5163, %v5206
  %v5211 = vadd.f32 %v5164, %v5207
  %v5212 = vadd.f32 %v5165, %v5208
  %v5213 = vadd.f32 %v5166, %v5209
  %s5214 = scalar_lea.vmem %s1, 532
  %v5215 = vld [vmem:[%s5214] sm:$0x7]
  %v5216 = vlaneseq
  %v5217 = vshrl.u32 %v5216, 7
  %v5218 = vsub.s32 1, %v5217
  %v5219 = vrot.slane %v5179, %v5218
  %v5220 = vlaneseq
  %v5221 = vshrl.u32 %v5220, 7
  %v5222 = vsub.s32 1, %v5221
  %v5223 = vrot.slane %v5180, %v5222
  %v5224 = vlaneseq
  %v5225 = vshrl.u32 %v5224, 7
  %v5226 = vsub.s32 1, %v5225
  %v5227 = vrot.slane %v5181, %v5226
  %v5228 = vlaneseq
  %v5229 = vshrl.u32 %v5228, 7
  %v5230 = vsub.s32 1, %v5229
  %v5231 = vrot.slane %v5182, %v5230
  %5233 = vset.pattern.permute.xlu0 0
  %5234 = vperm.xlu0 %5233, %v5215
  %v5235 = vpop.permute.xlu0 %5234
  %v5237 = vmul.f32 %v5219, %v5235
  %v5238 = vmul.f32 %v5223, %v5235
  %v5239 = vmul.f32 %v5227, %v5235
  %v5240 = vmul.f32 %v5231, %v5235
  %v5241 = vadd.f32 %v5210, %v5237
  %v5242 = vadd.f32 %v5211, %v5238
  %v5243 = vadd.f32 %v5212, %v5239
  %v5244 = vadd.f32 %v5213, %v5240
  %s5245 = scalar_lea.vmem %s1, 536
  %v5246 = vld [vmem:[%s5245] sm:$0x7]
  %v5247 = vlaneseq
  %v5248 = vshrl.u32 %v5247, 7
  %v5249 = vsub.s32 2, %v5248
  %v5250 = vrot.slane %v5179, %v5249
  %v5251 = vlaneseq
  %v5252 = vshrl.u32 %v5251, 7
  %v5253 = vsub.s32 2, %v5252
  %v5254 = vrot.slane %v5180, %v5253
  %v5255 = vlaneseq
  %v5256 = vshrl.u32 %v5255, 7
  %v5257 = vsub.s32 2, %v5256
  %v5258 = vrot.slane %v5181, %v5257
  %v5259 = vlaneseq
  %v5260 = vshrl.u32 %v5259, 7
  %v5261 = vsub.s32 2, %v5260
  %v5262 = vrot.slane %v5182, %v5261
  %5264 = vset.pattern.permute.xlu0 0
  %5265 = vperm.xlu0 %5264, %v5246
  %v5266 = vpop.permute.xlu0 %5265
  %v5268 = vmul.f32 %v5250, %v5266
  %v5269 = vmul.f32 %v5254, %v5266
  %v5270 = vmul.f32 %v5258, %v5266
  %v5271 = vmul.f32 %v5262, %v5266
  %v5272 = vadd.f32 %v5241, %v5268
  %v5273 = vadd.f32 %v5242, %v5269
  %v5274 = vadd.f32 %v5243, %v5270
  %v5275 = vadd.f32 %v5244, %v5271
  %s5276 = scalar_lea.vmem %s2, 16
  %v5277 = vld [vmem:[%s5276] sm:$0x7]
  %5279 = vset.pattern.permute.xlu0 0
  %5280 = vperm.xlu0 %5279, %v5277
  %v5281 = vpop.permute.xlu0 %5280
  %v5283 = vadd.f32 %v5272, %v5281
  %v5284 = vadd.f32 %v5273, %v5281
  %v5285 = vadd.f32 %v5274, %v5281
  %v5286 = vadd.f32 %v5275, %v5281
  %v5287 = vmul.f32 %v5283, %v5283
  %v5288 = vmul.f32 %v5284, %v5284
  %v5289 = vmul.f32 %v5285, %v5285
  %v5290 = vmul.f32 %v5286, %v5286
  %v5295 = vrot.slane %v5287, 5
  %v5296 = vrot.slane %v5288, 5
  %v5297 = vrot.slane %v5289, 5
  %v5298 = vrot.slane %v5290, 5
  %v5303 = vsel %vm1135, %v5283, %v5295
  %v5304 = vsel %vm1135, %v5284, %v5296
  %v5305 = vsel %vm1135, %v5285, %v5297
  %v5306 = vsel %vm1135, %v5286, %v5298
  %v5307 = vsel %vm1140, %v5303, 0.0
  %v5308 = vsel %vm1140, %v5304, 0.0
  %v5309 = vadd.f32 %v5307, %v5308
  %5310 = vadd.xlane.f32.xlu0 %v5309
  %v5311 = vpop.xlane.xlu0 %5310
  %v5312 = vsel %vm1140, %v5305, 0.0
  %v5313 = vsel %vm1140, %v5306, 0.0
  %v5314 = vadd.f32 %v5312, %v5313
  %5315 = vadd.xlane.f32.xlu0 %v5314
  %v5316 = vpop.xlane.xlu0 %5315
  %v5317 = vsel %vm1140, %v5311, 0.0
  %v5318 = vsel %vm1140, %v5316, 0.0
  %v5319 = vadd.f32 %v5317, %v5318
  %v5320 = vmul.f32 %v5319, 0.001953125
  %v5321 = vmul.f32 %v5320, %v5320
  %v5323 = vrot.slane %v5321, 5
  %v5325 = vsub.f32 %v5320, %v5323
  %v5326 = vmax.f32 %v5325, 0.0
  %s5327 = scalar_lea.vmem %s3, 16
  %v5328 = vld [vmem:[%s5327] sm:$0x7]
  %v5329 = vadd.f32 %v5326, 1e-05
  %v5330 = vrsqrt.pop %v5329
  %v5332 = vrot.slane %v5330, 3
  %v5334 = vmul.f32 %v5328, %v5332
  %s5335 = scalar_lea.vmem %s4, 16
  %v5336 = vld [vmem:[%s5335] sm:$0x7]
  %v5337 = vmul.f32 %v5320, %v5334
  %v5338 = vsub.f32 %v5336, %v5337
  %5340 = vset.pattern.permute.xlu0 0
  %5341 = vperm.xlu0 %5340, %v5334
  %v5342 = vpop.permute.xlu0 %5341
  %v5344 = vmul.f32 %v5283, %v5342
  %v5345 = vmul.f32 %v5284, %v5342
  %v5346 = vmul.f32 %v5285, %v5342
  %v5347 = vmul.f32 %v5286, %v5342
  %5349 = vset.pattern.permute.xlu0 0
  %5350 = vperm.xlu0 %5349, %v5338
  %v5351 = vpop.permute.xlu0 %5350
  %v5353 = vadd.f32 %v5344, %v5351
  %v5354 = vadd.f32 %v5345, %v5351
  %v5355 = vadd.f32 %v5346, %v5351
  %v5356 = vadd.f32 %v5347, %v5351
  %5357 = vrot.lane.b32.xlu0 %v5353, 17
  %v5358 = vpop.permute.xlu0 %5357
  %5359 = vrot.lane.b32.xlu0 %v5355, 17
  %v5360 = vpop.permute.xlu0 %5359
  %5361 = vrot.lane.b32.xlu0 %v5354, 17
  %v5362 = vpop.permute.xlu0 %5361
  %5363 = vrot.lane.b32.xlu0 %v5356, 17
  %v5364 = vpop.permute.xlu0 %5363
  %v5365 = vsel %vm49, %v5358, %v5362
  %v5366 = vsel %vm49, %v5360, %v5364
  %v5367 = vsel %vm49, %v5362, %v5358
  %v5368 = vsel %vm49, %v5364, %v5360
  %v5369 = vsel %vm58, %v5367, 0.0
  %v5370 = vsel %vm59, %v5365, 0.0
  %v5371 = vsel %vm58, %v5368, 0.0
  %v5372 = vsel %vm59, %v5366, 0.0
  %s5373 = scalar_lea.vmem %s1, 540
  %v5374 = vld [vmem:[%s5373] sm:$0x7]
  %v5375 = vlaneseq
  %v5376 = vshrl.u32 %v5375, 7
  %v5377 = vsub.s32 0, %v5376
  %v5378 = vrot.slane %v5369, %v5377
  %v5379 = vlaneseq
  %v5380 = vshrl.u32 %v5379, 7
  %v5381 = vsub.s32 0, %v5380
  %v5382 = vrot.slane %v5370, %v5381
  %v5383 = vlaneseq
  %v5384 = vshrl.u32 %v5383, 7
  %v5385 = vsub.s32 0, %v5384
  %v5386 = vrot.slane %v5371, %v5385
  %v5387 = vlaneseq
  %v5388 = vshrl.u32 %v5387, 7
  %v5389 = vsub.s32 0, %v5388
  %v5390 = vrot.slane %v5372, %v5389
  %5392 = vset.pattern.permute.xlu0 0
  %5393 = vperm.xlu0 %5392, %v5374
  %v5394 = vpop.permute.xlu0 %5393
  %v5396 = vmul.f32 %v5378, %v5394
  %v5397 = vmul.f32 %v5382, %v5394
  %v5398 = vmul.f32 %v5386, %v5394
  %v5399 = vmul.f32 %v5390, %v5394
  %s5400 = scalar_lea.vmem %s1, 544
  %v5401 = vld [vmem:[%s5400] sm:$0x7]
  %v5402 = vlaneseq
  %v5403 = vshrl.u32 %v5402, 7
  %v5404 = vsub.s32 1, %v5403
  %v5405 = vrot.slane %v5369, %v5404
  %v5406 = vlaneseq
  %v5407 = vshrl.u32 %v5406, 7
  %v5408 = vsub.s32 1, %v5407
  %v5409 = vrot.slane %v5370, %v5408
  %v5410 = vlaneseq
  %v5411 = vshrl.u32 %v5410, 7
  %v5412 = vsub.s32 1, %v5411
  %v5413 = vrot.slane %v5371, %v5412
  %v5414 = vlaneseq
  %v5415 = vshrl.u32 %v5414, 7
  %v5416 = vsub.s32 1, %v5415
  %v5417 = vrot.slane %v5372, %v5416
  %5419 = vset.pattern.permute.xlu0 0
  %5420 = vperm.xlu0 %5419, %v5401
  %v5421 = vpop.permute.xlu0 %5420
  %v5423 = vmul.f32 %v5405, %v5421
  %v5424 = vmul.f32 %v5409, %v5421
  %v5425 = vmul.f32 %v5413, %v5421
  %v5426 = vmul.f32 %v5417, %v5421
  %v5427 = vadd.f32 %v5396, %v5423
  %v5428 = vadd.f32 %v5397, %v5424
  %v5429 = vadd.f32 %v5398, %v5425
  %v5430 = vadd.f32 %v5399, %v5426
  %s5431 = scalar_lea.vmem %s1, 548
  %v5432 = vld [vmem:[%s5431] sm:$0x7]
  %v5433 = vlaneseq
  %v5434 = vshrl.u32 %v5433, 7
  %v5435 = vsub.s32 2, %v5434
  %v5436 = vrot.slane %v5369, %v5435
  %v5437 = vlaneseq
  %v5438 = vshrl.u32 %v5437, 7
  %v5439 = vsub.s32 2, %v5438
  %v5440 = vrot.slane %v5370, %v5439
  %v5441 = vlaneseq
  %v5442 = vshrl.u32 %v5441, 7
  %v5443 = vsub.s32 2, %v5442
  %v5444 = vrot.slane %v5371, %v5443
  %v5445 = vlaneseq
  %v5446 = vshrl.u32 %v5445, 7
  %v5447 = vsub.s32 2, %v5446
  %v5448 = vrot.slane %v5372, %v5447
  %5450 = vset.pattern.permute.xlu0 0
  %5451 = vperm.xlu0 %5450, %v5432
  %v5452 = vpop.permute.xlu0 %5451
  %v5454 = vmul.f32 %v5436, %v5452
  %v5455 = vmul.f32 %v5440, %v5452
  %v5456 = vmul.f32 %v5444, %v5452
  %v5457 = vmul.f32 %v5448, %v5452
  %v5458 = vadd.f32 %v5427, %v5454
  %v5459 = vadd.f32 %v5428, %v5455
  %v5460 = vadd.f32 %v5429, %v5456
  %v5461 = vadd.f32 %v5430, %v5457
  %5462 = vrot.lane.b32.xlu0 %v5353, 16
  %v5463 = vpop.permute.xlu0 %5462
  %5464 = vrot.lane.b32.xlu0 %v5355, 16
  %v5465 = vpop.permute.xlu0 %5464
  %5466 = vrot.lane.b32.xlu0 %v5354, 16
  %v5467 = vpop.permute.xlu0 %5466
  %5468 = vrot.lane.b32.xlu0 %v5356, 16
  %v5469 = vpop.permute.xlu0 %5468
  %v5470 = vsel %vm160, %v5463, %v5467
  %v5471 = vsel %vm160, %v5465, %v5469
  %v5472 = vsel %vm160, %v5467, %v5463
  %v5473 = vsel %vm160, %v5469, %v5465
  %v5474 = vsel %vm167, %v5472, 0.0
  %v5475 = vsel %vm168, %v5470, 0.0
  %v5476 = vsel %vm167, %v5473, 0.0
  %v5477 = vsel %vm168, %v5471, 0.0
  %s5478 = scalar_lea.vmem %s1, 552
  %v5479 = vld [vmem:[%s5478] sm:$0x7]
  %v5480 = vlaneseq
  %v5481 = vshrl.u32 %v5480, 7
  %v5482 = vsub.s32 0, %v5481
  %v5483 = vrot.slane %v5474, %v5482
  %v5484 = vlaneseq
  %v5485 = vshrl.u32 %v5484, 7
  %v5486 = vsub.s32 0, %v5485
  %v5487 = vrot.slane %v5475, %v5486
  %v5488 = vlaneseq
  %v5489 = vshrl.u32 %v5488, 7
  %v5490 = vsub.s32 0, %v5489
  %v5491 = vrot.slane %v5476, %v5490
  %v5492 = vlaneseq
  %v5493 = vshrl.u32 %v5492, 7
  %v5494 = vsub.s32 0, %v5493
  %v5495 = vrot.slane %v5477, %v5494
  %5497 = vset.pattern.permute.xlu0 0
  %5498 = vperm.xlu0 %5497, %v5479
  %v5499 = vpop.permute.xlu0 %5498
  %v5501 = vmul.f32 %v5483, %v5499
  %v5502 = vmul.f32 %v5487, %v5499
  %v5503 = vmul.f32 %v5491, %v5499
  %v5504 = vmul.f32 %v5495, %v5499
  %v5505 = vadd.f32 %v5458, %v5501
  %v5506 = vadd.f32 %v5459, %v5502
  %v5507 = vadd.f32 %v5460, %v5503
  %v5508 = vadd.f32 %v5461, %v5504
  %s5509 = scalar_lea.vmem %s1, 556
  %v5510 = vld [vmem:[%s5509] sm:$0x7]
  %v5511 = vlaneseq
  %v5512 = vshrl.u32 %v5511, 7
  %v5513 = vsub.s32 1, %v5512
  %v5514 = vrot.slane %v5474, %v5513
  %v5515 = vlaneseq
  %v5516 = vshrl.u32 %v5515, 7
  %v5517 = vsub.s32 1, %v5516
  %v5518 = vrot.slane %v5475, %v5517
  %v5519 = vlaneseq
  %v5520 = vshrl.u32 %v5519, 7
  %v5521 = vsub.s32 1, %v5520
  %v5522 = vrot.slane %v5476, %v5521
  %v5523 = vlaneseq
  %v5524 = vshrl.u32 %v5523, 7
  %v5525 = vsub.s32 1, %v5524
  %v5526 = vrot.slane %v5477, %v5525
  %5528 = vset.pattern.permute.xlu0 0
  %5529 = vperm.xlu0 %5528, %v5510
  %v5530 = vpop.permute.xlu0 %5529
  %v5532 = vmul.f32 %v5514, %v5530
  %v5533 = vmul.f32 %v5518, %v5530
  %v5534 = vmul.f32 %v5522, %v5530
  %v5535 = vmul.f32 %v5526, %v5530
  %v5536 = vadd.f32 %v5505, %v5532
  %v5537 = vadd.f32 %v5506, %v5533
  %v5538 = vadd.f32 %v5507, %v5534
  %v5539 = vadd.f32 %v5508, %v5535
  %s5540 = scalar_lea.vmem %s1, 560
  %v5541 = vld [vmem:[%s5540] sm:$0x7]
  %v5542 = vlaneseq
  %v5543 = vshrl.u32 %v5542, 7
  %v5544 = vsub.s32 2, %v5543
  %v5545 = vrot.slane %v5474, %v5544
  %v5546 = vlaneseq
  %v5547 = vshrl.u32 %v5546, 7
  %v5548 = vsub.s32 2, %v5547
  %v5549 = vrot.slane %v5475, %v5548
  %v5550 = vlaneseq
  %v5551 = vshrl.u32 %v5550, 7
  %v5552 = vsub.s32 2, %v5551
  %v5553 = vrot.slane %v5476, %v5552
  %v5554 = vlaneseq
  %v5555 = vshrl.u32 %v5554, 7
  %v5556 = vsub.s32 2, %v5555
  %v5557 = vrot.slane %v5477, %v5556
  %5559 = vset.pattern.permute.xlu0 0
  %5560 = vperm.xlu0 %5559, %v5541
  %v5561 = vpop.permute.xlu0 %5560
  %v5563 = vmul.f32 %v5545, %v5561
  %v5564 = vmul.f32 %v5549, %v5561
  %v5565 = vmul.f32 %v5553, %v5561
  %v5566 = vmul.f32 %v5557, %v5561
  %v5567 = vadd.f32 %v5536, %v5563
  %v5568 = vadd.f32 %v5537, %v5564
  %v5569 = vadd.f32 %v5538, %v5565
  %v5570 = vadd.f32 %v5539, %v5566
  %5571 = vrot.lane.b32.xlu0 %v5353, 15
  %v5572 = vpop.permute.xlu0 %5571
  %5573 = vrot.lane.b32.xlu0 %v5355, 15
  %v5574 = vpop.permute.xlu0 %5573
  %5575 = vrot.lane.b32.xlu0 %v5354, 15
  %v5576 = vpop.permute.xlu0 %5575
  %5577 = vrot.lane.b32.xlu0 %v5356, 15
  %v5578 = vpop.permute.xlu0 %5577
  %v5579 = vsel %vm274, %v5572, %v5576
  %v5580 = vsel %vm274, %v5574, %v5578
  %v5581 = vsel %vm274, %v5576, %v5572
  %v5582 = vsel %vm274, %v5578, %v5574
  %v5583 = vsel %vm283, %v5581, 0.0
  %v5584 = vsel %vm284, %v5579, 0.0
  %v5585 = vsel %vm283, %v5582, 0.0
  %v5586 = vsel %vm284, %v5580, 0.0
  %s5587 = scalar_lea.vmem %s1, 564
  %v5588 = vld [vmem:[%s5587] sm:$0x7]
  %v5589 = vlaneseq
  %v5590 = vshrl.u32 %v5589, 7
  %v5591 = vsub.s32 0, %v5590
  %v5592 = vrot.slane %v5583, %v5591
  %v5593 = vlaneseq
  %v5594 = vshrl.u32 %v5593, 7
  %v5595 = vsub.s32 0, %v5594
  %v5596 = vrot.slane %v5584, %v5595
  %v5597 = vlaneseq
  %v5598 = vshrl.u32 %v5597, 7
  %v5599 = vsub.s32 0, %v5598
  %v5600 = vrot.slane %v5585, %v5599
  %v5601 = vlaneseq
  %v5602 = vshrl.u32 %v5601, 7
  %v5603 = vsub.s32 0, %v5602
  %v5604 = vrot.slane %v5586, %v5603
  %5606 = vset.pattern.permute.xlu0 0
  %5607 = vperm.xlu0 %5606, %v5588
  %v5608 = vpop.permute.xlu0 %5607
  %v5610 = vmul.f32 %v5592, %v5608
  %v5611 = vmul.f32 %v5596, %v5608
  %v5612 = vmul.f32 %v5600, %v5608
  %v5613 = vmul.f32 %v5604, %v5608
  %v5614 = vadd.f32 %v5567, %v5610
  %v5615 = vadd.f32 %v5568, %v5611
  %v5616 = vadd.f32 %v5569, %v5612
  %v5617 = vadd.f32 %v5570, %v5613
  %s5618 = scalar_lea.vmem %s1, 568
  %v5619 = vld [vmem:[%s5618] sm:$0x7]
  %v5620 = vlaneseq
  %v5621 = vshrl.u32 %v5620, 7
  %v5622 = vsub.s32 1, %v5621
  %v5623 = vrot.slane %v5583, %v5622
  %v5624 = vlaneseq
  %v5625 = vshrl.u32 %v5624, 7
  %v5626 = vsub.s32 1, %v5625
  %v5627 = vrot.slane %v5584, %v5626
  %v5628 = vlaneseq
  %v5629 = vshrl.u32 %v5628, 7
  %v5630 = vsub.s32 1, %v5629
  %v5631 = vrot.slane %v5585, %v5630
  %v5632 = vlaneseq
  %v5633 = vshrl.u32 %v5632, 7
  %v5634 = vsub.s32 1, %v5633
  %v5635 = vrot.slane %v5586, %v5634
  %5637 = vset.pattern.permute.xlu0 0
  %5638 = vperm.xlu0 %5637, %v5619
  %v5639 = vpop.permute.xlu0 %5638
  %v5641 = vmul.f32 %v5623, %v5639
  %v5642 = vmul.f32 %v5627, %v5639
  %v5643 = vmul.f32 %v5631, %v5639
  %v5644 = vmul.f32 %v5635, %v5639
  %v5645 = vadd.f32 %v5614, %v5641
  %v5646 = vadd.f32 %v5615, %v5642
  %v5647 = vadd.f32 %v5616, %v5643
  %v5648 = vadd.f32 %v5617, %v5644
  %s5649 = scalar_lea.vmem %s1, 572
  %v5650 = vld [vmem:[%s5649] sm:$0x7]
  %v5651 = vlaneseq
  %v5652 = vshrl.u32 %v5651, 7
  %v5653 = vsub.s32 2, %v5652
  %v5654 = vrot.slane %v5583, %v5653
  %v5655 = vlaneseq
  %v5656 = vshrl.u32 %v5655, 7
  %v5657 = vsub.s32 2, %v5656
  %v5658 = vrot.slane %v5584, %v5657
  %v5659 = vlaneseq
  %v5660 = vshrl.u32 %v5659, 7
  %v5661 = vsub.s32 2, %v5660
  %v5662 = vrot.slane %v5585, %v5661
  %v5663 = vlaneseq
  %v5664 = vshrl.u32 %v5663, 7
  %v5665 = vsub.s32 2, %v5664
  %v5666 = vrot.slane %v5586, %v5665
  %5668 = vset.pattern.permute.xlu0 0
  %5669 = vperm.xlu0 %5668, %v5650
  %v5670 = vpop.permute.xlu0 %5669
  %v5672 = vmul.f32 %v5654, %v5670
  %v5673 = vmul.f32 %v5658, %v5670
  %v5674 = vmul.f32 %v5662, %v5670
  %v5675 = vmul.f32 %v5666, %v5670
  %v5676 = vadd.f32 %v5645, %v5672
  %v5677 = vadd.f32 %v5646, %v5673
  %v5678 = vadd.f32 %v5647, %v5674
  %v5679 = vadd.f32 %v5648, %v5675
  %5680 = vrot.lane.b32.xlu0 %v5353, 1
  %v5681 = vpop.permute.xlu0 %5680
  %5682 = vrot.lane.b32.xlu0 %v5355, 1
  %v5683 = vpop.permute.xlu0 %5682
  %5684 = vrot.lane.b32.xlu0 %v5354, 1
  %v5685 = vpop.permute.xlu0 %5684
  %5686 = vrot.lane.b32.xlu0 %v5356, 1
  %v5687 = vpop.permute.xlu0 %5686
  %v5688 = vsel %vm390, %v5681, %v5685
  %v5689 = vsel %vm390, %v5683, %v5687
  %v5690 = vsel %vm390, %v5685, %v5681
  %v5691 = vsel %vm390, %v5687, %v5683
  %v5692 = vsel %vm397, %v5690, 0.0
  %v5693 = vsel %vm398, %v5688, 0.0
  %v5694 = vsel %vm397, %v5691, 0.0
  %v5695 = vsel %vm398, %v5689, 0.0
  %s5696 = scalar_lea.vmem %s1, 576
  %v5697 = vld [vmem:[%s5696] sm:$0x7]
  %v5698 = vlaneseq
  %v5699 = vshrl.u32 %v5698, 7
  %v5700 = vsub.s32 0, %v5699
  %v5701 = vrot.slane %v5692, %v5700
  %v5702 = vlaneseq
  %v5703 = vshrl.u32 %v5702, 7
  %v5704 = vsub.s32 0, %v5703
  %v5705 = vrot.slane %v5693, %v5704
  %v5706 = vlaneseq
  %v5707 = vshrl.u32 %v5706, 7
  %v5708 = vsub.s32 0, %v5707
  %v5709 = vrot.slane %v5694, %v5708
  %v5710 = vlaneseq
  %v5711 = vshrl.u32 %v5710, 7
  %v5712 = vsub.s32 0, %v5711
  %v5713 = vrot.slane %v5695, %v5712
  %5715 = vset.pattern.permute.xlu0 0
  %5716 = vperm.xlu0 %5715, %v5697
  %v5717 = vpop.permute.xlu0 %5716
  %v5719 = vmul.f32 %v5701, %v5717
  %v5720 = vmul.f32 %v5705, %v5717
  %v5721 = vmul.f32 %v5709, %v5717
  %v5722 = vmul.f32 %v5713, %v5717
  %v5723 = vadd.f32 %v5676, %v5719
  %v5724 = vadd.f32 %v5677, %v5720
  %v5725 = vadd.f32 %v5678, %v5721
  %v5726 = vadd.f32 %v5679, %v5722
  %s5727 = scalar_lea.vmem %s1, 580
  %v5728 = vld [vmem:[%s5727] sm:$0x7]
  %v5729 = vlaneseq
  %v5730 = vshrl.u32 %v5729, 7
  %v5731 = vsub.s32 1, %v5730
  %v5732 = vrot.slane %v5692, %v5731
  %v5733 = vlaneseq
  %v5734 = vshrl.u32 %v5733, 7
  %v5735 = vsub.s32 1, %v5734
  %v5736 = vrot.slane %v5693, %v5735
  %v5737 = vlaneseq
  %v5738 = vshrl.u32 %v5737, 7
  %v5739 = vsub.s32 1, %v5738
  %v5740 = vrot.slane %v5694, %v5739
  %v5741 = vlaneseq
  %v5742 = vshrl.u32 %v5741, 7
  %v5743 = vsub.s32 1, %v5742
  %v5744 = vrot.slane %v5695, %v5743
  %5746 = vset.pattern.permute.xlu0 0
  %5747 = vperm.xlu0 %5746, %v5728
  %v5748 = vpop.permute.xlu0 %5747
  %v5750 = vmul.f32 %v5732, %v5748
  %v5751 = vmul.f32 %v5736, %v5748
  %v5752 = vmul.f32 %v5740, %v5748
  %v5753 = vmul.f32 %v5744, %v5748
  %v5754 = vadd.f32 %v5723, %v5750
  %v5755 = vadd.f32 %v5724, %v5751
  %v5756 = vadd.f32 %v5725, %v5752
  %v5757 = vadd.f32 %v5726, %v5753
  %s5758 = scalar_lea.vmem %s1, 584
  %v5759 = vld [vmem:[%s5758] sm:$0x7]
  %v5760 = vlaneseq
  %v5761 = vshrl.u32 %v5760, 7
  %v5762 = vsub.s32 2, %v5761
  %v5763 = vrot.slane %v5692, %v5762
  %v5764 = vlaneseq
  %v5765 = vshrl.u32 %v5764, 7
  %v5766 = vsub.s32 2, %v5765
  %v5767 = vrot.slane %v5693, %v5766
  %v5768 = vlaneseq
  %v5769 = vshrl.u32 %v5768, 7
  %v5770 = vsub.s32 2, %v5769
  %v5771 = vrot.slane %v5694, %v5770
  %v5772 = vlaneseq
  %v5773 = vshrl.u32 %v5772, 7
  %v5774 = vsub.s32 2, %v5773
  %v5775 = vrot.slane %v5695, %v5774
  %5777 = vset.pattern.permute.xlu0 0
  %5778 = vperm.xlu0 %5777, %v5759
  %v5779 = vpop.permute.xlu0 %5778
  %v5781 = vmul.f32 %v5763, %v5779
  %v5782 = vmul.f32 %v5767, %v5779
  %v5783 = vmul.f32 %v5771, %v5779
  %v5784 = vmul.f32 %v5775, %v5779
  %v5785 = vadd.f32 %v5754, %v5781
  %v5786 = vadd.f32 %v5755, %v5782
  %v5787 = vadd.f32 %v5756, %v5783
  %v5788 = vadd.f32 %v5757, %v5784
  %s5789 = scalar_lea.vmem %s1, 588
  %v5790 = vld [vmem:[%s5789] sm:$0x7]
  %v5791 = vlaneseq
  %v5792 = vshrl.u32 %v5791, 7
  %v5793 = vsub.s32 0, %v5792
  %v5794 = vrot.slane %v5353, %v5793
  %v5795 = vlaneseq
  %v5796 = vshrl.u32 %v5795, 7
  %v5797 = vsub.s32 0, %v5796
  %v5798 = vrot.slane %v5354, %v5797
  %v5799 = vlaneseq
  %v5800 = vshrl.u32 %v5799, 7
  %v5801 = vsub.s32 0, %v5800
  %v5802 = vrot.slane %v5355, %v5801
  %v5803 = vlaneseq
  %v5804 = vshrl.u32 %v5803, 7
  %v5805 = vsub.s32 0, %v5804
  %v5806 = vrot.slane %v5356, %v5805
  %5808 = vset.pattern.permute.xlu0 0
  %5809 = vperm.xlu0 %5808, %v5790
  %v5810 = vpop.permute.xlu0 %5809
  %v5812 = vmul.f32 %v5794, %v5810
  %v5813 = vmul.f32 %v5798, %v5810
  %v5814 = vmul.f32 %v5802, %v5810
  %v5815 = vmul.f32 %v5806, %v5810
  %v5816 = vadd.f32 %v5785, %v5812
  %v5817 = vadd.f32 %v5786, %v5813
  %v5818 = vadd.f32 %v5787, %v5814
  %v5819 = vadd.f32 %v5788, %v5815
  %s5820 = scalar_lea.vmem %s1, 592
  %v5821 = vld [vmem:[%s5820] sm:$0x7]
  %v5822 = vlaneseq
  %v5823 = vshrl.u32 %v5822, 7
  %v5824 = vsub.s32 1, %v5823
  %v5825 = vrot.slane %v5353, %v5824
  %v5826 = vlaneseq
  %v5827 = vshrl.u32 %v5826, 7
  %v5828 = vsub.s32 1, %v5827
  %v5829 = vrot.slane %v5354, %v5828
  %v5830 = vlaneseq
  %v5831 = vshrl.u32 %v5830, 7
  %v5832 = vsub.s32 1, %v5831
  %v5833 = vrot.slane %v5355, %v5832
  %v5834 = vlaneseq
  %v5835 = vshrl.u32 %v5834, 7
  %v5836 = vsub.s32 1, %v5835
  %v5837 = vrot.slane %v5356, %v5836
  %5839 = vset.pattern.permute.xlu0 0
  %5840 = vperm.xlu0 %5839, %v5821
  %v5841 = vpop.permute.xlu0 %5840
  %v5843 = vmul.f32 %v5825, %v5841
  %v5844 = vmul.f32 %v5829, %v5841
  %v5845 = vmul.f32 %v5833, %v5841
  %v5846 = vmul.f32 %v5837, %v5841
  %v5847 = vadd.f32 %v5816, %v5843
  %v5848 = vadd.f32 %v5817, %v5844
  %v5849 = vadd.f32 %v5818, %v5845
  %v5850 = vadd.f32 %v5819, %v5846
  %s5851 = scalar_lea.vmem %s1, 596
  %v5852 = vld [vmem:[%s5851] sm:$0x7]
  %v5853 = vlaneseq
  %v5854 = vshrl.u32 %v5853, 7
  %v5855 = vsub.s32 2, %v5854
  %v5856 = vrot.slane %v5353, %v5855
  %v5857 = vlaneseq
  %v5858 = vshrl.u32 %v5857, 7
  %v5859 = vsub.s32 2, %v5858
  %v5860 = vrot.slane %v5354, %v5859
  %v5861 = vlaneseq
  %v5862 = vshrl.u32 %v5861, 7
  %v5863 = vsub.s32 2, %v5862
  %v5864 = vrot.slane %v5355, %v5863
  %v5865 = vlaneseq
  %v5866 = vshrl.u32 %v5865, 7
  %v5867 = vsub.s32 2, %v5866
  %v5868 = vrot.slane %v5356, %v5867
  %5870 = vset.pattern.permute.xlu0 0
  %5871 = vperm.xlu0 %5870, %v5852
  %v5872 = vpop.permute.xlu0 %5871
  %v5874 = vmul.f32 %v5856, %v5872
  %v5875 = vmul.f32 %v5860, %v5872
  %v5876 = vmul.f32 %v5864, %v5872
  %v5877 = vmul.f32 %v5868, %v5872
  %v5878 = vadd.f32 %v5847, %v5874
  %v5879 = vadd.f32 %v5848, %v5875
  %v5880 = vadd.f32 %v5849, %v5876
  %v5881 = vadd.f32 %v5850, %v5877
  %5882 = vrot.lane.b32.xlu0 %v5353, 127
  %v5883 = vpop.permute.xlu0 %5882
  %5884 = vrot.lane.b32.xlu0 %v5355, 127
  %v5885 = vpop.permute.xlu0 %5884
  %5886 = vrot.lane.b32.xlu0 %v5354, 127
  %v5887 = vpop.permute.xlu0 %5886
  %5888 = vrot.lane.b32.xlu0 %v5356, 127
  %v5889 = vpop.permute.xlu0 %5888
  %v5890 = vsel %vm657, %v5883, %v5887
  %v5891 = vsel %vm657, %v5885, %v5889
  %v5892 = vsel %vm657, %v5887, %v5883
  %v5893 = vsel %vm657, %v5889, %v5885
  %v5894 = vsel %vm664, %v5890, 0.0
  %v5895 = vsel %vm665, %v5892, 0.0
  %v5896 = vsel %vm664, %v5891, 0.0
  %v5897 = vsel %vm665, %v5893, 0.0
  %s5898 = scalar_lea.vmem %s1, 600
  %v5899 = vld [vmem:[%s5898] sm:$0x7]
  %v5900 = vlaneseq
  %v5901 = vshrl.u32 %v5900, 7
  %v5902 = vsub.s32 0, %v5901
  %v5903 = vrot.slane %v5894, %v5902
  %v5904 = vlaneseq
  %v5905 = vshrl.u32 %v5904, 7
  %v5906 = vsub.s32 0, %v5905
  %v5907 = vrot.slane %v5895, %v5906
  %v5908 = vlaneseq
  %v5909 = vshrl.u32 %v5908, 7
  %v5910 = vsub.s32 0, %v5909
  %v5911 = vrot.slane %v5896, %v5910
  %v5912 = vlaneseq
  %v5913 = vshrl.u32 %v5912, 7
  %v5914 = vsub.s32 0, %v5913
  %v5915 = vrot.slane %v5897, %v5914
  %5917 = vset.pattern.permute.xlu0 0
  %5918 = vperm.xlu0 %5917, %v5899
  %v5919 = vpop.permute.xlu0 %5918
  %v5921 = vmul.f32 %v5903, %v5919
  %v5922 = vmul.f32 %v5907, %v5919
  %v5923 = vmul.f32 %v5911, %v5919
  %v5924 = vmul.f32 %v5915, %v5919
  %v5925 = vadd.f32 %v5878, %v5921
  %v5926 = vadd.f32 %v5879, %v5922
  %v5927 = vadd.f32 %v5880, %v5923
  %v5928 = vadd.f32 %v5881, %v5924
  %s5929 = scalar_lea.vmem %s1, 604
  %v5930 = vld [vmem:[%s5929] sm:$0x7]
  %v5931 = vlaneseq
  %v5932 = vshrl.u32 %v5931, 7
  %v5933 = vsub.s32 1, %v5932
  %v5934 = vrot.slane %v5894, %v5933
  %v5935 = vlaneseq
  %v5936 = vshrl.u32 %v5935, 7
  %v5937 = vsub.s32 1, %v5936
  %v5938 = vrot.slane %v5895, %v5937
  %v5939 = vlaneseq
  %v5940 = vshrl.u32 %v5939, 7
  %v5941 = vsub.s32 1, %v5940
  %v5942 = vrot.slane %v5896, %v5941
  %v5943 = vlaneseq
  %v5944 = vshrl.u32 %v5943, 7
  %v5945 = vsub.s32 1, %v5944
  %v5946 = vrot.slane %v5897, %v5945
  %5948 = vset.pattern.permute.xlu0 0
  %5949 = vperm.xlu0 %5948, %v5930
  %v5950 = vpop.permute.xlu0 %5949
  %v5952 = vmul.f32 %v5934, %v5950
  %v5953 = vmul.f32 %v5938, %v5950
  %v5954 = vmul.f32 %v5942, %v5950
  %v5955 = vmul.f32 %v5946, %v5950
  %v5956 = vadd.f32 %v5925, %v5952
  %v5957 = vadd.f32 %v5926, %v5953
  %v5958 = vadd.f32 %v5927, %v5954
  %v5959 = vadd.f32 %v5928, %v5955
  %s5960 = scalar_lea.vmem %s1, 608
  %v5961 = vld [vmem:[%s5960] sm:$0x7]
  %v5962 = vlaneseq
  %v5963 = vshrl.u32 %v5962, 7
  %v5964 = vsub.s32 2, %v5963
  %v5965 = vrot.slane %v5894, %v5964
  %v5966 = vlaneseq
  %v5967 = vshrl.u32 %v5966, 7
  %v5968 = vsub.s32 2, %v5967
  %v5969 = vrot.slane %v5895, %v5968
  %v5970 = vlaneseq
  %v5971 = vshrl.u32 %v5970, 7
  %v5972 = vsub.s32 2, %v5971
  %v5973 = vrot.slane %v5896, %v5972
  %v5974 = vlaneseq
  %v5975 = vshrl.u32 %v5974, 7
  %v5976 = vsub.s32 2, %v5975
  %v5977 = vrot.slane %v5897, %v5976
  %5979 = vset.pattern.permute.xlu0 0
  %5980 = vperm.xlu0 %5979, %v5961
  %v5981 = vpop.permute.xlu0 %5980
  %v5983 = vmul.f32 %v5965, %v5981
  %v5984 = vmul.f32 %v5969, %v5981
  %v5985 = vmul.f32 %v5973, %v5981
  %v5986 = vmul.f32 %v5977, %v5981
  %v5987 = vadd.f32 %v5956, %v5983
  %v5988 = vadd.f32 %v5957, %v5984
  %v5989 = vadd.f32 %v5958, %v5985
  %v5990 = vadd.f32 %v5959, %v5986
  %5991 = vrot.lane.b32.xlu0 %v5353, 113
  %v5992 = vpop.permute.xlu0 %5991
  %5993 = vrot.lane.b32.xlu0 %v5355, 113
  %v5994 = vpop.permute.xlu0 %5993
  %5995 = vrot.lane.b32.xlu0 %v5354, 113
  %v5996 = vpop.permute.xlu0 %5995
  %5997 = vrot.lane.b32.xlu0 %v5356, 113
  %v5998 = vpop.permute.xlu0 %5997
  %v5999 = vsel %vm771, %v5992, %v5996
  %v6000 = vsel %vm771, %v5994, %v5998
  %v6001 = vsel %vm771, %v5996, %v5992
  %v6002 = vsel %vm771, %v5998, %v5994
  %v6003 = vsel %vm780, %v5999, 0.0
  %v6004 = vsel %vm781, %v6001, 0.0
  %v6005 = vsel %vm780, %v6000, 0.0
  %v6006 = vsel %vm781, %v6002, 0.0
  %s6007 = scalar_lea.vmem %s1, 612
  %v6008 = vld [vmem:[%s6007] sm:$0x7]
  %v6009 = vlaneseq
  %v6010 = vshrl.u32 %v6009, 7
  %v6011 = vsub.s32 0, %v6010
  %v6012 = vrot.slane %v6003, %v6011
  %v6013 = vlaneseq
  %v6014 = vshrl.u32 %v6013, 7
  %v6015 = vsub.s32 0, %v6014
  %v6016 = vrot.slane %v6004, %v6015
  %v6017 = vlaneseq
  %v6018 = vshrl.u32 %v6017, 7
  %v6019 = vsub.s32 0, %v6018
  %v6020 = vrot.slane %v6005, %v6019
  %v6021 = vlaneseq
  %v6022 = vshrl.u32 %v6021, 7
  %v6023 = vsub.s32 0, %v6022
  %v6024 = vrot.slane %v6006, %v6023
  %6026 = vset.pattern.permute.xlu0 0
  %6027 = vperm.xlu0 %6026, %v6008
  %v6028 = vpop.permute.xlu0 %6027
  %v6030 = vmul.f32 %v6012, %v6028
  %v6031 = vmul.f32 %v6016, %v6028
  %v6032 = vmul.f32 %v6020, %v6028
  %v6033 = vmul.f32 %v6024, %v6028
  %v6034 = vadd.f32 %v5987, %v6030
  %v6035 = vadd.f32 %v5988, %v6031
  %v6036 = vadd.f32 %v5989, %v6032
  %v6037 = vadd.f32 %v5990, %v6033
  %s6038 = scalar_lea.vmem %s1, 616
  %v6039 = vld [vmem:[%s6038] sm:$0x7]
  %v6040 = vlaneseq
  %v6041 = vshrl.u32 %v6040, 7
  %v6042 = vsub.s32 1, %v6041
  %v6043 = vrot.slane %v6003, %v6042
  %v6044 = vlaneseq
  %v6045 = vshrl.u32 %v6044, 7
  %v6046 = vsub.s32 1, %v6045
  %v6047 = vrot.slane %v6004, %v6046
  %v6048 = vlaneseq
  %v6049 = vshrl.u32 %v6048, 7
  %v6050 = vsub.s32 1, %v6049
  %v6051 = vrot.slane %v6005, %v6050
  %v6052 = vlaneseq
  %v6053 = vshrl.u32 %v6052, 7
  %v6054 = vsub.s32 1, %v6053
  %v6055 = vrot.slane %v6006, %v6054
  %6057 = vset.pattern.permute.xlu0 0
  %6058 = vperm.xlu0 %6057, %v6039
  %v6059 = vpop.permute.xlu0 %6058
  %v6061 = vmul.f32 %v6043, %v6059
  %v6062 = vmul.f32 %v6047, %v6059
  %v6063 = vmul.f32 %v6051, %v6059
  %v6064 = vmul.f32 %v6055, %v6059
  %v6065 = vadd.f32 %v6034, %v6061
  %v6066 = vadd.f32 %v6035, %v6062
  %v6067 = vadd.f32 %v6036, %v6063
  %v6068 = vadd.f32 %v6037, %v6064
  %s6069 = scalar_lea.vmem %s1, 620
  %v6070 = vld [vmem:[%s6069] sm:$0x7]
  %v6071 = vlaneseq
  %v6072 = vshrl.u32 %v6071, 7
  %v6073 = vsub.s32 2, %v6072
  %v6074 = vrot.slane %v6003, %v6073
  %v6075 = vlaneseq
  %v6076 = vshrl.u32 %v6075, 7
  %v6077 = vsub.s32 2, %v6076
  %v6078 = vrot.slane %v6004, %v6077
  %v6079 = vlaneseq
  %v6080 = vshrl.u32 %v6079, 7
  %v6081 = vsub.s32 2, %v6080
  %v6082 = vrot.slane %v6005, %v6081
  %v6083 = vlaneseq
  %v6084 = vshrl.u32 %v6083, 7
  %v6085 = vsub.s32 2, %v6084
  %v6086 = vrot.slane %v6006, %v6085
  %6088 = vset.pattern.permute.xlu0 0
  %6089 = vperm.xlu0 %6088, %v6070
  %v6090 = vpop.permute.xlu0 %6089
  %v6092 = vmul.f32 %v6074, %v6090
  %v6093 = vmul.f32 %v6078, %v6090
  %v6094 = vmul.f32 %v6082, %v6090
  %v6095 = vmul.f32 %v6086, %v6090
  %v6096 = vadd.f32 %v6065, %v6092
  %v6097 = vadd.f32 %v6066, %v6093
  %v6098 = vadd.f32 %v6067, %v6094
  %v6099 = vadd.f32 %v6068, %v6095
  %6100 = vrot.lane.b32.xlu0 %v5353, 112
  %v6101 = vpop.permute.xlu0 %6100
  %6102 = vrot.lane.b32.xlu0 %v5355, 112
  %v6103 = vpop.permute.xlu0 %6102
  %6104 = vrot.lane.b32.xlu0 %v5354, 112
  %v6105 = vpop.permute.xlu0 %6104
  %6106 = vrot.lane.b32.xlu0 %v5356, 112
  %v6107 = vpop.permute.xlu0 %6106
  %v6108 = vsel %vm887, %v6101, %v6105
  %v6109 = vsel %vm887, %v6103, %v6107
  %v6110 = vsel %vm887, %v6105, %v6101
  %v6111 = vsel %vm887, %v6107, %v6103
  %v6112 = vsel %vm894, %v6108, 0.0
  %v6113 = vsel %vm895, %v6110, 0.0
  %v6114 = vsel %vm894, %v6109, 0.0
  %v6115 = vsel %vm895, %v6111, 0.0
  %s6116 = scalar_lea.vmem %s1, 624
  %v6117 = vld [vmem:[%s6116] sm:$0x7]
  %v6118 = vlaneseq
  %v6119 = vshrl.u32 %v6118, 7
  %v6120 = vsub.s32 0, %v6119
  %v6121 = vrot.slane %v6112, %v6120
  %v6122 = vlaneseq
  %v6123 = vshrl.u32 %v6122, 7
  %v6124 = vsub.s32 0, %v6123
  %v6125 = vrot.slane %v6113, %v6124
  %v6126 = vlaneseq
  %v6127 = vshrl.u32 %v6126, 7
  %v6128 = vsub.s32 0, %v6127
  %v6129 = vrot.slane %v6114, %v6128
  %v6130 = vlaneseq
  %v6131 = vshrl.u32 %v6130, 7
  %v6132 = vsub.s32 0, %v6131
  %v6133 = vrot.slane %v6115, %v6132
  %6135 = vset.pattern.permute.xlu0 0
  %6136 = vperm.xlu0 %6135, %v6117
  %v6137 = vpop.permute.xlu0 %6136
  %v6139 = vmul.f32 %v6121, %v6137
  %v6140 = vmul.f32 %v6125, %v6137
  %v6141 = vmul.f32 %v6129, %v6137
  %v6142 = vmul.f32 %v6133, %v6137
  %v6143 = vadd.f32 %v6096, %v6139
  %v6144 = vadd.f32 %v6097, %v6140
  %v6145 = vadd.f32 %v6098, %v6141
  %v6146 = vadd.f32 %v6099, %v6142
  %s6147 = scalar_lea.vmem %s1, 628
  %v6148 = vld [vmem:[%s6147] sm:$0x7]
  %v6149 = vlaneseq
  %v6150 = vshrl.u32 %v6149, 7
  %v6151 = vsub.s32 1, %v6150
  %v6152 = vrot.slane %v6112, %v6151
  %v6153 = vlaneseq
  %v6154 = vshrl.u32 %v6153, 7
  %v6155 = vsub.s32 1, %v6154
  %v6156 = vrot.slane %v6113, %v6155
  %v6157 = vlaneseq
  %v6158 = vshrl.u32 %v6157, 7
  %v6159 = vsub.s32 1, %v6158
  %v6160 = vrot.slane %v6114, %v6159
  %v6161 = vlaneseq
  %v6162 = vshrl.u32 %v6161, 7
  %v6163 = vsub.s32 1, %v6162
  %v6164 = vrot.slane %v6115, %v6163
  %6166 = vset.pattern.permute.xlu0 0
  %6167 = vperm.xlu0 %6166, %v6148
  %v6168 = vpop.permute.xlu0 %6167
  %v6170 = vmul.f32 %v6152, %v6168
  %v6171 = vmul.f32 %v6156, %v6168
  %v6172 = vmul.f32 %v6160, %v6168
  %v6173 = vmul.f32 %v6164, %v6168
  %v6174 = vadd.f32 %v6143, %v6170
  %v6175 = vadd.f32 %v6144, %v6171
  %v6176 = vadd.f32 %v6145, %v6172
  %v6177 = vadd.f32 %v6146, %v6173
  %s6178 = scalar_lea.vmem %s1, 632
  %v6179 = vld [vmem:[%s6178] sm:$0x7]
  %v6180 = vlaneseq
  %v6181 = vshrl.u32 %v6180, 7
  %v6182 = vsub.s32 2, %v6181
  %v6183 = vrot.slane %v6112, %v6182
  %v6184 = vlaneseq
  %v6185 = vshrl.u32 %v6184, 7
  %v6186 = vsub.s32 2, %v6185
  %v6187 = vrot.slane %v6113, %v6186
  %v6188 = vlaneseq
  %v6189 = vshrl.u32 %v6188, 7
  %v6190 = vsub.s32 2, %v6189
  %v6191 = vrot.slane %v6114, %v6190
  %v6192 = vlaneseq
  %v6193 = vshrl.u32 %v6192, 7
  %v6194 = vsub.s32 2, %v6193
  %v6195 = vrot.slane %v6115, %v6194
  %6197 = vset.pattern.permute.xlu0 0
  %6198 = vperm.xlu0 %6197, %v6179
  %v6199 = vpop.permute.xlu0 %6198
  %v6201 = vmul.f32 %v6183, %v6199
  %v6202 = vmul.f32 %v6187, %v6199
  %v6203 = vmul.f32 %v6191, %v6199
  %v6204 = vmul.f32 %v6195, %v6199
  %v6205 = vadd.f32 %v6174, %v6201
  %v6206 = vadd.f32 %v6175, %v6202
  %v6207 = vadd.f32 %v6176, %v6203
  %v6208 = vadd.f32 %v6177, %v6204
  %6209 = vrot.lane.b32.xlu0 %v5353, 111
  %v6210 = vpop.permute.xlu0 %6209
  %6211 = vrot.lane.b32.xlu0 %v5355, 111
  %v6212 = vpop.permute.xlu0 %6211
  %6213 = vrot.lane.b32.xlu0 %v5354, 111
  %v6214 = vpop.permute.xlu0 %6213
  %6215 = vrot.lane.b32.xlu0 %v5356, 111
  %v6216 = vpop.permute.xlu0 %6215
  %v6217 = vsel %vm1001, %v6210, %v6214
  %v6218 = vsel %vm1001, %v6212, %v6216
  %v6219 = vsel %vm1001, %v6214, %v6210
  %v6220 = vsel %vm1001, %v6216, %v6212
  %v6221 = vsel %vm1010, %v6217, 0.0
  %v6222 = vsel %vm1011, %v6219, 0.0
  %v6223 = vsel %vm1010, %v6218, 0.0
  %v6224 = vsel %vm1011, %v6220, 0.0
  %s6225 = scalar_lea.vmem %s1, 636
  %v6226 = vld [vmem:[%s6225] sm:$0x7]
  %v6227 = vlaneseq
  %v6228 = vshrl.u32 %v6227, 7
  %v6229 = vsub.s32 0, %v6228
  %v6230 = vrot.slane %v6221, %v6229
  %v6231 = vlaneseq
  %v6232 = vshrl.u32 %v6231, 7
  %v6233 = vsub.s32 0, %v6232
  %v6234 = vrot.slane %v6222, %v6233
  %v6235 = vlaneseq
  %v6236 = vshrl.u32 %v6235, 7
  %v6237 = vsub.s32 0, %v6236
  %v6238 = vrot.slane %v6223, %v6237
  %v6239 = vlaneseq
  %v6240 = vshrl.u32 %v6239, 7
  %v6241 = vsub.s32 0, %v6240
  %v6242 = vrot.slane %v6224, %v6241
  %6244 = vset.pattern.permute.xlu0 0
  %6245 = vperm.xlu0 %6244, %v6226
  %v6246 = vpop.permute.xlu0 %6245
  %v6248 = vmul.f32 %v6230, %v6246
  %v6249 = vmul.f32 %v6234, %v6246
  %v6250 = vmul.f32 %v6238, %v6246
  %v6251 = vmul.f32 %v6242, %v6246
  %v6252 = vadd.f32 %v6205, %v6248
  %v6253 = vadd.f32 %v6206, %v6249
  %v6254 = vadd.f32 %v6207, %v6250
  %v6255 = vadd.f32 %v6208, %v6251
  %s6256 = scalar_lea.vmem %s1, 640
  %v6257 = vld [vmem:[%s6256] sm:$0x7]
  %v6258 = vlaneseq
  %v6259 = vshrl.u32 %v6258, 7
  %v6260 = vsub.s32 1, %v6259
  %v6261 = vrot.slane %v6221, %v6260
  %v6262 = vlaneseq
  %v6263 = vshrl.u32 %v6262, 7
  %v6264 = vsub.s32 1, %v6263
  %v6265 = vrot.slane %v6222, %v6264
  %v6266 = vlaneseq
  %v6267 = vshrl.u32 %v6266, 7
  %v6268 = vsub.s32 1, %v6267
  %v6269 = vrot.slane %v6223, %v6268
  %v6270 = vlaneseq
  %v6271 = vshrl.u32 %v6270, 7
  %v6272 = vsub.s32 1, %v6271
  %v6273 = vrot.slane %v6224, %v6272
  %6275 = vset.pattern.permute.xlu0 0
  %6276 = vperm.xlu0 %6275, %v6257
  %v6277 = vpop.permute.xlu0 %6276
  %v6279 = vmul.f32 %v6261, %v6277
  %v6280 = vmul.f32 %v6265, %v6277
  %v6281 = vmul.f32 %v6269, %v6277
  %v6282 = vmul.f32 %v6273, %v6277
  %v6283 = vadd.f32 %v6252, %v6279
  %v6284 = vadd.f32 %v6253, %v6280
  %v6285 = vadd.f32 %v6254, %v6281
  %v6286 = vadd.f32 %v6255, %v6282
  %s6287 = scalar_lea.vmem %s1, 644
  %v6288 = vld [vmem:[%s6287] sm:$0x7]
  %v6289 = vlaneseq
  %v6290 = vshrl.u32 %v6289, 7
  %v6291 = vsub.s32 2, %v6290
  %v6292 = vrot.slane %v6221, %v6291
  %v6293 = vlaneseq
  %v6294 = vshrl.u32 %v6293, 7
  %v6295 = vsub.s32 2, %v6294
  %v6296 = vrot.slane %v6222, %v6295
  %v6297 = vlaneseq
  %v6298 = vshrl.u32 %v6297, 7
  %v6299 = vsub.s32 2, %v6298
  %v6300 = vrot.slane %v6223, %v6299
  %v6301 = vlaneseq
  %v6302 = vshrl.u32 %v6301, 7
  %v6303 = vsub.s32 2, %v6302
  %v6304 = vrot.slane %v6224, %v6303
  %6306 = vset.pattern.permute.xlu0 0
  %6307 = vperm.xlu0 %6306, %v6288
  %v6308 = vpop.permute.xlu0 %6307
  %v6310 = vmul.f32 %v6292, %v6308
  %v6311 = vmul.f32 %v6296, %v6308
  %v6312 = vmul.f32 %v6300, %v6308
  %v6313 = vmul.f32 %v6304, %v6308
  %v6314 = vadd.f32 %v6283, %v6310
  %v6315 = vadd.f32 %v6284, %v6311
  %v6316 = vadd.f32 %v6285, %v6312
  %v6317 = vadd.f32 %v6286, %v6313
  %s6318 = scalar_lea.vmem %s2, 20
  %v6319 = vld [vmem:[%s6318] sm:$0x7]
  %6321 = vset.pattern.permute.xlu0 0
  %6322 = vperm.xlu0 %6321, %v6319
  %v6323 = vpop.permute.xlu0 %6322
  %v6325 = vadd.f32 %v6314, %v6323
  %v6326 = vadd.f32 %v6315, %v6323
  %v6327 = vadd.f32 %v6316, %v6323
  %v6328 = vadd.f32 %v6317, %v6323
  %v6329 = vmul.f32 %v6325, %v6325
  %v6330 = vmul.f32 %v6326, %v6326
  %v6331 = vmul.f32 %v6327, %v6327
  %v6332 = vmul.f32 %v6328, %v6328
  %v6337 = vrot.slane %v6329, 5
  %v6338 = vrot.slane %v6330, 5
  %v6339 = vrot.slane %v6331, 5
  %v6340 = vrot.slane %v6332, 5
  %v6345 = vsel %vm1135, %v6325, %v6337
  %v6346 = vsel %vm1135, %v6326, %v6338
  %v6347 = vsel %vm1135, %v6327, %v6339
  %v6348 = vsel %vm1135, %v6328, %v6340
  %v6349 = vsel %vm1140, %v6345, 0.0
  %v6350 = vsel %vm1140, %v6346, 0.0
  %v6351 = vadd.f32 %v6349, %v6350
  %6352 = vadd.xlane.f32.xlu0 %v6351
  %v6353 = vpop.xlane.xlu0 %6352
  %v6354 = vsel %vm1140, %v6347, 0.0
  %v6355 = vsel %vm1140, %v6348, 0.0
  %v6356 = vadd.f32 %v6354, %v6355
  %6357 = vadd.xlane.f32.xlu0 %v6356
  %v6358 = vpop.xlane.xlu0 %6357
  %v6359 = vsel %vm1140, %v6353, 0.0
  %v6360 = vsel %vm1140, %v6358, 0.0
  %v6361 = vadd.f32 %v6359, %v6360
  %v6362 = vmul.f32 %v6361, 0.001953125
  %v6363 = vmul.f32 %v6362, %v6362
  %v6365 = vrot.slane %v6363, 5
  %v6367 = vsub.f32 %v6362, %v6365
  %v6368 = vmax.f32 %v6367, 0.0
  %s6369 = scalar_lea.vmem %s3, 20
  %v6370 = vld [vmem:[%s6369] sm:$0x7]
  %v6371 = vadd.f32 %v6368, 1e-05
  %v6372 = vrsqrt.pop %v6371
  %v6374 = vrot.slane %v6372, 3
  %v6376 = vmul.f32 %v6370, %v6374
  %s6377 = scalar_lea.vmem %s4, 20
  %v6378 = vld [vmem:[%s6377] sm:$0x7]
  %v6379 = vmul.f32 %v6362, %v6376
  %v6380 = vsub.f32 %v6378, %v6379
  %6382 = vset.pattern.permute.xlu0 0
  %6383 = vperm.xlu0 %6382, %v6376
  %v6384 = vpop.permute.xlu0 %6383
  %v6386 = vmul.f32 %v6325, %v6384
  %v6387 = vmul.f32 %v6326, %v6384
  %v6388 = vmul.f32 %v6327, %v6384
  %v6389 = vmul.f32 %v6328, %v6384
  %6391 = vset.pattern.permute.xlu0 0
  %6392 = vperm.xlu0 %6391, %v6380
  %v6393 = vpop.permute.xlu0 %6392
  %v6395 = vadd.f32 %v6386, %v6393
  %v6396 = vadd.f32 %v6387, %v6393
  %v6397 = vadd.f32 %v6388, %v6393
  %v6398 = vadd.f32 %v6389, %v6393
  %v6399 = vadd.f32 %v6395, %v33
  %v6400 = vadd.f32 %v6396, %v37
  %v6401 = vadd.f32 %v6397, %v34
  %v6402 = vadd.f32 %v6398, %v38
  %v6407 = vcombine.low %v6399, %v6400
  %v6408 = vcombine.low %v6401, %v6402
  %6411 = vst [vmem:[%s5] sm:$0x77] %v6407
  %6412 = vst [vmem:[%s5 + $0x8] sm:$0x77] %v6408
  // Predicated region
  $region22: #{tpu_custom_call.1} parent=0 // pred_check
    _
  $region23: #{tpu_custom_call.1} parent=0 // pred_check_branch
    %6414 = sbr.rel (0) target = $region25
  $region24: #{tpu_custom_call.1} parent=0 // pred_region
    _
  $region25: #{tpu_custom_call.1} parent=0 // pred_fallthru
    _
  // Predicated region
  $region26: #{tpu_custom_call.1} parent=0 // pred_check
    _
  $region27: #{tpu_custom_call.1} parent=0 // pred_check_branch
    %6416 = sbr.rel (0) target = $region29
  $region28: #{tpu_custom_call.1} parent=0 // pred_region
    _
  $region29: #{tpu_custom_call.1} parent=0 // pred_fallthru
    _

</llo_original>
